<compile_context>
chip_gen: v5e
topology: v5e:2x2
jax: 0.10.0
libtpu: 0.0.40
codegen_flags: <defaults>
</compile_context>

<pallas_src>
import math

import jax
import jax.numpy as jnp
from jax.experimental import pallas as pl
from jax.experimental.pallas import tpu as pltpu

# ----------------------------- configuration --------------------------------
MAX_FRAMES = 8                              # max_frames
NOISE_EMB_DIM = 128                         # noise_level_emb_dim (abstract prop, chosen)
NOISE_DIM = max(NOISE_EMB_DIM // 4, 32)     # noise_level_dim -> 32
FRAME_EMB_DIM = 128                         # frame_idx_emd_dim (abstract prop, chosen)
EXT_NUM_CLASSES = 10                        # external_cond_num_classes
EXT_EMB_DIM = 128                           # external_cond_emb_dim (abstract prop, chosen)

TAB_ROWS = MAX_FRAMES + EXT_NUM_CLASSES     # 18 (frame rows then label rows)
TAB_ROWS_PAD = ((TAB_ROWS + 7) // 8) * 8    # 24 (pad to sublane multiple)
FC_DIM = FRAME_EMB_DIM + EXT_EMB_DIM        # 256 (lane-dense fused output)

TOKEN_TILE = 256                            # rows per grid step (fits 64 MiB v7x VMEM easily)


# ------------------------------- kernel --------------------------------------
def _backbone_emb_kernel(
    t_ref,        # (TN, 1)              f32   noise levels (diffusion timesteps)
    fidx_ref,     # (TN, 1)              i32   frame indices in [0, MAX_FRAMES)
    cidx_ref,     # (TN, 1)              i32   external labels in [0, EXT_NUM_CLASSES)
    freqs_ref,    # (1, NOISE_DIM)       f32   [freqs | freqs]
    phase_ref,    # (1, NOISE_DIM)       f32   [0 ... 0 | pi/2 ... pi/2]
    w1_ref,       # (NOISE_DIM, NOISE_EMB_DIM)
    b1_ref,       # (1, NOISE_EMB_DIM)
    w2_ref,       # (NOISE_EMB_DIM, NOISE_EMB_DIM)
    b2_ref,       # (1, NOISE_EMB_DIM)
    tab_ref,      # (TAB_ROWS_PAD, FC_DIM)  block-diagonal [frame_table ; cond_table]
    noise_out_ref,   # (TN, NOISE_EMB_DIM)
    fc_out_ref,      # (TN, FC_DIM)  = [frame_emb | cond_emb]
):
    tn = t_ref.shape[0]

    # ---- StochasticTimeEmbedding: phased sinusoid -> Linear -> SiLU -> Linear
    # sin(x) and sin(x + pi/2) = cos(x) in one transcendental pass, no concat.
    args = t_ref[...] * freqs_ref[...] + phase_ref[...]          # (TN, NOISE_DIM)
    sin_cos = jnp.sin(args)                                      # [sin | cos]
    h = jnp.dot(sin_cos, w1_ref[...], preferred_element_type=jnp.float32) + b1_ref[...]
    h = h * jax.nn.sigmoid(h)                                    # SiLU (f32, VPU/EUP)
    noise_out_ref[...] = (
        jnp.dot(h, w2_ref[...], preferred_element_type=jnp.float32) + b2_ref[...]
    )

    # ---- Fused LabelEmbedding lookups: one combined one-hot @ block-diag table
    # frame one-hot occupies columns [0, MAX_FRAMES), label one-hot is offset by
    # MAX_FRAMES; the padded table rows are zero and never selected.
    iota = jax.lax.broadcasted_iota(jnp.int32, (tn, TAB_ROWS_PAD), 1)
    onehot = (
        (iota == fidx_ref[...]).astype(jnp.float32)
        + (iota == (cidx_ref[...] + MAX_FRAMES)).astype(jnp.float32)
    )                                                            # (TN, TAB_ROWS_PAD)
    fc_out_ref[...] = jnp.dot(
        onehot, tab_ref[...], preferred_element_type=jnp.float32
    )


# ------------------------------- wrapper --------------------------------------
@jax.jit
def base_backbone_embeddings(noise_levels, frame_idx, ext_labels, params):
    """noise_levels: (B, T) float/int; frame_idx: (B, T) int; ext_labels: (B, T) int."""
    B, T = noise_levels.shape
    N = B * T
    n_pad = pl.cdiv(N, TOKEN_TILE) * TOKEN_TILE
    pad = n_pad - N

    t = noise_levels.reshape(N, 1).astype(jnp.float32)
    fidx = frame_idx.reshape(N, 1).astype(jnp.int32)
    cidx = ext_labels.reshape(N, 1).astype(jnp.int32)
    if pad:
        t = jnp.pad(t, ((0, pad), (0, 0)))
        fidx = jnp.pad(fidx, ((0, pad), (0, 0)))     # padded rows sliced off below
        cidx = jnp.pad(cidx, ((0, pad), (0, 0)))

    # phased-sin constants: [f | f] and [0 | pi/2]
    freqs = params["freqs"].reshape(1, NOISE_DIM // 2).astype(jnp.float32)
    freqs_full = jnp.concatenate([freqs, freqs], axis=-1)                      # (1, 32)
    phase = jnp.concatenate(
        [jnp.zeros_like(freqs), jnp.full_like(freqs, 0.5 * math.pi)], axis=-1)  # (1, 32)

    # block-diagonal fused embedding table (24, 256)
    tab = jnp.zeros((TAB_ROWS_PAD, FC_DIM), jnp.float32)
    tab = tab.at[:MAX_FRAMES, :FRAME_EMB_DIM].set(
        params["frame_table"].astype(jnp.float32))
    tab = tab.at[MAX_FRAMES:TAB_ROWS, FRAME_EMB_DIM:].set(
        params["cond_table"].astype(jnp.float32))

    w1 = params["w1"].astype(jnp.float32)
    b1 = params["b1"].reshape(1, NOISE_EMB_DIM).astype(jnp.float32)
    w2 = params["w2"].astype(jnp.float32)
    b2 = params["b2"].reshape(1, NOISE_EMB_DIM).astype(jnp.float32)

    operands = (t, fidx, cidx, freqs_full, phase, w1, b1, w2, b2, tab)

    def row_spec(dim):
        return pl.BlockSpec((TOKEN_TILE, dim), lambda i: (i, 0))

    def const_spec(shape):
        return pl.BlockSpec(shape, lambda i: (0, 0))

    in_specs = [
        row_spec(1),                 # t
        row_spec(1),                 # fidx
        row_spec(1),                 # cidx
        const_spec(freqs_full.shape),
        const_spec(phase.shape),
        const_spec(w1.shape),
        const_spec(b1.shape),
        const_spec(w2.shape),
        const_spec(b2.shape),
        const_spec(tab.shape),
    ]
    out_shape = (
        jax.ShapeDtypeStruct((n_pad, NOISE_EMB_DIM), jnp.float32),
        jax.ShapeDtypeStruct((n_pad, FC_DIM), jnp.float32),
    )
    out_specs = (row_spec(NOISE_EMB_DIM), row_spec(FC_DIM))

    in_bytes = sum(int(op.size) * op.dtype.itemsize for op in operands)
    out_bytes = n_pad * (NOISE_EMB_DIM + FC_DIM) * 4
    cost = pl.CostEstimate(
        flops=2 * n_pad * (NOISE_DIM * NOISE_EMB_DIM
                           + NOISE_EMB_DIM * NOISE_EMB_DIM
                           + TAB_ROWS_PAD * FC_DIM),
        transcendentals=n_pad * (NOISE_DIM + NOISE_EMB_DIM),   # sin + sigmoid
        bytes_accessed=in_bytes + out_bytes,
    )

    noise_emb, fc_emb = pl.pallas_call(
        _backbone_emb_kernel,
        out_shape=out_shape,
        grid=(n_pad // TOKEN_TILE,),
        in_specs=in_specs,
        out_specs=out_specs,
        compiler_params=pltpu.CompilerParams(
            dimension_semantics=("parallel",),       # token tiles are independent
            vmem_limit_bytes=32 * 1024 * 1024,       # explicit; fits v7x's 64 MiB
        ),
        cost_estimate=cost,
    )(*operands)

    noise_emb = noise_emb[:N].reshape(B, T, NOISE_EMB_DIM)
    frame_emb = fc_emb[:N, :FRAME_EMB_DIM].reshape(B, T, FRAME_EMB_DIM)
    cond_emb = fc_emb[:N, FRAME_EMB_DIM:].reshape(B, T, EXT_EMB_DIM)
    return noise_emb, frame_emb, cond_emb


# --------------------------- pure-JAX reference --------------------------------
def _reference(noise_levels, frame_idx, ext_labels, params):
    B, T = noise_levels.shape
    t = noise_levels.reshape(-1, 1).astype(jnp.float32)
    args = t * params["freqs"]
    sin_cos = jnp.concatenate([jnp.sin(args), jnp.cos(args)], axis=-1)
    h = sin_cos @ params["w1"] + params["b1"]
    h = h * jax.nn.sigmoid(h)
    noise_emb = h @ params["w2"] + params["b2"]
    frame_emb = params["frame_table"][frame_idx.reshape(-1)]
    cond_emb = params["cond_table"][ext_labels.reshape(-1)]
    return (
        noise_emb.reshape(B, T, -1),
        frame_emb.reshape(B, T, -1),
        cond_emb.reshape(B, T, -1),
    )


# ------------------------------- main -----------------------------------------
if __name__ == "__main__":
    key = jax.random.PRNGKey(0)
    k_nl, k_lbl, k_w1, k_w2, k_ft, k_ct, k_nl2, k_lbl2 = jax.random.split(key, 8)

    # deterministic parameter init (synthetic; not loaded from a checkpoint)
    half = NOISE_DIM // 2
    params = {
        "freqs": jnp.exp(
            -math.log(10000.0) * jnp.arange(half, dtype=jnp.float32) / half
        ).reshape(1, half),
        "w1": 0.02 * jax.random.normal(k_w1, (NOISE_DIM, NOISE_EMB_DIM), jnp.float32),
        "b1": jnp.zeros((1, NOISE_EMB_DIM), jnp.float32),
        "w2": 0.02 * jax.random.normal(k_w2, (NOISE_EMB_DIM, NOISE_EMB_DIM), jnp.float32),
        "b2": jnp.zeros((1, NOISE_EMB_DIM), jnp.float32),
        "frame_table": 0.02 * jax.random.normal(k_ft, (MAX_FRAMES, FRAME_EMB_DIM), jnp.float32),
        "cond_table": 0.02 * jax.random.normal(k_ct, (EXT_NUM_CLASSES, EXT_EMB_DIM), jnp.float32),
    }

    def run_case(knl, klb, B, T):
        noise_levels = jax.random.randint(knl, (B, T), 0, 1000)        # diffusion timesteps
        frame_idx = jnp.tile(jnp.arange(T, dtype=jnp.int32)[None, :], (B, 1)) % MAX_FRAMES
        ext_labels = jax.random.randint(klb, (B, T), 0, EXT_NUM_CLASSES)

        outs = base_backbone_embeddings(noise_levels, frame_idx, ext_labels, params)
        outs = jax.block_until_ready(outs)
        refs = _reference(noise_levels, frame_idx, ext_labels, params)
        for o, r in zip(outs, refs):
            assert o.shape == r.shape and o.dtype == r.dtype
            assert float(jnp.max(jnp.abs(o - r))) < 1e-3

    # case 1: 2 sequences of max_frames frames
    run_case(k_nl, k_lbl, 2, MAX_FRAMES)
    # case 2: N = 15 (not a multiple of 8) exercises the row-padding path
    run_case(k_nl2, k_lbl2, 3, 5)

    print("KERNEL_OK")
</pallas_src>

<mosaic_0001>
module attributes {stable_mosaic.version = 11 : i64} {
  func.func @_backbone_emb_kernel(%arg0: i32, %arg1: memref<256x1xf32, #tpu.memory_space<vmem>>, %arg2: memref<256x1xi32, #tpu.memory_space<vmem>>, %arg3: memref<256x1xi32, #tpu.memory_space<vmem>>, %arg4: memref<1x32xf32, #tpu.memory_space<vmem>>, %arg5: memref<1x32xf32, #tpu.memory_space<vmem>>, %arg6: memref<32x128xf32, #tpu.memory_space<vmem>>, %arg7: memref<1x128xf32, #tpu.memory_space<vmem>>, %arg8: memref<128x128xf32, #tpu.memory_space<vmem>>, %arg9: memref<1x128xf32, #tpu.memory_space<vmem>>, %arg10: memref<24x256xf32, #tpu.memory_space<vmem>>, %arg11: memref<256x128xf32, #tpu.memory_space<vmem>>, %arg12: memref<256x256xf32, #tpu.memory_space<vmem>>) attributes {dimension_semantics = [#tpu.dimension_semantics<parallel>], iteration_bounds = array<i64: 1>, scalar_prefetch = 0 : i64, scratch_operands = 0 : i64, tpu.core_type = #tpu.core_type<tc>, window_params = [{transform_indices = @transform_0, window_bounds = array<i64: 256, 1>}, {transform_indices = @transform_1, window_bounds = array<i64: 256, 1>}, {transform_indices = @transform_2, window_bounds = array<i64: 256, 1>}, {pipeline_mode = #tpu.pipeline_mode<synchronous>, transform_indices = @transform_3, window_bounds = array<i64: 1, 32>}, {pipeline_mode = #tpu.pipeline_mode<synchronous>, transform_indices = @transform_4, window_bounds = array<i64: 1, 32>}, {pipeline_mode = #tpu.pipeline_mode<synchronous>, transform_indices = @transform_5, window_bounds = array<i64: 32, 128>}, {pipeline_mode = #tpu.pipeline_mode<synchronous>, transform_indices = @transform_6, window_bounds = array<i64: 1, 128>}, {pipeline_mode = #tpu.pipeline_mode<synchronous>, transform_indices = @transform_7, window_bounds = array<i64: 128, 128>}, {pipeline_mode = #tpu.pipeline_mode<synchronous>, transform_indices = @transform_8, window_bounds = array<i64: 1, 128>}, {pipeline_mode = #tpu.pipeline_mode<synchronous>, transform_indices = @transform_9, window_bounds = array<i64: 24, 256>}, {transform_indices = @transform_10, window_bounds = array<i64: 256, 128>}, {transform_indices = @transform_11, window_bounds = array<i64: 256, 256>}]} {
    %c0 = arith.constant 0 : index
    %c0_0 = arith.constant 0 : index
    %0 = vector.load %arg1[%c0, %c0_0] : memref<256x1xf32, #tpu.memory_space<vmem>>, vector<256x1xf32>
    %c0_1 = arith.constant 0 : index
    %c0_2 = arith.constant 0 : index
    %1 = vector.load %arg4[%c0_1, %c0_2] : memref<1x32xf32, #tpu.memory_space<vmem>>, vector<1x32xf32>
    %2 = vector.broadcast %0 : vector<256x1xf32> to vector<256x32xf32>
    %3 = vector.broadcast %1 : vector<1x32xf32> to vector<256x32xf32>
    %4 = arith.mulf %2, %3 : vector<256x32xf32>
    %c0_3 = arith.constant 0 : index
    %c0_4 = arith.constant 0 : index
    %5 = vector.load %arg5[%c0_3, %c0_4] : memref<1x32xf32, #tpu.memory_space<vmem>>, vector<1x32xf32>
    %6 = vector.broadcast %5 : vector<1x32xf32> to vector<256x32xf32>
    %7 = arith.addf %4, %6 : vector<256x32xf32>
    %8 = math.sin %7 : vector<256x32xf32>
    %c0_5 = arith.constant 0 : index
    %c0_6 = arith.constant 0 : index
    %9 = vector.load %arg6[%c0_5, %c0_6] : memref<32x128xf32, #tpu.memory_space<vmem>>, vector<32x128xf32>
    %cst = arith.constant dense<0.000000e+00> : vector<256x128xf32>
    %10 = tpu.matmul %8, %9, %cst {dimension_numbers = #tpu.dot_dimension_numbers<[1], [0], [0], [1], [0, 0, 1, 1], [], []>} : vector<256x32xf32>, vector<32x128xf32>, vector<256x128xf32> -> vector<256x128xf32>
    %c0_7 = arith.constant 0 : index
    %c0_8 = arith.constant 0 : index
    %11 = vector.load %arg7[%c0_7, %c0_8] : memref<1x128xf32, #tpu.memory_space<vmem>>, vector<1x128xf32>
    %12 = vector.broadcast %11 : vector<1x128xf32> to vector<256x128xf32>
    %13 = arith.addf %10, %12 : vector<256x128xf32>
    %14 = arith.negf %13 : vector<256x128xf32>
    %15 = math.exp %14 : vector<256x128xf32>
    %cst_9 = arith.constant 1.000000e+00 : f32
    %16 = vector.broadcast %cst_9 : f32 to vector<256x128xf32>
    %17 = arith.addf %16, %15 : vector<256x128xf32>
    %18 = arith.divf %16, %17 : vector<256x128xf32>
    %19 = arith.mulf %13, %18 : vector<256x128xf32>
    %c0_10 = arith.constant 0 : index
    %c0_11 = arith.constant 0 : index
    %20 = vector.load %arg8[%c0_10, %c0_11] : memref<128x128xf32, #tpu.memory_space<vmem>>, vector<128x128xf32>
    %cst_12 = arith.constant dense<0.000000e+00> : vector<256x128xf32>
    %21 = tpu.matmul %19, %20, %cst_12 {dimension_numbers = #tpu.dot_dimension_numbers<[1], [0], [0], [1], [0, 0, 1, 1], [], []>} : vector<256x128xf32>, vector<128x128xf32>, vector<256x128xf32> -> vector<256x128xf32>
    %c0_13 = arith.constant 0 : index
    %c0_14 = arith.constant 0 : index
    %22 = vector.load %arg9[%c0_13, %c0_14] : memref<1x128xf32, #tpu.memory_space<vmem>>, vector<1x128xf32>
    %23 = vector.broadcast %22 : vector<1x128xf32> to vector<256x128xf32>
    %24 = arith.addf %21, %23 : vector<256x128xf32>
    %c0_15 = arith.constant 0 : index
    %c0_16 = arith.constant 0 : index
    %25 = vector.load %arg11[%c0_15, %c0_16] : memref<256x128xf32, #tpu.memory_space<vmem>>, vector<256x128xf32>
    tpu.vector_store %arg11[%c0_15, %c0_16], %24 {strides = array<i32>} : memref<256x128xf32, #tpu.memory_space<vmem>>, vector<256x128xf32>,
    %26 = tpu.iota {dimensions = array<i32: 1>} : vector<256x24xi32>
    %c0_17 = arith.constant 0 : index
    %c0_18 = arith.constant 0 : index
    %27 = vector.load %arg2[%c0_17, %c0_18] : memref<256x1xi32, #tpu.memory_space<vmem>>, vector<256x1xi32>
    %28 = vector.broadcast %27 : vector<256x1xi32> to vector<256x24xi32>
    %29 = arith.cmpi eq, %26, %28 : vector<256x24xi32>
    %30 = arith.extui %29 : vector<256x24xi1> to vector<256x24xi32>
    %31 = arith.sitofp %30 : vector<256x24xi32> to vector<256x24xf32>
    %c0_19 = arith.constant 0 : index
    %c0_20 = arith.constant 0 : index
    %32 = vector.load %arg3[%c0_19, %c0_20] : memref<256x1xi32, #tpu.memory_space<vmem>>, vector<256x1xi32>
    %c8_i32 = arith.constant 8 : i32
    %33 = vector.broadcast %c8_i32 : i32 to vector<256x1xi32>
    %34 = arith.addi %32, %33 : vector<256x1xi32>
    %35 = vector.broadcast %34 : vector<256x1xi32> to vector<256x24xi32>
    %36 = arith.cmpi eq, %26, %35 : vector<256x24xi32>
    %37 = arith.extui %36 : vector<256x24xi1> to vector<256x24xi32>
    %38 = arith.sitofp %37 : vector<256x24xi32> to vector<256x24xf32>
    %39 = arith.addf %31, %38 : vector<256x24xf32>
    %c0_21 = arith.constant 0 : index
    %c0_22 = arith.constant 0 : index
    %40 = vector.load %arg10[%c0_21, %c0_22] : memref<24x256xf32, #tpu.memory_space<vmem>>, vector<24x256xf32>
    %cst_23 = arith.constant dense<0.000000e+00> : vector<256x256xf32>
    %41 = tpu.matmul %39, %40, %cst_23 {dimension_numbers = #tpu.dot_dimension_numbers<[1], [0], [0], [1], [0, 0, 1, 1], [], []>} : vector<256x24xf32>, vector<24x256xf32>, vector<256x256xf32> -> vector<256x256xf32>
    %c0_24 = arith.constant 0 : index
    %c0_25 = arith.constant 0 : index
    %42 = vector.load %arg12[%c0_24, %c0_25] : memref<256x256xf32, #tpu.memory_space<vmem>>, vector<256x256xf32>
    tpu.vector_store %arg12[%c0_24, %c0_25], %41 {strides = array<i32>} : memref<256x256xf32, #tpu.memory_space<vmem>>, vector<256x256xf32>,
    return
  }
  func.func @transform_0(%arg0: i32) -> (i32, i32) {
    %c0_i32 = arith.constant 0 : i32
    %c0_i32_0 = arith.constant 0 : i32
    return %arg0, %c0_i32 : i32, i32
  }
  func.func @transform_1(%arg0: i32) -> (i32, i32) {
    %c0_i32 = arith.constant 0 : i32
    %c0_i32_0 = arith.constant 0 : i32
    return %arg0, %c0_i32 : i32, i32
  }
  func.func @transform_2(%arg0: i32) -> (i32, i32) {
    %c0_i32 = arith.constant 0 : i32
    %c0_i32_0 = arith.constant 0 : i32
    return %arg0, %c0_i32 : i32, i32
  }
  func.func @transform_3(%arg0: i32) -> (i32, i32) {
    %c0_i32 = arith.constant 0 : i32
    %c0_i32_0 = arith.constant 0 : i32
    %c0_i32_1 = arith.constant 0 : i32
    return %c0_i32, %c0_i32_0 : i32, i32
  }
  func.func @transform_4(%arg0: i32) -> (i32, i32) {
    %c0_i32 = arith.constant 0 : i32
    %c0_i32_0 = arith.constant 0 : i32
    %c0_i32_1 = arith.constant 0 : i32
    return %c0_i32, %c0_i32_0 : i32, i32
  }
  func.func @transform_5(%arg0: i32) -> (i32, i32) {
    %c0_i32 = arith.constant 0 : i32
    %c0_i32_0 = arith.constant 0 : i32
    %c0_i32_1 = arith.constant 0 : i32
    return %c0_i32, %c0_i32_0 : i32, i32
  }
  func.func @transform_6(%arg0: i32) -> (i32, i32) {
    %c0_i32 = arith.constant 0 : i32
    %c0_i32_0 = arith.constant 0 : i32
    %c0_i32_1 = arith.constant 0 : i32
    return %c0_i32, %c0_i32_0 : i32, i32
  }
  func.func @transform_7(%arg0: i32) -> (i32, i32) {
    %c0_i32 = arith.constant 0 : i32
    %c0_i32_0 = arith.constant 0 : i32
    %c0_i32_1 = arith.constant 0 : i32
    return %c0_i32, %c0_i32_0 : i32, i32
  }
  func.func @transform_8(%arg0: i32) -> (i32, i32) {
    %c0_i32 = arith.constant 0 : i32
    %c0_i32_0 = arith.constant 0 : i32
    %c0_i32_1 = arith.constant 0 : i32
    return %c0_i32, %c0_i32_0 : i32, i32
  }
  func.func @transform_9(%arg0: i32) -> (i32, i32) {
    %c0_i32 = arith.constant 0 : i32
    %c0_i32_0 = arith.constant 0 : i32
    %c0_i32_1 = arith.constant 0 : i32
    return %c0_i32, %c0_i32_0 : i32, i32
  }
  func.func @transform_10(%arg0: i32) -> (i32, i32) {
    %c0_i32 = arith.constant 0 : i32
    %c0_i32_0 = arith.constant 0 : i32
    return %arg0, %c0_i32 : i32, i32
  }
  func.func @transform_11(%arg0: i32) -> (i32, i32) {
    %c0_i32 = arith.constant 0 : i32
    %c0_i32_0 = arith.constant 0 : i32
    return %arg0, %c0_i32 : i32, i32
  }
}

</mosaic_0001>

<llo_original>
// kernel: base_backbone_embeddings.1
$region0: #{base_backbone_embeddings.1}
  #allocation0 [shape = 'u32[]', space=smem, size = 0x4, offset = 0x4, fixed_abs, tag = 'smem constant byte address 0x4 - core index']
  #allocation1 [shape = 'u32[72,128]{1,0:T(1,128)}', space=vmem, size = 0x9000, scoped, tag = 'internal scratch']
  %s0 = inlined_call_operand.vmem [shape: f32[256,1], index: 0, kind: input, shape index: {}]
  %s1 = inlined_call_operand.vmem [shape: s32[256,1], index: 1, kind: input, shape index: {}]
  %s2 = inlined_call_operand.vmem [shape: s32[256,1], index: 2, kind: input, shape index: {}]
  %s3 = inlined_call_operand.vmem [shape: f32[1,32], index: 3, kind: input, shape index: {}]
  %s4 = inlined_call_operand.vmem [shape: f32[1,32], index: 4, kind: input, shape index: {}]
  %s5 = inlined_call_operand.vmem [shape: f32[32,128], index: 5, kind: input, shape index: {}]
  %s6 = inlined_call_operand.vmem [shape: f32[1,128], index: 6, kind: input, shape index: {}]
  %s7 = inlined_call_operand.vmem [shape: f32[128,128], index: 7, kind: input, shape index: {}]
  %s8 = inlined_call_operand.vmem [shape: f32[1,128], index: 8, kind: input, shape index: {}]
  %s9 = inlined_call_operand.vmem [shape: f32[24,256], index: 9, kind: input, shape index: {}]
  %s10 = inlined_call_operand.vmem [shape: f32[256,128], index: 10, kind: output, shape index: {0}]
  %s11 = inlined_call_operand.vmem [shape: f32[256,256], index: 11, kind: output, shape index: {1}]
  %12 = xla_tuple %s10, %s11
  %s13 = sld [smem:[#allocation0]]
  $region58: #{base_backbone_embeddings.1} parent=0
    _
  %s15 = ssub.s32 1, %s13
  %s16 = scalar_select 0, %s15, %s13
  // Predicated region
  $region2: #{base_backbone_embeddings.1} parent=0 // pred_check
    _
  $region3: #{base_backbone_embeddings.1} parent=0 // pred_check_branch
    %18 = sbr.rel (0) target = $region5
  $region4: #{base_backbone_embeddings.1} parent=0 // pred_region
    _
  $region5: #{base_backbone_embeddings.1} parent=0 // pred_fallthru
    _
  // Predicated region
  $region6: #{base_backbone_embeddings.1} parent=0 // pred_check
    _
  $region7: #{base_backbone_embeddings.1} parent=0 // pred_check_branch
    %20 = sbr.rel (0) target = $region9
  $region8: #{base_backbone_embeddings.1} parent=0 // pred_region
    _
  $region9: #{base_backbone_embeddings.1} parent=0 // pred_fallthru
    _
  // Predicated region
  $region10: #{base_backbone_embeddings.1} parent=0 // pred_check
    _
  $region11: #{base_backbone_embeddings.1} parent=0 // pred_check_branch
    %22 = sbr.rel (0) target = $region13
  $region12: #{base_backbone_embeddings.1} parent=0 // pred_region
    _
  $region13: #{base_backbone_embeddings.1} parent=0 // pred_fallthru
    _
  // Predicated region
  $region14: #{base_backbone_embeddings.1} parent=0 // pred_check
    _
  $region15: #{base_backbone_embeddings.1} parent=0 // pred_check_branch
    %24 = sbr.rel (0) target = $region17
  $region16: #{base_backbone_embeddings.1} parent=0 // pred_region
    _
  $region17: #{base_backbone_embeddings.1} parent=0 // pred_fallthru
    _
  // Predicated region
  $region18: #{base_backbone_embeddings.1} parent=0 // pred_check
    _
  $region19: #{base_backbone_embeddings.1} parent=0 // pred_check_branch
    %26 = sbr.rel (0) target = $region21
  $region20: #{base_backbone_embeddings.1} parent=0 // pred_region
    _
  $region21: #{base_backbone_embeddings.1} parent=0 // pred_fallthru
    _
  // Predicated region
  $region22: #{base_backbone_embeddings.1} parent=0 // pred_check
    _
  $region23: #{base_backbone_embeddings.1} parent=0 // pred_check_branch
    %28 = sbr.rel (0) target = $region25
  $region24: #{base_backbone_embeddings.1} parent=0 // pred_region
    _
  $region25: #{base_backbone_embeddings.1} parent=0 // pred_fallthru
    _
  // Predicated region
  $region26: #{base_backbone_embeddings.1} parent=0 // pred_check
    _
  $region27: #{base_backbone_embeddings.1} parent=0 // pred_check_branch
    %30 = sbr.rel (0) target = $region29
  $region28: #{base_backbone_embeddings.1} parent=0 // pred_region
    _
  $region29: #{base_backbone_embeddings.1} parent=0 // pred_fallthru
    _
  // Predicated region
  $region30: #{base_backbone_embeddings.1} parent=0 // pred_check
    _
  $region31: #{base_backbone_embeddings.1} parent=0 // pred_check_branch
    %32 = sbr.rel (0) target = $region33
  $region32: #{base_backbone_embeddings.1} parent=0 // pred_region
    _
  $region33: #{base_backbone_embeddings.1} parent=0 // pred_fallthru
    _
  // Predicated region
  $region34: #{base_backbone_embeddings.1} parent=0 // pred_check
    _
  $region35: #{base_backbone_embeddings.1} parent=0 // pred_check_branch
    %34 = sbr.rel (0) target = $region37
  $region36: #{base_backbone_embeddings.1} parent=0 // pred_region
    _
  $region37: #{base_backbone_embeddings.1} parent=0 // pred_fallthru
    _
  // Predicated region
  $region38: #{base_backbone_embeddings.1} parent=0 // pred_check
    _
  $region39: #{base_backbone_embeddings.1} parent=0 // pred_check_branch
    %36 = sbr.rel (0) target = $region41
  $region40: #{base_backbone_embeddings.1} parent=0 // pred_region
    _
  $region41: #{base_backbone_embeddings.1} parent=0 // pred_fallthru
    _
  %v37 = vld [vmem:[%s0] sm:$0xff]
  %v38 = vld [vmem:[%s0 + $0x8] sm:$0xff]
  %v39 = vld [vmem:[%s0 + $0x10] sm:$0xff]
  %v40 = vld [vmem:[%s0 + $0x18] sm:$0xff]
  %v41 = vld [vmem:[%s0 + $0x20] sm:$0xff]
  %v42 = vld [vmem:[%s0 + $0x28] sm:$0xff]
  %v43 = vld [vmem:[%s0 + $0x30] sm:$0xff]
  %v44 = vld [vmem:[%s0 + $0x38] sm:$0xff]
  %v45 = vld [vmem:[%s0 + $0x40] sm:$0xff]
  %v46 = vld [vmem:[%s0 + $0x48] sm:$0xff]
  %v47 = vld [vmem:[%s0 + $0x50] sm:$0xff]
  %v48 = vld [vmem:[%s0 + $0x58] sm:$0xff]
  %v49 = vld [vmem:[%s0 + $0x60] sm:$0xff]
  %v50 = vld [vmem:[%s0 + $0x68] sm:$0xff]
  %v51 = vld [vmem:[%s0 + $0x70] sm:$0xff]
  %v52 = vld [vmem:[%s0 + $0x78] sm:$0xff]
  %v53 = vld [vmem:[%s0 + $0x80] sm:$0xff]
  %v54 = vld [vmem:[%s0 + $0x88] sm:$0xff]
  %v55 = vld [vmem:[%s0 + $0x90] sm:$0xff]
  %v56 = vld [vmem:[%s0 + $0x98] sm:$0xff]
  %v57 = vld [vmem:[%s0 + $0xa0] sm:$0xff]
  %v58 = vld [vmem:[%s0 + $0xa8] sm:$0xff]
  %v59 = vld [vmem:[%s0 + $0xb0] sm:$0xff]
  %v60 = vld [vmem:[%s0 + $0xb8] sm:$0xff]
  %v61 = vld [vmem:[%s0 + $0xc0] sm:$0xff]
  %v62 = vld [vmem:[%s0 + $0xc8] sm:$0xff]
  %v63 = vld [vmem:[%s0 + $0xd0] sm:$0xff]
  %v64 = vld [vmem:[%s0 + $0xd8] sm:$0xff]
  %v65 = vld [vmem:[%s0 + $0xe0] sm:$0xff]
  %v66 = vld [vmem:[%s0 + $0xe8] sm:$0xff]
  %v67 = vld [vmem:[%s0 + $0xf0] sm:$0xff]
  %v68 = vld [vmem:[%s0 + $0xf8] sm:$0xff]
  %v69 = vld [vmem:[%s3] sm:$0x1]
  %71 = vset.pattern.permute.xlu0 0
  %72 = vperm.xlu0 %71, %v37
  %v73 = vpop.permute.xlu0 %72
  %76 = vset.pattern.permute.xlu0 0
  %77 = vperm.xlu0 %76, %v38
  %v78 = vpop.permute.xlu0 %77
  %81 = vset.pattern.permute.xlu0 0
  %82 = vperm.xlu0 %81, %v39
  %v83 = vpop.permute.xlu0 %82
  %86 = vset.pattern.permute.xlu0 0
  %87 = vperm.xlu0 %86, %v40
  %v88 = vpop.permute.xlu0 %87
  %91 = vset.pattern.permute.xlu0 0
  %92 = vperm.xlu0 %91, %v41
  %v93 = vpop.permute.xlu0 %92
  %96 = vset.pattern.permute.xlu0 0
  %97 = vperm.xlu0 %96, %v42
  %v98 = vpop.permute.xlu0 %97
  %101 = vset.pattern.permute.xlu0 0
  %102 = vperm.xlu0 %101, %v43
  %v103 = vpop.permute.xlu0 %102
  %106 = vset.pattern.permute.xlu0 0
  %107 = vperm.xlu0 %106, %v44
  %v108 = vpop.permute.xlu0 %107
  %111 = vset.pattern.permute.xlu0 0
  %112 = vperm.xlu0 %111, %v45
  %v113 = vpop.permute.xlu0 %112
  %116 = vset.pattern.permute.xlu0 0
  %117 = vperm.xlu0 %116, %v46
  %v118 = vpop.permute.xlu0 %117
  %121 = vset.pattern.permute.xlu0 0
  %122 = vperm.xlu0 %121, %v47
  %v123 = vpop.permute.xlu0 %122
  %126 = vset.pattern.permute.xlu0 0
  %127 = vperm.xlu0 %126, %v48
  %v128 = vpop.permute.xlu0 %127
  %131 = vset.pattern.permute.xlu0 0
  %132 = vperm.xlu0 %131, %v49
  %v133 = vpop.permute.xlu0 %132
  %136 = vset.pattern.permute.xlu0 0
  %137 = vperm.xlu0 %136, %v50
  %v138 = vpop.permute.xlu0 %137
  %141 = vset.pattern.permute.xlu0 0
  %142 = vperm.xlu0 %141, %v51
  %v143 = vpop.permute.xlu0 %142
  %146 = vset.pattern.permute.xlu0 0
  %147 = vperm.xlu0 %146, %v52
  %v148 = vpop.permute.xlu0 %147
  %151 = vset.pattern.permute.xlu0 0
  %152 = vperm.xlu0 %151, %v53
  %v153 = vpop.permute.xlu0 %152
  %156 = vset.pattern.permute.xlu0 0
  %157 = vperm.xlu0 %156, %v54
  %v158 = vpop.permute.xlu0 %157
  %161 = vset.pattern.permute.xlu0 0
  %162 = vperm.xlu0 %161, %v55
  %v163 = vpop.permute.xlu0 %162
  %166 = vset.pattern.permute.xlu0 0
  %167 = vperm.xlu0 %166, %v56
  %v168 = vpop.permute.xlu0 %167
  %171 = vset.pattern.permute.xlu0 0
  %172 = vperm.xlu0 %171, %v57
  %v173 = vpop.permute.xlu0 %172
  %176 = vset.pattern.permute.xlu0 0
  %177 = vperm.xlu0 %176, %v58
  %v178 = vpop.permute.xlu0 %177
  %181 = vset.pattern.permute.xlu0 0
  %182 = vperm.xlu0 %181, %v59
  %v183 = vpop.permute.xlu0 %182
  %186 = vset.pattern.permute.xlu0 0
  %187 = vperm.xlu0 %186, %v60
  %v188 = vpop.permute.xlu0 %187
  %191 = vset.pattern.permute.xlu0 0
  %192 = vperm.xlu0 %191, %v61
  %v193 = vpop.permute.xlu0 %192
  %196 = vset.pattern.permute.xlu0 0
  %197 = vperm.xlu0 %196, %v62
  %v198 = vpop.permute.xlu0 %197
  %201 = vset.pattern.permute.xlu0 0
  %202 = vperm.xlu0 %201, %v63
  %v203 = vpop.permute.xlu0 %202
  %206 = vset.pattern.permute.xlu0 0
  %207 = vperm.xlu0 %206, %v64
  %v208 = vpop.permute.xlu0 %207
  %211 = vset.pattern.permute.xlu0 0
  %212 = vperm.xlu0 %211, %v65
  %v213 = vpop.permute.xlu0 %212
  %216 = vset.pattern.permute.xlu0 0
  %217 = vperm.xlu0 %216, %v66
  %v218 = vpop.permute.xlu0 %217
  %221 = vset.pattern.permute.xlu0 0
  %222 = vperm.xlu0 %221, %v67
  %v223 = vpop.permute.xlu0 %222
  %226 = vset.pattern.permute.xlu0 0
  %227 = vperm.xlu0 %226, %v68
  %v228 = vpop.permute.xlu0 %227
  %v231 = vperm.slane %v69, 0
  %v233 = vmul.f32 %v73, %v231
  %v234 = vmul.f32 %v78, %v231
  %v235 = vmul.f32 %v83, %v231
  %v236 = vmul.f32 %v88, %v231
  %v237 = vmul.f32 %v93, %v231
  %v238 = vmul.f32 %v98, %v231
  %v239 = vmul.f32 %v103, %v231
  %v240 = vmul.f32 %v108, %v231
  %v241 = vmul.f32 %v113, %v231
  %v242 = vmul.f32 %v118, %v231
  %v243 = vmul.f32 %v123, %v231
  %v244 = vmul.f32 %v128, %v231
  %v245 = vmul.f32 %v133, %v231
  %v246 = vmul.f32 %v138, %v231
  %v247 = vmul.f32 %v143, %v231
  %v248 = vmul.f32 %v148, %v231
  %v249 = vmul.f32 %v153, %v231
  %v250 = vmul.f32 %v158, %v231
  %v251 = vmul.f32 %v163, %v231
  %v252 = vmul.f32 %v168, %v231
  %v253 = vmul.f32 %v173, %v231
  %v254 = vmul.f32 %v178, %v231
  %v255 = vmul.f32 %v183, %v231
  %v256 = vmul.f32 %v188, %v231
  %v257 = vmul.f32 %v193, %v231
  %v258 = vmul.f32 %v198, %v231
  %v259 = vmul.f32 %v203, %v231
  %v260 = vmul.f32 %v208, %v231
  %v261 = vmul.f32 %v213, %v231
  %v262 = vmul.f32 %v218, %v231
  %v263 = vmul.f32 %v223, %v231
  %v264 = vmul.f32 %v228, %v231
  %v265 = vld [vmem:[%s4] sm:$0x1]
  %v267 = vperm.slane %v265, 0
  %v269 = vadd.f32 %v233, %v267
  %v270 = vadd.f32 %v234, %v267
  %v271 = vadd.f32 %v235, %v267
  %v272 = vadd.f32 %v236, %v267
  %v273 = vadd.f32 %v237, %v267
  %v274 = vadd.f32 %v238, %v267
  %v275 = vadd.f32 %v239, %v267
  %v276 = vadd.f32 %v240, %v267
  %v277 = vadd.f32 %v241, %v267
  %v278 = vadd.f32 %v242, %v267
  %v279 = vadd.f32 %v243, %v267
  %v280 = vadd.f32 %v244, %v267
  %v281 = vadd.f32 %v245, %v267
  %v282 = vadd.f32 %v246, %v267
  %v283 = vadd.f32 %v247, %v267
  %v284 = vadd.f32 %v248, %v267
  %v285 = vadd.f32 %v249, %v267
  %v286 = vadd.f32 %v250, %v267
  %v287 = vadd.f32 %v251, %v267
  %v288 = vadd.f32 %v252, %v267
  %v289 = vadd.f32 %v253, %v267
  %v290 = vadd.f32 %v254, %v267
  %v291 = vadd.f32 %v255, %v267
  %v292 = vadd.f32 %v256, %v267
  %v293 = vadd.f32 %v257, %v267
  %v294 = vadd.f32 %v258, %v267
  %v295 = vadd.f32 %v259, %v267
  %v296 = vadd.f32 %v260, %v267
  %v297 = vadd.f32 %v261, %v267
  %v298 = vadd.f32 %v262, %v267
  %v299 = vadd.f32 %v263, %v267
  %v300 = vadd.f32 %v264, %v267
  %v301 = vand.u32 2147483647, %v269
  %vm302 = vcmp.le.f32.partialorder %v301, 0.7853982
  %vm303 = vcmp.lt.s32.totalorder %v269, 0
  %v304 = vand.u32 %v269, 2139095040
  %v305 = vshrl.u32 %v304, 23
  %v306 = vsub.s32 %v305, 127
  %v307 = vand.u32 2147483647, %v269
  %v308 = vand.u32 %v307, 8388607
  %v309 = vor.u32 %v308, 8388608
  %v310 = vsub.s32 0, %v309
  %v311 = vadd.s32 %v306, 1
  %vm312 = vcmp.gt.s32.totalorder %v311, 0
  %v313 = vsel %vm312, %v311, 0
  %v314 = vshrl.u32 %v313, 5
  %v315 = vand.u32 %v313, 31
  %v316 = vsub.s32 32, %v315
  %v317 = vshrl.u32 683565275, %v316
  %v318 = vshll.u32 683565275, %v315
  %v319 = vshrl.u32 2475754826, %v316
  %v320 = vor.u32 %v318, %v319
  %v321 = vshll.u32 2475754826, %v315
  %v322 = vshrl.u32 2131351028, %v316
  %v323 = vor.u32 %v321, %v322
  %v324 = vshll.u32 2131351028, %v315
  %v325 = vshrl.u32 2102212464, %v316
  %v326 = vor.u32 %v324, %v325
  %v327 = vshll.u32 2102212464, %v315
  %v328 = vshrl.u32 920167782, %v316
  %v329 = vor.u32 %v327, %v328
  %v330 = vshll.u32 920167782, %v315
  %v331 = vshrl.u32 1326507024, %v316
  %v332 = vor.u32 %v330, %v331
  %vm333 = vcmp.lt.s32.totalorder %v314, 1
  %vm334 = vcmp.lt.s32.totalorder %v314, 2
  %vm335 = vcmp.lt.s32.totalorder %v314, 3
  %vm336 = vcmp.lt.s32.totalorder %v314, 4
  %v337 = vsel %vm333, %v317, %v320
  %v338 = vsel %vm336, %v326, 2102212464
  %v339 = vsel %vm335, %v323, %v338
  %v340 = vsel %vm334, %v337, %v339
  %v341 = vsel %vm333, %v320, %v323
  %v342 = vsel %vm336, %v329, 920167782
  %v343 = vsel %vm335, %v326, %v342
  %v344 = vsel %vm334, %v341, %v343
  %v345 = vsel %vm333, %v323, %v326
  %v346 = vsel %vm336, %v332, 1326507024
  %v347 = vsel %vm335, %v329, %v346
  %v348 = vsel %vm334, %v345, %v347
  %v349 = vshll.u32 %v309, 8
  %v350 = vand.u32 %v349, 65535
  %v351 = vshrl.u32 %v349, 16
  %v352 = vand.u32 %v348, 65535
  %v353 = vshrl.u32 %v348, 16
  %v354 = vmul.u32 %v350, %v352
  %v355 = vmul.u32 %v350, %v353
  %v356 = vmul.u32 %v351, %v352
  %v357 = vmul.u32 %v351, %v353
  %v358 = vshll.u32 %v355, 16
  %v359 = vshrl.u32 %v355, 16
  %v360 = vshll.u32 %v356, 16
  %v361 = vshrl.u32 %v356, 16
  %vm362 = vc.u32 %v354, %v358
  %v363 = vsel %vm362, 1, 0
  %v364 = vadd.s32 %v354, %v358
  %v365 = vadd.s32 %v357, %v363
  %vm366 = vc.u32 %v364, %v360
  %v367 = vsel %vm366, 1, 0
  %v368 = vadd.s32 %v364, %v360
  %v369 = vadd.s32 %v365, %v367
  %v370 = vadd.s32 %v369, %v359
  %v371 = vadd.s32 %v370, %v361
  %v372 = vand.u32 %v349, 65535
  %v373 = vshrl.u32 %v349, 16
  %v374 = vand.u32 %v344, 65535
  %v375 = vshrl.u32 %v344, 16
  %v376 = vmul.u32 %v372, %v374
  %v377 = vmul.u32 %v372, %v375
  %v378 = vmul.u32 %v373, %v374
  %v379 = vmul.u32 %v373, %v375
  %v380 = vshll.u32 %v377, 16
  %v381 = vshrl.u32 %v377, 16
  %v382 = vshll.u32 %v378, 16
  %v383 = vshrl.u32 %v378, 16
  %vm384 = vc.u32 %v376, %v380
  %v385 = vsel %vm384, 1, 0
  %v386 = vadd.s32 %v376, %v380
  %v387 = vadd.s32 %v379, %v385
  %vm388 = vc.u32 %v386, %v382
  %v389 = vsel %vm388, 1, 0
  %v390 = vadd.s32 %v386, %v382
  %v391 = vadd.s32 %v387, %v389
  %v392 = vadd.s32 %v391, %v381
  %v393 = vadd.s32 %v392, %v383
  %v394 = vmul.u32 %v349, %v340
  %v395 = vadd.s32 %v371, %v390
  %vm396 = vc.u32 %v371, %v390
  %v397 = vadd.s32 %v393, 1
  %v398 = vsel %vm396, %v397, %v393
  %v399 = vadd.s32 %v394, %v398
  %v400 = vadd.s32 %v399, 536870912
  %v401 = vshrl.u32 %v400, 30
  %v402 = vshll.u32 %v401, 30
  %v403 = vsub.s32 %v399, %v402
  %vm404 = vcmp.lt.s32.totalorder %v403, 0
  %v405 = vsub.s32 0, %v403
  %v406 = vsel %vm404, %v405, %v403
  %v407 = vclz %v406
  %v408 = vsub.s32 %v407, 2
  %vm409 = vcmp.gt.s32.totalorder 0, %v408
  %v410 = vsel %vm409, 0, %v408
  %v411 = vsub.s32 32, %v410
  %v412 = vshll.u32 %v403, %v410
  %v413 = vshrl.u32 %v395, %v411
  %v414 = vor.u32 %v412, %v413
  %v415 = vsub.s32 4294967266, %v410
  %v416 = vadd.s32 %v415, 127
  %v417 = vshll.u32 %v416, 23
  %v418 = vor.u32 4788187, %v417
  %v419 = vand.u32 2147483647, %v418
  %v421 = vcvt.s32.f32 %v414
  %v422 = vmul.f32 %v421, %v419
  %v423 = vxor.u32 %v422, 2147483648
  %v424 = vsel %vm303, %v423, %v422
  %v425 = vsub.s32 4, %v401
  %v426 = vsel %vm303, %v425, %v401
  %v427 = vsel %vm302, %v269, %v424
  %v428 = vsel %vm302, 0, %v426
  %v429 = vmul.f32 %v427, %v427
  %v430 = vmul.f32 %v429, -0.001358992
  %v431 = vadd.f32 %v430, 0.041655596
  %v432 = vmul.f32 %v429, %v431
  %v433 = vadd.f32 %v432, -0.4999988
  %v434 = vmul.f32 %v429, %v433
  %v435 = vadd.f32 1.0, %v434
  %v436 = vmul.f32 %v427, %v427
  %v437 = vmul.f32 %v436, -0.00019511016
  %v438 = vadd.f32 %v437, 0.008332121
  %v439 = vmul.f32 %v436, %v438
  %v440 = vadd.f32 %v439, -0.16666654
  %v441 = vmul.f32 %v436, %v440
  %v442 = vadd.f32 %v441, 1.0
  %v443 = vmul.f32 %v442, %v427
  %vm444 = vweird.f32 %v269
  %v445 = vadd.s32 %v428, 3
  %v446 = vand.u32 %v445, 3
  %vm447 = vcmp.lt.s32.totalorder %v446, 2
  %vm448 = vcmp.eq.s32.totalorder %v446, 0
  %v449 = vxor.u32 %v443, 2147483648
  %v450 = vsel %vm448, %v435, %v449
  %vm451 = vcmp.eq.s32.totalorder %v446, 2
  %v452 = vxor.u32 %v435, 2147483648
  %v453 = vsel %vm451, %v452, %v443
  %v454 = vsel %vm447, %v450, %v453
  %v455 = vsel %vm444, nan, %v454
  %v456 = vand.u32 2147483647, %v270
  %vm457 = vcmp.le.f32.partialorder %v456, 0.7853982
  %vm458 = vcmp.lt.s32.totalorder %v270, 0
  %v459 = vand.u32 %v270, 2139095040
  %v460 = vshrl.u32 %v459, 23
  %v461 = vsub.s32 %v460, 127
  %v462 = vand.u32 2147483647, %v270
  %v463 = vand.u32 %v462, 8388607
  %v464 = vor.u32 %v463, 8388608
  %v465 = vsub.s32 0, %v464
  %v466 = vadd.s32 %v461, 1
  %vm467 = vcmp.gt.s32.totalorder %v466, 0
  %v468 = vsel %vm467, %v466, 0
  %v469 = vshrl.u32 %v468, 5
  %v470 = vand.u32 %v468, 31
  %v471 = vsub.s32 32, %v470
  %v472 = vshrl.u32 683565275, %v471
  %v473 = vshll.u32 683565275, %v470
  %v474 = vshrl.u32 2475754826, %v471
  %v475 = vor.u32 %v473, %v474
  %v476 = vshll.u32 2475754826, %v470
  %v477 = vshrl.u32 2131351028, %v471
  %v478 = vor.u32 %v476, %v477
  %v479 = vshll.u32 2131351028, %v470
  %v480 = vshrl.u32 2102212464, %v471
  %v481 = vor.u32 %v479, %v480
  %v482 = vshll.u32 2102212464, %v470
  %v483 = vshrl.u32 920167782, %v471
  %v484 = vor.u32 %v482, %v483
  %v485 = vshll.u32 920167782, %v470
  %v486 = vshrl.u32 1326507024, %v471
  %v487 = vor.u32 %v485, %v486
  %vm488 = vcmp.lt.s32.totalorder %v469, 1
  %vm489 = vcmp.lt.s32.totalorder %v469, 2
  %vm490 = vcmp.lt.s32.totalorder %v469, 3
  %vm491 = vcmp.lt.s32.totalorder %v469, 4
  %v492 = vsel %vm488, %v472, %v475
  %v493 = vsel %vm491, %v481, 2102212464
  %v494 = vsel %vm490, %v478, %v493
  %v495 = vsel %vm489, %v492, %v494
  %v496 = vsel %vm488, %v475, %v478
  %v497 = vsel %vm491, %v484, 920167782
  %v498 = vsel %vm490, %v481, %v497
  %v499 = vsel %vm489, %v496, %v498
  %v500 = vsel %vm488, %v478, %v481
  %v501 = vsel %vm491, %v487, 1326507024
  %v502 = vsel %vm490, %v484, %v501
  %v503 = vsel %vm489, %v500, %v502
  %v504 = vshll.u32 %v464, 8
  %v505 = vand.u32 %v504, 65535
  %v506 = vshrl.u32 %v504, 16
  %v507 = vand.u32 %v503, 65535
  %v508 = vshrl.u32 %v503, 16
  %v509 = vmul.u32 %v505, %v507
  %v510 = vmul.u32 %v505, %v508
  %v511 = vmul.u32 %v506, %v507
  %v512 = vmul.u32 %v506, %v508
  %v513 = vshll.u32 %v510, 16
  %v514 = vshrl.u32 %v510, 16
  %v515 = vshll.u32 %v511, 16
  %v516 = vshrl.u32 %v511, 16
  %vm517 = vc.u32 %v509, %v513
  %v518 = vsel %vm517, 1, 0
  %v519 = vadd.s32 %v509, %v513
  %v520 = vadd.s32 %v512, %v518
  %vm521 = vc.u32 %v519, %v515
  %v522 = vsel %vm521, 1, 0
  %v523 = vadd.s32 %v519, %v515
  %v524 = vadd.s32 %v520, %v522
  %v525 = vadd.s32 %v524, %v514
  %v526 = vadd.s32 %v525, %v516
  %v527 = vand.u32 %v504, 65535
  %v528 = vshrl.u32 %v504, 16
  %v529 = vand.u32 %v499, 65535
  %v530 = vshrl.u32 %v499, 16
  %v531 = vmul.u32 %v527, %v529
  %v532 = vmul.u32 %v527, %v530
  %v533 = vmul.u32 %v528, %v529
  %v534 = vmul.u32 %v528, %v530
  %v535 = vshll.u32 %v532, 16
  %v536 = vshrl.u32 %v532, 16
  %v537 = vshll.u32 %v533, 16
  %v538 = vshrl.u32 %v533, 16
  %vm539 = vc.u32 %v531, %v535
  %v540 = vsel %vm539, 1, 0
  %v541 = vadd.s32 %v531, %v535
  %v542 = vadd.s32 %v534, %v540
  %vm543 = vc.u32 %v541, %v537
  %v544 = vsel %vm543, 1, 0
  %v545 = vadd.s32 %v541, %v537
  %v546 = vadd.s32 %v542, %v544
  %v547 = vadd.s32 %v546, %v536
  %v548 = vadd.s32 %v547, %v538
  %v549 = vmul.u32 %v504, %v495
  %v550 = vadd.s32 %v526, %v545
  %vm551 = vc.u32 %v526, %v545
  %v552 = vadd.s32 %v548, 1
  %v553 = vsel %vm551, %v552, %v548
  %v554 = vadd.s32 %v549, %v553
  %v555 = vadd.s32 %v554, 536870912
  %v556 = vshrl.u32 %v555, 30
  %v557 = vshll.u32 %v556, 30
  %v558 = vsub.s32 %v554, %v557
  %vm559 = vcmp.lt.s32.totalorder %v558, 0
  %v560 = vsub.s32 0, %v558
  %v561 = vsel %vm559, %v560, %v558
  %v562 = vclz %v561
  %v563 = vsub.s32 %v562, 2
  %vm564 = vcmp.gt.s32.totalorder 0, %v563
  %v565 = vsel %vm564, 0, %v563
  %v566 = vsub.s32 32, %v565
  %v567 = vshll.u32 %v558, %v565
  %v568 = vshrl.u32 %v550, %v566
  %v569 = vor.u32 %v567, %v568
  %v570 = vsub.s32 4294967266, %v565
  %v571 = vadd.s32 %v570, 127
  %v572 = vshll.u32 %v571, 23
  %v573 = vor.u32 4788187, %v572
  %v574 = vand.u32 2147483647, %v573
  %v576 = vcvt.s32.f32 %v569
  %v577 = vmul.f32 %v576, %v574
  %v578 = vxor.u32 %v577, 2147483648
  %v579 = vsel %vm458, %v578, %v577
  %v580 = vsub.s32 4, %v556
  %v581 = vsel %vm458, %v580, %v556
  %v582 = vsel %vm457, %v270, %v579
  %v583 = vsel %vm457, 0, %v581
  %v584 = vmul.f32 %v582, %v582
  %v585 = vmul.f32 %v584, -0.001358992
  %v586 = vadd.f32 %v585, 0.041655596
  %v587 = vmul.f32 %v584, %v586
  %v588 = vadd.f32 %v587, -0.4999988
  %v589 = vmul.f32 %v584, %v588
  %v590 = vadd.f32 1.0, %v589
  %v591 = vmul.f32 %v582, %v582
  %v592 = vmul.f32 %v591, -0.00019511016
  %v593 = vadd.f32 %v592, 0.008332121
  %v594 = vmul.f32 %v591, %v593
  %v595 = vadd.f32 %v594, -0.16666654
  %v596 = vmul.f32 %v591, %v595
  %v597 = vadd.f32 %v596, 1.0
  %v598 = vmul.f32 %v597, %v582
  %vm599 = vweird.f32 %v270
  %v600 = vadd.s32 %v583, 3
  %v601 = vand.u32 %v600, 3
  %vm602 = vcmp.lt.s32.totalorder %v601, 2
  %vm603 = vcmp.eq.s32.totalorder %v601, 0
  %v604 = vxor.u32 %v598, 2147483648
  %v605 = vsel %vm603, %v590, %v604
  %vm606 = vcmp.eq.s32.totalorder %v601, 2
  %v607 = vxor.u32 %v590, 2147483648
  %v608 = vsel %vm606, %v607, %v598
  %v609 = vsel %vm602, %v605, %v608
  %v610 = vsel %vm599, nan, %v609
  %v611 = vand.u32 2147483647, %v271
  %vm612 = vcmp.le.f32.partialorder %v611, 0.7853982
  %vm613 = vcmp.lt.s32.totalorder %v271, 0
  %v614 = vand.u32 %v271, 2139095040
  %v615 = vshrl.u32 %v614, 23
  %v616 = vsub.s32 %v615, 127
  %v617 = vand.u32 2147483647, %v271
  %v618 = vand.u32 %v617, 8388607
  %v619 = vor.u32 %v618, 8388608
  %v620 = vsub.s32 0, %v619
  %v621 = vadd.s32 %v616, 1
  %vm622 = vcmp.gt.s32.totalorder %v621, 0
  %v623 = vsel %vm622, %v621, 0
  %v624 = vshrl.u32 %v623, 5
  %v625 = vand.u32 %v623, 31
  %v626 = vsub.s32 32, %v625
  %v627 = vshrl.u32 683565275, %v626
  %v628 = vshll.u32 683565275, %v625
  %v629 = vshrl.u32 2475754826, %v626
  %v630 = vor.u32 %v628, %v629
  %v631 = vshll.u32 2475754826, %v625
  %v632 = vshrl.u32 2131351028, %v626
  %v633 = vor.u32 %v631, %v632
  %v634 = vshll.u32 2131351028, %v625
  %v635 = vshrl.u32 2102212464, %v626
  %v636 = vor.u32 %v634, %v635
  %v637 = vshll.u32 2102212464, %v625
  %v638 = vshrl.u32 920167782, %v626
  %v639 = vor.u32 %v637, %v638
  %v640 = vshll.u32 920167782, %v625
  %v641 = vshrl.u32 1326507024, %v626
  %v642 = vor.u32 %v640, %v641
  %vm643 = vcmp.lt.s32.totalorder %v624, 1
  %vm644 = vcmp.lt.s32.totalorder %v624, 2
  %vm645 = vcmp.lt.s32.totalorder %v624, 3
  %vm646 = vcmp.lt.s32.totalorder %v624, 4
  %v647 = vsel %vm643, %v627, %v630
  %v648 = vsel %vm646, %v636, 2102212464
  %v649 = vsel %vm645, %v633, %v648
  %v650 = vsel %vm644, %v647, %v649
  %v651 = vsel %vm643, %v630, %v633
  %v652 = vsel %vm646, %v639, 920167782
  %v653 = vsel %vm645, %v636, %v652
  %v654 = vsel %vm644, %v651, %v653
  %v655 = vsel %vm643, %v633, %v636
  %v656 = vsel %vm646, %v642, 1326507024
  %v657 = vsel %vm645, %v639, %v656
  %v658 = vsel %vm644, %v655, %v657
  %v659 = vshll.u32 %v619, 8
  %v660 = vand.u32 %v659, 65535
  %v661 = vshrl.u32 %v659, 16
  %v662 = vand.u32 %v658, 65535
  %v663 = vshrl.u32 %v658, 16
  %v664 = vmul.u32 %v660, %v662
  %v665 = vmul.u32 %v660, %v663
  %v666 = vmul.u32 %v661, %v662
  %v667 = vmul.u32 %v661, %v663
  %v668 = vshll.u32 %v665, 16
  %v669 = vshrl.u32 %v665, 16
  %v670 = vshll.u32 %v666, 16
  %v671 = vshrl.u32 %v666, 16
  %vm672 = vc.u32 %v664, %v668
  %v673 = vsel %vm672, 1, 0
  %v674 = vadd.s32 %v664, %v668
  %v675 = vadd.s32 %v667, %v673
  %vm676 = vc.u32 %v674, %v670
  %v677 = vsel %vm676, 1, 0
  %v678 = vadd.s32 %v674, %v670
  %v679 = vadd.s32 %v675, %v677
  %v680 = vadd.s32 %v679, %v669
  %v681 = vadd.s32 %v680, %v671
  %v682 = vand.u32 %v659, 65535
  %v683 = vshrl.u32 %v659, 16
  %v684 = vand.u32 %v654, 65535
  %v685 = vshrl.u32 %v654, 16
  %v686 = vmul.u32 %v682, %v684
  %v687 = vmul.u32 %v682, %v685
  %v688 = vmul.u32 %v683, %v684
  %v689 = vmul.u32 %v683, %v685
  %v690 = vshll.u32 %v687, 16
  %v691 = vshrl.u32 %v687, 16
  %v692 = vshll.u32 %v688, 16
  %v693 = vshrl.u32 %v688, 16
  %vm694 = vc.u32 %v686, %v690
  %v695 = vsel %vm694, 1, 0
  %v696 = vadd.s32 %v686, %v690
  %v697 = vadd.s32 %v689, %v695
  %vm698 = vc.u32 %v696, %v692
  %v699 = vsel %vm698, 1, 0
  %v700 = vadd.s32 %v696, %v692
  %v701 = vadd.s32 %v697, %v699
  %v702 = vadd.s32 %v701, %v691
  %v703 = vadd.s32 %v702, %v693
  %v704 = vmul.u32 %v659, %v650
  %v705 = vadd.s32 %v681, %v700
  %vm706 = vc.u32 %v681, %v700
  %v707 = vadd.s32 %v703, 1
  %v708 = vsel %vm706, %v707, %v703
  %v709 = vadd.s32 %v704, %v708
  %v710 = vadd.s32 %v709, 536870912
  %v711 = vshrl.u32 %v710, 30
  %v712 = vshll.u32 %v711, 30
  %v713 = vsub.s32 %v709, %v712
  %vm714 = vcmp.lt.s32.totalorder %v713, 0
  %v715 = vsub.s32 0, %v713
  %v716 = vsel %vm714, %v715, %v713
  %v717 = vclz %v716
  %v718 = vsub.s32 %v717, 2
  %vm719 = vcmp.gt.s32.totalorder 0, %v718
  %v720 = vsel %vm719, 0, %v718
  %v721 = vsub.s32 32, %v720
  %v722 = vshll.u32 %v713, %v720
  %v723 = vshrl.u32 %v705, %v721
  %v724 = vor.u32 %v722, %v723
  %v725 = vsub.s32 4294967266, %v720
  %v726 = vadd.s32 %v725, 127
  %v727 = vshll.u32 %v726, 23
  %v728 = vor.u32 4788187, %v727
  %v729 = vand.u32 2147483647, %v728
  %v731 = vcvt.s32.f32 %v724
  %v732 = vmul.f32 %v731, %v729
  %v733 = vxor.u32 %v732, 2147483648
  %v734 = vsel %vm613, %v733, %v732
  %v735 = vsub.s32 4, %v711
  %v736 = vsel %vm613, %v735, %v711
  %v737 = vsel %vm612, %v271, %v734
  %v738 = vsel %vm612, 0, %v736
  %v739 = vmul.f32 %v737, %v737
  %v740 = vmul.f32 %v739, -0.001358992
  %v741 = vadd.f32 %v740, 0.041655596
  %v742 = vmul.f32 %v739, %v741
  %v743 = vadd.f32 %v742, -0.4999988
  %v744 = vmul.f32 %v739, %v743
  %v745 = vadd.f32 1.0, %v744
  %v746 = vmul.f32 %v737, %v737
  %v747 = vmul.f32 %v746, -0.00019511016
  %v748 = vadd.f32 %v747, 0.008332121
  %v749 = vmul.f32 %v746, %v748
  %v750 = vadd.f32 %v749, -0.16666654
  %v751 = vmul.f32 %v746, %v750
  %v752 = vadd.f32 %v751, 1.0
  %v753 = vmul.f32 %v752, %v737
  %vm754 = vweird.f32 %v271
  %v755 = vadd.s32 %v738, 3
  %v756 = vand.u32 %v755, 3
  %vm757 = vcmp.lt.s32.totalorder %v756, 2
  %vm758 = vcmp.eq.s32.totalorder %v756, 0
  %v759 = vxor.u32 %v753, 2147483648
  %v760 = vsel %vm758, %v745, %v759
  %vm761 = vcmp.eq.s32.totalorder %v756, 2
  %v762 = vxor.u32 %v745, 2147483648
  %v763 = vsel %vm761, %v762, %v753
  %v764 = vsel %vm757, %v760, %v763
  %v765 = vsel %vm754, nan, %v764
  %v766 = vand.u32 2147483647, %v272
  %vm767 = vcmp.le.f32.partialorder %v766, 0.7853982
  %vm768 = vcmp.lt.s32.totalorder %v272, 0
  %v769 = vand.u32 %v272, 2139095040
  %v770 = vshrl.u32 %v769, 23
  %v771 = vsub.s32 %v770, 127
  %v772 = vand.u32 2147483647, %v272
  %v773 = vand.u32 %v772, 8388607
  %v774 = vor.u32 %v773, 8388608
  %v775 = vsub.s32 0, %v774
  %v776 = vadd.s32 %v771, 1
  %vm777 = vcmp.gt.s32.totalorder %v776, 0
  %v778 = vsel %vm777, %v776, 0
  %v779 = vshrl.u32 %v778, 5
  %v780 = vand.u32 %v778, 31
  %v781 = vsub.s32 32, %v780
  %v782 = vshrl.u32 683565275, %v781
  %v783 = vshll.u32 683565275, %v780
  %v784 = vshrl.u32 2475754826, %v781
  %v785 = vor.u32 %v783, %v784
  %v786 = vshll.u32 2475754826, %v780
  %v787 = vshrl.u32 2131351028, %v781
  %v788 = vor.u32 %v786, %v787
  %v789 = vshll.u32 2131351028, %v780
  %v790 = vshrl.u32 2102212464, %v781
  %v791 = vor.u32 %v789, %v790
  %v792 = vshll.u32 2102212464, %v780
  %v793 = vshrl.u32 920167782, %v781
  %v794 = vor.u32 %v792, %v793
  %v795 = vshll.u32 920167782, %v780
  %v796 = vshrl.u32 1326507024, %v781
  %v797 = vor.u32 %v795, %v796
  %vm798 = vcmp.lt.s32.totalorder %v779, 1
  %vm799 = vcmp.lt.s32.totalorder %v779, 2
  %vm800 = vcmp.lt.s32.totalorder %v779, 3
  %vm801 = vcmp.lt.s32.totalorder %v779, 4
  %v802 = vsel %vm798, %v782, %v785
  %v803 = vsel %vm801, %v791, 2102212464
  %v804 = vsel %vm800, %v788, %v803
  %v805 = vsel %vm799, %v802, %v804
  %v806 = vsel %vm798, %v785, %v788
  %v807 = vsel %vm801, %v794, 920167782
  %v808 = vsel %vm800, %v791, %v807
  %v809 = vsel %vm799, %v806, %v808
  %v810 = vsel %vm798, %v788, %v791
  %v811 = vsel %vm801, %v797, 1326507024
  %v812 = vsel %vm800, %v794, %v811
  %v813 = vsel %vm799, %v810, %v812
  %v814 = vshll.u32 %v774, 8
  %v815 = vand.u32 %v814, 65535
  %v816 = vshrl.u32 %v814, 16
  %v817 = vand.u32 %v813, 65535
  %v818 = vshrl.u32 %v813, 16
  %v819 = vmul.u32 %v815, %v817
  %v820 = vmul.u32 %v815, %v818
  %v821 = vmul.u32 %v816, %v817
  %v822 = vmul.u32 %v816, %v818
  %v823 = vshll.u32 %v820, 16
  %v824 = vshrl.u32 %v820, 16
  %v825 = vshll.u32 %v821, 16
  %v826 = vshrl.u32 %v821, 16
  %vm827 = vc.u32 %v819, %v823
  %v828 = vsel %vm827, 1, 0
  %v829 = vadd.s32 %v819, %v823
  %v830 = vadd.s32 %v822, %v828
  %vm831 = vc.u32 %v829, %v825
  %v832 = vsel %vm831, 1, 0
  %v833 = vadd.s32 %v829, %v825
  %v834 = vadd.s32 %v830, %v832
  %v835 = vadd.s32 %v834, %v824
  %v836 = vadd.s32 %v835, %v826
  %v837 = vand.u32 %v814, 65535
  %v838 = vshrl.u32 %v814, 16
  %v839 = vand.u32 %v809, 65535
  %v840 = vshrl.u32 %v809, 16
  %v841 = vmul.u32 %v837, %v839
  %v842 = vmul.u32 %v837, %v840
  %v843 = vmul.u32 %v838, %v839
  %v844 = vmul.u32 %v838, %v840
  %v845 = vshll.u32 %v842, 16
  %v846 = vshrl.u32 %v842, 16
  %v847 = vshll.u32 %v843, 16
  %v848 = vshrl.u32 %v843, 16
  %vm849 = vc.u32 %v841, %v845
  %v850 = vsel %vm849, 1, 0
  %v851 = vadd.s32 %v841, %v845
  %v852 = vadd.s32 %v844, %v850
  %vm853 = vc.u32 %v851, %v847
  %v854 = vsel %vm853, 1, 0
  %v855 = vadd.s32 %v851, %v847
  %v856 = vadd.s32 %v852, %v854
  %v857 = vadd.s32 %v856, %v846
  %v858 = vadd.s32 %v857, %v848
  %v859 = vmul.u32 %v814, %v805
  %v860 = vadd.s32 %v836, %v855
  %vm861 = vc.u32 %v836, %v855
  %v862 = vadd.s32 %v858, 1
  %v863 = vsel %vm861, %v862, %v858
  %v864 = vadd.s32 %v859, %v863
  %v865 = vadd.s32 %v864, 536870912
  %v866 = vshrl.u32 %v865, 30
  %v867 = vshll.u32 %v866, 30
  %v868 = vsub.s32 %v864, %v867
  %vm869 = vcmp.lt.s32.totalorder %v868, 0
  %v870 = vsub.s32 0, %v868
  %v871 = vsel %vm869, %v870, %v868
  %v872 = vclz %v871
  %v873 = vsub.s32 %v872, 2
  %vm874 = vcmp.gt.s32.totalorder 0, %v873
  %v875 = vsel %vm874, 0, %v873
  %v876 = vsub.s32 32, %v875
  %v877 = vshll.u32 %v868, %v875
  %v878 = vshrl.u32 %v860, %v876
  %v879 = vor.u32 %v877, %v878
  %v880 = vsub.s32 4294967266, %v875
  %v881 = vadd.s32 %v880, 127
  %v882 = vshll.u32 %v881, 23
  %v883 = vor.u32 4788187, %v882
  %v884 = vand.u32 2147483647, %v883
  %v886 = vcvt.s32.f32 %v879
  %v887 = vmul.f32 %v886, %v884
  %v888 = vxor.u32 %v887, 2147483648
  %v889 = vsel %vm768, %v888, %v887
  %v890 = vsub.s32 4, %v866
  %v891 = vsel %vm768, %v890, %v866
  %v892 = vsel %vm767, %v272, %v889
  %v893 = vsel %vm767, 0, %v891
  %v894 = vmul.f32 %v892, %v892
  %v895 = vmul.f32 %v894, -0.001358992
  %v896 = vadd.f32 %v895, 0.041655596
  %v897 = vmul.f32 %v894, %v896
  %v898 = vadd.f32 %v897, -0.4999988
  %v899 = vmul.f32 %v894, %v898
  %v900 = vadd.f32 1.0, %v899
  %v901 = vmul.f32 %v892, %v892
  %v902 = vmul.f32 %v901, -0.00019511016
  %v903 = vadd.f32 %v902, 0.008332121
  %v904 = vmul.f32 %v901, %v903
  %v905 = vadd.f32 %v904, -0.16666654
  %v906 = vmul.f32 %v901, %v905
  %v907 = vadd.f32 %v906, 1.0
  %v908 = vmul.f32 %v907, %v892
  %vm909 = vweird.f32 %v272
  %v910 = vadd.s32 %v893, 3
  %v911 = vand.u32 %v910, 3
  %vm912 = vcmp.lt.s32.totalorder %v911, 2
  %vm913 = vcmp.eq.s32.totalorder %v911, 0
  %v914 = vxor.u32 %v908, 2147483648
  %v915 = vsel %vm913, %v900, %v914
  %vm916 = vcmp.eq.s32.totalorder %v911, 2
  %v917 = vxor.u32 %v900, 2147483648
  %v918 = vsel %vm916, %v917, %v908
  %v919 = vsel %vm912, %v915, %v918
  %v920 = vsel %vm909, nan, %v919
  %v921 = vand.u32 2147483647, %v273
  %vm922 = vcmp.le.f32.partialorder %v921, 0.7853982
  %vm923 = vcmp.lt.s32.totalorder %v273, 0
  %v924 = vand.u32 %v273, 2139095040
  %v925 = vshrl.u32 %v924, 23
  %v926 = vsub.s32 %v925, 127
  %v927 = vand.u32 2147483647, %v273
  %v928 = vand.u32 %v927, 8388607
  %v929 = vor.u32 %v928, 8388608
  %v930 = vsub.s32 0, %v929
  %v931 = vadd.s32 %v926, 1
  %vm932 = vcmp.gt.s32.totalorder %v931, 0
  %v933 = vsel %vm932, %v931, 0
  %v934 = vshrl.u32 %v933, 5
  %v935 = vand.u32 %v933, 31
  %v936 = vsub.s32 32, %v935
  %v937 = vshrl.u32 683565275, %v936
  %v938 = vshll.u32 683565275, %v935
  %v939 = vshrl.u32 2475754826, %v936
  %v940 = vor.u32 %v938, %v939
  %v941 = vshll.u32 2475754826, %v935
  %v942 = vshrl.u32 2131351028, %v936
  %v943 = vor.u32 %v941, %v942
  %v944 = vshll.u32 2131351028, %v935
  %v945 = vshrl.u32 2102212464, %v936
  %v946 = vor.u32 %v944, %v945
  %v947 = vshll.u32 2102212464, %v935
  %v948 = vshrl.u32 920167782, %v936
  %v949 = vor.u32 %v947, %v948
  %v950 = vshll.u32 920167782, %v935
  %v951 = vshrl.u32 1326507024, %v936
  %v952 = vor.u32 %v950, %v951
  %vm953 = vcmp.lt.s32.totalorder %v934, 1
  %vm954 = vcmp.lt.s32.totalorder %v934, 2
  %vm955 = vcmp.lt.s32.totalorder %v934, 3
  %vm956 = vcmp.lt.s32.totalorder %v934, 4
  %v957 = vsel %vm953, %v937, %v940
  %v958 = vsel %vm956, %v946, 2102212464
  %v959 = vsel %vm955, %v943, %v958
  %v960 = vsel %vm954, %v957, %v959
  %v961 = vsel %vm953, %v940, %v943
  %v962 = vsel %vm956, %v949, 920167782
  %v963 = vsel %vm955, %v946, %v962
  %v964 = vsel %vm954, %v961, %v963
  %v965 = vsel %vm953, %v943, %v946
  %v966 = vsel %vm956, %v952, 1326507024
  %v967 = vsel %vm955, %v949, %v966
  %v968 = vsel %vm954, %v965, %v967
  %v969 = vshll.u32 %v929, 8
  %v970 = vand.u32 %v969, 65535
  %v971 = vshrl.u32 %v969, 16
  %v972 = vand.u32 %v968, 65535
  %v973 = vshrl.u32 %v968, 16
  %v974 = vmul.u32 %v970, %v972
  %v975 = vmul.u32 %v970, %v973
  %v976 = vmul.u32 %v971, %v972
  %v977 = vmul.u32 %v971, %v973
  %v978 = vshll.u32 %v975, 16
  %v979 = vshrl.u32 %v975, 16
  %v980 = vshll.u32 %v976, 16
  %v981 = vshrl.u32 %v976, 16
  %vm982 = vc.u32 %v974, %v978
  %v983 = vsel %vm982, 1, 0
  %v984 = vadd.s32 %v974, %v978
  %v985 = vadd.s32 %v977, %v983
  %vm986 = vc.u32 %v984, %v980
  %v987 = vsel %vm986, 1, 0
  %v988 = vadd.s32 %v984, %v980
  %v989 = vadd.s32 %v985, %v987
  %v990 = vadd.s32 %v989, %v979
  %v991 = vadd.s32 %v990, %v981
  %v992 = vand.u32 %v969, 65535
  %v993 = vshrl.u32 %v969, 16
  %v994 = vand.u32 %v964, 65535
  %v995 = vshrl.u32 %v964, 16
  %v996 = vmul.u32 %v992, %v994
  %v997 = vmul.u32 %v992, %v995
  %v998 = vmul.u32 %v993, %v994
  %v999 = vmul.u32 %v993, %v995
  %v1000 = vshll.u32 %v997, 16
  %v1001 = vshrl.u32 %v997, 16
  %v1002 = vshll.u32 %v998, 16
  %v1003 = vshrl.u32 %v998, 16
  %vm1004 = vc.u32 %v996, %v1000
  %v1005 = vsel %vm1004, 1, 0
  %v1006 = vadd.s32 %v996, %v1000
  %v1007 = vadd.s32 %v999, %v1005
  %vm1008 = vc.u32 %v1006, %v1002
  %v1009 = vsel %vm1008, 1, 0
  %v1010 = vadd.s32 %v1006, %v1002
  %v1011 = vadd.s32 %v1007, %v1009
  %v1012 = vadd.s32 %v1011, %v1001
  %v1013 = vadd.s32 %v1012, %v1003
  %v1014 = vmul.u32 %v969, %v960
  %v1015 = vadd.s32 %v991, %v1010
  %vm1016 = vc.u32 %v991, %v1010
  %v1017 = vadd.s32 %v1013, 1
  %v1018 = vsel %vm1016, %v1017, %v1013
  %v1019 = vadd.s32 %v1014, %v1018
  %v1020 = vadd.s32 %v1019, 536870912
  %v1021 = vshrl.u32 %v1020, 30
  %v1022 = vshll.u32 %v1021, 30
  %v1023 = vsub.s32 %v1019, %v1022
  %vm1024 = vcmp.lt.s32.totalorder %v1023, 0
  %v1025 = vsub.s32 0, %v1023
  %v1026 = vsel %vm1024, %v1025, %v1023
  %v1027 = vclz %v1026
  %v1028 = vsub.s32 %v1027, 2
  %vm1029 = vcmp.gt.s32.totalorder 0, %v1028
  %v1030 = vsel %vm1029, 0, %v1028
  %v1031 = vsub.s32 32, %v1030
  %v1032 = vshll.u32 %v1023, %v1030
  %v1033 = vshrl.u32 %v1015, %v1031
  %v1034 = vor.u32 %v1032, %v1033
  %v1035 = vsub.s32 4294967266, %v1030
  %v1036 = vadd.s32 %v1035, 127
  %v1037 = vshll.u32 %v1036, 23
  %v1038 = vor.u32 4788187, %v1037
  %v1039 = vand.u32 2147483647, %v1038
  %v1041 = vcvt.s32.f32 %v1034
  %v1042 = vmul.f32 %v1041, %v1039
  %v1043 = vxor.u32 %v1042, 2147483648
  %v1044 = vsel %vm923, %v1043, %v1042
  %v1045 = vsub.s32 4, %v1021
  %v1046 = vsel %vm923, %v1045, %v1021
  %v1047 = vsel %vm922, %v273, %v1044
  %v1048 = vsel %vm922, 0, %v1046
  %v1049 = vmul.f32 %v1047, %v1047
  %v1050 = vmul.f32 %v1049, -0.001358992
  %v1051 = vadd.f32 %v1050, 0.041655596
  %v1052 = vmul.f32 %v1049, %v1051
  %v1053 = vadd.f32 %v1052, -0.4999988
  %v1054 = vmul.f32 %v1049, %v1053
  %v1055 = vadd.f32 1.0, %v1054
  %v1056 = vmul.f32 %v1047, %v1047
  %v1057 = vmul.f32 %v1056, -0.00019511016
  %v1058 = vadd.f32 %v1057, 0.008332121
  %v1059 = vmul.f32 %v1056, %v1058
  %v1060 = vadd.f32 %v1059, -0.16666654
  %v1061 = vmul.f32 %v1056, %v1060
  %v1062 = vadd.f32 %v1061, 1.0
  %v1063 = vmul.f32 %v1062, %v1047
  %vm1064 = vweird.f32 %v273
  %v1065 = vadd.s32 %v1048, 3
  %v1066 = vand.u32 %v1065, 3
  %vm1067 = vcmp.lt.s32.totalorder %v1066, 2
  %vm1068 = vcmp.eq.s32.totalorder %v1066, 0
  %v1069 = vxor.u32 %v1063, 2147483648
  %v1070 = vsel %vm1068, %v1055, %v1069
  %vm1071 = vcmp.eq.s32.totalorder %v1066, 2
  %v1072 = vxor.u32 %v1055, 2147483648
  %v1073 = vsel %vm1071, %v1072, %v1063
  %v1074 = vsel %vm1067, %v1070, %v1073
  %v1075 = vsel %vm1064, nan, %v1074
  %v1076 = vand.u32 2147483647, %v274
  %vm1077 = vcmp.le.f32.partialorder %v1076, 0.7853982
  %vm1078 = vcmp.lt.s32.totalorder %v274, 0
  %v1079 = vand.u32 %v274, 2139095040
  %v1080 = vshrl.u32 %v1079, 23
  %v1081 = vsub.s32 %v1080, 127
  %v1082 = vand.u32 2147483647, %v274
  %v1083 = vand.u32 %v1082, 8388607
  %v1084 = vor.u32 %v1083, 8388608
  %v1085 = vsub.s32 0, %v1084
  %v1086 = vadd.s32 %v1081, 1
  %vm1087 = vcmp.gt.s32.totalorder %v1086, 0
  %v1088 = vsel %vm1087, %v1086, 0
  %v1089 = vshrl.u32 %v1088, 5
  %v1090 = vand.u32 %v1088, 31
  %v1091 = vsub.s32 32, %v1090
  %v1092 = vshrl.u32 683565275, %v1091
  %v1093 = vshll.u32 683565275, %v1090
  %v1094 = vshrl.u32 2475754826, %v1091
  %v1095 = vor.u32 %v1093, %v1094
  %v1096 = vshll.u32 2475754826, %v1090
  %v1097 = vshrl.u32 2131351028, %v1091
  %v1098 = vor.u32 %v1096, %v1097
  %v1099 = vshll.u32 2131351028, %v1090
  %v1100 = vshrl.u32 2102212464, %v1091
  %v1101 = vor.u32 %v1099, %v1100
  %v1102 = vshll.u32 2102212464, %v1090
  %v1103 = vshrl.u32 920167782, %v1091
  %v1104 = vor.u32 %v1102, %v1103
  %v1105 = vshll.u32 920167782, %v1090
  %v1106 = vshrl.u32 1326507024, %v1091
  %v1107 = vor.u32 %v1105, %v1106
  %vm1108 = vcmp.lt.s32.totalorder %v1089, 1
  %vm1109 = vcmp.lt.s32.totalorder %v1089, 2
  %vm1110 = vcmp.lt.s32.totalorder %v1089, 3
  %vm1111 = vcmp.lt.s32.totalorder %v1089, 4
  %v1112 = vsel %vm1108, %v1092, %v1095
  %v1113 = vsel %vm1111, %v1101, 2102212464
  %v1114 = vsel %vm1110, %v1098, %v1113
  %v1115 = vsel %vm1109, %v1112, %v1114
  %v1116 = vsel %vm1108, %v1095, %v1098
  %v1117 = vsel %vm1111, %v1104, 920167782
  %v1118 = vsel %vm1110, %v1101, %v1117
  %v1119 = vsel %vm1109, %v1116, %v1118
  %v1120 = vsel %vm1108, %v1098, %v1101
  %v1121 = vsel %vm1111, %v1107, 1326507024
  %v1122 = vsel %vm1110, %v1104, %v1121
  %v1123 = vsel %vm1109, %v1120, %v1122
  %v1124 = vshll.u32 %v1084, 8
  %v1125 = vand.u32 %v1124, 65535
  %v1126 = vshrl.u32 %v1124, 16
  %v1127 = vand.u32 %v1123, 65535
  %v1128 = vshrl.u32 %v1123, 16
  %v1129 = vmul.u32 %v1125, %v1127
  %v1130 = vmul.u32 %v1125, %v1128
  %v1131 = vmul.u32 %v1126, %v1127
  %v1132 = vmul.u32 %v1126, %v1128
  %v1133 = vshll.u32 %v1130, 16
  %v1134 = vshrl.u32 %v1130, 16
  %v1135 = vshll.u32 %v1131, 16
  %v1136 = vshrl.u32 %v1131, 16
  %vm1137 = vc.u32 %v1129, %v1133
  %v1138 = vsel %vm1137, 1, 0
  %v1139 = vadd.s32 %v1129, %v1133
  %v1140 = vadd.s32 %v1132, %v1138
  %vm1141 = vc.u32 %v1139, %v1135
  %v1142 = vsel %vm1141, 1, 0
  %v1143 = vadd.s32 %v1139, %v1135
  %v1144 = vadd.s32 %v1140, %v1142
  %v1145 = vadd.s32 %v1144, %v1134
  %v1146 = vadd.s32 %v1145, %v1136
  %v1147 = vand.u32 %v1124, 65535
  %v1148 = vshrl.u32 %v1124, 16
  %v1149 = vand.u32 %v1119, 65535
  %v1150 = vshrl.u32 %v1119, 16
  %v1151 = vmul.u32 %v1147, %v1149
  %v1152 = vmul.u32 %v1147, %v1150
  %v1153 = vmul.u32 %v1148, %v1149
  %v1154 = vmul.u32 %v1148, %v1150
  %v1155 = vshll.u32 %v1152, 16
  %v1156 = vshrl.u32 %v1152, 16
  %v1157 = vshll.u32 %v1153, 16
  %v1158 = vshrl.u32 %v1153, 16
  %vm1159 = vc.u32 %v1151, %v1155
  %v1160 = vsel %vm1159, 1, 0
  %v1161 = vadd.s32 %v1151, %v1155
  %v1162 = vadd.s32 %v1154, %v1160
  %vm1163 = vc.u32 %v1161, %v1157
  %v1164 = vsel %vm1163, 1, 0
  %v1165 = vadd.s32 %v1161, %v1157
  %v1166 = vadd.s32 %v1162, %v1164
  %v1167 = vadd.s32 %v1166, %v1156
  %v1168 = vadd.s32 %v1167, %v1158
  %v1169 = vmul.u32 %v1124, %v1115
  %v1170 = vadd.s32 %v1146, %v1165
  %vm1171 = vc.u32 %v1146, %v1165
  %v1172 = vadd.s32 %v1168, 1
  %v1173 = vsel %vm1171, %v1172, %v1168
  %v1174 = vadd.s32 %v1169, %v1173
  %v1175 = vadd.s32 %v1174, 536870912
  %v1176 = vshrl.u32 %v1175, 30
  %v1177 = vshll.u32 %v1176, 30
  %v1178 = vsub.s32 %v1174, %v1177
  %vm1179 = vcmp.lt.s32.totalorder %v1178, 0
  %v1180 = vsub.s32 0, %v1178
  %v1181 = vsel %vm1179, %v1180, %v1178
  %v1182 = vclz %v1181
  %v1183 = vsub.s32 %v1182, 2
  %vm1184 = vcmp.gt.s32.totalorder 0, %v1183
  %v1185 = vsel %vm1184, 0, %v1183
  %v1186 = vsub.s32 32, %v1185
  %v1187 = vshll.u32 %v1178, %v1185
  %v1188 = vshrl.u32 %v1170, %v1186
  %v1189 = vor.u32 %v1187, %v1188
  %v1190 = vsub.s32 4294967266, %v1185
  %v1191 = vadd.s32 %v1190, 127
  %v1192 = vshll.u32 %v1191, 23
  %v1193 = vor.u32 4788187, %v1192
  %v1194 = vand.u32 2147483647, %v1193
  %v1196 = vcvt.s32.f32 %v1189
  %v1197 = vmul.f32 %v1196, %v1194
  %v1198 = vxor.u32 %v1197, 2147483648
  %v1199 = vsel %vm1078, %v1198, %v1197
  %v1200 = vsub.s32 4, %v1176
  %v1201 = vsel %vm1078, %v1200, %v1176
  %v1202 = vsel %vm1077, %v274, %v1199
  %v1203 = vsel %vm1077, 0, %v1201
  %v1204 = vmul.f32 %v1202, %v1202
  %v1205 = vmul.f32 %v1204, -0.001358992
  %v1206 = vadd.f32 %v1205, 0.041655596
  %v1207 = vmul.f32 %v1204, %v1206
  %v1208 = vadd.f32 %v1207, -0.4999988
  %v1209 = vmul.f32 %v1204, %v1208
  %v1210 = vadd.f32 1.0, %v1209
  %v1211 = vmul.f32 %v1202, %v1202
  %v1212 = vmul.f32 %v1211, -0.00019511016
  %v1213 = vadd.f32 %v1212, 0.008332121
  %v1214 = vmul.f32 %v1211, %v1213
  %v1215 = vadd.f32 %v1214, -0.16666654
  %v1216 = vmul.f32 %v1211, %v1215
  %v1217 = vadd.f32 %v1216, 1.0
  %v1218 = vmul.f32 %v1217, %v1202
  %vm1219 = vweird.f32 %v274
  %v1220 = vadd.s32 %v1203, 3
  %v1221 = vand.u32 %v1220, 3
  %vm1222 = vcmp.lt.s32.totalorder %v1221, 2
  %vm1223 = vcmp.eq.s32.totalorder %v1221, 0
  %v1224 = vxor.u32 %v1218, 2147483648
  %v1225 = vsel %vm1223, %v1210, %v1224
  %vm1226 = vcmp.eq.s32.totalorder %v1221, 2
  %v1227 = vxor.u32 %v1210, 2147483648
  %v1228 = vsel %vm1226, %v1227, %v1218
  %v1229 = vsel %vm1222, %v1225, %v1228
  %v1230 = vsel %vm1219, nan, %v1229
  %v1231 = vand.u32 2147483647, %v275
  %vm1232 = vcmp.le.f32.partialorder %v1231, 0.7853982
  %vm1233 = vcmp.lt.s32.totalorder %v275, 0
  %v1234 = vand.u32 %v275, 2139095040
  %v1235 = vshrl.u32 %v1234, 23
  %v1236 = vsub.s32 %v1235, 127
  %v1237 = vand.u32 2147483647, %v275
  %v1238 = vand.u32 %v1237, 8388607
  %v1239 = vor.u32 %v1238, 8388608
  %v1240 = vsub.s32 0, %v1239
  %v1241 = vadd.s32 %v1236, 1
  %vm1242 = vcmp.gt.s32.totalorder %v1241, 0
  %v1243 = vsel %vm1242, %v1241, 0
  %v1244 = vshrl.u32 %v1243, 5
  %v1245 = vand.u32 %v1243, 31
  %v1246 = vsub.s32 32, %v1245
  %v1247 = vshrl.u32 683565275, %v1246
  %v1248 = vshll.u32 683565275, %v1245
  %v1249 = vshrl.u32 2475754826, %v1246
  %v1250 = vor.u32 %v1248, %v1249
  %v1251 = vshll.u32 2475754826, %v1245
  %v1252 = vshrl.u32 2131351028, %v1246
  %v1253 = vor.u32 %v1251, %v1252
  %v1254 = vshll.u32 2131351028, %v1245
  %v1255 = vshrl.u32 2102212464, %v1246
  %v1256 = vor.u32 %v1254, %v1255
  %v1257 = vshll.u32 2102212464, %v1245
  %v1258 = vshrl.u32 920167782, %v1246
  %v1259 = vor.u32 %v1257, %v1258
  %v1260 = vshll.u32 920167782, %v1245
  %v1261 = vshrl.u32 1326507024, %v1246
  %v1262 = vor.u32 %v1260, %v1261
  %vm1263 = vcmp.lt.s32.totalorder %v1244, 1
  %vm1264 = vcmp.lt.s32.totalorder %v1244, 2
  %vm1265 = vcmp.lt.s32.totalorder %v1244, 3
  %vm1266 = vcmp.lt.s32.totalorder %v1244, 4
  %v1267 = vsel %vm1263, %v1247, %v1250
  %v1268 = vsel %vm1266, %v1256, 2102212464
  %v1269 = vsel %vm1265, %v1253, %v1268
  %v1270 = vsel %vm1264, %v1267, %v1269
  %v1271 = vsel %vm1263, %v1250, %v1253
  %v1272 = vsel %vm1266, %v1259, 920167782
  %v1273 = vsel %vm1265, %v1256, %v1272
  %v1274 = vsel %vm1264, %v1271, %v1273
  %v1275 = vsel %vm1263, %v1253, %v1256
  %v1276 = vsel %vm1266, %v1262, 1326507024
  %v1277 = vsel %vm1265, %v1259, %v1276
  %v1278 = vsel %vm1264, %v1275, %v1277
  %v1279 = vshll.u32 %v1239, 8
  %v1280 = vand.u32 %v1279, 65535
  %v1281 = vshrl.u32 %v1279, 16
  %v1282 = vand.u32 %v1278, 65535
  %v1283 = vshrl.u32 %v1278, 16
  %v1284 = vmul.u32 %v1280, %v1282
  %v1285 = vmul.u32 %v1280, %v1283
  %v1286 = vmul.u32 %v1281, %v1282
  %v1287 = vmul.u32 %v1281, %v1283
  %v1288 = vshll.u32 %v1285, 16
  %v1289 = vshrl.u32 %v1285, 16
  %v1290 = vshll.u32 %v1286, 16
  %v1291 = vshrl.u32 %v1286, 16
  %vm1292 = vc.u32 %v1284, %v1288
  %v1293 = vsel %vm1292, 1, 0
  %v1294 = vadd.s32 %v1284, %v1288
  %v1295 = vadd.s32 %v1287, %v1293
  %vm1296 = vc.u32 %v1294, %v1290
  %v1297 = vsel %vm1296, 1, 0
  %v1298 = vadd.s32 %v1294, %v1290
  %v1299 = vadd.s32 %v1295, %v1297
  %v1300 = vadd.s32 %v1299, %v1289
  %v1301 = vadd.s32 %v1300, %v1291
  %v1302 = vand.u32 %v1279, 65535
  %v1303 = vshrl.u32 %v1279, 16
  %v1304 = vand.u32 %v1274, 65535
  %v1305 = vshrl.u32 %v1274, 16
  %v1306 = vmul.u32 %v1302, %v1304
  %v1307 = vmul.u32 %v1302, %v1305
  %v1308 = vmul.u32 %v1303, %v1304
  %v1309 = vmul.u32 %v1303, %v1305
  %v1310 = vshll.u32 %v1307, 16
  %v1311 = vshrl.u32 %v1307, 16
  %v1312 = vshll.u32 %v1308, 16
  %v1313 = vshrl.u32 %v1308, 16
  %vm1314 = vc.u32 %v1306, %v1310
  %v1315 = vsel %vm1314, 1, 0
  %v1316 = vadd.s32 %v1306, %v1310
  %v1317 = vadd.s32 %v1309, %v1315
  %vm1318 = vc.u32 %v1316, %v1312
  %v1319 = vsel %vm1318, 1, 0
  %v1320 = vadd.s32 %v1316, %v1312
  %v1321 = vadd.s32 %v1317, %v1319
  %v1322 = vadd.s32 %v1321, %v1311
  %v1323 = vadd.s32 %v1322, %v1313
  %v1324 = vmul.u32 %v1279, %v1270
  %v1325 = vadd.s32 %v1301, %v1320
  %vm1326 = vc.u32 %v1301, %v1320
  %v1327 = vadd.s32 %v1323, 1
  %v1328 = vsel %vm1326, %v1327, %v1323
  %v1329 = vadd.s32 %v1324, %v1328
  %v1330 = vadd.s32 %v1329, 536870912
  %v1331 = vshrl.u32 %v1330, 30
  %v1332 = vshll.u32 %v1331, 30
  %v1333 = vsub.s32 %v1329, %v1332
  %vm1334 = vcmp.lt.s32.totalorder %v1333, 0
  %v1335 = vsub.s32 0, %v1333
  %v1336 = vsel %vm1334, %v1335, %v1333
  %v1337 = vclz %v1336
  %v1338 = vsub.s32 %v1337, 2
  %vm1339 = vcmp.gt.s32.totalorder 0, %v1338
  %v1340 = vsel %vm1339, 0, %v1338
  %v1341 = vsub.s32 32, %v1340
  %v1342 = vshll.u32 %v1333, %v1340
  %v1343 = vshrl.u32 %v1325, %v1341
  %v1344 = vor.u32 %v1342, %v1343
  %v1345 = vsub.s32 4294967266, %v1340
  %v1346 = vadd.s32 %v1345, 127
  %v1347 = vshll.u32 %v1346, 23
  %v1348 = vor.u32 4788187, %v1347
  %v1349 = vand.u32 2147483647, %v1348
  %v1351 = vcvt.s32.f32 %v1344
  %v1352 = vmul.f32 %v1351, %v1349
  %v1353 = vxor.u32 %v1352, 2147483648
  %v1354 = vsel %vm1233, %v1353, %v1352
  %v1355 = vsub.s32 4, %v1331
  %v1356 = vsel %vm1233, %v1355, %v1331
  %v1357 = vsel %vm1232, %v275, %v1354
  %v1358 = vsel %vm1232, 0, %v1356
  %v1359 = vmul.f32 %v1357, %v1357
  %v1360 = vmul.f32 %v1359, -0.001358992
  %v1361 = vadd.f32 %v1360, 0.041655596
  %v1362 = vmul.f32 %v1359, %v1361
  %v1363 = vadd.f32 %v1362, -0.4999988
  %v1364 = vmul.f32 %v1359, %v1363
  %v1365 = vadd.f32 1.0, %v1364
  %v1366 = vmul.f32 %v1357, %v1357
  %v1367 = vmul.f32 %v1366, -0.00019511016
  %v1368 = vadd.f32 %v1367, 0.008332121
  %v1369 = vmul.f32 %v1366, %v1368
  %v1370 = vadd.f32 %v1369, -0.16666654
  %v1371 = vmul.f32 %v1366, %v1370
  %v1372 = vadd.f32 %v1371, 1.0
  %v1373 = vmul.f32 %v1372, %v1357
  %vm1374 = vweird.f32 %v275
  %v1375 = vadd.s32 %v1358, 3
  %v1376 = vand.u32 %v1375, 3
  %vm1377 = vcmp.lt.s32.totalorder %v1376, 2
  %vm1378 = vcmp.eq.s32.totalorder %v1376, 0
  %v1379 = vxor.u32 %v1373, 2147483648
  %v1380 = vsel %vm1378, %v1365, %v1379
  %vm1381 = vcmp.eq.s32.totalorder %v1376, 2
  %v1382 = vxor.u32 %v1365, 2147483648
  %v1383 = vsel %vm1381, %v1382, %v1373
  %v1384 = vsel %vm1377, %v1380, %v1383
  %v1385 = vsel %vm1374, nan, %v1384
  %v1386 = vand.u32 2147483647, %v276
  %vm1387 = vcmp.le.f32.partialorder %v1386, 0.7853982
  %vm1388 = vcmp.lt.s32.totalorder %v276, 0
  %v1389 = vand.u32 %v276, 2139095040
  %v1390 = vshrl.u32 %v1389, 23
  %v1391 = vsub.s32 %v1390, 127
  %v1392 = vand.u32 2147483647, %v276
  %v1393 = vand.u32 %v1392, 8388607
  %v1394 = vor.u32 %v1393, 8388608
  %v1395 = vsub.s32 0, %v1394
  %v1396 = vadd.s32 %v1391, 1
  %vm1397 = vcmp.gt.s32.totalorder %v1396, 0
  %v1398 = vsel %vm1397, %v1396, 0
  %v1399 = vshrl.u32 %v1398, 5
  %v1400 = vand.u32 %v1398, 31
  %v1401 = vsub.s32 32, %v1400
  %v1402 = vshrl.u32 683565275, %v1401
  %v1403 = vshll.u32 683565275, %v1400
  %v1404 = vshrl.u32 2475754826, %v1401
  %v1405 = vor.u32 %v1403, %v1404
  %v1406 = vshll.u32 2475754826, %v1400
  %v1407 = vshrl.u32 2131351028, %v1401
  %v1408 = vor.u32 %v1406, %v1407
  %v1409 = vshll.u32 2131351028, %v1400
  %v1410 = vshrl.u32 2102212464, %v1401
  %v1411 = vor.u32 %v1409, %v1410
  %v1412 = vshll.u32 2102212464, %v1400
  %v1413 = vshrl.u32 920167782, %v1401
  %v1414 = vor.u32 %v1412, %v1413
  %v1415 = vshll.u32 920167782, %v1400
  %v1416 = vshrl.u32 1326507024, %v1401
  %v1417 = vor.u32 %v1415, %v1416
  %vm1418 = vcmp.lt.s32.totalorder %v1399, 1
  %vm1419 = vcmp.lt.s32.totalorder %v1399, 2
  %vm1420 = vcmp.lt.s32.totalorder %v1399, 3
  %vm1421 = vcmp.lt.s32.totalorder %v1399, 4
  %v1422 = vsel %vm1418, %v1402, %v1405
  %v1423 = vsel %vm1421, %v1411, 2102212464
  %v1424 = vsel %vm1420, %v1408, %v1423
  %v1425 = vsel %vm1419, %v1422, %v1424
  %v1426 = vsel %vm1418, %v1405, %v1408
  %v1427 = vsel %vm1421, %v1414, 920167782
  %v1428 = vsel %vm1420, %v1411, %v1427
  %v1429 = vsel %vm1419, %v1426, %v1428
  %v1430 = vsel %vm1418, %v1408, %v1411
  %v1431 = vsel %vm1421, %v1417, 1326507024
  %v1432 = vsel %vm1420, %v1414, %v1431
  %v1433 = vsel %vm1419, %v1430, %v1432
  %v1434 = vshll.u32 %v1394, 8
  %v1435 = vand.u32 %v1434, 65535
  %v1436 = vshrl.u32 %v1434, 16
  %v1437 = vand.u32 %v1433, 65535
  %v1438 = vshrl.u32 %v1433, 16
  %v1439 = vmul.u32 %v1435, %v1437
  %v1440 = vmul.u32 %v1435, %v1438
  %v1441 = vmul.u32 %v1436, %v1437
  %v1442 = vmul.u32 %v1436, %v1438
  %v1443 = vshll.u32 %v1440, 16
  %v1444 = vshrl.u32 %v1440, 16
  %v1445 = vshll.u32 %v1441, 16
  %v1446 = vshrl.u32 %v1441, 16
  %vm1447 = vc.u32 %v1439, %v1443
  %v1448 = vsel %vm1447, 1, 0
  %v1449 = vadd.s32 %v1439, %v1443
  %v1450 = vadd.s32 %v1442, %v1448
  %vm1451 = vc.u32 %v1449, %v1445
  %v1452 = vsel %vm1451, 1, 0
  %v1453 = vadd.s32 %v1449, %v1445
  %v1454 = vadd.s32 %v1450, %v1452
  %v1455 = vadd.s32 %v1454, %v1444
  %v1456 = vadd.s32 %v1455, %v1446
  %v1457 = vand.u32 %v1434, 65535
  %v1458 = vshrl.u32 %v1434, 16
  %v1459 = vand.u32 %v1429, 65535
  %v1460 = vshrl.u32 %v1429, 16
  %v1461 = vmul.u32 %v1457, %v1459
  %v1462 = vmul.u32 %v1457, %v1460
  %v1463 = vmul.u32 %v1458, %v1459
  %v1464 = vmul.u32 %v1458, %v1460
  %v1465 = vshll.u32 %v1462, 16
  %v1466 = vshrl.u32 %v1462, 16
  %v1467 = vshll.u32 %v1463, 16
  %v1468 = vshrl.u32 %v1463, 16
  %vm1469 = vc.u32 %v1461, %v1465
  %v1470 = vsel %vm1469, 1, 0
  %v1471 = vadd.s32 %v1461, %v1465
  %v1472 = vadd.s32 %v1464, %v1470
  %vm1473 = vc.u32 %v1471, %v1467
  %v1474 = vsel %vm1473, 1, 0
  %v1475 = vadd.s32 %v1471, %v1467
  %v1476 = vadd.s32 %v1472, %v1474
  %v1477 = vadd.s32 %v1476, %v1466
  %v1478 = vadd.s32 %v1477, %v1468
  %v1479 = vmul.u32 %v1434, %v1425
  %v1480 = vadd.s32 %v1456, %v1475
  %vm1481 = vc.u32 %v1456, %v1475
  %v1482 = vadd.s32 %v1478, 1
  %v1483 = vsel %vm1481, %v1482, %v1478
  %v1484 = vadd.s32 %v1479, %v1483
  %v1485 = vadd.s32 %v1484, 536870912
  %v1486 = vshrl.u32 %v1485, 30
  %v1487 = vshll.u32 %v1486, 30
  %v1488 = vsub.s32 %v1484, %v1487
  %vm1489 = vcmp.lt.s32.totalorder %v1488, 0
  %v1490 = vsub.s32 0, %v1488
  %v1491 = vsel %vm1489, %v1490, %v1488
  %v1492 = vclz %v1491
  %v1493 = vsub.s32 %v1492, 2
  %vm1494 = vcmp.gt.s32.totalorder 0, %v1493
  %v1495 = vsel %vm1494, 0, %v1493
  %v1496 = vsub.s32 32, %v1495
  %v1497 = vshll.u32 %v1488, %v1495
  %v1498 = vshrl.u32 %v1480, %v1496
  %v1499 = vor.u32 %v1497, %v1498
  %v1500 = vsub.s32 4294967266, %v1495
  %v1501 = vadd.s32 %v1500, 127
  %v1502 = vshll.u32 %v1501, 23
  %v1503 = vor.u32 4788187, %v1502
  %v1504 = vand.u32 2147483647, %v1503
  %v1506 = vcvt.s32.f32 %v1499
  %v1507 = vmul.f32 %v1506, %v1504
  %v1508 = vxor.u32 %v1507, 2147483648
  %v1509 = vsel %vm1388, %v1508, %v1507
  %v1510 = vsub.s32 4, %v1486
  %v1511 = vsel %vm1388, %v1510, %v1486
  %v1512 = vsel %vm1387, %v276, %v1509
  %v1513 = vsel %vm1387, 0, %v1511
  %v1514 = vmul.f32 %v1512, %v1512
  %v1515 = vmul.f32 %v1514, -0.001358992
  %v1516 = vadd.f32 %v1515, 0.041655596
  %v1517 = vmul.f32 %v1514, %v1516
  %v1518 = vadd.f32 %v1517, -0.4999988
  %v1519 = vmul.f32 %v1514, %v1518
  %v1520 = vadd.f32 1.0, %v1519
  %v1521 = vmul.f32 %v1512, %v1512
  %v1522 = vmul.f32 %v1521, -0.00019511016
  %v1523 = vadd.f32 %v1522, 0.008332121
  %v1524 = vmul.f32 %v1521, %v1523
  %v1525 = vadd.f32 %v1524, -0.16666654
  %v1526 = vmul.f32 %v1521, %v1525
  %v1527 = vadd.f32 %v1526, 1.0
  %v1528 = vmul.f32 %v1527, %v1512
  %vm1529 = vweird.f32 %v276
  %v1530 = vadd.s32 %v1513, 3
  %v1531 = vand.u32 %v1530, 3
  %vm1532 = vcmp.lt.s32.totalorder %v1531, 2
  %vm1533 = vcmp.eq.s32.totalorder %v1531, 0
  %v1534 = vxor.u32 %v1528, 2147483648
  %v1535 = vsel %vm1533, %v1520, %v1534
  %vm1536 = vcmp.eq.s32.totalorder %v1531, 2
  %v1537 = vxor.u32 %v1520, 2147483648
  %v1538 = vsel %vm1536, %v1537, %v1528
  %v1539 = vsel %vm1532, %v1535, %v1538
  %v1540 = vsel %vm1529, nan, %v1539
  %v1541 = vand.u32 2147483647, %v277
  %vm1542 = vcmp.le.f32.partialorder %v1541, 0.7853982
  %vm1543 = vcmp.lt.s32.totalorder %v277, 0
  %v1544 = vand.u32 %v277, 2139095040
  %v1545 = vshrl.u32 %v1544, 23
  %v1546 = vsub.s32 %v1545, 127
  %v1547 = vand.u32 2147483647, %v277
  %v1548 = vand.u32 %v1547, 8388607
  %v1549 = vor.u32 %v1548, 8388608
  %v1550 = vsub.s32 0, %v1549
  %v1551 = vadd.s32 %v1546, 1
  %vm1552 = vcmp.gt.s32.totalorder %v1551, 0
  %v1553 = vsel %vm1552, %v1551, 0
  %v1554 = vshrl.u32 %v1553, 5
  %v1555 = vand.u32 %v1553, 31
  %v1556 = vsub.s32 32, %v1555
  %v1557 = vshrl.u32 683565275, %v1556
  %v1558 = vshll.u32 683565275, %v1555
  %v1559 = vshrl.u32 2475754826, %v1556
  %v1560 = vor.u32 %v1558, %v1559
  %v1561 = vshll.u32 2475754826, %v1555
  %v1562 = vshrl.u32 2131351028, %v1556
  %v1563 = vor.u32 %v1561, %v1562
  %v1564 = vshll.u32 2131351028, %v1555
  %v1565 = vshrl.u32 2102212464, %v1556
  %v1566 = vor.u32 %v1564, %v1565
  %v1567 = vshll.u32 2102212464, %v1555
  %v1568 = vshrl.u32 920167782, %v1556
  %v1569 = vor.u32 %v1567, %v1568
  %v1570 = vshll.u32 920167782, %v1555
  %v1571 = vshrl.u32 1326507024, %v1556
  %v1572 = vor.u32 %v1570, %v1571
  %vm1573 = vcmp.lt.s32.totalorder %v1554, 1
  %vm1574 = vcmp.lt.s32.totalorder %v1554, 2
  %vm1575 = vcmp.lt.s32.totalorder %v1554, 3
  %vm1576 = vcmp.lt.s32.totalorder %v1554, 4
  %v1577 = vsel %vm1573, %v1557, %v1560
  %v1578 = vsel %vm1576, %v1566, 2102212464
  %v1579 = vsel %vm1575, %v1563, %v1578
  %v1580 = vsel %vm1574, %v1577, %v1579
  %v1581 = vsel %vm1573, %v1560, %v1563
  %v1582 = vsel %vm1576, %v1569, 920167782
  %v1583 = vsel %vm1575, %v1566, %v1582
  %v1584 = vsel %vm1574, %v1581, %v1583
  %v1585 = vsel %vm1573, %v1563, %v1566
  %v1586 = vsel %vm1576, %v1572, 1326507024
  %v1587 = vsel %vm1575, %v1569, %v1586
  %v1588 = vsel %vm1574, %v1585, %v1587
  %v1589 = vshll.u32 %v1549, 8
  %v1590 = vand.u32 %v1589, 65535
  %v1591 = vshrl.u32 %v1589, 16
  %v1592 = vand.u32 %v1588, 65535
  %v1593 = vshrl.u32 %v1588, 16
  %v1594 = vmul.u32 %v1590, %v1592
  %v1595 = vmul.u32 %v1590, %v1593
  %v1596 = vmul.u32 %v1591, %v1592
  %v1597 = vmul.u32 %v1591, %v1593
  %v1598 = vshll.u32 %v1595, 16
  %v1599 = vshrl.u32 %v1595, 16
  %v1600 = vshll.u32 %v1596, 16
  %v1601 = vshrl.u32 %v1596, 16
  %vm1602 = vc.u32 %v1594, %v1598
  %v1603 = vsel %vm1602, 1, 0
  %v1604 = vadd.s32 %v1594, %v1598
  %v1605 = vadd.s32 %v1597, %v1603
  %vm1606 = vc.u32 %v1604, %v1600
  %v1607 = vsel %vm1606, 1, 0
  %v1608 = vadd.s32 %v1604, %v1600
  %v1609 = vadd.s32 %v1605, %v1607
  %v1610 = vadd.s32 %v1609, %v1599
  %v1611 = vadd.s32 %v1610, %v1601
  %v1612 = vand.u32 %v1589, 65535
  %v1613 = vshrl.u32 %v1589, 16
  %v1614 = vand.u32 %v1584, 65535
  %v1615 = vshrl.u32 %v1584, 16
  %v1616 = vmul.u32 %v1612, %v1614
  %v1617 = vmul.u32 %v1612, %v1615
  %v1618 = vmul.u32 %v1613, %v1614
  %v1619 = vmul.u32 %v1613, %v1615
  %v1620 = vshll.u32 %v1617, 16
  %v1621 = vshrl.u32 %v1617, 16
  %v1622 = vshll.u32 %v1618, 16
  %v1623 = vshrl.u32 %v1618, 16
  %vm1624 = vc.u32 %v1616, %v1620
  %v1625 = vsel %vm1624, 1, 0
  %v1626 = vadd.s32 %v1616, %v1620
  %v1627 = vadd.s32 %v1619, %v1625
  %vm1628 = vc.u32 %v1626, %v1622
  %v1629 = vsel %vm1628, 1, 0
  %v1630 = vadd.s32 %v1626, %v1622
  %v1631 = vadd.s32 %v1627, %v1629
  %v1632 = vadd.s32 %v1631, %v1621
  %v1633 = vadd.s32 %v1632, %v1623
  %v1634 = vmul.u32 %v1589, %v1580
  %v1635 = vadd.s32 %v1611, %v1630
  %vm1636 = vc.u32 %v1611, %v1630
  %v1637 = vadd.s32 %v1633, 1
  %v1638 = vsel %vm1636, %v1637, %v1633
  %v1639 = vadd.s32 %v1634, %v1638
  %v1640 = vadd.s32 %v1639, 536870912
  %v1641 = vshrl.u32 %v1640, 30
  %v1642 = vshll.u32 %v1641, 30
  %v1643 = vsub.s32 %v1639, %v1642
  %vm1644 = vcmp.lt.s32.totalorder %v1643, 0
  %v1645 = vsub.s32 0, %v1643
  %v1646 = vsel %vm1644, %v1645, %v1643
  %v1647 = vclz %v1646
  %v1648 = vsub.s32 %v1647, 2
  %vm1649 = vcmp.gt.s32.totalorder 0, %v1648
  %v1650 = vsel %vm1649, 0, %v1648
  %v1651 = vsub.s32 32, %v1650
  %v1652 = vshll.u32 %v1643, %v1650
  %v1653 = vshrl.u32 %v1635, %v1651
  %v1654 = vor.u32 %v1652, %v1653
  %v1655 = vsub.s32 4294967266, %v1650
  %v1656 = vadd.s32 %v1655, 127
  %v1657 = vshll.u32 %v1656, 23
  %v1658 = vor.u32 4788187, %v1657
  %v1659 = vand.u32 2147483647, %v1658
  %v1661 = vcvt.s32.f32 %v1654
  %v1662 = vmul.f32 %v1661, %v1659
  %v1663 = vxor.u32 %v1662, 2147483648
  %v1664 = vsel %vm1543, %v1663, %v1662
  %v1665 = vsub.s32 4, %v1641
  %v1666 = vsel %vm1543, %v1665, %v1641
  %v1667 = vsel %vm1542, %v277, %v1664
  %v1668 = vsel %vm1542, 0, %v1666
  %v1669 = vmul.f32 %v1667, %v1667
  %v1670 = vmul.f32 %v1669, -0.001358992
  %v1671 = vadd.f32 %v1670, 0.041655596
  %v1672 = vmul.f32 %v1669, %v1671
  %v1673 = vadd.f32 %v1672, -0.4999988
  %v1674 = vmul.f32 %v1669, %v1673
  %v1675 = vadd.f32 1.0, %v1674
  %v1676 = vmul.f32 %v1667, %v1667
  %v1677 = vmul.f32 %v1676, -0.00019511016
  %v1678 = vadd.f32 %v1677, 0.008332121
  %v1679 = vmul.f32 %v1676, %v1678
  %v1680 = vadd.f32 %v1679, -0.16666654
  %v1681 = vmul.f32 %v1676, %v1680
  %v1682 = vadd.f32 %v1681, 1.0
  %v1683 = vmul.f32 %v1682, %v1667
  %vm1684 = vweird.f32 %v277
  %v1685 = vadd.s32 %v1668, 3
  %v1686 = vand.u32 %v1685, 3
  %vm1687 = vcmp.lt.s32.totalorder %v1686, 2
  %vm1688 = vcmp.eq.s32.totalorder %v1686, 0
  %v1689 = vxor.u32 %v1683, 2147483648
  %v1690 = vsel %vm1688, %v1675, %v1689
  %vm1691 = vcmp.eq.s32.totalorder %v1686, 2
  %v1692 = vxor.u32 %v1675, 2147483648
  %v1693 = vsel %vm1691, %v1692, %v1683
  %v1694 = vsel %vm1687, %v1690, %v1693
  %v1695 = vsel %vm1684, nan, %v1694
  %v1696 = vand.u32 2147483647, %v278
  %vm1697 = vcmp.le.f32.partialorder %v1696, 0.7853982
  %vm1698 = vcmp.lt.s32.totalorder %v278, 0
  %v1699 = vand.u32 %v278, 2139095040
  %v1700 = vshrl.u32 %v1699, 23
  %v1701 = vsub.s32 %v1700, 127
  %v1702 = vand.u32 2147483647, %v278
  %v1703 = vand.u32 %v1702, 8388607
  %v1704 = vor.u32 %v1703, 8388608
  %v1705 = vsub.s32 0, %v1704
  %v1706 = vadd.s32 %v1701, 1
  %vm1707 = vcmp.gt.s32.totalorder %v1706, 0
  %v1708 = vsel %vm1707, %v1706, 0
  %v1709 = vshrl.u32 %v1708, 5
  %v1710 = vand.u32 %v1708, 31
  %v1711 = vsub.s32 32, %v1710
  %v1712 = vshrl.u32 683565275, %v1711
  %v1713 = vshll.u32 683565275, %v1710
  %v1714 = vshrl.u32 2475754826, %v1711
  %v1715 = vor.u32 %v1713, %v1714
  %v1716 = vshll.u32 2475754826, %v1710
  %v1717 = vshrl.u32 2131351028, %v1711
  %v1718 = vor.u32 %v1716, %v1717
  %v1719 = vshll.u32 2131351028, %v1710
  %v1720 = vshrl.u32 2102212464, %v1711
  %v1721 = vor.u32 %v1719, %v1720
  %v1722 = vshll.u32 2102212464, %v1710
  %v1723 = vshrl.u32 920167782, %v1711
  %v1724 = vor.u32 %v1722, %v1723
  %v1725 = vshll.u32 920167782, %v1710
  %v1726 = vshrl.u32 1326507024, %v1711
  %v1727 = vor.u32 %v1725, %v1726
  %vm1728 = vcmp.lt.s32.totalorder %v1709, 1
  %vm1729 = vcmp.lt.s32.totalorder %v1709, 2
  %vm1730 = vcmp.lt.s32.totalorder %v1709, 3
  %vm1731 = vcmp.lt.s32.totalorder %v1709, 4
  %v1732 = vsel %vm1728, %v1712, %v1715
  %v1733 = vsel %vm1731, %v1721, 2102212464
  %v1734 = vsel %vm1730, %v1718, %v1733
  %v1735 = vsel %vm1729, %v1732, %v1734
  %v1736 = vsel %vm1728, %v1715, %v1718
  %v1737 = vsel %vm1731, %v1724, 920167782
  %v1738 = vsel %vm1730, %v1721, %v1737
  %v1739 = vsel %vm1729, %v1736, %v1738
  %v1740 = vsel %vm1728, %v1718, %v1721
  %v1741 = vsel %vm1731, %v1727, 1326507024
  %v1742 = vsel %vm1730, %v1724, %v1741
  %v1743 = vsel %vm1729, %v1740, %v1742
  %v1744 = vshll.u32 %v1704, 8
  %v1745 = vand.u32 %v1744, 65535
  %v1746 = vshrl.u32 %v1744, 16
  %v1747 = vand.u32 %v1743, 65535
  %v1748 = vshrl.u32 %v1743, 16
  %v1749 = vmul.u32 %v1745, %v1747
  %v1750 = vmul.u32 %v1745, %v1748
  %v1751 = vmul.u32 %v1746, %v1747
  %v1752 = vmul.u32 %v1746, %v1748
  %v1753 = vshll.u32 %v1750, 16
  %v1754 = vshrl.u32 %v1750, 16
  %v1755 = vshll.u32 %v1751, 16
  %v1756 = vshrl.u32 %v1751, 16
  %vm1757 = vc.u32 %v1749, %v1753
  %v1758 = vsel %vm1757, 1, 0
  %v1759 = vadd.s32 %v1749, %v1753
  %v1760 = vadd.s32 %v1752, %v1758
  %vm1761 = vc.u32 %v1759, %v1755
  %v1762 = vsel %vm1761, 1, 0
  %v1763 = vadd.s32 %v1759, %v1755
  %v1764 = vadd.s32 %v1760, %v1762
  %v1765 = vadd.s32 %v1764, %v1754
  %v1766 = vadd.s32 %v1765, %v1756
  %v1767 = vand.u32 %v1744, 65535
  %v1768 = vshrl.u32 %v1744, 16
  %v1769 = vand.u32 %v1739, 65535
  %v1770 = vshrl.u32 %v1739, 16
  %v1771 = vmul.u32 %v1767, %v1769
  %v1772 = vmul.u32 %v1767, %v1770
  %v1773 = vmul.u32 %v1768, %v1769
  %v1774 = vmul.u32 %v1768, %v1770
  %v1775 = vshll.u32 %v1772, 16
  %v1776 = vshrl.u32 %v1772, 16
  %v1777 = vshll.u32 %v1773, 16
  %v1778 = vshrl.u32 %v1773, 16
  %vm1779 = vc.u32 %v1771, %v1775
  %v1780 = vsel %vm1779, 1, 0
  %v1781 = vadd.s32 %v1771, %v1775
  %v1782 = vadd.s32 %v1774, %v1780
  %vm1783 = vc.u32 %v1781, %v1777
  %v1784 = vsel %vm1783, 1, 0
  %v1785 = vadd.s32 %v1781, %v1777
  %v1786 = vadd.s32 %v1782, %v1784
  %v1787 = vadd.s32 %v1786, %v1776
  %v1788 = vadd.s32 %v1787, %v1778
  %v1789 = vmul.u32 %v1744, %v1735
  %v1790 = vadd.s32 %v1766, %v1785
  %vm1791 = vc.u32 %v1766, %v1785
  %v1792 = vadd.s32 %v1788, 1
  %v1793 = vsel %vm1791, %v1792, %v1788
  %v1794 = vadd.s32 %v1789, %v1793
  %v1795 = vadd.s32 %v1794, 536870912
  %v1796 = vshrl.u32 %v1795, 30
  %v1797 = vshll.u32 %v1796, 30
  %v1798 = vsub.s32 %v1794, %v1797
  %vm1799 = vcmp.lt.s32.totalorder %v1798, 0
  %v1800 = vsub.s32 0, %v1798
  %v1801 = vsel %vm1799, %v1800, %v1798
  %v1802 = vclz %v1801
  %v1803 = vsub.s32 %v1802, 2
  %vm1804 = vcmp.gt.s32.totalorder 0, %v1803
  %v1805 = vsel %vm1804, 0, %v1803
  %v1806 = vsub.s32 32, %v1805
  %v1807 = vshll.u32 %v1798, %v1805
  %v1808 = vshrl.u32 %v1790, %v1806
  %v1809 = vor.u32 %v1807, %v1808
  %v1810 = vsub.s32 4294967266, %v1805
  %v1811 = vadd.s32 %v1810, 127
  %v1812 = vshll.u32 %v1811, 23
  %v1813 = vor.u32 4788187, %v1812
  %v1814 = vand.u32 2147483647, %v1813
  %v1816 = vcvt.s32.f32 %v1809
  %v1817 = vmul.f32 %v1816, %v1814
  %v1818 = vxor.u32 %v1817, 2147483648
  %v1819 = vsel %vm1698, %v1818, %v1817
  %v1820 = vsub.s32 4, %v1796
  %v1821 = vsel %vm1698, %v1820, %v1796
  %v1822 = vsel %vm1697, %v278, %v1819
  %v1823 = vsel %vm1697, 0, %v1821
  %v1824 = vmul.f32 %v1822, %v1822
  %v1825 = vmul.f32 %v1824, -0.001358992
  %v1826 = vadd.f32 %v1825, 0.041655596
  %v1827 = vmul.f32 %v1824, %v1826
  %v1828 = vadd.f32 %v1827, -0.4999988
  %v1829 = vmul.f32 %v1824, %v1828
  %v1830 = vadd.f32 1.0, %v1829
  %v1831 = vmul.f32 %v1822, %v1822
  %v1832 = vmul.f32 %v1831, -0.00019511016
  %v1833 = vadd.f32 %v1832, 0.008332121
  %v1834 = vmul.f32 %v1831, %v1833
  %v1835 = vadd.f32 %v1834, -0.16666654
  %v1836 = vmul.f32 %v1831, %v1835
  %v1837 = vadd.f32 %v1836, 1.0
  %v1838 = vmul.f32 %v1837, %v1822
  %vm1839 = vweird.f32 %v278
  %v1840 = vadd.s32 %v1823, 3
  %v1841 = vand.u32 %v1840, 3
  %vm1842 = vcmp.lt.s32.totalorder %v1841, 2
  %vm1843 = vcmp.eq.s32.totalorder %v1841, 0
  %v1844 = vxor.u32 %v1838, 2147483648
  %v1845 = vsel %vm1843, %v1830, %v1844
  %vm1846 = vcmp.eq.s32.totalorder %v1841, 2
  %v1847 = vxor.u32 %v1830, 2147483648
  %v1848 = vsel %vm1846, %v1847, %v1838
  %v1849 = vsel %vm1842, %v1845, %v1848
  %v1850 = vsel %vm1839, nan, %v1849
  %v1851 = vand.u32 2147483647, %v279
  %vm1852 = vcmp.le.f32.partialorder %v1851, 0.7853982
  %vm1853 = vcmp.lt.s32.totalorder %v279, 0
  %v1854 = vand.u32 %v279, 2139095040
  %v1855 = vshrl.u32 %v1854, 23
  %v1856 = vsub.s32 %v1855, 127
  %v1857 = vand.u32 2147483647, %v279
  %v1858 = vand.u32 %v1857, 8388607
  %v1859 = vor.u32 %v1858, 8388608
  %v1860 = vsub.s32 0, %v1859
  %v1861 = vadd.s32 %v1856, 1
  %vm1862 = vcmp.gt.s32.totalorder %v1861, 0
  %v1863 = vsel %vm1862, %v1861, 0
  %v1864 = vshrl.u32 %v1863, 5
  %v1865 = vand.u32 %v1863, 31
  %v1866 = vsub.s32 32, %v1865
  %v1867 = vshrl.u32 683565275, %v1866
  %v1868 = vshll.u32 683565275, %v1865
  %v1869 = vshrl.u32 2475754826, %v1866
  %v1870 = vor.u32 %v1868, %v1869
  %v1871 = vshll.u32 2475754826, %v1865
  %v1872 = vshrl.u32 2131351028, %v1866
  %v1873 = vor.u32 %v1871, %v1872
  %v1874 = vshll.u32 2131351028, %v1865
  %v1875 = vshrl.u32 2102212464, %v1866
  %v1876 = vor.u32 %v1874, %v1875
  %v1877 = vshll.u32 2102212464, %v1865
  %v1878 = vshrl.u32 920167782, %v1866
  %v1879 = vor.u32 %v1877, %v1878
  %v1880 = vshll.u32 920167782, %v1865
  %v1881 = vshrl.u32 1326507024, %v1866
  %v1882 = vor.u32 %v1880, %v1881
  %vm1883 = vcmp.lt.s32.totalorder %v1864, 1
  %vm1884 = vcmp.lt.s32.totalorder %v1864, 2
  %vm1885 = vcmp.lt.s32.totalorder %v1864, 3
  %vm1886 = vcmp.lt.s32.totalorder %v1864, 4
  %v1887 = vsel %vm1883, %v1867, %v1870
  %v1888 = vsel %vm1886, %v1876, 2102212464
  %v1889 = vsel %vm1885, %v1873, %v1888
  %v1890 = vsel %vm1884, %v1887, %v1889
  %v1891 = vsel %vm1883, %v1870, %v1873
  %v1892 = vsel %vm1886, %v1879, 920167782
  %v1893 = vsel %vm1885, %v1876, %v1892
  %v1894 = vsel %vm1884, %v1891, %v1893
  %v1895 = vsel %vm1883, %v1873, %v1876
  %v1896 = vsel %vm1886, %v1882, 1326507024
  %v1897 = vsel %vm1885, %v1879, %v1896
  %v1898 = vsel %vm1884, %v1895, %v1897
  %v1899 = vshll.u32 %v1859, 8
  %v1900 = vand.u32 %v1899, 65535
  %v1901 = vshrl.u32 %v1899, 16
  %v1902 = vand.u32 %v1898, 65535
  %v1903 = vshrl.u32 %v1898, 16
  %v1904 = vmul.u32 %v1900, %v1902
  %v1905 = vmul.u32 %v1900, %v1903
  %v1906 = vmul.u32 %v1901, %v1902
  %v1907 = vmul.u32 %v1901, %v1903
  %v1908 = vshll.u32 %v1905, 16
  %v1909 = vshrl.u32 %v1905, 16
  %v1910 = vshll.u32 %v1906, 16
  %v1911 = vshrl.u32 %v1906, 16
  %vm1912 = vc.u32 %v1904, %v1908
  %v1913 = vsel %vm1912, 1, 0
  %v1914 = vadd.s32 %v1904, %v1908
  %v1915 = vadd.s32 %v1907, %v1913
  %vm1916 = vc.u32 %v1914, %v1910
  %v1917 = vsel %vm1916, 1, 0
  %v1918 = vadd.s32 %v1914, %v1910
  %v1919 = vadd.s32 %v1915, %v1917
  %v1920 = vadd.s32 %v1919, %v1909
  %v1921 = vadd.s32 %v1920, %v1911
  %v1922 = vand.u32 %v1899, 65535
  %v1923 = vshrl.u32 %v1899, 16
  %v1924 = vand.u32 %v1894, 65535
  %v1925 = vshrl.u32 %v1894, 16
  %v1926 = vmul.u32 %v1922, %v1924
  %v1927 = vmul.u32 %v1922, %v1925
  %v1928 = vmul.u32 %v1923, %v1924
  %v1929 = vmul.u32 %v1923, %v1925
  %v1930 = vshll.u32 %v1927, 16
  %v1931 = vshrl.u32 %v1927, 16
  %v1932 = vshll.u32 %v1928, 16
  %v1933 = vshrl.u32 %v1928, 16
  %vm1934 = vc.u32 %v1926, %v1930
  %v1935 = vsel %vm1934, 1, 0
  %v1936 = vadd.s32 %v1926, %v1930
  %v1937 = vadd.s32 %v1929, %v1935
  %vm1938 = vc.u32 %v1936, %v1932
  %v1939 = vsel %vm1938, 1, 0
  %v1940 = vadd.s32 %v1936, %v1932
  %v1941 = vadd.s32 %v1937, %v1939
  %v1942 = vadd.s32 %v1941, %v1931
  %v1943 = vadd.s32 %v1942, %v1933
  %v1944 = vmul.u32 %v1899, %v1890
  %v1945 = vadd.s32 %v1921, %v1940
  %vm1946 = vc.u32 %v1921, %v1940
  %v1947 = vadd.s32 %v1943, 1
  %v1948 = vsel %vm1946, %v1947, %v1943
  %v1949 = vadd.s32 %v1944, %v1948
  %v1950 = vadd.s32 %v1949, 536870912
  %v1951 = vshrl.u32 %v1950, 30
  %v1952 = vshll.u32 %v1951, 30
  %v1953 = vsub.s32 %v1949, %v1952
  %vm1954 = vcmp.lt.s32.totalorder %v1953, 0
  %v1955 = vsub.s32 0, %v1953
  %v1956 = vsel %vm1954, %v1955, %v1953
  %v1957 = vclz %v1956
  %v1958 = vsub.s32 %v1957, 2
  %vm1959 = vcmp.gt.s32.totalorder 0, %v1958
  %v1960 = vsel %vm1959, 0, %v1958
  %v1961 = vsub.s32 32, %v1960
  %v1962 = vshll.u32 %v1953, %v1960
  %v1963 = vshrl.u32 %v1945, %v1961
  %v1964 = vor.u32 %v1962, %v1963
  %v1965 = vsub.s32 4294967266, %v1960
  %v1966 = vadd.s32 %v1965, 127
  %v1967 = vshll.u32 %v1966, 23
  %v1968 = vor.u32 4788187, %v1967
  %v1969 = vand.u32 2147483647, %v1968
  %v1971 = vcvt.s32.f32 %v1964
  %v1972 = vmul.f32 %v1971, %v1969
  %v1973 = vxor.u32 %v1972, 2147483648
  %v1974 = vsel %vm1853, %v1973, %v1972
  %v1975 = vsub.s32 4, %v1951
  %v1976 = vsel %vm1853, %v1975, %v1951
  %v1977 = vsel %vm1852, %v279, %v1974
  %v1978 = vsel %vm1852, 0, %v1976
  %v1979 = vmul.f32 %v1977, %v1977
  %v1980 = vmul.f32 %v1979, -0.001358992
  %v1981 = vadd.f32 %v1980, 0.041655596
  %v1982 = vmul.f32 %v1979, %v1981
  %v1983 = vadd.f32 %v1982, -0.4999988
  %v1984 = vmul.f32 %v1979, %v1983
  %v1985 = vadd.f32 1.0, %v1984
  %v1986 = vmul.f32 %v1977, %v1977
  %v1987 = vmul.f32 %v1986, -0.00019511016
  %v1988 = vadd.f32 %v1987, 0.008332121
  %v1989 = vmul.f32 %v1986, %v1988
  %v1990 = vadd.f32 %v1989, -0.16666654
  %v1991 = vmul.f32 %v1986, %v1990
  %v1992 = vadd.f32 %v1991, 1.0
  %v1993 = vmul.f32 %v1992, %v1977
  %vm1994 = vweird.f32 %v279
  %v1995 = vadd.s32 %v1978, 3
  %v1996 = vand.u32 %v1995, 3
  %vm1997 = vcmp.lt.s32.totalorder %v1996, 2
  %vm1998 = vcmp.eq.s32.totalorder %v1996, 0
  %v1999 = vxor.u32 %v1993, 2147483648
  %v2000 = vsel %vm1998, %v1985, %v1999
  %vm2001 = vcmp.eq.s32.totalorder %v1996, 2
  %v2002 = vxor.u32 %v1985, 2147483648
  %v2003 = vsel %vm2001, %v2002, %v1993
  %v2004 = vsel %vm1997, %v2000, %v2003
  %v2005 = vsel %vm1994, nan, %v2004
  %v2006 = vand.u32 2147483647, %v280
  %vm2007 = vcmp.le.f32.partialorder %v2006, 0.7853982
  %vm2008 = vcmp.lt.s32.totalorder %v280, 0
  %v2009 = vand.u32 %v280, 2139095040
  %v2010 = vshrl.u32 %v2009, 23
  %v2011 = vsub.s32 %v2010, 127
  %v2012 = vand.u32 2147483647, %v280
  %v2013 = vand.u32 %v2012, 8388607
  %v2014 = vor.u32 %v2013, 8388608
  %v2015 = vsub.s32 0, %v2014
  %v2016 = vadd.s32 %v2011, 1
  %vm2017 = vcmp.gt.s32.totalorder %v2016, 0
  %v2018 = vsel %vm2017, %v2016, 0
  %v2019 = vshrl.u32 %v2018, 5
  %v2020 = vand.u32 %v2018, 31
  %v2021 = vsub.s32 32, %v2020
  %v2022 = vshrl.u32 683565275, %v2021
  %v2023 = vshll.u32 683565275, %v2020
  %v2024 = vshrl.u32 2475754826, %v2021
  %v2025 = vor.u32 %v2023, %v2024
  %v2026 = vshll.u32 2475754826, %v2020
  %v2027 = vshrl.u32 2131351028, %v2021
  %v2028 = vor.u32 %v2026, %v2027
  %v2029 = vshll.u32 2131351028, %v2020
  %v2030 = vshrl.u32 2102212464, %v2021
  %v2031 = vor.u32 %v2029, %v2030
  %v2032 = vshll.u32 2102212464, %v2020
  %v2033 = vshrl.u32 920167782, %v2021
  %v2034 = vor.u32 %v2032, %v2033
  %v2035 = vshll.u32 920167782, %v2020
  %v2036 = vshrl.u32 1326507024, %v2021
  %v2037 = vor.u32 %v2035, %v2036
  %vm2038 = vcmp.lt.s32.totalorder %v2019, 1
  %vm2039 = vcmp.lt.s32.totalorder %v2019, 2
  %vm2040 = vcmp.lt.s32.totalorder %v2019, 3
  %vm2041 = vcmp.lt.s32.totalorder %v2019, 4
  %v2042 = vsel %vm2038, %v2022, %v2025
  %v2043 = vsel %vm2041, %v2031, 2102212464
  %v2044 = vsel %vm2040, %v2028, %v2043
  %v2045 = vsel %vm2039, %v2042, %v2044
  %v2046 = vsel %vm2038, %v2025, %v2028
  %v2047 = vsel %vm2041, %v2034, 920167782
  %v2048 = vsel %vm2040, %v2031, %v2047
  %v2049 = vsel %vm2039, %v2046, %v2048
  %v2050 = vsel %vm2038, %v2028, %v2031
  %v2051 = vsel %vm2041, %v2037, 1326507024
  %v2052 = vsel %vm2040, %v2034, %v2051
  %v2053 = vsel %vm2039, %v2050, %v2052
  %v2054 = vshll.u32 %v2014, 8
  %v2055 = vand.u32 %v2054, 65535
  %v2056 = vshrl.u32 %v2054, 16
  %v2057 = vand.u32 %v2053, 65535
  %v2058 = vshrl.u32 %v2053, 16
  %v2059 = vmul.u32 %v2055, %v2057
  %v2060 = vmul.u32 %v2055, %v2058
  %v2061 = vmul.u32 %v2056, %v2057
  %v2062 = vmul.u32 %v2056, %v2058
  %v2063 = vshll.u32 %v2060, 16
  %v2064 = vshrl.u32 %v2060, 16
  %v2065 = vshll.u32 %v2061, 16
  %v2066 = vshrl.u32 %v2061, 16
  %vm2067 = vc.u32 %v2059, %v2063
  %v2068 = vsel %vm2067, 1, 0
  %v2069 = vadd.s32 %v2059, %v2063
  %v2070 = vadd.s32 %v2062, %v2068
  %vm2071 = vc.u32 %v2069, %v2065
  %v2072 = vsel %vm2071, 1, 0
  %v2073 = vadd.s32 %v2069, %v2065
  %v2074 = vadd.s32 %v2070, %v2072
  %v2075 = vadd.s32 %v2074, %v2064
  %v2076 = vadd.s32 %v2075, %v2066
  %v2077 = vand.u32 %v2054, 65535
  %v2078 = vshrl.u32 %v2054, 16
  %v2079 = vand.u32 %v2049, 65535
  %v2080 = vshrl.u32 %v2049, 16
  %v2081 = vmul.u32 %v2077, %v2079
  %v2082 = vmul.u32 %v2077, %v2080
  %v2083 = vmul.u32 %v2078, %v2079
  %v2084 = vmul.u32 %v2078, %v2080
  %v2085 = vshll.u32 %v2082, 16
  %v2086 = vshrl.u32 %v2082, 16
  %v2087 = vshll.u32 %v2083, 16
  %v2088 = vshrl.u32 %v2083, 16
  %vm2089 = vc.u32 %v2081, %v2085
  %v2090 = vsel %vm2089, 1, 0
  %v2091 = vadd.s32 %v2081, %v2085
  %v2092 = vadd.s32 %v2084, %v2090
  %vm2093 = vc.u32 %v2091, %v2087
  %v2094 = vsel %vm2093, 1, 0
  %v2095 = vadd.s32 %v2091, %v2087
  %v2096 = vadd.s32 %v2092, %v2094
  %v2097 = vadd.s32 %v2096, %v2086
  %v2098 = vadd.s32 %v2097, %v2088
  %v2099 = vmul.u32 %v2054, %v2045
  %v2100 = vadd.s32 %v2076, %v2095
  %vm2101 = vc.u32 %v2076, %v2095
  %v2102 = vadd.s32 %v2098, 1
  %v2103 = vsel %vm2101, %v2102, %v2098
  %v2104 = vadd.s32 %v2099, %v2103
  %v2105 = vadd.s32 %v2104, 536870912
  %v2106 = vshrl.u32 %v2105, 30
  %v2107 = vshll.u32 %v2106, 30
  %v2108 = vsub.s32 %v2104, %v2107
  %vm2109 = vcmp.lt.s32.totalorder %v2108, 0
  %v2110 = vsub.s32 0, %v2108
  %v2111 = vsel %vm2109, %v2110, %v2108
  %v2112 = vclz %v2111
  %v2113 = vsub.s32 %v2112, 2
  %vm2114 = vcmp.gt.s32.totalorder 0, %v2113
  %v2115 = vsel %vm2114, 0, %v2113
  %v2116 = vsub.s32 32, %v2115
  %v2117 = vshll.u32 %v2108, %v2115
  %v2118 = vshrl.u32 %v2100, %v2116
  %v2119 = vor.u32 %v2117, %v2118
  %v2120 = vsub.s32 4294967266, %v2115
  %v2121 = vadd.s32 %v2120, 127
  %v2122 = vshll.u32 %v2121, 23
  %v2123 = vor.u32 4788187, %v2122
  %v2124 = vand.u32 2147483647, %v2123
  %v2126 = vcvt.s32.f32 %v2119
  %v2127 = vmul.f32 %v2126, %v2124
  %v2128 = vxor.u32 %v2127, 2147483648
  %v2129 = vsel %vm2008, %v2128, %v2127
  %v2130 = vsub.s32 4, %v2106
  %v2131 = vsel %vm2008, %v2130, %v2106
  %v2132 = vsel %vm2007, %v280, %v2129
  %v2133 = vsel %vm2007, 0, %v2131
  %v2134 = vmul.f32 %v2132, %v2132
  %v2135 = vmul.f32 %v2134, -0.001358992
  %v2136 = vadd.f32 %v2135, 0.041655596
  %v2137 = vmul.f32 %v2134, %v2136
  %v2138 = vadd.f32 %v2137, -0.4999988
  %v2139 = vmul.f32 %v2134, %v2138
  %v2140 = vadd.f32 1.0, %v2139
  %v2141 = vmul.f32 %v2132, %v2132
  %v2142 = vmul.f32 %v2141, -0.00019511016
  %v2143 = vadd.f32 %v2142, 0.008332121
  %v2144 = vmul.f32 %v2141, %v2143
  %v2145 = vadd.f32 %v2144, -0.16666654
  %v2146 = vmul.f32 %v2141, %v2145
  %v2147 = vadd.f32 %v2146, 1.0
  %v2148 = vmul.f32 %v2147, %v2132
  %vm2149 = vweird.f32 %v280
  %v2150 = vadd.s32 %v2133, 3
  %v2151 = vand.u32 %v2150, 3
  %vm2152 = vcmp.lt.s32.totalorder %v2151, 2
  %vm2153 = vcmp.eq.s32.totalorder %v2151, 0
  %v2154 = vxor.u32 %v2148, 2147483648
  %v2155 = vsel %vm2153, %v2140, %v2154
  %vm2156 = vcmp.eq.s32.totalorder %v2151, 2
  %v2157 = vxor.u32 %v2140, 2147483648
  %v2158 = vsel %vm2156, %v2157, %v2148
  %v2159 = vsel %vm2152, %v2155, %v2158
  %v2160 = vsel %vm2149, nan, %v2159
  %v2161 = vand.u32 2147483647, %v281
  %vm2162 = vcmp.le.f32.partialorder %v2161, 0.7853982
  %vm2163 = vcmp.lt.s32.totalorder %v281, 0
  %v2164 = vand.u32 %v281, 2139095040
  %v2165 = vshrl.u32 %v2164, 23
  %v2166 = vsub.s32 %v2165, 127
  %v2167 = vand.u32 2147483647, %v281
  %v2168 = vand.u32 %v2167, 8388607
  %v2169 = vor.u32 %v2168, 8388608
  %v2170 = vsub.s32 0, %v2169
  %v2171 = vadd.s32 %v2166, 1
  %vm2172 = vcmp.gt.s32.totalorder %v2171, 0
  %v2173 = vsel %vm2172, %v2171, 0
  %v2174 = vshrl.u32 %v2173, 5
  %v2175 = vand.u32 %v2173, 31
  %v2176 = vsub.s32 32, %v2175
  %v2177 = vshrl.u32 683565275, %v2176
  %v2178 = vshll.u32 683565275, %v2175
  %v2179 = vshrl.u32 2475754826, %v2176
  %v2180 = vor.u32 %v2178, %v2179
  %v2181 = vshll.u32 2475754826, %v2175
  %v2182 = vshrl.u32 2131351028, %v2176
  %v2183 = vor.u32 %v2181, %v2182
  %v2184 = vshll.u32 2131351028, %v2175
  %v2185 = vshrl.u32 2102212464, %v2176
  %v2186 = vor.u32 %v2184, %v2185
  %v2187 = vshll.u32 2102212464, %v2175
  %v2188 = vshrl.u32 920167782, %v2176
  %v2189 = vor.u32 %v2187, %v2188
  %v2190 = vshll.u32 920167782, %v2175
  %v2191 = vshrl.u32 1326507024, %v2176
  %v2192 = vor.u32 %v2190, %v2191
  %vm2193 = vcmp.lt.s32.totalorder %v2174, 1
  %vm2194 = vcmp.lt.s32.totalorder %v2174, 2
  %vm2195 = vcmp.lt.s32.totalorder %v2174, 3
  %vm2196 = vcmp.lt.s32.totalorder %v2174, 4
  %v2197 = vsel %vm2193, %v2177, %v2180
  %v2198 = vsel %vm2196, %v2186, 2102212464
  %v2199 = vsel %vm2195, %v2183, %v2198
  %v2200 = vsel %vm2194, %v2197, %v2199
  %v2201 = vsel %vm2193, %v2180, %v2183
  %v2202 = vsel %vm2196, %v2189, 920167782
  %v2203 = vsel %vm2195, %v2186, %v2202
  %v2204 = vsel %vm2194, %v2201, %v2203
  %v2205 = vsel %vm2193, %v2183, %v2186
  %v2206 = vsel %vm2196, %v2192, 1326507024
  %v2207 = vsel %vm2195, %v2189, %v2206
  %v2208 = vsel %vm2194, %v2205, %v2207
  %v2209 = vshll.u32 %v2169, 8
  %v2210 = vand.u32 %v2209, 65535
  %v2211 = vshrl.u32 %v2209, 16
  %v2212 = vand.u32 %v2208, 65535
  %v2213 = vshrl.u32 %v2208, 16
  %v2214 = vmul.u32 %v2210, %v2212
  %v2215 = vmul.u32 %v2210, %v2213
  %v2216 = vmul.u32 %v2211, %v2212
  %v2217 = vmul.u32 %v2211, %v2213
  %v2218 = vshll.u32 %v2215, 16
  %v2219 = vshrl.u32 %v2215, 16
  %v2220 = vshll.u32 %v2216, 16
  %v2221 = vshrl.u32 %v2216, 16
  %vm2222 = vc.u32 %v2214, %v2218
  %v2223 = vsel %vm2222, 1, 0
  %v2224 = vadd.s32 %v2214, %v2218
  %v2225 = vadd.s32 %v2217, %v2223
  %vm2226 = vc.u32 %v2224, %v2220
  %v2227 = vsel %vm2226, 1, 0
  %v2228 = vadd.s32 %v2224, %v2220
  %v2229 = vadd.s32 %v2225, %v2227
  %v2230 = vadd.s32 %v2229, %v2219
  %v2231 = vadd.s32 %v2230, %v2221
  %v2232 = vand.u32 %v2209, 65535
  %v2233 = vshrl.u32 %v2209, 16
  %v2234 = vand.u32 %v2204, 65535
  %v2235 = vshrl.u32 %v2204, 16
  %v2236 = vmul.u32 %v2232, %v2234
  %v2237 = vmul.u32 %v2232, %v2235
  %v2238 = vmul.u32 %v2233, %v2234
  %v2239 = vmul.u32 %v2233, %v2235
  %v2240 = vshll.u32 %v2237, 16
  %v2241 = vshrl.u32 %v2237, 16
  %v2242 = vshll.u32 %v2238, 16
  %v2243 = vshrl.u32 %v2238, 16
  %vm2244 = vc.u32 %v2236, %v2240
  %v2245 = vsel %vm2244, 1, 0
  %v2246 = vadd.s32 %v2236, %v2240
  %v2247 = vadd.s32 %v2239, %v2245
  %vm2248 = vc.u32 %v2246, %v2242
  %v2249 = vsel %vm2248, 1, 0
  %v2250 = vadd.s32 %v2246, %v2242
  %v2251 = vadd.s32 %v2247, %v2249
  %v2252 = vadd.s32 %v2251, %v2241
  %v2253 = vadd.s32 %v2252, %v2243
  %v2254 = vmul.u32 %v2209, %v2200
  %v2255 = vadd.s32 %v2231, %v2250
  %vm2256 = vc.u32 %v2231, %v2250
  %v2257 = vadd.s32 %v2253, 1
  %v2258 = vsel %vm2256, %v2257, %v2253
  %v2259 = vadd.s32 %v2254, %v2258
  %v2260 = vadd.s32 %v2259, 536870912
  %v2261 = vshrl.u32 %v2260, 30
  %v2262 = vshll.u32 %v2261, 30
  %v2263 = vsub.s32 %v2259, %v2262
  %vm2264 = vcmp.lt.s32.totalorder %v2263, 0
  %v2265 = vsub.s32 0, %v2263
  %v2266 = vsel %vm2264, %v2265, %v2263
  %v2267 = vclz %v2266
  %v2268 = vsub.s32 %v2267, 2
  %vm2269 = vcmp.gt.s32.totalorder 0, %v2268
  %v2270 = vsel %vm2269, 0, %v2268
  %v2271 = vsub.s32 32, %v2270
  %v2272 = vshll.u32 %v2263, %v2270
  %v2273 = vshrl.u32 %v2255, %v2271
  %v2274 = vor.u32 %v2272, %v2273
  %v2275 = vsub.s32 4294967266, %v2270
  %v2276 = vadd.s32 %v2275, 127
  %v2277 = vshll.u32 %v2276, 23
  %v2278 = vor.u32 4788187, %v2277
  %v2279 = vand.u32 2147483647, %v2278
  %v2281 = vcvt.s32.f32 %v2274
  %v2282 = vmul.f32 %v2281, %v2279
  %v2283 = vxor.u32 %v2282, 2147483648
  %v2284 = vsel %vm2163, %v2283, %v2282
  %v2285 = vsub.s32 4, %v2261
  %v2286 = vsel %vm2163, %v2285, %v2261
  %v2287 = vsel %vm2162, %v281, %v2284
  %v2288 = vsel %vm2162, 0, %v2286
  %v2289 = vmul.f32 %v2287, %v2287
  %v2290 = vmul.f32 %v2289, -0.001358992
  %v2291 = vadd.f32 %v2290, 0.041655596
  %v2292 = vmul.f32 %v2289, %v2291
  %v2293 = vadd.f32 %v2292, -0.4999988
  %v2294 = vmul.f32 %v2289, %v2293
  %v2295 = vadd.f32 1.0, %v2294
  %v2296 = vmul.f32 %v2287, %v2287
  %v2297 = vmul.f32 %v2296, -0.00019511016
  %v2298 = vadd.f32 %v2297, 0.008332121
  %v2299 = vmul.f32 %v2296, %v2298
  %v2300 = vadd.f32 %v2299, -0.16666654
  %v2301 = vmul.f32 %v2296, %v2300
  %v2302 = vadd.f32 %v2301, 1.0
  %v2303 = vmul.f32 %v2302, %v2287
  %vm2304 = vweird.f32 %v281
  %v2305 = vadd.s32 %v2288, 3
  %v2306 = vand.u32 %v2305, 3
  %vm2307 = vcmp.lt.s32.totalorder %v2306, 2
  %vm2308 = vcmp.eq.s32.totalorder %v2306, 0
  %v2309 = vxor.u32 %v2303, 2147483648
  %v2310 = vsel %vm2308, %v2295, %v2309
  %vm2311 = vcmp.eq.s32.totalorder %v2306, 2
  %v2312 = vxor.u32 %v2295, 2147483648
  %v2313 = vsel %vm2311, %v2312, %v2303
  %v2314 = vsel %vm2307, %v2310, %v2313
  %v2315 = vsel %vm2304, nan, %v2314
  %v2316 = vand.u32 2147483647, %v282
  %vm2317 = vcmp.le.f32.partialorder %v2316, 0.7853982
  %vm2318 = vcmp.lt.s32.totalorder %v282, 0
  %v2319 = vand.u32 %v282, 2139095040
  %v2320 = vshrl.u32 %v2319, 23
  %v2321 = vsub.s32 %v2320, 127
  %v2322 = vand.u32 2147483647, %v282
  %v2323 = vand.u32 %v2322, 8388607
  %v2324 = vor.u32 %v2323, 8388608
  %v2325 = vsub.s32 0, %v2324
  %v2326 = vadd.s32 %v2321, 1
  %vm2327 = vcmp.gt.s32.totalorder %v2326, 0
  %v2328 = vsel %vm2327, %v2326, 0
  %v2329 = vshrl.u32 %v2328, 5
  %v2330 = vand.u32 %v2328, 31
  %v2331 = vsub.s32 32, %v2330
  %v2332 = vshrl.u32 683565275, %v2331
  %v2333 = vshll.u32 683565275, %v2330
  %v2334 = vshrl.u32 2475754826, %v2331
  %v2335 = vor.u32 %v2333, %v2334
  %v2336 = vshll.u32 2475754826, %v2330
  %v2337 = vshrl.u32 2131351028, %v2331
  %v2338 = vor.u32 %v2336, %v2337
  %v2339 = vshll.u32 2131351028, %v2330
  %v2340 = vshrl.u32 2102212464, %v2331
  %v2341 = vor.u32 %v2339, %v2340
  %v2342 = vshll.u32 2102212464, %v2330
  %v2343 = vshrl.u32 920167782, %v2331
  %v2344 = vor.u32 %v2342, %v2343
  %v2345 = vshll.u32 920167782, %v2330
  %v2346 = vshrl.u32 1326507024, %v2331
  %v2347 = vor.u32 %v2345, %v2346
  %vm2348 = vcmp.lt.s32.totalorder %v2329, 1
  %vm2349 = vcmp.lt.s32.totalorder %v2329, 2
  %vm2350 = vcmp.lt.s32.totalorder %v2329, 3
  %vm2351 = vcmp.lt.s32.totalorder %v2329, 4
  %v2352 = vsel %vm2348, %v2332, %v2335
  %v2353 = vsel %vm2351, %v2341, 2102212464
  %v2354 = vsel %vm2350, %v2338, %v2353
  %v2355 = vsel %vm2349, %v2352, %v2354
  %v2356 = vsel %vm2348, %v2335, %v2338
  %v2357 = vsel %vm2351, %v2344, 920167782
  %v2358 = vsel %vm2350, %v2341, %v2357
  %v2359 = vsel %vm2349, %v2356, %v2358
  %v2360 = vsel %vm2348, %v2338, %v2341
  %v2361 = vsel %vm2351, %v2347, 1326507024
  %v2362 = vsel %vm2350, %v2344, %v2361
  %v2363 = vsel %vm2349, %v2360, %v2362
  %v2364 = vshll.u32 %v2324, 8
  %v2365 = vand.u32 %v2364, 65535
  %v2366 = vshrl.u32 %v2364, 16
  %v2367 = vand.u32 %v2363, 65535
  %v2368 = vshrl.u32 %v2363, 16
  %v2369 = vmul.u32 %v2365, %v2367
  %v2370 = vmul.u32 %v2365, %v2368
  %v2371 = vmul.u32 %v2366, %v2367
  %v2372 = vmul.u32 %v2366, %v2368
  %v2373 = vshll.u32 %v2370, 16
  %v2374 = vshrl.u32 %v2370, 16
  %v2375 = vshll.u32 %v2371, 16
  %v2376 = vshrl.u32 %v2371, 16
  %vm2377 = vc.u32 %v2369, %v2373
  %v2378 = vsel %vm2377, 1, 0
  %v2379 = vadd.s32 %v2369, %v2373
  %v2380 = vadd.s32 %v2372, %v2378
  %vm2381 = vc.u32 %v2379, %v2375
  %v2382 = vsel %vm2381, 1, 0
  %v2383 = vadd.s32 %v2379, %v2375
  %v2384 = vadd.s32 %v2380, %v2382
  %v2385 = vadd.s32 %v2384, %v2374
  %v2386 = vadd.s32 %v2385, %v2376
  %v2387 = vand.u32 %v2364, 65535
  %v2388 = vshrl.u32 %v2364, 16
  %v2389 = vand.u32 %v2359, 65535
  %v2390 = vshrl.u32 %v2359, 16
  %v2391 = vmul.u32 %v2387, %v2389
  %v2392 = vmul.u32 %v2387, %v2390
  %v2393 = vmul.u32 %v2388, %v2389
  %v2394 = vmul.u32 %v2388, %v2390
  %v2395 = vshll.u32 %v2392, 16
  %v2396 = vshrl.u32 %v2392, 16
  %v2397 = vshll.u32 %v2393, 16
  %v2398 = vshrl.u32 %v2393, 16
  %vm2399 = vc.u32 %v2391, %v2395
  %v2400 = vsel %vm2399, 1, 0
  %v2401 = vadd.s32 %v2391, %v2395
  %v2402 = vadd.s32 %v2394, %v2400
  %vm2403 = vc.u32 %v2401, %v2397
  %v2404 = vsel %vm2403, 1, 0
  %v2405 = vadd.s32 %v2401, %v2397
  %v2406 = vadd.s32 %v2402, %v2404
  %v2407 = vadd.s32 %v2406, %v2396
  %v2408 = vadd.s32 %v2407, %v2398
  %v2409 = vmul.u32 %v2364, %v2355
  %v2410 = vadd.s32 %v2386, %v2405
  %vm2411 = vc.u32 %v2386, %v2405
  %v2412 = vadd.s32 %v2408, 1
  %v2413 = vsel %vm2411, %v2412, %v2408
  %v2414 = vadd.s32 %v2409, %v2413
  %v2415 = vadd.s32 %v2414, 536870912
  %v2416 = vshrl.u32 %v2415, 30
  %v2417 = vshll.u32 %v2416, 30
  %v2418 = vsub.s32 %v2414, %v2417
  %vm2419 = vcmp.lt.s32.totalorder %v2418, 0
  %v2420 = vsub.s32 0, %v2418
  %v2421 = vsel %vm2419, %v2420, %v2418
  %v2422 = vclz %v2421
  %v2423 = vsub.s32 %v2422, 2
  %vm2424 = vcmp.gt.s32.totalorder 0, %v2423
  %v2425 = vsel %vm2424, 0, %v2423
  %v2426 = vsub.s32 32, %v2425
  %v2427 = vshll.u32 %v2418, %v2425
  %v2428 = vshrl.u32 %v2410, %v2426
  %v2429 = vor.u32 %v2427, %v2428
  %v2430 = vsub.s32 4294967266, %v2425
  %v2431 = vadd.s32 %v2430, 127
  %v2432 = vshll.u32 %v2431, 23
  %v2433 = vor.u32 4788187, %v2432
  %v2434 = vand.u32 2147483647, %v2433
  %v2436 = vcvt.s32.f32 %v2429
  %v2437 = vmul.f32 %v2436, %v2434
  %v2438 = vxor.u32 %v2437, 2147483648
  %v2439 = vsel %vm2318, %v2438, %v2437
  %v2440 = vsub.s32 4, %v2416
  %v2441 = vsel %vm2318, %v2440, %v2416
  %v2442 = vsel %vm2317, %v282, %v2439
  %v2443 = vsel %vm2317, 0, %v2441
  %v2444 = vmul.f32 %v2442, %v2442
  %v2445 = vmul.f32 %v2444, -0.001358992
  %v2446 = vadd.f32 %v2445, 0.041655596
  %v2447 = vmul.f32 %v2444, %v2446
  %v2448 = vadd.f32 %v2447, -0.4999988
  %v2449 = vmul.f32 %v2444, %v2448
  %v2450 = vadd.f32 1.0, %v2449
  %v2451 = vmul.f32 %v2442, %v2442
  %v2452 = vmul.f32 %v2451, -0.00019511016
  %v2453 = vadd.f32 %v2452, 0.008332121
  %v2454 = vmul.f32 %v2451, %v2453
  %v2455 = vadd.f32 %v2454, -0.16666654
  %v2456 = vmul.f32 %v2451, %v2455
  %v2457 = vadd.f32 %v2456, 1.0
  %v2458 = vmul.f32 %v2457, %v2442
  %vm2459 = vweird.f32 %v282
  %v2460 = vadd.s32 %v2443, 3
  %v2461 = vand.u32 %v2460, 3
  %vm2462 = vcmp.lt.s32.totalorder %v2461, 2
  %vm2463 = vcmp.eq.s32.totalorder %v2461, 0
  %v2464 = vxor.u32 %v2458, 2147483648
  %v2465 = vsel %vm2463, %v2450, %v2464
  %vm2466 = vcmp.eq.s32.totalorder %v2461, 2
  %v2467 = vxor.u32 %v2450, 2147483648
  %v2468 = vsel %vm2466, %v2467, %v2458
  %v2469 = vsel %vm2462, %v2465, %v2468
  %v2470 = vsel %vm2459, nan, %v2469
  %v2471 = vand.u32 2147483647, %v283
  %vm2472 = vcmp.le.f32.partialorder %v2471, 0.7853982
  %vm2473 = vcmp.lt.s32.totalorder %v283, 0
  %v2474 = vand.u32 %v283, 2139095040
  %v2475 = vshrl.u32 %v2474, 23
  %v2476 = vsub.s32 %v2475, 127
  %v2477 = vand.u32 2147483647, %v283
  %v2478 = vand.u32 %v2477, 8388607
  %v2479 = vor.u32 %v2478, 8388608
  %v2480 = vsub.s32 0, %v2479
  %v2481 = vadd.s32 %v2476, 1
  %vm2482 = vcmp.gt.s32.totalorder %v2481, 0
  %v2483 = vsel %vm2482, %v2481, 0
  %v2484 = vshrl.u32 %v2483, 5
  %v2485 = vand.u32 %v2483, 31
  %v2486 = vsub.s32 32, %v2485
  %v2487 = vshrl.u32 683565275, %v2486
  %v2488 = vshll.u32 683565275, %v2485
  %v2489 = vshrl.u32 2475754826, %v2486
  %v2490 = vor.u32 %v2488, %v2489
  %v2491 = vshll.u32 2475754826, %v2485
  %v2492 = vshrl.u32 2131351028, %v2486
  %v2493 = vor.u32 %v2491, %v2492
  %v2494 = vshll.u32 2131351028, %v2485
  %v2495 = vshrl.u32 2102212464, %v2486
  %v2496 = vor.u32 %v2494, %v2495
  %v2497 = vshll.u32 2102212464, %v2485
  %v2498 = vshrl.u32 920167782, %v2486
  %v2499 = vor.u32 %v2497, %v2498
  %v2500 = vshll.u32 920167782, %v2485
  %v2501 = vshrl.u32 1326507024, %v2486
  %v2502 = vor.u32 %v2500, %v2501
  %vm2503 = vcmp.lt.s32.totalorder %v2484, 1
  %vm2504 = vcmp.lt.s32.totalorder %v2484, 2
  %vm2505 = vcmp.lt.s32.totalorder %v2484, 3
  %vm2506 = vcmp.lt.s32.totalorder %v2484, 4
  %v2507 = vsel %vm2503, %v2487, %v2490
  %v2508 = vsel %vm2506, %v2496, 2102212464
  %v2509 = vsel %vm2505, %v2493, %v2508
  %v2510 = vsel %vm2504, %v2507, %v2509
  %v2511 = vsel %vm2503, %v2490, %v2493
  %v2512 = vsel %vm2506, %v2499, 920167782
  %v2513 = vsel %vm2505, %v2496, %v2512
  %v2514 = vsel %vm2504, %v2511, %v2513
  %v2515 = vsel %vm2503, %v2493, %v2496
  %v2516 = vsel %vm2506, %v2502, 1326507024
  %v2517 = vsel %vm2505, %v2499, %v2516
  %v2518 = vsel %vm2504, %v2515, %v2517
  %v2519 = vshll.u32 %v2479, 8
  %v2520 = vand.u32 %v2519, 65535
  %v2521 = vshrl.u32 %v2519, 16
  %v2522 = vand.u32 %v2518, 65535
  %v2523 = vshrl.u32 %v2518, 16
  %v2524 = vmul.u32 %v2520, %v2522
  %v2525 = vmul.u32 %v2520, %v2523
  %v2526 = vmul.u32 %v2521, %v2522
  %v2527 = vmul.u32 %v2521, %v2523
  %v2528 = vshll.u32 %v2525, 16
  %v2529 = vshrl.u32 %v2525, 16
  %v2530 = vshll.u32 %v2526, 16
  %v2531 = vshrl.u32 %v2526, 16
  %vm2532 = vc.u32 %v2524, %v2528
  %v2533 = vsel %vm2532, 1, 0
  %v2534 = vadd.s32 %v2524, %v2528
  %v2535 = vadd.s32 %v2527, %v2533
  %vm2536 = vc.u32 %v2534, %v2530
  %v2537 = vsel %vm2536, 1, 0
  %v2538 = vadd.s32 %v2534, %v2530
  %v2539 = vadd.s32 %v2535, %v2537
  %v2540 = vadd.s32 %v2539, %v2529
  %v2541 = vadd.s32 %v2540, %v2531
  %v2542 = vand.u32 %v2519, 65535
  %v2543 = vshrl.u32 %v2519, 16
  %v2544 = vand.u32 %v2514, 65535
  %v2545 = vshrl.u32 %v2514, 16
  %v2546 = vmul.u32 %v2542, %v2544
  %v2547 = vmul.u32 %v2542, %v2545
  %v2548 = vmul.u32 %v2543, %v2544
  %v2549 = vmul.u32 %v2543, %v2545
  %v2550 = vshll.u32 %v2547, 16
  %v2551 = vshrl.u32 %v2547, 16
  %v2552 = vshll.u32 %v2548, 16
  %v2553 = vshrl.u32 %v2548, 16
  %vm2554 = vc.u32 %v2546, %v2550
  %v2555 = vsel %vm2554, 1, 0
  %v2556 = vadd.s32 %v2546, %v2550
  %v2557 = vadd.s32 %v2549, %v2555
  %vm2558 = vc.u32 %v2556, %v2552
  %v2559 = vsel %vm2558, 1, 0
  %v2560 = vadd.s32 %v2556, %v2552
  %v2561 = vadd.s32 %v2557, %v2559
  %v2562 = vadd.s32 %v2561, %v2551
  %v2563 = vadd.s32 %v2562, %v2553
  %v2564 = vmul.u32 %v2519, %v2510
  %v2565 = vadd.s32 %v2541, %v2560
  %vm2566 = vc.u32 %v2541, %v2560
  %v2567 = vadd.s32 %v2563, 1
  %v2568 = vsel %vm2566, %v2567, %v2563
  %v2569 = vadd.s32 %v2564, %v2568
  %v2570 = vadd.s32 %v2569, 536870912
  %v2571 = vshrl.u32 %v2570, 30
  %v2572 = vshll.u32 %v2571, 30
  %v2573 = vsub.s32 %v2569, %v2572
  %vm2574 = vcmp.lt.s32.totalorder %v2573, 0
  %v2575 = vsub.s32 0, %v2573
  %v2576 = vsel %vm2574, %v2575, %v2573
  %v2577 = vclz %v2576
  %v2578 = vsub.s32 %v2577, 2
  %vm2579 = vcmp.gt.s32.totalorder 0, %v2578
  %v2580 = vsel %vm2579, 0, %v2578
  %v2581 = vsub.s32 32, %v2580
  %v2582 = vshll.u32 %v2573, %v2580
  %v2583 = vshrl.u32 %v2565, %v2581
  %v2584 = vor.u32 %v2582, %v2583
  %v2585 = vsub.s32 4294967266, %v2580
  %v2586 = vadd.s32 %v2585, 127
  %v2587 = vshll.u32 %v2586, 23
  %v2588 = vor.u32 4788187, %v2587
  %v2589 = vand.u32 2147483647, %v2588
  %v2591 = vcvt.s32.f32 %v2584
  %v2592 = vmul.f32 %v2591, %v2589
  %v2593 = vxor.u32 %v2592, 2147483648
  %v2594 = vsel %vm2473, %v2593, %v2592
  %v2595 = vsub.s32 4, %v2571
  %v2596 = vsel %vm2473, %v2595, %v2571
  %v2597 = vsel %vm2472, %v283, %v2594
  %v2598 = vsel %vm2472, 0, %v2596
  %v2599 = vmul.f32 %v2597, %v2597
  %v2600 = vmul.f32 %v2599, -0.001358992
  %v2601 = vadd.f32 %v2600, 0.041655596
  %v2602 = vmul.f32 %v2599, %v2601
  %v2603 = vadd.f32 %v2602, -0.4999988
  %v2604 = vmul.f32 %v2599, %v2603
  %v2605 = vadd.f32 1.0, %v2604
  %v2606 = vmul.f32 %v2597, %v2597
  %v2607 = vmul.f32 %v2606, -0.00019511016
  %v2608 = vadd.f32 %v2607, 0.008332121
  %v2609 = vmul.f32 %v2606, %v2608
  %v2610 = vadd.f32 %v2609, -0.16666654
  %v2611 = vmul.f32 %v2606, %v2610
  %v2612 = vadd.f32 %v2611, 1.0
  %v2613 = vmul.f32 %v2612, %v2597
  %vm2614 = vweird.f32 %v283
  %v2615 = vadd.s32 %v2598, 3
  %v2616 = vand.u32 %v2615, 3
  %vm2617 = vcmp.lt.s32.totalorder %v2616, 2
  %vm2618 = vcmp.eq.s32.totalorder %v2616, 0
  %v2619 = vxor.u32 %v2613, 2147483648
  %v2620 = vsel %vm2618, %v2605, %v2619
  %vm2621 = vcmp.eq.s32.totalorder %v2616, 2
  %v2622 = vxor.u32 %v2605, 2147483648
  %v2623 = vsel %vm2621, %v2622, %v2613
  %v2624 = vsel %vm2617, %v2620, %v2623
  %v2625 = vsel %vm2614, nan, %v2624
  %v2626 = vand.u32 2147483647, %v284
  %vm2627 = vcmp.le.f32.partialorder %v2626, 0.7853982
  %vm2628 = vcmp.lt.s32.totalorder %v284, 0
  %v2629 = vand.u32 %v284, 2139095040
  %v2630 = vshrl.u32 %v2629, 23
  %v2631 = vsub.s32 %v2630, 127
  %v2632 = vand.u32 2147483647, %v284
  %v2633 = vand.u32 %v2632, 8388607
  %v2634 = vor.u32 %v2633, 8388608
  %v2635 = vsub.s32 0, %v2634
  %v2636 = vadd.s32 %v2631, 1
  %vm2637 = vcmp.gt.s32.totalorder %v2636, 0
  %v2638 = vsel %vm2637, %v2636, 0
  %v2639 = vshrl.u32 %v2638, 5
  %v2640 = vand.u32 %v2638, 31
  %v2641 = vsub.s32 32, %v2640
  %v2642 = vshrl.u32 683565275, %v2641
  %v2643 = vshll.u32 683565275, %v2640
  %v2644 = vshrl.u32 2475754826, %v2641
  %v2645 = vor.u32 %v2643, %v2644
  %v2646 = vshll.u32 2475754826, %v2640
  %v2647 = vshrl.u32 2131351028, %v2641
  %v2648 = vor.u32 %v2646, %v2647
  %v2649 = vshll.u32 2131351028, %v2640
  %v2650 = vshrl.u32 2102212464, %v2641
  %v2651 = vor.u32 %v2649, %v2650
  %v2652 = vshll.u32 2102212464, %v2640
  %v2653 = vshrl.u32 920167782, %v2641
  %v2654 = vor.u32 %v2652, %v2653
  %v2655 = vshll.u32 920167782, %v2640
  %v2656 = vshrl.u32 1326507024, %v2641
  %v2657 = vor.u32 %v2655, %v2656
  %vm2658 = vcmp.lt.s32.totalorder %v2639, 1
  %vm2659 = vcmp.lt.s32.totalorder %v2639, 2
  %vm2660 = vcmp.lt.s32.totalorder %v2639, 3
  %vm2661 = vcmp.lt.s32.totalorder %v2639, 4
  %v2662 = vsel %vm2658, %v2642, %v2645
  %v2663 = vsel %vm2661, %v2651, 2102212464
  %v2664 = vsel %vm2660, %v2648, %v2663
  %v2665 = vsel %vm2659, %v2662, %v2664
  %v2666 = vsel %vm2658, %v2645, %v2648
  %v2667 = vsel %vm2661, %v2654, 920167782
  %v2668 = vsel %vm2660, %v2651, %v2667
  %v2669 = vsel %vm2659, %v2666, %v2668
  %v2670 = vsel %vm2658, %v2648, %v2651
  %v2671 = vsel %vm2661, %v2657, 1326507024
  %v2672 = vsel %vm2660, %v2654, %v2671
  %v2673 = vsel %vm2659, %v2670, %v2672
  %v2674 = vshll.u32 %v2634, 8
  %v2675 = vand.u32 %v2674, 65535
  %v2676 = vshrl.u32 %v2674, 16
  %v2677 = vand.u32 %v2673, 65535
  %v2678 = vshrl.u32 %v2673, 16
  %v2679 = vmul.u32 %v2675, %v2677
  %v2680 = vmul.u32 %v2675, %v2678
  %v2681 = vmul.u32 %v2676, %v2677
  %v2682 = vmul.u32 %v2676, %v2678
  %v2683 = vshll.u32 %v2680, 16
  %v2684 = vshrl.u32 %v2680, 16
  %v2685 = vshll.u32 %v2681, 16
  %v2686 = vshrl.u32 %v2681, 16
  %vm2687 = vc.u32 %v2679, %v2683
  %v2688 = vsel %vm2687, 1, 0
  %v2689 = vadd.s32 %v2679, %v2683
  %v2690 = vadd.s32 %v2682, %v2688
  %vm2691 = vc.u32 %v2689, %v2685
  %v2692 = vsel %vm2691, 1, 0
  %v2693 = vadd.s32 %v2689, %v2685
  %v2694 = vadd.s32 %v2690, %v2692
  %v2695 = vadd.s32 %v2694, %v2684
  %v2696 = vadd.s32 %v2695, %v2686
  %v2697 = vand.u32 %v2674, 65535
  %v2698 = vshrl.u32 %v2674, 16
  %v2699 = vand.u32 %v2669, 65535
  %v2700 = vshrl.u32 %v2669, 16
  %v2701 = vmul.u32 %v2697, %v2699
  %v2702 = vmul.u32 %v2697, %v2700
  %v2703 = vmul.u32 %v2698, %v2699
  %v2704 = vmul.u32 %v2698, %v2700
  %v2705 = vshll.u32 %v2702, 16
  %v2706 = vshrl.u32 %v2702, 16
  %v2707 = vshll.u32 %v2703, 16
  %v2708 = vshrl.u32 %v2703, 16
  %vm2709 = vc.u32 %v2701, %v2705
  %v2710 = vsel %vm2709, 1, 0
  %v2711 = vadd.s32 %v2701, %v2705
  %v2712 = vadd.s32 %v2704, %v2710
  %vm2713 = vc.u32 %v2711, %v2707
  %v2714 = vsel %vm2713, 1, 0
  %v2715 = vadd.s32 %v2711, %v2707
  %v2716 = vadd.s32 %v2712, %v2714
  %v2717 = vadd.s32 %v2716, %v2706
  %v2718 = vadd.s32 %v2717, %v2708
  %v2719 = vmul.u32 %v2674, %v2665
  %v2720 = vadd.s32 %v2696, %v2715
  %vm2721 = vc.u32 %v2696, %v2715
  %v2722 = vadd.s32 %v2718, 1
  %v2723 = vsel %vm2721, %v2722, %v2718
  %v2724 = vadd.s32 %v2719, %v2723
  %v2725 = vadd.s32 %v2724, 536870912
  %v2726 = vshrl.u32 %v2725, 30
  %v2727 = vshll.u32 %v2726, 30
  %v2728 = vsub.s32 %v2724, %v2727
  %vm2729 = vcmp.lt.s32.totalorder %v2728, 0
  %v2730 = vsub.s32 0, %v2728
  %v2731 = vsel %vm2729, %v2730, %v2728
  %v2732 = vclz %v2731
  %v2733 = vsub.s32 %v2732, 2
  %vm2734 = vcmp.gt.s32.totalorder 0, %v2733
  %v2735 = vsel %vm2734, 0, %v2733
  %v2736 = vsub.s32 32, %v2735
  %v2737 = vshll.u32 %v2728, %v2735
  %v2738 = vshrl.u32 %v2720, %v2736
  %v2739 = vor.u32 %v2737, %v2738
  %v2740 = vsub.s32 4294967266, %v2735
  %v2741 = vadd.s32 %v2740, 127
  %v2742 = vshll.u32 %v2741, 23
  %v2743 = vor.u32 4788187, %v2742
  %v2744 = vand.u32 2147483647, %v2743
  %v2746 = vcvt.s32.f32 %v2739
  %v2747 = vmul.f32 %v2746, %v2744
  %v2748 = vxor.u32 %v2747, 2147483648
  %v2749 = vsel %vm2628, %v2748, %v2747
  %v2750 = vsub.s32 4, %v2726
  %v2751 = vsel %vm2628, %v2750, %v2726
  %v2752 = vsel %vm2627, %v284, %v2749
  %v2753 = vsel %vm2627, 0, %v2751
  %v2754 = vmul.f32 %v2752, %v2752
  %v2755 = vmul.f32 %v2754, -0.001358992
  %v2756 = vadd.f32 %v2755, 0.041655596
  %v2757 = vmul.f32 %v2754, %v2756
  %v2758 = vadd.f32 %v2757, -0.4999988
  %v2759 = vmul.f32 %v2754, %v2758
  %v2760 = vadd.f32 1.0, %v2759
  %v2761 = vmul.f32 %v2752, %v2752
  %v2762 = vmul.f32 %v2761, -0.00019511016
  %v2763 = vadd.f32 %v2762, 0.008332121
  %v2764 = vmul.f32 %v2761, %v2763
  %v2765 = vadd.f32 %v2764, -0.16666654
  %v2766 = vmul.f32 %v2761, %v2765
  %v2767 = vadd.f32 %v2766, 1.0
  %v2768 = vmul.f32 %v2767, %v2752
  %vm2769 = vweird.f32 %v284
  %v2770 = vadd.s32 %v2753, 3
  %v2771 = vand.u32 %v2770, 3
  %vm2772 = vcmp.lt.s32.totalorder %v2771, 2
  %vm2773 = vcmp.eq.s32.totalorder %v2771, 0
  %v2774 = vxor.u32 %v2768, 2147483648
  %v2775 = vsel %vm2773, %v2760, %v2774
  %vm2776 = vcmp.eq.s32.totalorder %v2771, 2
  %v2777 = vxor.u32 %v2760, 2147483648
  %v2778 = vsel %vm2776, %v2777, %v2768
  %v2779 = vsel %vm2772, %v2775, %v2778
  %v2780 = vsel %vm2769, nan, %v2779
  %v2781 = vand.u32 2147483647, %v285
  %vm2782 = vcmp.le.f32.partialorder %v2781, 0.7853982
  %vm2783 = vcmp.lt.s32.totalorder %v285, 0
  %v2784 = vand.u32 %v285, 2139095040
  %v2785 = vshrl.u32 %v2784, 23
  %v2786 = vsub.s32 %v2785, 127
  %v2787 = vand.u32 2147483647, %v285
  %v2788 = vand.u32 %v2787, 8388607
  %v2789 = vor.u32 %v2788, 8388608
  %v2790 = vsub.s32 0, %v2789
  %v2791 = vadd.s32 %v2786, 1
  %vm2792 = vcmp.gt.s32.totalorder %v2791, 0
  %v2793 = vsel %vm2792, %v2791, 0
  %v2794 = vshrl.u32 %v2793, 5
  %v2795 = vand.u32 %v2793, 31
  %v2796 = vsub.s32 32, %v2795
  %v2797 = vshrl.u32 683565275, %v2796
  %v2798 = vshll.u32 683565275, %v2795
  %v2799 = vshrl.u32 2475754826, %v2796
  %v2800 = vor.u32 %v2798, %v2799
  %v2801 = vshll.u32 2475754826, %v2795
  %v2802 = vshrl.u32 2131351028, %v2796
  %v2803 = vor.u32 %v2801, %v2802
  %v2804 = vshll.u32 2131351028, %v2795
  %v2805 = vshrl.u32 2102212464, %v2796
  %v2806 = vor.u32 %v2804, %v2805
  %v2807 = vshll.u32 2102212464, %v2795
  %v2808 = vshrl.u32 920167782, %v2796
  %v2809 = vor.u32 %v2807, %v2808
  %v2810 = vshll.u32 920167782, %v2795
  %v2811 = vshrl.u32 1326507024, %v2796
  %v2812 = vor.u32 %v2810, %v2811
  %vm2813 = vcmp.lt.s32.totalorder %v2794, 1
  %vm2814 = vcmp.lt.s32.totalorder %v2794, 2
  %vm2815 = vcmp.lt.s32.totalorder %v2794, 3
  %vm2816 = vcmp.lt.s32.totalorder %v2794, 4
  %v2817 = vsel %vm2813, %v2797, %v2800
  %v2818 = vsel %vm2816, %v2806, 2102212464
  %v2819 = vsel %vm2815, %v2803, %v2818
  %v2820 = vsel %vm2814, %v2817, %v2819
  %v2821 = vsel %vm2813, %v2800, %v2803
  %v2822 = vsel %vm2816, %v2809, 920167782
  %v2823 = vsel %vm2815, %v2806, %v2822
  %v2824 = vsel %vm2814, %v2821, %v2823
  %v2825 = vsel %vm2813, %v2803, %v2806
  %v2826 = vsel %vm2816, %v2812, 1326507024
  %v2827 = vsel %vm2815, %v2809, %v2826
  %v2828 = vsel %vm2814, %v2825, %v2827
  %v2829 = vshll.u32 %v2789, 8
  %v2830 = vand.u32 %v2829, 65535
  %v2831 = vshrl.u32 %v2829, 16
  %v2832 = vand.u32 %v2828, 65535
  %v2833 = vshrl.u32 %v2828, 16
  %v2834 = vmul.u32 %v2830, %v2832
  %v2835 = vmul.u32 %v2830, %v2833
  %v2836 = vmul.u32 %v2831, %v2832
  %v2837 = vmul.u32 %v2831, %v2833
  %v2838 = vshll.u32 %v2835, 16
  %v2839 = vshrl.u32 %v2835, 16
  %v2840 = vshll.u32 %v2836, 16
  %v2841 = vshrl.u32 %v2836, 16
  %vm2842 = vc.u32 %v2834, %v2838
  %v2843 = vsel %vm2842, 1, 0
  %v2844 = vadd.s32 %v2834, %v2838
  %v2845 = vadd.s32 %v2837, %v2843
  %vm2846 = vc.u32 %v2844, %v2840
  %v2847 = vsel %vm2846, 1, 0
  %v2848 = vadd.s32 %v2844, %v2840
  %v2849 = vadd.s32 %v2845, %v2847
  %v2850 = vadd.s32 %v2849, %v2839
  %v2851 = vadd.s32 %v2850, %v2841
  %v2852 = vand.u32 %v2829, 65535
  %v2853 = vshrl.u32 %v2829, 16
  %v2854 = vand.u32 %v2824, 65535
  %v2855 = vshrl.u32 %v2824, 16
  %v2856 = vmul.u32 %v2852, %v2854
  %v2857 = vmul.u32 %v2852, %v2855
  %v2858 = vmul.u32 %v2853, %v2854
  %v2859 = vmul.u32 %v2853, %v2855
  %v2860 = vshll.u32 %v2857, 16
  %v2861 = vshrl.u32 %v2857, 16
  %v2862 = vshll.u32 %v2858, 16
  %v2863 = vshrl.u32 %v2858, 16
  %vm2864 = vc.u32 %v2856, %v2860
  %v2865 = vsel %vm2864, 1, 0
  %v2866 = vadd.s32 %v2856, %v2860
  %v2867 = vadd.s32 %v2859, %v2865
  %vm2868 = vc.u32 %v2866, %v2862
  %v2869 = vsel %vm2868, 1, 0
  %v2870 = vadd.s32 %v2866, %v2862
  %v2871 = vadd.s32 %v2867, %v2869
  %v2872 = vadd.s32 %v2871, %v2861
  %v2873 = vadd.s32 %v2872, %v2863
  %v2874 = vmul.u32 %v2829, %v2820
  %v2875 = vadd.s32 %v2851, %v2870
  %vm2876 = vc.u32 %v2851, %v2870
  %v2877 = vadd.s32 %v2873, 1
  %v2878 = vsel %vm2876, %v2877, %v2873
  %v2879 = vadd.s32 %v2874, %v2878
  %v2880 = vadd.s32 %v2879, 536870912
  %v2881 = vshrl.u32 %v2880, 30
  %v2882 = vshll.u32 %v2881, 30
  %v2883 = vsub.s32 %v2879, %v2882
  %vm2884 = vcmp.lt.s32.totalorder %v2883, 0
  %v2885 = vsub.s32 0, %v2883
  %v2886 = vsel %vm2884, %v2885, %v2883
  %v2887 = vclz %v2886
  %v2888 = vsub.s32 %v2887, 2
  %vm2889 = vcmp.gt.s32.totalorder 0, %v2888
  %v2890 = vsel %vm2889, 0, %v2888
  %v2891 = vsub.s32 32, %v2890
  %v2892 = vshll.u32 %v2883, %v2890
  %v2893 = vshrl.u32 %v2875, %v2891
  %v2894 = vor.u32 %v2892, %v2893
  %v2895 = vsub.s32 4294967266, %v2890
  %v2896 = vadd.s32 %v2895, 127
  %v2897 = vshll.u32 %v2896, 23
  %v2898 = vor.u32 4788187, %v2897
  %v2899 = vand.u32 2147483647, %v2898
  %v2901 = vcvt.s32.f32 %v2894
  %v2902 = vmul.f32 %v2901, %v2899
  %v2903 = vxor.u32 %v2902, 2147483648
  %v2904 = vsel %vm2783, %v2903, %v2902
  %v2905 = vsub.s32 4, %v2881
  %v2906 = vsel %vm2783, %v2905, %v2881
  %v2907 = vsel %vm2782, %v285, %v2904
  %v2908 = vsel %vm2782, 0, %v2906
  %v2909 = vmul.f32 %v2907, %v2907
  %v2910 = vmul.f32 %v2909, -0.001358992
  %v2911 = vadd.f32 %v2910, 0.041655596
  %v2912 = vmul.f32 %v2909, %v2911
  %v2913 = vadd.f32 %v2912, -0.4999988
  %v2914 = vmul.f32 %v2909, %v2913
  %v2915 = vadd.f32 1.0, %v2914
  %v2916 = vmul.f32 %v2907, %v2907
  %v2917 = vmul.f32 %v2916, -0.00019511016
  %v2918 = vadd.f32 %v2917, 0.008332121
  %v2919 = vmul.f32 %v2916, %v2918
  %v2920 = vadd.f32 %v2919, -0.16666654
  %v2921 = vmul.f32 %v2916, %v2920
  %v2922 = vadd.f32 %v2921, 1.0
  %v2923 = vmul.f32 %v2922, %v2907
  %vm2924 = vweird.f32 %v285
  %v2925 = vadd.s32 %v2908, 3
  %v2926 = vand.u32 %v2925, 3
  %vm2927 = vcmp.lt.s32.totalorder %v2926, 2
  %vm2928 = vcmp.eq.s32.totalorder %v2926, 0
  %v2929 = vxor.u32 %v2923, 2147483648
  %v2930 = vsel %vm2928, %v2915, %v2929
  %vm2931 = vcmp.eq.s32.totalorder %v2926, 2
  %v2932 = vxor.u32 %v2915, 2147483648
  %v2933 = vsel %vm2931, %v2932, %v2923
  %v2934 = vsel %vm2927, %v2930, %v2933
  %v2935 = vsel %vm2924, nan, %v2934
  %v2936 = vand.u32 2147483647, %v286
  %vm2937 = vcmp.le.f32.partialorder %v2936, 0.7853982
  %vm2938 = vcmp.lt.s32.totalorder %v286, 0
  %v2939 = vand.u32 %v286, 2139095040
  %v2940 = vshrl.u32 %v2939, 23
  %v2941 = vsub.s32 %v2940, 127
  %v2942 = vand.u32 2147483647, %v286
  %v2943 = vand.u32 %v2942, 8388607
  %v2944 = vor.u32 %v2943, 8388608
  %v2945 = vsub.s32 0, %v2944
  %v2946 = vadd.s32 %v2941, 1
  %vm2947 = vcmp.gt.s32.totalorder %v2946, 0
  %v2948 = vsel %vm2947, %v2946, 0
  %v2949 = vshrl.u32 %v2948, 5
  %v2950 = vand.u32 %v2948, 31
  %v2951 = vsub.s32 32, %v2950
  %v2952 = vshrl.u32 683565275, %v2951
  %v2953 = vshll.u32 683565275, %v2950
  %v2954 = vshrl.u32 2475754826, %v2951
  %v2955 = vor.u32 %v2953, %v2954
  %v2956 = vshll.u32 2475754826, %v2950
  %v2957 = vshrl.u32 2131351028, %v2951
  %v2958 = vor.u32 %v2956, %v2957
  %v2959 = vshll.u32 2131351028, %v2950
  %v2960 = vshrl.u32 2102212464, %v2951
  %v2961 = vor.u32 %v2959, %v2960
  %v2962 = vshll.u32 2102212464, %v2950
  %v2963 = vshrl.u32 920167782, %v2951
  %v2964 = vor.u32 %v2962, %v2963
  %v2965 = vshll.u32 920167782, %v2950
  %v2966 = vshrl.u32 1326507024, %v2951
  %v2967 = vor.u32 %v2965, %v2966
  %vm2968 = vcmp.lt.s32.totalorder %v2949, 1
  %vm2969 = vcmp.lt.s32.totalorder %v2949, 2
  %vm2970 = vcmp.lt.s32.totalorder %v2949, 3
  %vm2971 = vcmp.lt.s32.totalorder %v2949, 4
  %v2972 = vsel %vm2968, %v2952, %v2955
  %v2973 = vsel %vm2971, %v2961, 2102212464
  %v2974 = vsel %vm2970, %v2958, %v2973
  %v2975 = vsel %vm2969, %v2972, %v2974
  %v2976 = vsel %vm2968, %v2955, %v2958
  %v2977 = vsel %vm2971, %v2964, 920167782
  %v2978 = vsel %vm2970, %v2961, %v2977
  %v2979 = vsel %vm2969, %v2976, %v2978
  %v2980 = vsel %vm2968, %v2958, %v2961
  %v2981 = vsel %vm2971, %v2967, 1326507024
  %v2982 = vsel %vm2970, %v2964, %v2981
  %v2983 = vsel %vm2969, %v2980, %v2982
  %v2984 = vshll.u32 %v2944, 8
  %v2985 = vand.u32 %v2984, 65535
  %v2986 = vshrl.u32 %v2984, 16
  %v2987 = vand.u32 %v2983, 65535
  %v2988 = vshrl.u32 %v2983, 16
  %v2989 = vmul.u32 %v2985, %v2987
  %v2990 = vmul.u32 %v2985, %v2988
  %v2991 = vmul.u32 %v2986, %v2987
  %v2992 = vmul.u32 %v2986, %v2988
  %v2993 = vshll.u32 %v2990, 16
  %v2994 = vshrl.u32 %v2990, 16
  %v2995 = vshll.u32 %v2991, 16
  %v2996 = vshrl.u32 %v2991, 16
  %vm2997 = vc.u32 %v2989, %v2993
  %v2998 = vsel %vm2997, 1, 0
  %v2999 = vadd.s32 %v2989, %v2993
  %v3000 = vadd.s32 %v2992, %v2998
  %vm3001 = vc.u32 %v2999, %v2995
  %v3002 = vsel %vm3001, 1, 0
  %v3003 = vadd.s32 %v2999, %v2995
  %v3004 = vadd.s32 %v3000, %v3002
  %v3005 = vadd.s32 %v3004, %v2994
  %v3006 = vadd.s32 %v3005, %v2996
  %v3007 = vand.u32 %v2984, 65535
  %v3008 = vshrl.u32 %v2984, 16
  %v3009 = vand.u32 %v2979, 65535
  %v3010 = vshrl.u32 %v2979, 16
  %v3011 = vmul.u32 %v3007, %v3009
  %v3012 = vmul.u32 %v3007, %v3010
  %v3013 = vmul.u32 %v3008, %v3009
  %v3014 = vmul.u32 %v3008, %v3010
  %v3015 = vshll.u32 %v3012, 16
  %v3016 = vshrl.u32 %v3012, 16
  %v3017 = vshll.u32 %v3013, 16
  %v3018 = vshrl.u32 %v3013, 16
  %vm3019 = vc.u32 %v3011, %v3015
  %v3020 = vsel %vm3019, 1, 0
  %v3021 = vadd.s32 %v3011, %v3015
  %v3022 = vadd.s32 %v3014, %v3020
  %vm3023 = vc.u32 %v3021, %v3017
  %v3024 = vsel %vm3023, 1, 0
  %v3025 = vadd.s32 %v3021, %v3017
  %v3026 = vadd.s32 %v3022, %v3024
  %v3027 = vadd.s32 %v3026, %v3016
  %v3028 = vadd.s32 %v3027, %v3018
  %v3029 = vmul.u32 %v2984, %v2975
  %v3030 = vadd.s32 %v3006, %v3025
  %vm3031 = vc.u32 %v3006, %v3025
  %v3032 = vadd.s32 %v3028, 1
  %v3033 = vsel %vm3031, %v3032, %v3028
  %v3034 = vadd.s32 %v3029, %v3033
  %v3035 = vadd.s32 %v3034, 536870912
  %v3036 = vshrl.u32 %v3035, 30
  %v3037 = vshll.u32 %v3036, 30
  %v3038 = vsub.s32 %v3034, %v3037
  %vm3039 = vcmp.lt.s32.totalorder %v3038, 0
  %v3040 = vsub.s32 0, %v3038
  %v3041 = vsel %vm3039, %v3040, %v3038
  %v3042 = vclz %v3041
  %v3043 = vsub.s32 %v3042, 2
  %vm3044 = vcmp.gt.s32.totalorder 0, %v3043
  %v3045 = vsel %vm3044, 0, %v3043
  %v3046 = vsub.s32 32, %v3045
  %v3047 = vshll.u32 %v3038, %v3045
  %v3048 = vshrl.u32 %v3030, %v3046
  %v3049 = vor.u32 %v3047, %v3048
  %v3050 = vsub.s32 4294967266, %v3045
  %v3051 = vadd.s32 %v3050, 127
  %v3052 = vshll.u32 %v3051, 23
  %v3053 = vor.u32 4788187, %v3052
  %v3054 = vand.u32 2147483647, %v3053
  %v3056 = vcvt.s32.f32 %v3049
  %v3057 = vmul.f32 %v3056, %v3054
  %v3058 = vxor.u32 %v3057, 2147483648
  %v3059 = vsel %vm2938, %v3058, %v3057
  %v3060 = vsub.s32 4, %v3036
  %v3061 = vsel %vm2938, %v3060, %v3036
  %v3062 = vsel %vm2937, %v286, %v3059
  %v3063 = vsel %vm2937, 0, %v3061
  %v3064 = vmul.f32 %v3062, %v3062
  %v3065 = vmul.f32 %v3064, -0.001358992
  %v3066 = vadd.f32 %v3065, 0.041655596
  %v3067 = vmul.f32 %v3064, %v3066
  %v3068 = vadd.f32 %v3067, -0.4999988
  %v3069 = vmul.f32 %v3064, %v3068
  %v3070 = vadd.f32 1.0, %v3069
  %v3071 = vmul.f32 %v3062, %v3062
  %v3072 = vmul.f32 %v3071, -0.00019511016
  %v3073 = vadd.f32 %v3072, 0.008332121
  %v3074 = vmul.f32 %v3071, %v3073
  %v3075 = vadd.f32 %v3074, -0.16666654
  %v3076 = vmul.f32 %v3071, %v3075
  %v3077 = vadd.f32 %v3076, 1.0
  %v3078 = vmul.f32 %v3077, %v3062
  %vm3079 = vweird.f32 %v286
  %v3080 = vadd.s32 %v3063, 3
  %v3081 = vand.u32 %v3080, 3
  %vm3082 = vcmp.lt.s32.totalorder %v3081, 2
  %vm3083 = vcmp.eq.s32.totalorder %v3081, 0
  %v3084 = vxor.u32 %v3078, 2147483648
  %v3085 = vsel %vm3083, %v3070, %v3084
  %vm3086 = vcmp.eq.s32.totalorder %v3081, 2
  %v3087 = vxor.u32 %v3070, 2147483648
  %v3088 = vsel %vm3086, %v3087, %v3078
  %v3089 = vsel %vm3082, %v3085, %v3088
  %v3090 = vsel %vm3079, nan, %v3089
  %v3091 = vand.u32 2147483647, %v287
  %vm3092 = vcmp.le.f32.partialorder %v3091, 0.7853982
  %vm3093 = vcmp.lt.s32.totalorder %v287, 0
  %v3094 = vand.u32 %v287, 2139095040
  %v3095 = vshrl.u32 %v3094, 23
  %v3096 = vsub.s32 %v3095, 127
  %v3097 = vand.u32 2147483647, %v287
  %v3098 = vand.u32 %v3097, 8388607
  %v3099 = vor.u32 %v3098, 8388608
  %v3100 = vsub.s32 0, %v3099
  %v3101 = vadd.s32 %v3096, 1
  %vm3102 = vcmp.gt.s32.totalorder %v3101, 0
  %v3103 = vsel %vm3102, %v3101, 0
  %v3104 = vshrl.u32 %v3103, 5
  %v3105 = vand.u32 %v3103, 31
  %v3106 = vsub.s32 32, %v3105
  %v3107 = vshrl.u32 683565275, %v3106
  %v3108 = vshll.u32 683565275, %v3105
  %v3109 = vshrl.u32 2475754826, %v3106
  %v3110 = vor.u32 %v3108, %v3109
  %v3111 = vshll.u32 2475754826, %v3105
  %v3112 = vshrl.u32 2131351028, %v3106
  %v3113 = vor.u32 %v3111, %v3112
  %v3114 = vshll.u32 2131351028, %v3105
  %v3115 = vshrl.u32 2102212464, %v3106
  %v3116 = vor.u32 %v3114, %v3115
  %v3117 = vshll.u32 2102212464, %v3105
  %v3118 = vshrl.u32 920167782, %v3106
  %v3119 = vor.u32 %v3117, %v3118
  %v3120 = vshll.u32 920167782, %v3105
  %v3121 = vshrl.u32 1326507024, %v3106
  %v3122 = vor.u32 %v3120, %v3121
  %vm3123 = vcmp.lt.s32.totalorder %v3104, 1
  %vm3124 = vcmp.lt.s32.totalorder %v3104, 2
  %vm3125 = vcmp.lt.s32.totalorder %v3104, 3
  %vm3126 = vcmp.lt.s32.totalorder %v3104, 4
  %v3127 = vsel %vm3123, %v3107, %v3110
  %v3128 = vsel %vm3126, %v3116, 2102212464
  %v3129 = vsel %vm3125, %v3113, %v3128
  %v3130 = vsel %vm3124, %v3127, %v3129
  %v3131 = vsel %vm3123, %v3110, %v3113
  %v3132 = vsel %vm3126, %v3119, 920167782
  %v3133 = vsel %vm3125, %v3116, %v3132
  %v3134 = vsel %vm3124, %v3131, %v3133
  %v3135 = vsel %vm3123, %v3113, %v3116
  %v3136 = vsel %vm3126, %v3122, 1326507024
  %v3137 = vsel %vm3125, %v3119, %v3136
  %v3138 = vsel %vm3124, %v3135, %v3137
  %v3139 = vshll.u32 %v3099, 8
  %v3140 = vand.u32 %v3139, 65535
  %v3141 = vshrl.u32 %v3139, 16
  %v3142 = vand.u32 %v3138, 65535
  %v3143 = vshrl.u32 %v3138, 16
  %v3144 = vmul.u32 %v3140, %v3142
  %v3145 = vmul.u32 %v3140, %v3143
  %v3146 = vmul.u32 %v3141, %v3142
  %v3147 = vmul.u32 %v3141, %v3143
  %v3148 = vshll.u32 %v3145, 16
  %v3149 = vshrl.u32 %v3145, 16
  %v3150 = vshll.u32 %v3146, 16
  %v3151 = vshrl.u32 %v3146, 16
  %vm3152 = vc.u32 %v3144, %v3148
  %v3153 = vsel %vm3152, 1, 0
  %v3154 = vadd.s32 %v3144, %v3148
  %v3155 = vadd.s32 %v3147, %v3153
  %vm3156 = vc.u32 %v3154, %v3150
  %v3157 = vsel %vm3156, 1, 0
  %v3158 = vadd.s32 %v3154, %v3150
  %v3159 = vadd.s32 %v3155, %v3157
  %v3160 = vadd.s32 %v3159, %v3149
  %v3161 = vadd.s32 %v3160, %v3151
  %v3162 = vand.u32 %v3139, 65535
  %v3163 = vshrl.u32 %v3139, 16
  %v3164 = vand.u32 %v3134, 65535
  %v3165 = vshrl.u32 %v3134, 16
  %v3166 = vmul.u32 %v3162, %v3164
  %v3167 = vmul.u32 %v3162, %v3165
  %v3168 = vmul.u32 %v3163, %v3164
  %v3169 = vmul.u32 %v3163, %v3165
  %v3170 = vshll.u32 %v3167, 16
  %v3171 = vshrl.u32 %v3167, 16
  %v3172 = vshll.u32 %v3168, 16
  %v3173 = vshrl.u32 %v3168, 16
  %vm3174 = vc.u32 %v3166, %v3170
  %v3175 = vsel %vm3174, 1, 0
  %v3176 = vadd.s32 %v3166, %v3170
  %v3177 = vadd.s32 %v3169, %v3175
  %vm3178 = vc.u32 %v3176, %v3172
  %v3179 = vsel %vm3178, 1, 0
  %v3180 = vadd.s32 %v3176, %v3172
  %v3181 = vadd.s32 %v3177, %v3179
  %v3182 = vadd.s32 %v3181, %v3171
  %v3183 = vadd.s32 %v3182, %v3173
  %v3184 = vmul.u32 %v3139, %v3130
  %v3185 = vadd.s32 %v3161, %v3180
  %vm3186 = vc.u32 %v3161, %v3180
  %v3187 = vadd.s32 %v3183, 1
  %v3188 = vsel %vm3186, %v3187, %v3183
  %v3189 = vadd.s32 %v3184, %v3188
  %v3190 = vadd.s32 %v3189, 536870912
  %v3191 = vshrl.u32 %v3190, 30
  %v3192 = vshll.u32 %v3191, 30
  %v3193 = vsub.s32 %v3189, %v3192
  %vm3194 = vcmp.lt.s32.totalorder %v3193, 0
  %v3195 = vsub.s32 0, %v3193
  %v3196 = vsel %vm3194, %v3195, %v3193
  %v3197 = vclz %v3196
  %v3198 = vsub.s32 %v3197, 2
  %vm3199 = vcmp.gt.s32.totalorder 0, %v3198
  %v3200 = vsel %vm3199, 0, %v3198
  %v3201 = vsub.s32 32, %v3200
  %v3202 = vshll.u32 %v3193, %v3200
  %v3203 = vshrl.u32 %v3185, %v3201
  %v3204 = vor.u32 %v3202, %v3203
  %v3205 = vsub.s32 4294967266, %v3200
  %v3206 = vadd.s32 %v3205, 127
  %v3207 = vshll.u32 %v3206, 23
  %v3208 = vor.u32 4788187, %v3207
  %v3209 = vand.u32 2147483647, %v3208
  %v3211 = vcvt.s32.f32 %v3204
  %v3212 = vmul.f32 %v3211, %v3209
  %v3213 = vxor.u32 %v3212, 2147483648
  %v3214 = vsel %vm3093, %v3213, %v3212
  %v3215 = vsub.s32 4, %v3191
  %v3216 = vsel %vm3093, %v3215, %v3191
  %v3217 = vsel %vm3092, %v287, %v3214
  %v3218 = vsel %vm3092, 0, %v3216
  %v3219 = vmul.f32 %v3217, %v3217
  %v3220 = vmul.f32 %v3219, -0.001358992
  %v3221 = vadd.f32 %v3220, 0.041655596
  %v3222 = vmul.f32 %v3219, %v3221
  %v3223 = vadd.f32 %v3222, -0.4999988
  %v3224 = vmul.f32 %v3219, %v3223
  %v3225 = vadd.f32 1.0, %v3224
  %v3226 = vmul.f32 %v3217, %v3217
  %v3227 = vmul.f32 %v3226, -0.00019511016
  %v3228 = vadd.f32 %v3227, 0.008332121
  %v3229 = vmul.f32 %v3226, %v3228
  %v3230 = vadd.f32 %v3229, -0.16666654
  %v3231 = vmul.f32 %v3226, %v3230
  %v3232 = vadd.f32 %v3231, 1.0
  %v3233 = vmul.f32 %v3232, %v3217
  %vm3234 = vweird.f32 %v287
  %v3235 = vadd.s32 %v3218, 3
  %v3236 = vand.u32 %v3235, 3
  %vm3237 = vcmp.lt.s32.totalorder %v3236, 2
  %vm3238 = vcmp.eq.s32.totalorder %v3236, 0
  %v3239 = vxor.u32 %v3233, 2147483648
  %v3240 = vsel %vm3238, %v3225, %v3239
  %vm3241 = vcmp.eq.s32.totalorder %v3236, 2
  %v3242 = vxor.u32 %v3225, 2147483648
  %v3243 = vsel %vm3241, %v3242, %v3233
  %v3244 = vsel %vm3237, %v3240, %v3243
  %v3245 = vsel %vm3234, nan, %v3244
  %v3246 = vand.u32 2147483647, %v288
  %vm3247 = vcmp.le.f32.partialorder %v3246, 0.7853982
  %vm3248 = vcmp.lt.s32.totalorder %v288, 0
  %v3249 = vand.u32 %v288, 2139095040
  %v3250 = vshrl.u32 %v3249, 23
  %v3251 = vsub.s32 %v3250, 127
  %v3252 = vand.u32 2147483647, %v288
  %v3253 = vand.u32 %v3252, 8388607
  %v3254 = vor.u32 %v3253, 8388608
  %v3255 = vsub.s32 0, %v3254
  %v3256 = vadd.s32 %v3251, 1
  %vm3257 = vcmp.gt.s32.totalorder %v3256, 0
  %v3258 = vsel %vm3257, %v3256, 0
  %v3259 = vshrl.u32 %v3258, 5
  %v3260 = vand.u32 %v3258, 31
  %v3261 = vsub.s32 32, %v3260
  %v3262 = vshrl.u32 683565275, %v3261
  %v3263 = vshll.u32 683565275, %v3260
  %v3264 = vshrl.u32 2475754826, %v3261
  %v3265 = vor.u32 %v3263, %v3264
  %v3266 = vshll.u32 2475754826, %v3260
  %v3267 = vshrl.u32 2131351028, %v3261
  %v3268 = vor.u32 %v3266, %v3267
  %v3269 = vshll.u32 2131351028, %v3260
  %v3270 = vshrl.u32 2102212464, %v3261
  %v3271 = vor.u32 %v3269, %v3270
  %v3272 = vshll.u32 2102212464, %v3260
  %v3273 = vshrl.u32 920167782, %v3261
  %v3274 = vor.u32 %v3272, %v3273
  %v3275 = vshll.u32 920167782, %v3260
  %v3276 = vshrl.u32 1326507024, %v3261
  %v3277 = vor.u32 %v3275, %v3276
  %vm3278 = vcmp.lt.s32.totalorder %v3259, 1
  %vm3279 = vcmp.lt.s32.totalorder %v3259, 2
  %vm3280 = vcmp.lt.s32.totalorder %v3259, 3
  %vm3281 = vcmp.lt.s32.totalorder %v3259, 4
  %v3282 = vsel %vm3278, %v3262, %v3265
  %v3283 = vsel %vm3281, %v3271, 2102212464
  %v3284 = vsel %vm3280, %v3268, %v3283
  %v3285 = vsel %vm3279, %v3282, %v3284
  %v3286 = vsel %vm3278, %v3265, %v3268
  %v3287 = vsel %vm3281, %v3274, 920167782
  %v3288 = vsel %vm3280, %v3271, %v3287
  %v3289 = vsel %vm3279, %v3286, %v3288
  %v3290 = vsel %vm3278, %v3268, %v3271
  %v3291 = vsel %vm3281, %v3277, 1326507024
  %v3292 = vsel %vm3280, %v3274, %v3291
  %v3293 = vsel %vm3279, %v3290, %v3292
  %v3294 = vshll.u32 %v3254, 8
  %v3295 = vand.u32 %v3294, 65535
  %v3296 = vshrl.u32 %v3294, 16
  %v3297 = vand.u32 %v3293, 65535
  %v3298 = vshrl.u32 %v3293, 16
  %v3299 = vmul.u32 %v3295, %v3297
  %v3300 = vmul.u32 %v3295, %v3298
  %v3301 = vmul.u32 %v3296, %v3297
  %v3302 = vmul.u32 %v3296, %v3298
  %v3303 = vshll.u32 %v3300, 16
  %v3304 = vshrl.u32 %v3300, 16
  %v3305 = vshll.u32 %v3301, 16
  %v3306 = vshrl.u32 %v3301, 16
  %vm3307 = vc.u32 %v3299, %v3303
  %v3308 = vsel %vm3307, 1, 0
  %v3309 = vadd.s32 %v3299, %v3303
  %v3310 = vadd.s32 %v3302, %v3308
  %vm3311 = vc.u32 %v3309, %v3305
  %v3312 = vsel %vm3311, 1, 0
  %v3313 = vadd.s32 %v3309, %v3305
  %v3314 = vadd.s32 %v3310, %v3312
  %v3315 = vadd.s32 %v3314, %v3304
  %v3316 = vadd.s32 %v3315, %v3306
  %v3317 = vand.u32 %v3294, 65535
  %v3318 = vshrl.u32 %v3294, 16
  %v3319 = vand.u32 %v3289, 65535
  %v3320 = vshrl.u32 %v3289, 16
  %v3321 = vmul.u32 %v3317, %v3319
  %v3322 = vmul.u32 %v3317, %v3320
  %v3323 = vmul.u32 %v3318, %v3319
  %v3324 = vmul.u32 %v3318, %v3320
  %v3325 = vshll.u32 %v3322, 16
  %v3326 = vshrl.u32 %v3322, 16
  %v3327 = vshll.u32 %v3323, 16
  %v3328 = vshrl.u32 %v3323, 16
  %vm3329 = vc.u32 %v3321, %v3325
  %v3330 = vsel %vm3329, 1, 0
  %v3331 = vadd.s32 %v3321, %v3325
  %v3332 = vadd.s32 %v3324, %v3330
  %vm3333 = vc.u32 %v3331, %v3327
  %v3334 = vsel %vm3333, 1, 0
  %v3335 = vadd.s32 %v3331, %v3327
  %v3336 = vadd.s32 %v3332, %v3334
  %v3337 = vadd.s32 %v3336, %v3326
  %v3338 = vadd.s32 %v3337, %v3328
  %v3339 = vmul.u32 %v3294, %v3285
  %v3340 = vadd.s32 %v3316, %v3335
  %vm3341 = vc.u32 %v3316, %v3335
  %v3342 = vadd.s32 %v3338, 1
  %v3343 = vsel %vm3341, %v3342, %v3338
  %v3344 = vadd.s32 %v3339, %v3343
  %v3345 = vadd.s32 %v3344, 536870912
  %v3346 = vshrl.u32 %v3345, 30
  %v3347 = vshll.u32 %v3346, 30
  %v3348 = vsub.s32 %v3344, %v3347
  %vm3349 = vcmp.lt.s32.totalorder %v3348, 0
  %v3350 = vsub.s32 0, %v3348
  %v3351 = vsel %vm3349, %v3350, %v3348
  %v3352 = vclz %v3351
  %v3353 = vsub.s32 %v3352, 2
  %vm3354 = vcmp.gt.s32.totalorder 0, %v3353
  %v3355 = vsel %vm3354, 0, %v3353
  %v3356 = vsub.s32 32, %v3355
  %v3357 = vshll.u32 %v3348, %v3355
  %v3358 = vshrl.u32 %v3340, %v3356
  %v3359 = vor.u32 %v3357, %v3358
  %v3360 = vsub.s32 4294967266, %v3355
  %v3361 = vadd.s32 %v3360, 127
  %v3362 = vshll.u32 %v3361, 23
  %v3363 = vor.u32 4788187, %v3362
  %v3364 = vand.u32 2147483647, %v3363
  %v3366 = vcvt.s32.f32 %v3359
  %v3367 = vmul.f32 %v3366, %v3364
  %v3368 = vxor.u32 %v3367, 2147483648
  %v3369 = vsel %vm3248, %v3368, %v3367
  %v3370 = vsub.s32 4, %v3346
  %v3371 = vsel %vm3248, %v3370, %v3346
  %v3372 = vsel %vm3247, %v288, %v3369
  %v3373 = vsel %vm3247, 0, %v3371
  %v3374 = vmul.f32 %v3372, %v3372
  %v3375 = vmul.f32 %v3374, -0.001358992
  %v3376 = vadd.f32 %v3375, 0.041655596
  %v3377 = vmul.f32 %v3374, %v3376
  %v3378 = vadd.f32 %v3377, -0.4999988
  %v3379 = vmul.f32 %v3374, %v3378
  %v3380 = vadd.f32 1.0, %v3379
  %v3381 = vmul.f32 %v3372, %v3372
  %v3382 = vmul.f32 %v3381, -0.00019511016
  %v3383 = vadd.f32 %v3382, 0.008332121
  %v3384 = vmul.f32 %v3381, %v3383
  %v3385 = vadd.f32 %v3384, -0.16666654
  %v3386 = vmul.f32 %v3381, %v3385
  %v3387 = vadd.f32 %v3386, 1.0
  %v3388 = vmul.f32 %v3387, %v3372
  %vm3389 = vweird.f32 %v288
  %v3390 = vadd.s32 %v3373, 3
  %v3391 = vand.u32 %v3390, 3
  %vm3392 = vcmp.lt.s32.totalorder %v3391, 2
  %vm3393 = vcmp.eq.s32.totalorder %v3391, 0
  %v3394 = vxor.u32 %v3388, 2147483648
  %v3395 = vsel %vm3393, %v3380, %v3394
  %vm3396 = vcmp.eq.s32.totalorder %v3391, 2
  %v3397 = vxor.u32 %v3380, 2147483648
  %v3398 = vsel %vm3396, %v3397, %v3388
  %v3399 = vsel %vm3392, %v3395, %v3398
  %v3400 = vsel %vm3389, nan, %v3399
  %v3401 = vand.u32 2147483647, %v289
  %vm3402 = vcmp.le.f32.partialorder %v3401, 0.7853982
  %vm3403 = vcmp.lt.s32.totalorder %v289, 0
  %v3404 = vand.u32 %v289, 2139095040
  %v3405 = vshrl.u32 %v3404, 23
  %v3406 = vsub.s32 %v3405, 127
  %v3407 = vand.u32 2147483647, %v289
  %v3408 = vand.u32 %v3407, 8388607
  %v3409 = vor.u32 %v3408, 8388608
  %v3410 = vsub.s32 0, %v3409
  %v3411 = vadd.s32 %v3406, 1
  %vm3412 = vcmp.gt.s32.totalorder %v3411, 0
  %v3413 = vsel %vm3412, %v3411, 0
  %v3414 = vshrl.u32 %v3413, 5
  %v3415 = vand.u32 %v3413, 31
  %v3416 = vsub.s32 32, %v3415
  %v3417 = vshrl.u32 683565275, %v3416
  %v3418 = vshll.u32 683565275, %v3415
  %v3419 = vshrl.u32 2475754826, %v3416
  %v3420 = vor.u32 %v3418, %v3419
  %v3421 = vshll.u32 2475754826, %v3415
  %v3422 = vshrl.u32 2131351028, %v3416
  %v3423 = vor.u32 %v3421, %v3422
  %v3424 = vshll.u32 2131351028, %v3415
  %v3425 = vshrl.u32 2102212464, %v3416
  %v3426 = vor.u32 %v3424, %v3425
  %v3427 = vshll.u32 2102212464, %v3415
  %v3428 = vshrl.u32 920167782, %v3416
  %v3429 = vor.u32 %v3427, %v3428
  %v3430 = vshll.u32 920167782, %v3415
  %v3431 = vshrl.u32 1326507024, %v3416
  %v3432 = vor.u32 %v3430, %v3431
  %vm3433 = vcmp.lt.s32.totalorder %v3414, 1
  %vm3434 = vcmp.lt.s32.totalorder %v3414, 2
  %vm3435 = vcmp.lt.s32.totalorder %v3414, 3
  %vm3436 = vcmp.lt.s32.totalorder %v3414, 4
  %v3437 = vsel %vm3433, %v3417, %v3420
  %v3438 = vsel %vm3436, %v3426, 2102212464
  %v3439 = vsel %vm3435, %v3423, %v3438
  %v3440 = vsel %vm3434, %v3437, %v3439
  %v3441 = vsel %vm3433, %v3420, %v3423
  %v3442 = vsel %vm3436, %v3429, 920167782
  %v3443 = vsel %vm3435, %v3426, %v3442
  %v3444 = vsel %vm3434, %v3441, %v3443
  %v3445 = vsel %vm3433, %v3423, %v3426
  %v3446 = vsel %vm3436, %v3432, 1326507024
  %v3447 = vsel %vm3435, %v3429, %v3446
  %v3448 = vsel %vm3434, %v3445, %v3447
  %v3449 = vshll.u32 %v3409, 8
  %v3450 = vand.u32 %v3449, 65535
  %v3451 = vshrl.u32 %v3449, 16
  %v3452 = vand.u32 %v3448, 65535
  %v3453 = vshrl.u32 %v3448, 16
  %v3454 = vmul.u32 %v3450, %v3452
  %v3455 = vmul.u32 %v3450, %v3453
  %v3456 = vmul.u32 %v3451, %v3452
  %v3457 = vmul.u32 %v3451, %v3453
  %v3458 = vshll.u32 %v3455, 16
  %v3459 = vshrl.u32 %v3455, 16
  %v3460 = vshll.u32 %v3456, 16
  %v3461 = vshrl.u32 %v3456, 16
  %vm3462 = vc.u32 %v3454, %v3458
  %v3463 = vsel %vm3462, 1, 0
  %v3464 = vadd.s32 %v3454, %v3458
  %v3465 = vadd.s32 %v3457, %v3463
  %vm3466 = vc.u32 %v3464, %v3460
  %v3467 = vsel %vm3466, 1, 0
  %v3468 = vadd.s32 %v3464, %v3460
  %v3469 = vadd.s32 %v3465, %v3467
  %v3470 = vadd.s32 %v3469, %v3459
  %v3471 = vadd.s32 %v3470, %v3461
  %v3472 = vand.u32 %v3449, 65535
  %v3473 = vshrl.u32 %v3449, 16
  %v3474 = vand.u32 %v3444, 65535
  %v3475 = vshrl.u32 %v3444, 16
  %v3476 = vmul.u32 %v3472, %v3474
  %v3477 = vmul.u32 %v3472, %v3475
  %v3478 = vmul.u32 %v3473, %v3474
  %v3479 = vmul.u32 %v3473, %v3475
  %v3480 = vshll.u32 %v3477, 16
  %v3481 = vshrl.u32 %v3477, 16
  %v3482 = vshll.u32 %v3478, 16
  %v3483 = vshrl.u32 %v3478, 16
  %vm3484 = vc.u32 %v3476, %v3480
  %v3485 = vsel %vm3484, 1, 0
  %v3486 = vadd.s32 %v3476, %v3480
  %v3487 = vadd.s32 %v3479, %v3485
  %vm3488 = vc.u32 %v3486, %v3482
  %v3489 = vsel %vm3488, 1, 0
  %v3490 = vadd.s32 %v3486, %v3482
  %v3491 = vadd.s32 %v3487, %v3489
  %v3492 = vadd.s32 %v3491, %v3481
  %v3493 = vadd.s32 %v3492, %v3483
  %v3494 = vmul.u32 %v3449, %v3440
  %v3495 = vadd.s32 %v3471, %v3490
  %vm3496 = vc.u32 %v3471, %v3490
  %v3497 = vadd.s32 %v3493, 1
  %v3498 = vsel %vm3496, %v3497, %v3493
  %v3499 = vadd.s32 %v3494, %v3498
  %v3500 = vadd.s32 %v3499, 536870912
  %v3501 = vshrl.u32 %v3500, 30
  %v3502 = vshll.u32 %v3501, 30
  %v3503 = vsub.s32 %v3499, %v3502
  %vm3504 = vcmp.lt.s32.totalorder %v3503, 0
  %v3505 = vsub.s32 0, %v3503
  %v3506 = vsel %vm3504, %v3505, %v3503
  %v3507 = vclz %v3506
  %v3508 = vsub.s32 %v3507, 2
  %vm3509 = vcmp.gt.s32.totalorder 0, %v3508
  %v3510 = vsel %vm3509, 0, %v3508
  %v3511 = vsub.s32 32, %v3510
  %v3512 = vshll.u32 %v3503, %v3510
  %v3513 = vshrl.u32 %v3495, %v3511
  %v3514 = vor.u32 %v3512, %v3513
  %v3515 = vsub.s32 4294967266, %v3510
  %v3516 = vadd.s32 %v3515, 127
  %v3517 = vshll.u32 %v3516, 23
  %v3518 = vor.u32 4788187, %v3517
  %v3519 = vand.u32 2147483647, %v3518
  %v3521 = vcvt.s32.f32 %v3514
  %v3522 = vmul.f32 %v3521, %v3519
  %v3523 = vxor.u32 %v3522, 2147483648
  %v3524 = vsel %vm3403, %v3523, %v3522
  %v3525 = vsub.s32 4, %v3501
  %v3526 = vsel %vm3403, %v3525, %v3501
  %v3527 = vsel %vm3402, %v289, %v3524
  %v3528 = vsel %vm3402, 0, %v3526
  %v3529 = vmul.f32 %v3527, %v3527
  %v3530 = vmul.f32 %v3529, -0.001358992
  %v3531 = vadd.f32 %v3530, 0.041655596
  %v3532 = vmul.f32 %v3529, %v3531
  %v3533 = vadd.f32 %v3532, -0.4999988
  %v3534 = vmul.f32 %v3529, %v3533
  %v3535 = vadd.f32 1.0, %v3534
  %v3536 = vmul.f32 %v3527, %v3527
  %v3537 = vmul.f32 %v3536, -0.00019511016
  %v3538 = vadd.f32 %v3537, 0.008332121
  %v3539 = vmul.f32 %v3536, %v3538
  %v3540 = vadd.f32 %v3539, -0.16666654
  %v3541 = vmul.f32 %v3536, %v3540
  %v3542 = vadd.f32 %v3541, 1.0
  %v3543 = vmul.f32 %v3542, %v3527
  %vm3544 = vweird.f32 %v289
  %v3545 = vadd.s32 %v3528, 3
  %v3546 = vand.u32 %v3545, 3
  %vm3547 = vcmp.lt.s32.totalorder %v3546, 2
  %vm3548 = vcmp.eq.s32.totalorder %v3546, 0
  %v3549 = vxor.u32 %v3543, 2147483648
  %v3550 = vsel %vm3548, %v3535, %v3549
  %vm3551 = vcmp.eq.s32.totalorder %v3546, 2
  %v3552 = vxor.u32 %v3535, 2147483648
  %v3553 = vsel %vm3551, %v3552, %v3543
  %v3554 = vsel %vm3547, %v3550, %v3553
  %v3555 = vsel %vm3544, nan, %v3554
  %v3556 = vand.u32 2147483647, %v290
  %vm3557 = vcmp.le.f32.partialorder %v3556, 0.7853982
  %vm3558 = vcmp.lt.s32.totalorder %v290, 0
  %v3559 = vand.u32 %v290, 2139095040
  %v3560 = vshrl.u32 %v3559, 23
  %v3561 = vsub.s32 %v3560, 127
  %v3562 = vand.u32 2147483647, %v290
  %v3563 = vand.u32 %v3562, 8388607
  %v3564 = vor.u32 %v3563, 8388608
  %v3565 = vsub.s32 0, %v3564
  %v3566 = vadd.s32 %v3561, 1
  %vm3567 = vcmp.gt.s32.totalorder %v3566, 0
  %v3568 = vsel %vm3567, %v3566, 0
  %v3569 = vshrl.u32 %v3568, 5
  %v3570 = vand.u32 %v3568, 31
  %v3571 = vsub.s32 32, %v3570
  %v3572 = vshrl.u32 683565275, %v3571
  %v3573 = vshll.u32 683565275, %v3570
  %v3574 = vshrl.u32 2475754826, %v3571
  %v3575 = vor.u32 %v3573, %v3574
  %v3576 = vshll.u32 2475754826, %v3570
  %v3577 = vshrl.u32 2131351028, %v3571
  %v3578 = vor.u32 %v3576, %v3577
  %v3579 = vshll.u32 2131351028, %v3570
  %v3580 = vshrl.u32 2102212464, %v3571
  %v3581 = vor.u32 %v3579, %v3580
  %v3582 = vshll.u32 2102212464, %v3570
  %v3583 = vshrl.u32 920167782, %v3571
  %v3584 = vor.u32 %v3582, %v3583
  %v3585 = vshll.u32 920167782, %v3570
  %v3586 = vshrl.u32 1326507024, %v3571
  %v3587 = vor.u32 %v3585, %v3586
  %vm3588 = vcmp.lt.s32.totalorder %v3569, 1
  %vm3589 = vcmp.lt.s32.totalorder %v3569, 2
  %vm3590 = vcmp.lt.s32.totalorder %v3569, 3
  %vm3591 = vcmp.lt.s32.totalorder %v3569, 4
  %v3592 = vsel %vm3588, %v3572, %v3575
  %v3593 = vsel %vm3591, %v3581, 2102212464
  %v3594 = vsel %vm3590, %v3578, %v3593
  %v3595 = vsel %vm3589, %v3592, %v3594
  %v3596 = vsel %vm3588, %v3575, %v3578
  %v3597 = vsel %vm3591, %v3584, 920167782
  %v3598 = vsel %vm3590, %v3581, %v3597
  %v3599 = vsel %vm3589, %v3596, %v3598
  %v3600 = vsel %vm3588, %v3578, %v3581
  %v3601 = vsel %vm3591, %v3587, 1326507024
  %v3602 = vsel %vm3590, %v3584, %v3601
  %v3603 = vsel %vm3589, %v3600, %v3602
  %v3604 = vshll.u32 %v3564, 8
  %v3605 = vand.u32 %v3604, 65535
  %v3606 = vshrl.u32 %v3604, 16
  %v3607 = vand.u32 %v3603, 65535
  %v3608 = vshrl.u32 %v3603, 16
  %v3609 = vmul.u32 %v3605, %v3607
  %v3610 = vmul.u32 %v3605, %v3608
  %v3611 = vmul.u32 %v3606, %v3607
  %v3612 = vmul.u32 %v3606, %v3608
  %v3613 = vshll.u32 %v3610, 16
  %v3614 = vshrl.u32 %v3610, 16
  %v3615 = vshll.u32 %v3611, 16
  %v3616 = vshrl.u32 %v3611, 16
  %vm3617 = vc.u32 %v3609, %v3613
  %v3618 = vsel %vm3617, 1, 0
  %v3619 = vadd.s32 %v3609, %v3613
  %v3620 = vadd.s32 %v3612, %v3618
  %vm3621 = vc.u32 %v3619, %v3615
  %v3622 = vsel %vm3621, 1, 0
  %v3623 = vadd.s32 %v3619, %v3615
  %v3624 = vadd.s32 %v3620, %v3622
  %v3625 = vadd.s32 %v3624, %v3614
  %v3626 = vadd.s32 %v3625, %v3616
  %v3627 = vand.u32 %v3604, 65535
  %v3628 = vshrl.u32 %v3604, 16
  %v3629 = vand.u32 %v3599, 65535
  %v3630 = vshrl.u32 %v3599, 16
  %v3631 = vmul.u32 %v3627, %v3629
  %v3632 = vmul.u32 %v3627, %v3630
  %v3633 = vmul.u32 %v3628, %v3629
  %v3634 = vmul.u32 %v3628, %v3630
  %v3635 = vshll.u32 %v3632, 16
  %v3636 = vshrl.u32 %v3632, 16
  %v3637 = vshll.u32 %v3633, 16
  %v3638 = vshrl.u32 %v3633, 16
  %vm3639 = vc.u32 %v3631, %v3635
  %v3640 = vsel %vm3639, 1, 0
  %v3641 = vadd.s32 %v3631, %v3635
  %v3642 = vadd.s32 %v3634, %v3640
  %vm3643 = vc.u32 %v3641, %v3637
  %v3644 = vsel %vm3643, 1, 0
  %v3645 = vadd.s32 %v3641, %v3637
  %v3646 = vadd.s32 %v3642, %v3644
  %v3647 = vadd.s32 %v3646, %v3636
  %v3648 = vadd.s32 %v3647, %v3638
  %v3649 = vmul.u32 %v3604, %v3595
  %v3650 = vadd.s32 %v3626, %v3645
  %vm3651 = vc.u32 %v3626, %v3645
  %v3652 = vadd.s32 %v3648, 1
  %v3653 = vsel %vm3651, %v3652, %v3648
  %v3654 = vadd.s32 %v3649, %v3653
  %v3655 = vadd.s32 %v3654, 536870912
  %v3656 = vshrl.u32 %v3655, 30
  %v3657 = vshll.u32 %v3656, 30
  %v3658 = vsub.s32 %v3654, %v3657
  %vm3659 = vcmp.lt.s32.totalorder %v3658, 0
  %v3660 = vsub.s32 0, %v3658
  %v3661 = vsel %vm3659, %v3660, %v3658
  %v3662 = vclz %v3661
  %v3663 = vsub.s32 %v3662, 2
  %vm3664 = vcmp.gt.s32.totalorder 0, %v3663
  %v3665 = vsel %vm3664, 0, %v3663
  %v3666 = vsub.s32 32, %v3665
  %v3667 = vshll.u32 %v3658, %v3665
  %v3668 = vshrl.u32 %v3650, %v3666
  %v3669 = vor.u32 %v3667, %v3668
  %v3670 = vsub.s32 4294967266, %v3665
  %v3671 = vadd.s32 %v3670, 127
  %v3672 = vshll.u32 %v3671, 23
  %v3673 = vor.u32 4788187, %v3672
  %v3674 = vand.u32 2147483647, %v3673
  %v3676 = vcvt.s32.f32 %v3669
  %v3677 = vmul.f32 %v3676, %v3674
  %v3678 = vxor.u32 %v3677, 2147483648
  %v3679 = vsel %vm3558, %v3678, %v3677
  %v3680 = vsub.s32 4, %v3656
  %v3681 = vsel %vm3558, %v3680, %v3656
  %v3682 = vsel %vm3557, %v290, %v3679
  %v3683 = vsel %vm3557, 0, %v3681
  %v3684 = vmul.f32 %v3682, %v3682
  %v3685 = vmul.f32 %v3684, -0.001358992
  %v3686 = vadd.f32 %v3685, 0.041655596
  %v3687 = vmul.f32 %v3684, %v3686
  %v3688 = vadd.f32 %v3687, -0.4999988
  %v3689 = vmul.f32 %v3684, %v3688
  %v3690 = vadd.f32 1.0, %v3689
  %v3691 = vmul.f32 %v3682, %v3682
  %v3692 = vmul.f32 %v3691, -0.00019511016
  %v3693 = vadd.f32 %v3692, 0.008332121
  %v3694 = vmul.f32 %v3691, %v3693
  %v3695 = vadd.f32 %v3694, -0.16666654
  %v3696 = vmul.f32 %v3691, %v3695
  %v3697 = vadd.f32 %v3696, 1.0
  %v3698 = vmul.f32 %v3697, %v3682
  %vm3699 = vweird.f32 %v290
  %v3700 = vadd.s32 %v3683, 3
  %v3701 = vand.u32 %v3700, 3
  %vm3702 = vcmp.lt.s32.totalorder %v3701, 2
  %vm3703 = vcmp.eq.s32.totalorder %v3701, 0
  %v3704 = vxor.u32 %v3698, 2147483648
  %v3705 = vsel %vm3703, %v3690, %v3704
  %vm3706 = vcmp.eq.s32.totalorder %v3701, 2
  %v3707 = vxor.u32 %v3690, 2147483648
  %v3708 = vsel %vm3706, %v3707, %v3698
  %v3709 = vsel %vm3702, %v3705, %v3708
  %v3710 = vsel %vm3699, nan, %v3709
  %v3711 = vand.u32 2147483647, %v291
  %vm3712 = vcmp.le.f32.partialorder %v3711, 0.7853982
  %vm3713 = vcmp.lt.s32.totalorder %v291, 0
  %v3714 = vand.u32 %v291, 2139095040
  %v3715 = vshrl.u32 %v3714, 23
  %v3716 = vsub.s32 %v3715, 127
  %v3717 = vand.u32 2147483647, %v291
  %v3718 = vand.u32 %v3717, 8388607
  %v3719 = vor.u32 %v3718, 8388608
  %v3720 = vsub.s32 0, %v3719
  %v3721 = vadd.s32 %v3716, 1
  %vm3722 = vcmp.gt.s32.totalorder %v3721, 0
  %v3723 = vsel %vm3722, %v3721, 0
  %v3724 = vshrl.u32 %v3723, 5
  %v3725 = vand.u32 %v3723, 31
  %v3726 = vsub.s32 32, %v3725
  %v3727 = vshrl.u32 683565275, %v3726
  %v3728 = vshll.u32 683565275, %v3725
  %v3729 = vshrl.u32 2475754826, %v3726
  %v3730 = vor.u32 %v3728, %v3729
  %v3731 = vshll.u32 2475754826, %v3725
  %v3732 = vshrl.u32 2131351028, %v3726
  %v3733 = vor.u32 %v3731, %v3732
  %v3734 = vshll.u32 2131351028, %v3725
  %v3735 = vshrl.u32 2102212464, %v3726
  %v3736 = vor.u32 %v3734, %v3735
  %v3737 = vshll.u32 2102212464, %v3725
  %v3738 = vshrl.u32 920167782, %v3726
  %v3739 = vor.u32 %v3737, %v3738
  %v3740 = vshll.u32 920167782, %v3725
  %v3741 = vshrl.u32 1326507024, %v3726
  %v3742 = vor.u32 %v3740, %v3741
  %vm3743 = vcmp.lt.s32.totalorder %v3724, 1
  %vm3744 = vcmp.lt.s32.totalorder %v3724, 2
  %vm3745 = vcmp.lt.s32.totalorder %v3724, 3
  %vm3746 = vcmp.lt.s32.totalorder %v3724, 4
  %v3747 = vsel %vm3743, %v3727, %v3730
  %v3748 = vsel %vm3746, %v3736, 2102212464
  %v3749 = vsel %vm3745, %v3733, %v3748
  %v3750 = vsel %vm3744, %v3747, %v3749
  %v3751 = vsel %vm3743, %v3730, %v3733
  %v3752 = vsel %vm3746, %v3739, 920167782
  %v3753 = vsel %vm3745, %v3736, %v3752
  %v3754 = vsel %vm3744, %v3751, %v3753
  %v3755 = vsel %vm3743, %v3733, %v3736
  %v3756 = vsel %vm3746, %v3742, 1326507024
  %v3757 = vsel %vm3745, %v3739, %v3756
  %v3758 = vsel %vm3744, %v3755, %v3757
  %v3759 = vshll.u32 %v3719, 8
  %v3760 = vand.u32 %v3759, 65535
  %v3761 = vshrl.u32 %v3759, 16
  %v3762 = vand.u32 %v3758, 65535
  %v3763 = vshrl.u32 %v3758, 16
  %v3764 = vmul.u32 %v3760, %v3762
  %v3765 = vmul.u32 %v3760, %v3763
  %v3766 = vmul.u32 %v3761, %v3762
  %v3767 = vmul.u32 %v3761, %v3763
  %v3768 = vshll.u32 %v3765, 16
  %v3769 = vshrl.u32 %v3765, 16
  %v3770 = vshll.u32 %v3766, 16
  %v3771 = vshrl.u32 %v3766, 16
  %vm3772 = vc.u32 %v3764, %v3768
  %v3773 = vsel %vm3772, 1, 0
  %v3774 = vadd.s32 %v3764, %v3768
  %v3775 = vadd.s32 %v3767, %v3773
  %vm3776 = vc.u32 %v3774, %v3770
  %v3777 = vsel %vm3776, 1, 0
  %v3778 = vadd.s32 %v3774, %v3770
  %v3779 = vadd.s32 %v3775, %v3777
  %v3780 = vadd.s32 %v3779, %v3769
  %v3781 = vadd.s32 %v3780, %v3771
  %v3782 = vand.u32 %v3759, 65535
  %v3783 = vshrl.u32 %v3759, 16
  %v3784 = vand.u32 %v3754, 65535
  %v3785 = vshrl.u32 %v3754, 16
  %v3786 = vmul.u32 %v3782, %v3784
  %v3787 = vmul.u32 %v3782, %v3785
  %v3788 = vmul.u32 %v3783, %v3784
  %v3789 = vmul.u32 %v3783, %v3785
  %v3790 = vshll.u32 %v3787, 16
  %v3791 = vshrl.u32 %v3787, 16
  %v3792 = vshll.u32 %v3788, 16
  %v3793 = vshrl.u32 %v3788, 16
  %vm3794 = vc.u32 %v3786, %v3790
  %v3795 = vsel %vm3794, 1, 0
  %v3796 = vadd.s32 %v3786, %v3790
  %v3797 = vadd.s32 %v3789, %v3795
  %vm3798 = vc.u32 %v3796, %v3792
  %v3799 = vsel %vm3798, 1, 0
  %v3800 = vadd.s32 %v3796, %v3792
  %v3801 = vadd.s32 %v3797, %v3799
  %v3802 = vadd.s32 %v3801, %v3791
  %v3803 = vadd.s32 %v3802, %v3793
  %v3804 = vmul.u32 %v3759, %v3750
  %v3805 = vadd.s32 %v3781, %v3800
  %vm3806 = vc.u32 %v3781, %v3800
  %v3807 = vadd.s32 %v3803, 1
  %v3808 = vsel %vm3806, %v3807, %v3803
  %v3809 = vadd.s32 %v3804, %v3808
  %v3810 = vadd.s32 %v3809, 536870912
  %v3811 = vshrl.u32 %v3810, 30
  %v3812 = vshll.u32 %v3811, 30
  %v3813 = vsub.s32 %v3809, %v3812
  %vm3814 = vcmp.lt.s32.totalorder %v3813, 0
  %v3815 = vsub.s32 0, %v3813
  %v3816 = vsel %vm3814, %v3815, %v3813
  %v3817 = vclz %v3816
  %v3818 = vsub.s32 %v3817, 2
  %vm3819 = vcmp.gt.s32.totalorder 0, %v3818
  %v3820 = vsel %vm3819, 0, %v3818
  %v3821 = vsub.s32 32, %v3820
  %v3822 = vshll.u32 %v3813, %v3820
  %v3823 = vshrl.u32 %v3805, %v3821
  %v3824 = vor.u32 %v3822, %v3823
  %v3825 = vsub.s32 4294967266, %v3820
  %v3826 = vadd.s32 %v3825, 127
  %v3827 = vshll.u32 %v3826, 23
  %v3828 = vor.u32 4788187, %v3827
  %v3829 = vand.u32 2147483647, %v3828
  %v3831 = vcvt.s32.f32 %v3824
  %v3832 = vmul.f32 %v3831, %v3829
  %v3833 = vxor.u32 %v3832, 2147483648
  %v3834 = vsel %vm3713, %v3833, %v3832
  %v3835 = vsub.s32 4, %v3811
  %v3836 = vsel %vm3713, %v3835, %v3811
  %v3837 = vsel %vm3712, %v291, %v3834
  %v3838 = vsel %vm3712, 0, %v3836
  %v3839 = vmul.f32 %v3837, %v3837
  %v3840 = vmul.f32 %v3839, -0.001358992
  %v3841 = vadd.f32 %v3840, 0.041655596
  %v3842 = vmul.f32 %v3839, %v3841
  %v3843 = vadd.f32 %v3842, -0.4999988
  %v3844 = vmul.f32 %v3839, %v3843
  %v3845 = vadd.f32 1.0, %v3844
  %v3846 = vmul.f32 %v3837, %v3837
  %v3847 = vmul.f32 %v3846, -0.00019511016
  %v3848 = vadd.f32 %v3847, 0.008332121
  %v3849 = vmul.f32 %v3846, %v3848
  %v3850 = vadd.f32 %v3849, -0.16666654
  %v3851 = vmul.f32 %v3846, %v3850
  %v3852 = vadd.f32 %v3851, 1.0
  %v3853 = vmul.f32 %v3852, %v3837
  %vm3854 = vweird.f32 %v291
  %v3855 = vadd.s32 %v3838, 3
  %v3856 = vand.u32 %v3855, 3
  %vm3857 = vcmp.lt.s32.totalorder %v3856, 2
  %vm3858 = vcmp.eq.s32.totalorder %v3856, 0
  %v3859 = vxor.u32 %v3853, 2147483648
  %v3860 = vsel %vm3858, %v3845, %v3859
  %vm3861 = vcmp.eq.s32.totalorder %v3856, 2
  %v3862 = vxor.u32 %v3845, 2147483648
  %v3863 = vsel %vm3861, %v3862, %v3853
  %v3864 = vsel %vm3857, %v3860, %v3863
  %v3865 = vsel %vm3854, nan, %v3864
  %v3866 = vand.u32 2147483647, %v292
  %vm3867 = vcmp.le.f32.partialorder %v3866, 0.7853982
  %vm3868 = vcmp.lt.s32.totalorder %v292, 0
  %v3869 = vand.u32 %v292, 2139095040
  %v3870 = vshrl.u32 %v3869, 23
  %v3871 = vsub.s32 %v3870, 127
  %v3872 = vand.u32 2147483647, %v292
  %v3873 = vand.u32 %v3872, 8388607
  %v3874 = vor.u32 %v3873, 8388608
  %v3875 = vsub.s32 0, %v3874
  %v3876 = vadd.s32 %v3871, 1
  %vm3877 = vcmp.gt.s32.totalorder %v3876, 0
  %v3878 = vsel %vm3877, %v3876, 0
  %v3879 = vshrl.u32 %v3878, 5
  %v3880 = vand.u32 %v3878, 31
  %v3881 = vsub.s32 32, %v3880
  %v3882 = vshrl.u32 683565275, %v3881
  %v3883 = vshll.u32 683565275, %v3880
  %v3884 = vshrl.u32 2475754826, %v3881
  %v3885 = vor.u32 %v3883, %v3884
  %v3886 = vshll.u32 2475754826, %v3880
  %v3887 = vshrl.u32 2131351028, %v3881
  %v3888 = vor.u32 %v3886, %v3887
  %v3889 = vshll.u32 2131351028, %v3880
  %v3890 = vshrl.u32 2102212464, %v3881
  %v3891 = vor.u32 %v3889, %v3890
  %v3892 = vshll.u32 2102212464, %v3880
  %v3893 = vshrl.u32 920167782, %v3881
  %v3894 = vor.u32 %v3892, %v3893
  %v3895 = vshll.u32 920167782, %v3880
  %v3896 = vshrl.u32 1326507024, %v3881
  %v3897 = vor.u32 %v3895, %v3896
  %vm3898 = vcmp.lt.s32.totalorder %v3879, 1
  %vm3899 = vcmp.lt.s32.totalorder %v3879, 2
  %vm3900 = vcmp.lt.s32.totalorder %v3879, 3
  %vm3901 = vcmp.lt.s32.totalorder %v3879, 4
  %v3902 = vsel %vm3898, %v3882, %v3885
  %v3903 = vsel %vm3901, %v3891, 2102212464
  %v3904 = vsel %vm3900, %v3888, %v3903
  %v3905 = vsel %vm3899, %v3902, %v3904
  %v3906 = vsel %vm3898, %v3885, %v3888
  %v3907 = vsel %vm3901, %v3894, 920167782
  %v3908 = vsel %vm3900, %v3891, %v3907
  %v3909 = vsel %vm3899, %v3906, %v3908
  %v3910 = vsel %vm3898, %v3888, %v3891
  %v3911 = vsel %vm3901, %v3897, 1326507024
  %v3912 = vsel %vm3900, %v3894, %v3911
  %v3913 = vsel %vm3899, %v3910, %v3912
  %v3914 = vshll.u32 %v3874, 8
  %v3915 = vand.u32 %v3914, 65535
  %v3916 = vshrl.u32 %v3914, 16
  %v3917 = vand.u32 %v3913, 65535
  %v3918 = vshrl.u32 %v3913, 16
  %v3919 = vmul.u32 %v3915, %v3917
  %v3920 = vmul.u32 %v3915, %v3918
  %v3921 = vmul.u32 %v3916, %v3917
  %v3922 = vmul.u32 %v3916, %v3918
  %v3923 = vshll.u32 %v3920, 16
  %v3924 = vshrl.u32 %v3920, 16
  %v3925 = vshll.u32 %v3921, 16
  %v3926 = vshrl.u32 %v3921, 16
  %vm3927 = vc.u32 %v3919, %v3923
  %v3928 = vsel %vm3927, 1, 0
  %v3929 = vadd.s32 %v3919, %v3923
  %v3930 = vadd.s32 %v3922, %v3928
  %vm3931 = vc.u32 %v3929, %v3925
  %v3932 = vsel %vm3931, 1, 0
  %v3933 = vadd.s32 %v3929, %v3925
  %v3934 = vadd.s32 %v3930, %v3932
  %v3935 = vadd.s32 %v3934, %v3924
  %v3936 = vadd.s32 %v3935, %v3926
  %v3937 = vand.u32 %v3914, 65535
  %v3938 = vshrl.u32 %v3914, 16
  %v3939 = vand.u32 %v3909, 65535
  %v3940 = vshrl.u32 %v3909, 16
  %v3941 = vmul.u32 %v3937, %v3939
  %v3942 = vmul.u32 %v3937, %v3940
  %v3943 = vmul.u32 %v3938, %v3939
  %v3944 = vmul.u32 %v3938, %v3940
  %v3945 = vshll.u32 %v3942, 16
  %v3946 = vshrl.u32 %v3942, 16
  %v3947 = vshll.u32 %v3943, 16
  %v3948 = vshrl.u32 %v3943, 16
  %vm3949 = vc.u32 %v3941, %v3945
  %v3950 = vsel %vm3949, 1, 0
  %v3951 = vadd.s32 %v3941, %v3945
  %v3952 = vadd.s32 %v3944, %v3950
  %vm3953 = vc.u32 %v3951, %v3947
  %v3954 = vsel %vm3953, 1, 0
  %v3955 = vadd.s32 %v3951, %v3947
  %v3956 = vadd.s32 %v3952, %v3954
  %v3957 = vadd.s32 %v3956, %v3946
  %v3958 = vadd.s32 %v3957, %v3948
  %v3959 = vmul.u32 %v3914, %v3905
  %v3960 = vadd.s32 %v3936, %v3955
  %vm3961 = vc.u32 %v3936, %v3955
  %v3962 = vadd.s32 %v3958, 1
  %v3963 = vsel %vm3961, %v3962, %v3958
  %v3964 = vadd.s32 %v3959, %v3963
  %v3965 = vadd.s32 %v3964, 536870912
  %v3966 = vshrl.u32 %v3965, 30
  %v3967 = vshll.u32 %v3966, 30
  %v3968 = vsub.s32 %v3964, %v3967
  %vm3969 = vcmp.lt.s32.totalorder %v3968, 0
  %v3970 = vsub.s32 0, %v3968
  %v3971 = vsel %vm3969, %v3970, %v3968
  %v3972 = vclz %v3971
  %v3973 = vsub.s32 %v3972, 2
  %vm3974 = vcmp.gt.s32.totalorder 0, %v3973
  %v3975 = vsel %vm3974, 0, %v3973
  %v3976 = vsub.s32 32, %v3975
  %v3977 = vshll.u32 %v3968, %v3975
  %v3978 = vshrl.u32 %v3960, %v3976
  %v3979 = vor.u32 %v3977, %v3978
  %v3980 = vsub.s32 4294967266, %v3975
  %v3981 = vadd.s32 %v3980, 127
  %v3982 = vshll.u32 %v3981, 23
  %v3983 = vor.u32 4788187, %v3982
  %v3984 = vand.u32 2147483647, %v3983
  %v3986 = vcvt.s32.f32 %v3979
  %v3987 = vmul.f32 %v3986, %v3984
  %v3988 = vxor.u32 %v3987, 2147483648
  %v3989 = vsel %vm3868, %v3988, %v3987
  %v3990 = vsub.s32 4, %v3966
  %v3991 = vsel %vm3868, %v3990, %v3966
  %v3992 = vsel %vm3867, %v292, %v3989
  %v3993 = vsel %vm3867, 0, %v3991
  %v3994 = vmul.f32 %v3992, %v3992
  %v3995 = vmul.f32 %v3994, -0.001358992
  %v3996 = vadd.f32 %v3995, 0.041655596
  %v3997 = vmul.f32 %v3994, %v3996
  %v3998 = vadd.f32 %v3997, -0.4999988
  %v3999 = vmul.f32 %v3994, %v3998
  %v4000 = vadd.f32 1.0, %v3999
  %v4001 = vmul.f32 %v3992, %v3992
  %v4002 = vmul.f32 %v4001, -0.00019511016
  %v4003 = vadd.f32 %v4002, 0.008332121
  %v4004 = vmul.f32 %v4001, %v4003
  %v4005 = vadd.f32 %v4004, -0.16666654
  %v4006 = vmul.f32 %v4001, %v4005
  %v4007 = vadd.f32 %v4006, 1.0
  %v4008 = vmul.f32 %v4007, %v3992
  %vm4009 = vweird.f32 %v292
  %v4010 = vadd.s32 %v3993, 3
  %v4011 = vand.u32 %v4010, 3
  %vm4012 = vcmp.lt.s32.totalorder %v4011, 2
  %vm4013 = vcmp.eq.s32.totalorder %v4011, 0
  %v4014 = vxor.u32 %v4008, 2147483648
  %v4015 = vsel %vm4013, %v4000, %v4014
  %vm4016 = vcmp.eq.s32.totalorder %v4011, 2
  %v4017 = vxor.u32 %v4000, 2147483648
  %v4018 = vsel %vm4016, %v4017, %v4008
  %v4019 = vsel %vm4012, %v4015, %v4018
  %v4020 = vsel %vm4009, nan, %v4019
  %v4021 = vand.u32 2147483647, %v293
  %vm4022 = vcmp.le.f32.partialorder %v4021, 0.7853982
  %vm4023 = vcmp.lt.s32.totalorder %v293, 0
  %v4024 = vand.u32 %v293, 2139095040
  %v4025 = vshrl.u32 %v4024, 23
  %v4026 = vsub.s32 %v4025, 127
  %v4027 = vand.u32 2147483647, %v293
  %v4028 = vand.u32 %v4027, 8388607
  %v4029 = vor.u32 %v4028, 8388608
  %v4030 = vsub.s32 0, %v4029
  %v4031 = vadd.s32 %v4026, 1
  %vm4032 = vcmp.gt.s32.totalorder %v4031, 0
  %v4033 = vsel %vm4032, %v4031, 0
  %v4034 = vshrl.u32 %v4033, 5
  %v4035 = vand.u32 %v4033, 31
  %v4036 = vsub.s32 32, %v4035
  %v4037 = vshrl.u32 683565275, %v4036
  %v4038 = vshll.u32 683565275, %v4035
  %v4039 = vshrl.u32 2475754826, %v4036
  %v4040 = vor.u32 %v4038, %v4039
  %v4041 = vshll.u32 2475754826, %v4035
  %v4042 = vshrl.u32 2131351028, %v4036
  %v4043 = vor.u32 %v4041, %v4042
  %v4044 = vshll.u32 2131351028, %v4035
  %v4045 = vshrl.u32 2102212464, %v4036
  %v4046 = vor.u32 %v4044, %v4045
  %v4047 = vshll.u32 2102212464, %v4035
  %v4048 = vshrl.u32 920167782, %v4036
  %v4049 = vor.u32 %v4047, %v4048
  %v4050 = vshll.u32 920167782, %v4035
  %v4051 = vshrl.u32 1326507024, %v4036
  %v4052 = vor.u32 %v4050, %v4051
  %vm4053 = vcmp.lt.s32.totalorder %v4034, 1
  %vm4054 = vcmp.lt.s32.totalorder %v4034, 2
  %vm4055 = vcmp.lt.s32.totalorder %v4034, 3
  %vm4056 = vcmp.lt.s32.totalorder %v4034, 4
  %v4057 = vsel %vm4053, %v4037, %v4040
  %v4058 = vsel %vm4056, %v4046, 2102212464
  %v4059 = vsel %vm4055, %v4043, %v4058
  %v4060 = vsel %vm4054, %v4057, %v4059
  %v4061 = vsel %vm4053, %v4040, %v4043
  %v4062 = vsel %vm4056, %v4049, 920167782
  %v4063 = vsel %vm4055, %v4046, %v4062
  %v4064 = vsel %vm4054, %v4061, %v4063
  %v4065 = vsel %vm4053, %v4043, %v4046
  %v4066 = vsel %vm4056, %v4052, 1326507024
  %v4067 = vsel %vm4055, %v4049, %v4066
  %v4068 = vsel %vm4054, %v4065, %v4067
  %v4069 = vshll.u32 %v4029, 8
  %v4070 = vand.u32 %v4069, 65535
  %v4071 = vshrl.u32 %v4069, 16
  %v4072 = vand.u32 %v4068, 65535
  %v4073 = vshrl.u32 %v4068, 16
  %v4074 = vmul.u32 %v4070, %v4072
  %v4075 = vmul.u32 %v4070, %v4073
  %v4076 = vmul.u32 %v4071, %v4072
  %v4077 = vmul.u32 %v4071, %v4073
  %v4078 = vshll.u32 %v4075, 16
  %v4079 = vshrl.u32 %v4075, 16
  %v4080 = vshll.u32 %v4076, 16
  %v4081 = vshrl.u32 %v4076, 16
  %vm4082 = vc.u32 %v4074, %v4078
  %v4083 = vsel %vm4082, 1, 0
  %v4084 = vadd.s32 %v4074, %v4078
  %v4085 = vadd.s32 %v4077, %v4083
  %vm4086 = vc.u32 %v4084, %v4080
  %v4087 = vsel %vm4086, 1, 0
  %v4088 = vadd.s32 %v4084, %v4080
  %v4089 = vadd.s32 %v4085, %v4087
  %v4090 = vadd.s32 %v4089, %v4079
  %v4091 = vadd.s32 %v4090, %v4081
  %v4092 = vand.u32 %v4069, 65535
  %v4093 = vshrl.u32 %v4069, 16
  %v4094 = vand.u32 %v4064, 65535
  %v4095 = vshrl.u32 %v4064, 16
  %v4096 = vmul.u32 %v4092, %v4094
  %v4097 = vmul.u32 %v4092, %v4095
  %v4098 = vmul.u32 %v4093, %v4094
  %v4099 = vmul.u32 %v4093, %v4095
  %v4100 = vshll.u32 %v4097, 16
  %v4101 = vshrl.u32 %v4097, 16
  %v4102 = vshll.u32 %v4098, 16
  %v4103 = vshrl.u32 %v4098, 16
  %vm4104 = vc.u32 %v4096, %v4100
  %v4105 = vsel %vm4104, 1, 0
  %v4106 = vadd.s32 %v4096, %v4100
  %v4107 = vadd.s32 %v4099, %v4105
  %vm4108 = vc.u32 %v4106, %v4102
  %v4109 = vsel %vm4108, 1, 0
  %v4110 = vadd.s32 %v4106, %v4102
  %v4111 = vadd.s32 %v4107, %v4109
  %v4112 = vadd.s32 %v4111, %v4101
  %v4113 = vadd.s32 %v4112, %v4103
  %v4114 = vmul.u32 %v4069, %v4060
  %v4115 = vadd.s32 %v4091, %v4110
  %vm4116 = vc.u32 %v4091, %v4110
  %v4117 = vadd.s32 %v4113, 1
  %v4118 = vsel %vm4116, %v4117, %v4113
  %v4119 = vadd.s32 %v4114, %v4118
  %v4120 = vadd.s32 %v4119, 536870912
  %v4121 = vshrl.u32 %v4120, 30
  %v4122 = vshll.u32 %v4121, 30
  %v4123 = vsub.s32 %v4119, %v4122
  %vm4124 = vcmp.lt.s32.totalorder %v4123, 0
  %v4125 = vsub.s32 0, %v4123
  %v4126 = vsel %vm4124, %v4125, %v4123
  %v4127 = vclz %v4126
  %v4128 = vsub.s32 %v4127, 2
  %vm4129 = vcmp.gt.s32.totalorder 0, %v4128
  %v4130 = vsel %vm4129, 0, %v4128
  %v4131 = vsub.s32 32, %v4130
  %v4132 = vshll.u32 %v4123, %v4130
  %v4133 = vshrl.u32 %v4115, %v4131
  %v4134 = vor.u32 %v4132, %v4133
  %v4135 = vsub.s32 4294967266, %v4130
  %v4136 = vadd.s32 %v4135, 127
  %v4137 = vshll.u32 %v4136, 23
  %v4138 = vor.u32 4788187, %v4137
  %v4139 = vand.u32 2147483647, %v4138
  %v4141 = vcvt.s32.f32 %v4134
  %v4142 = vmul.f32 %v4141, %v4139
  %v4143 = vxor.u32 %v4142, 2147483648
  %v4144 = vsel %vm4023, %v4143, %v4142
  %v4145 = vsub.s32 4, %v4121
  %v4146 = vsel %vm4023, %v4145, %v4121
  %v4147 = vsel %vm4022, %v293, %v4144
  %v4148 = vsel %vm4022, 0, %v4146
  %v4149 = vmul.f32 %v4147, %v4147
  %v4150 = vmul.f32 %v4149, -0.001358992
  %v4151 = vadd.f32 %v4150, 0.041655596
  %v4152 = vmul.f32 %v4149, %v4151
  %v4153 = vadd.f32 %v4152, -0.4999988
  %v4154 = vmul.f32 %v4149, %v4153
  %v4155 = vadd.f32 1.0, %v4154
  %v4156 = vmul.f32 %v4147, %v4147
  %v4157 = vmul.f32 %v4156, -0.00019511016
  %v4158 = vadd.f32 %v4157, 0.008332121
  %v4159 = vmul.f32 %v4156, %v4158
  %v4160 = vadd.f32 %v4159, -0.16666654
  %v4161 = vmul.f32 %v4156, %v4160
  %v4162 = vadd.f32 %v4161, 1.0
  %v4163 = vmul.f32 %v4162, %v4147
  %vm4164 = vweird.f32 %v293
  %v4165 = vadd.s32 %v4148, 3
  %v4166 = vand.u32 %v4165, 3
  %vm4167 = vcmp.lt.s32.totalorder %v4166, 2
  %vm4168 = vcmp.eq.s32.totalorder %v4166, 0
  %v4169 = vxor.u32 %v4163, 2147483648
  %v4170 = vsel %vm4168, %v4155, %v4169
  %vm4171 = vcmp.eq.s32.totalorder %v4166, 2
  %v4172 = vxor.u32 %v4155, 2147483648
  %v4173 = vsel %vm4171, %v4172, %v4163
  %v4174 = vsel %vm4167, %v4170, %v4173
  %v4175 = vsel %vm4164, nan, %v4174
  %v4176 = vand.u32 2147483647, %v294
  %vm4177 = vcmp.le.f32.partialorder %v4176, 0.7853982
  %vm4178 = vcmp.lt.s32.totalorder %v294, 0
  %v4179 = vand.u32 %v294, 2139095040
  %v4180 = vshrl.u32 %v4179, 23
  %v4181 = vsub.s32 %v4180, 127
  %v4182 = vand.u32 2147483647, %v294
  %v4183 = vand.u32 %v4182, 8388607
  %v4184 = vor.u32 %v4183, 8388608
  %v4185 = vsub.s32 0, %v4184
  %v4186 = vadd.s32 %v4181, 1
  %vm4187 = vcmp.gt.s32.totalorder %v4186, 0
  %v4188 = vsel %vm4187, %v4186, 0
  %v4189 = vshrl.u32 %v4188, 5
  %v4190 = vand.u32 %v4188, 31
  %v4191 = vsub.s32 32, %v4190
  %v4192 = vshrl.u32 683565275, %v4191
  %v4193 = vshll.u32 683565275, %v4190
  %v4194 = vshrl.u32 2475754826, %v4191
  %v4195 = vor.u32 %v4193, %v4194
  %v4196 = vshll.u32 2475754826, %v4190
  %v4197 = vshrl.u32 2131351028, %v4191
  %v4198 = vor.u32 %v4196, %v4197
  %v4199 = vshll.u32 2131351028, %v4190
  %v4200 = vshrl.u32 2102212464, %v4191
  %v4201 = vor.u32 %v4199, %v4200
  %v4202 = vshll.u32 2102212464, %v4190
  %v4203 = vshrl.u32 920167782, %v4191
  %v4204 = vor.u32 %v4202, %v4203
  %v4205 = vshll.u32 920167782, %v4190
  %v4206 = vshrl.u32 1326507024, %v4191
  %v4207 = vor.u32 %v4205, %v4206
  %vm4208 = vcmp.lt.s32.totalorder %v4189, 1
  %vm4209 = vcmp.lt.s32.totalorder %v4189, 2
  %vm4210 = vcmp.lt.s32.totalorder %v4189, 3
  %vm4211 = vcmp.lt.s32.totalorder %v4189, 4
  %v4212 = vsel %vm4208, %v4192, %v4195
  %v4213 = vsel %vm4211, %v4201, 2102212464
  %v4214 = vsel %vm4210, %v4198, %v4213
  %v4215 = vsel %vm4209, %v4212, %v4214
  %v4216 = vsel %vm4208, %v4195, %v4198
  %v4217 = vsel %vm4211, %v4204, 920167782
  %v4218 = vsel %vm4210, %v4201, %v4217
  %v4219 = vsel %vm4209, %v4216, %v4218
  %v4220 = vsel %vm4208, %v4198, %v4201
  %v4221 = vsel %vm4211, %v4207, 1326507024
  %v4222 = vsel %vm4210, %v4204, %v4221
  %v4223 = vsel %vm4209, %v4220, %v4222
  %v4224 = vshll.u32 %v4184, 8
  %v4225 = vand.u32 %v4224, 65535
  %v4226 = vshrl.u32 %v4224, 16
  %v4227 = vand.u32 %v4223, 65535
  %v4228 = vshrl.u32 %v4223, 16
  %v4229 = vmul.u32 %v4225, %v4227
  %v4230 = vmul.u32 %v4225, %v4228
  %v4231 = vmul.u32 %v4226, %v4227
  %v4232 = vmul.u32 %v4226, %v4228
  %v4233 = vshll.u32 %v4230, 16
  %v4234 = vshrl.u32 %v4230, 16
  %v4235 = vshll.u32 %v4231, 16
  %v4236 = vshrl.u32 %v4231, 16
  %vm4237 = vc.u32 %v4229, %v4233
  %v4238 = vsel %vm4237, 1, 0
  %v4239 = vadd.s32 %v4229, %v4233
  %v4240 = vadd.s32 %v4232, %v4238
  %vm4241 = vc.u32 %v4239, %v4235
  %v4242 = vsel %vm4241, 1, 0
  %v4243 = vadd.s32 %v4239, %v4235
  %v4244 = vadd.s32 %v4240, %v4242
  %v4245 = vadd.s32 %v4244, %v4234
  %v4246 = vadd.s32 %v4245, %v4236
  %v4247 = vand.u32 %v4224, 65535
  %v4248 = vshrl.u32 %v4224, 16
  %v4249 = vand.u32 %v4219, 65535
  %v4250 = vshrl.u32 %v4219, 16
  %v4251 = vmul.u32 %v4247, %v4249
  %v4252 = vmul.u32 %v4247, %v4250
  %v4253 = vmul.u32 %v4248, %v4249
  %v4254 = vmul.u32 %v4248, %v4250
  %v4255 = vshll.u32 %v4252, 16
  %v4256 = vshrl.u32 %v4252, 16
  %v4257 = vshll.u32 %v4253, 16
  %v4258 = vshrl.u32 %v4253, 16
  %vm4259 = vc.u32 %v4251, %v4255
  %v4260 = vsel %vm4259, 1, 0
  %v4261 = vadd.s32 %v4251, %v4255
  %v4262 = vadd.s32 %v4254, %v4260
  %vm4263 = vc.u32 %v4261, %v4257
  %v4264 = vsel %vm4263, 1, 0
  %v4265 = vadd.s32 %v4261, %v4257
  %v4266 = vadd.s32 %v4262, %v4264
  %v4267 = vadd.s32 %v4266, %v4256
  %v4268 = vadd.s32 %v4267, %v4258
  %v4269 = vmul.u32 %v4224, %v4215
  %v4270 = vadd.s32 %v4246, %v4265
  %vm4271 = vc.u32 %v4246, %v4265
  %v4272 = vadd.s32 %v4268, 1
  %v4273 = vsel %vm4271, %v4272, %v4268
  %v4274 = vadd.s32 %v4269, %v4273
  %v4275 = vadd.s32 %v4274, 536870912
  %v4276 = vshrl.u32 %v4275, 30
  %v4277 = vshll.u32 %v4276, 30
  %v4278 = vsub.s32 %v4274, %v4277
  %vm4279 = vcmp.lt.s32.totalorder %v4278, 0
  %v4280 = vsub.s32 0, %v4278
  %v4281 = vsel %vm4279, %v4280, %v4278
  %v4282 = vclz %v4281
  %v4283 = vsub.s32 %v4282, 2
  %vm4284 = vcmp.gt.s32.totalorder 0, %v4283
  %v4285 = vsel %vm4284, 0, %v4283
  %v4286 = vsub.s32 32, %v4285
  %v4287 = vshll.u32 %v4278, %v4285
  %v4288 = vshrl.u32 %v4270, %v4286
  %v4289 = vor.u32 %v4287, %v4288
  %v4290 = vsub.s32 4294967266, %v4285
  %v4291 = vadd.s32 %v4290, 127
  %v4292 = vshll.u32 %v4291, 23
  %v4293 = vor.u32 4788187, %v4292
  %v4294 = vand.u32 2147483647, %v4293
  %v4296 = vcvt.s32.f32 %v4289
  %v4297 = vmul.f32 %v4296, %v4294
  %v4298 = vxor.u32 %v4297, 2147483648
  %v4299 = vsel %vm4178, %v4298, %v4297
  %v4300 = vsub.s32 4, %v4276
  %v4301 = vsel %vm4178, %v4300, %v4276
  %v4302 = vsel %vm4177, %v294, %v4299
  %v4303 = vsel %vm4177, 0, %v4301
  %v4304 = vmul.f32 %v4302, %v4302
  %v4305 = vmul.f32 %v4304, -0.001358992
  %v4306 = vadd.f32 %v4305, 0.041655596
  %v4307 = vmul.f32 %v4304, %v4306
  %v4308 = vadd.f32 %v4307, -0.4999988
  %v4309 = vmul.f32 %v4304, %v4308
  %v4310 = vadd.f32 1.0, %v4309
  %v4311 = vmul.f32 %v4302, %v4302
  %v4312 = vmul.f32 %v4311, -0.00019511016
  %v4313 = vadd.f32 %v4312, 0.008332121
  %v4314 = vmul.f32 %v4311, %v4313
  %v4315 = vadd.f32 %v4314, -0.16666654
  %v4316 = vmul.f32 %v4311, %v4315
  %v4317 = vadd.f32 %v4316, 1.0
  %v4318 = vmul.f32 %v4317, %v4302
  %vm4319 = vweird.f32 %v294
  %v4320 = vadd.s32 %v4303, 3
  %v4321 = vand.u32 %v4320, 3
  %vm4322 = vcmp.lt.s32.totalorder %v4321, 2
  %vm4323 = vcmp.eq.s32.totalorder %v4321, 0
  %v4324 = vxor.u32 %v4318, 2147483648
  %v4325 = vsel %vm4323, %v4310, %v4324
  %vm4326 = vcmp.eq.s32.totalorder %v4321, 2
  %v4327 = vxor.u32 %v4310, 2147483648
  %v4328 = vsel %vm4326, %v4327, %v4318
  %v4329 = vsel %vm4322, %v4325, %v4328
  %v4330 = vsel %vm4319, nan, %v4329
  %v4331 = vand.u32 2147483647, %v295
  %vm4332 = vcmp.le.f32.partialorder %v4331, 0.7853982
  %vm4333 = vcmp.lt.s32.totalorder %v295, 0
  %v4334 = vand.u32 %v295, 2139095040
  %v4335 = vshrl.u32 %v4334, 23
  %v4336 = vsub.s32 %v4335, 127
  %v4337 = vand.u32 2147483647, %v295
  %v4338 = vand.u32 %v4337, 8388607
  %v4339 = vor.u32 %v4338, 8388608
  %v4340 = vsub.s32 0, %v4339
  %v4341 = vadd.s32 %v4336, 1
  %vm4342 = vcmp.gt.s32.totalorder %v4341, 0
  %v4343 = vsel %vm4342, %v4341, 0
  %v4344 = vshrl.u32 %v4343, 5
  %v4345 = vand.u32 %v4343, 31
  %v4346 = vsub.s32 32, %v4345
  %v4347 = vshrl.u32 683565275, %v4346
  %v4348 = vshll.u32 683565275, %v4345
  %v4349 = vshrl.u32 2475754826, %v4346
  %v4350 = vor.u32 %v4348, %v4349
  %v4351 = vshll.u32 2475754826, %v4345
  %v4352 = vshrl.u32 2131351028, %v4346
  %v4353 = vor.u32 %v4351, %v4352
  %v4354 = vshll.u32 2131351028, %v4345
  %v4355 = vshrl.u32 2102212464, %v4346
  %v4356 = vor.u32 %v4354, %v4355
  %v4357 = vshll.u32 2102212464, %v4345
  %v4358 = vshrl.u32 920167782, %v4346
  %v4359 = vor.u32 %v4357, %v4358
  %v4360 = vshll.u32 920167782, %v4345
  %v4361 = vshrl.u32 1326507024, %v4346
  %v4362 = vor.u32 %v4360, %v4361
  %vm4363 = vcmp.lt.s32.totalorder %v4344, 1
  %vm4364 = vcmp.lt.s32.totalorder %v4344, 2
  %vm4365 = vcmp.lt.s32.totalorder %v4344, 3
  %vm4366 = vcmp.lt.s32.totalorder %v4344, 4
  %v4367 = vsel %vm4363, %v4347, %v4350
  %v4368 = vsel %vm4366, %v4356, 2102212464
  %v4369 = vsel %vm4365, %v4353, %v4368
  %v4370 = vsel %vm4364, %v4367, %v4369
  %v4371 = vsel %vm4363, %v4350, %v4353
  %v4372 = vsel %vm4366, %v4359, 920167782
  %v4373 = vsel %vm4365, %v4356, %v4372
  %v4374 = vsel %vm4364, %v4371, %v4373
  %v4375 = vsel %vm4363, %v4353, %v4356
  %v4376 = vsel %vm4366, %v4362, 1326507024
  %v4377 = vsel %vm4365, %v4359, %v4376
  %v4378 = vsel %vm4364, %v4375, %v4377
  %v4379 = vshll.u32 %v4339, 8
  %v4380 = vand.u32 %v4379, 65535
  %v4381 = vshrl.u32 %v4379, 16
  %v4382 = vand.u32 %v4378, 65535
  %v4383 = vshrl.u32 %v4378, 16
  %v4384 = vmul.u32 %v4380, %v4382
  %v4385 = vmul.u32 %v4380, %v4383
  %v4386 = vmul.u32 %v4381, %v4382
  %v4387 = vmul.u32 %v4381, %v4383
  %v4388 = vshll.u32 %v4385, 16
  %v4389 = vshrl.u32 %v4385, 16
  %v4390 = vshll.u32 %v4386, 16
  %v4391 = vshrl.u32 %v4386, 16
  %vm4392 = vc.u32 %v4384, %v4388
  %v4393 = vsel %vm4392, 1, 0
  %v4394 = vadd.s32 %v4384, %v4388
  %v4395 = vadd.s32 %v4387, %v4393
  %vm4396 = vc.u32 %v4394, %v4390
  %v4397 = vsel %vm4396, 1, 0
  %v4398 = vadd.s32 %v4394, %v4390
  %v4399 = vadd.s32 %v4395, %v4397
  %v4400 = vadd.s32 %v4399, %v4389
  %v4401 = vadd.s32 %v4400, %v4391
  %v4402 = vand.u32 %v4379, 65535
  %v4403 = vshrl.u32 %v4379, 16
  %v4404 = vand.u32 %v4374, 65535
  %v4405 = vshrl.u32 %v4374, 16
  %v4406 = vmul.u32 %v4402, %v4404
  %v4407 = vmul.u32 %v4402, %v4405
  %v4408 = vmul.u32 %v4403, %v4404
  %v4409 = vmul.u32 %v4403, %v4405
  %v4410 = vshll.u32 %v4407, 16
  %v4411 = vshrl.u32 %v4407, 16
  %v4412 = vshll.u32 %v4408, 16
  %v4413 = vshrl.u32 %v4408, 16
  %vm4414 = vc.u32 %v4406, %v4410
  %v4415 = vsel %vm4414, 1, 0
  %v4416 = vadd.s32 %v4406, %v4410
  %v4417 = vadd.s32 %v4409, %v4415
  %vm4418 = vc.u32 %v4416, %v4412
  %v4419 = vsel %vm4418, 1, 0
  %v4420 = vadd.s32 %v4416, %v4412
  %v4421 = vadd.s32 %v4417, %v4419
  %v4422 = vadd.s32 %v4421, %v4411
  %v4423 = vadd.s32 %v4422, %v4413
  %v4424 = vmul.u32 %v4379, %v4370
  %v4425 = vadd.s32 %v4401, %v4420
  %vm4426 = vc.u32 %v4401, %v4420
  %v4427 = vadd.s32 %v4423, 1
  %v4428 = vsel %vm4426, %v4427, %v4423
  %v4429 = vadd.s32 %v4424, %v4428
  %v4430 = vadd.s32 %v4429, 536870912
  %v4431 = vshrl.u32 %v4430, 30
  %v4432 = vshll.u32 %v4431, 30
  %v4433 = vsub.s32 %v4429, %v4432
  %vm4434 = vcmp.lt.s32.totalorder %v4433, 0
  %v4435 = vsub.s32 0, %v4433
  %v4436 = vsel %vm4434, %v4435, %v4433
  %v4437 = vclz %v4436
  %v4438 = vsub.s32 %v4437, 2
  %vm4439 = vcmp.gt.s32.totalorder 0, %v4438
  %v4440 = vsel %vm4439, 0, %v4438
  %v4441 = vsub.s32 32, %v4440
  %v4442 = vshll.u32 %v4433, %v4440
  %v4443 = vshrl.u32 %v4425, %v4441
  %v4444 = vor.u32 %v4442, %v4443
  %v4445 = vsub.s32 4294967266, %v4440
  %v4446 = vadd.s32 %v4445, 127
  %v4447 = vshll.u32 %v4446, 23
  %v4448 = vor.u32 4788187, %v4447
  %v4449 = vand.u32 2147483647, %v4448
  %v4451 = vcvt.s32.f32 %v4444
  %v4452 = vmul.f32 %v4451, %v4449
  %v4453 = vxor.u32 %v4452, 2147483648
  %v4454 = vsel %vm4333, %v4453, %v4452
  %v4455 = vsub.s32 4, %v4431
  %v4456 = vsel %vm4333, %v4455, %v4431
  %v4457 = vsel %vm4332, %v295, %v4454
  %v4458 = vsel %vm4332, 0, %v4456
  %v4459 = vmul.f32 %v4457, %v4457
  %v4460 = vmul.f32 %v4459, -0.001358992
  %v4461 = vadd.f32 %v4460, 0.041655596
  %v4462 = vmul.f32 %v4459, %v4461
  %v4463 = vadd.f32 %v4462, -0.4999988
  %v4464 = vmul.f32 %v4459, %v4463
  %v4465 = vadd.f32 1.0, %v4464
  %v4466 = vmul.f32 %v4457, %v4457
  %v4467 = vmul.f32 %v4466, -0.00019511016
  %v4468 = vadd.f32 %v4467, 0.008332121
  %v4469 = vmul.f32 %v4466, %v4468
  %v4470 = vadd.f32 %v4469, -0.16666654
  %v4471 = vmul.f32 %v4466, %v4470
  %v4472 = vadd.f32 %v4471, 1.0
  %v4473 = vmul.f32 %v4472, %v4457
  %vm4474 = vweird.f32 %v295
  %v4475 = vadd.s32 %v4458, 3
  %v4476 = vand.u32 %v4475, 3
  %vm4477 = vcmp.lt.s32.totalorder %v4476, 2
  %vm4478 = vcmp.eq.s32.totalorder %v4476, 0
  %v4479 = vxor.u32 %v4473, 2147483648
  %v4480 = vsel %vm4478, %v4465, %v4479
  %vm4481 = vcmp.eq.s32.totalorder %v4476, 2
  %v4482 = vxor.u32 %v4465, 2147483648
  %v4483 = vsel %vm4481, %v4482, %v4473
  %v4484 = vsel %vm4477, %v4480, %v4483
  %v4485 = vsel %vm4474, nan, %v4484
  %v4486 = vand.u32 2147483647, %v296
  %vm4487 = vcmp.le.f32.partialorder %v4486, 0.7853982
  %vm4488 = vcmp.lt.s32.totalorder %v296, 0
  %v4489 = vand.u32 %v296, 2139095040
  %v4490 = vshrl.u32 %v4489, 23
  %v4491 = vsub.s32 %v4490, 127
  %v4492 = vand.u32 2147483647, %v296
  %v4493 = vand.u32 %v4492, 8388607
  %v4494 = vor.u32 %v4493, 8388608
  %v4495 = vsub.s32 0, %v4494
  %v4496 = vadd.s32 %v4491, 1
  %vm4497 = vcmp.gt.s32.totalorder %v4496, 0
  %v4498 = vsel %vm4497, %v4496, 0
  %v4499 = vshrl.u32 %v4498, 5
  %v4500 = vand.u32 %v4498, 31
  %v4501 = vsub.s32 32, %v4500
  %v4502 = vshrl.u32 683565275, %v4501
  %v4503 = vshll.u32 683565275, %v4500
  %v4504 = vshrl.u32 2475754826, %v4501
  %v4505 = vor.u32 %v4503, %v4504
  %v4506 = vshll.u32 2475754826, %v4500
  %v4507 = vshrl.u32 2131351028, %v4501
  %v4508 = vor.u32 %v4506, %v4507
  %v4509 = vshll.u32 2131351028, %v4500
  %v4510 = vshrl.u32 2102212464, %v4501
  %v4511 = vor.u32 %v4509, %v4510
  %v4512 = vshll.u32 2102212464, %v4500
  %v4513 = vshrl.u32 920167782, %v4501
  %v4514 = vor.u32 %v4512, %v4513
  %v4515 = vshll.u32 920167782, %v4500
  %v4516 = vshrl.u32 1326507024, %v4501
  %v4517 = vor.u32 %v4515, %v4516
  %vm4518 = vcmp.lt.s32.totalorder %v4499, 1
  %vm4519 = vcmp.lt.s32.totalorder %v4499, 2
  %vm4520 = vcmp.lt.s32.totalorder %v4499, 3
  %vm4521 = vcmp.lt.s32.totalorder %v4499, 4
  %v4522 = vsel %vm4518, %v4502, %v4505
  %v4523 = vsel %vm4521, %v4511, 2102212464
  %v4524 = vsel %vm4520, %v4508, %v4523
  %v4525 = vsel %vm4519, %v4522, %v4524
  %v4526 = vsel %vm4518, %v4505, %v4508
  %v4527 = vsel %vm4521, %v4514, 920167782
  %v4528 = vsel %vm4520, %v4511, %v4527
  %v4529 = vsel %vm4519, %v4526, %v4528
  %v4530 = vsel %vm4518, %v4508, %v4511
  %v4531 = vsel %vm4521, %v4517, 1326507024
  %v4532 = vsel %vm4520, %v4514, %v4531
  %v4533 = vsel %vm4519, %v4530, %v4532
  %v4534 = vshll.u32 %v4494, 8
  %v4535 = vand.u32 %v4534, 65535
  %v4536 = vshrl.u32 %v4534, 16
  %v4537 = vand.u32 %v4533, 65535
  %v4538 = vshrl.u32 %v4533, 16
  %v4539 = vmul.u32 %v4535, %v4537
  %v4540 = vmul.u32 %v4535, %v4538
  %v4541 = vmul.u32 %v4536, %v4537
  %v4542 = vmul.u32 %v4536, %v4538
  %v4543 = vshll.u32 %v4540, 16
  %v4544 = vshrl.u32 %v4540, 16
  %v4545 = vshll.u32 %v4541, 16
  %v4546 = vshrl.u32 %v4541, 16
  %vm4547 = vc.u32 %v4539, %v4543
  %v4548 = vsel %vm4547, 1, 0
  %v4549 = vadd.s32 %v4539, %v4543
  %v4550 = vadd.s32 %v4542, %v4548
  %vm4551 = vc.u32 %v4549, %v4545
  %v4552 = vsel %vm4551, 1, 0
  %v4553 = vadd.s32 %v4549, %v4545
  %v4554 = vadd.s32 %v4550, %v4552
  %v4555 = vadd.s32 %v4554, %v4544
  %v4556 = vadd.s32 %v4555, %v4546
  %v4557 = vand.u32 %v4534, 65535
  %v4558 = vshrl.u32 %v4534, 16
  %v4559 = vand.u32 %v4529, 65535
  %v4560 = vshrl.u32 %v4529, 16
  %v4561 = vmul.u32 %v4557, %v4559
  %v4562 = vmul.u32 %v4557, %v4560
  %v4563 = vmul.u32 %v4558, %v4559
  %v4564 = vmul.u32 %v4558, %v4560
  %v4565 = vshll.u32 %v4562, 16
  %v4566 = vshrl.u32 %v4562, 16
  %v4567 = vshll.u32 %v4563, 16
  %v4568 = vshrl.u32 %v4563, 16
  %vm4569 = vc.u32 %v4561, %v4565
  %v4570 = vsel %vm4569, 1, 0
  %v4571 = vadd.s32 %v4561, %v4565
  %v4572 = vadd.s32 %v4564, %v4570
  %vm4573 = vc.u32 %v4571, %v4567
  %v4574 = vsel %vm4573, 1, 0
  %v4575 = vadd.s32 %v4571, %v4567
  %v4576 = vadd.s32 %v4572, %v4574
  %v4577 = vadd.s32 %v4576, %v4566
  %v4578 = vadd.s32 %v4577, %v4568
  %v4579 = vmul.u32 %v4534, %v4525
  %v4580 = vadd.s32 %v4556, %v4575
  %vm4581 = vc.u32 %v4556, %v4575
  %v4582 = vadd.s32 %v4578, 1
  %v4583 = vsel %vm4581, %v4582, %v4578
  %v4584 = vadd.s32 %v4579, %v4583
  %v4585 = vadd.s32 %v4584, 536870912
  %v4586 = vshrl.u32 %v4585, 30
  %v4587 = vshll.u32 %v4586, 30
  %v4588 = vsub.s32 %v4584, %v4587
  %vm4589 = vcmp.lt.s32.totalorder %v4588, 0
  %v4590 = vsub.s32 0, %v4588
  %v4591 = vsel %vm4589, %v4590, %v4588
  %v4592 = vclz %v4591
  %v4593 = vsub.s32 %v4592, 2
  %vm4594 = vcmp.gt.s32.totalorder 0, %v4593
  %v4595 = vsel %vm4594, 0, %v4593
  %v4596 = vsub.s32 32, %v4595
  %v4597 = vshll.u32 %v4588, %v4595
  %v4598 = vshrl.u32 %v4580, %v4596
  %v4599 = vor.u32 %v4597, %v4598
  %v4600 = vsub.s32 4294967266, %v4595
  %v4601 = vadd.s32 %v4600, 127
  %v4602 = vshll.u32 %v4601, 23
  %v4603 = vor.u32 4788187, %v4602
  %v4604 = vand.u32 2147483647, %v4603
  %v4606 = vcvt.s32.f32 %v4599
  %v4607 = vmul.f32 %v4606, %v4604
  %v4608 = vxor.u32 %v4607, 2147483648
  %v4609 = vsel %vm4488, %v4608, %v4607
  %v4610 = vsub.s32 4, %v4586
  %v4611 = vsel %vm4488, %v4610, %v4586
  %v4612 = vsel %vm4487, %v296, %v4609
  %v4613 = vsel %vm4487, 0, %v4611
  %v4614 = vmul.f32 %v4612, %v4612
  %v4615 = vmul.f32 %v4614, -0.001358992
  %v4616 = vadd.f32 %v4615, 0.041655596
  %v4617 = vmul.f32 %v4614, %v4616
  %v4618 = vadd.f32 %v4617, -0.4999988
  %v4619 = vmul.f32 %v4614, %v4618
  %v4620 = vadd.f32 1.0, %v4619
  %v4621 = vmul.f32 %v4612, %v4612
  %v4622 = vmul.f32 %v4621, -0.00019511016
  %v4623 = vadd.f32 %v4622, 0.008332121
  %v4624 = vmul.f32 %v4621, %v4623
  %v4625 = vadd.f32 %v4624, -0.16666654
  %v4626 = vmul.f32 %v4621, %v4625
  %v4627 = vadd.f32 %v4626, 1.0
  %v4628 = vmul.f32 %v4627, %v4612
  %vm4629 = vweird.f32 %v296
  %v4630 = vadd.s32 %v4613, 3
  %v4631 = vand.u32 %v4630, 3
  %vm4632 = vcmp.lt.s32.totalorder %v4631, 2
  %vm4633 = vcmp.eq.s32.totalorder %v4631, 0
  %v4634 = vxor.u32 %v4628, 2147483648
  %v4635 = vsel %vm4633, %v4620, %v4634
  %vm4636 = vcmp.eq.s32.totalorder %v4631, 2
  %v4637 = vxor.u32 %v4620, 2147483648
  %v4638 = vsel %vm4636, %v4637, %v4628
  %v4639 = vsel %vm4632, %v4635, %v4638
  %v4640 = vsel %vm4629, nan, %v4639
  %v4641 = vand.u32 2147483647, %v297
  %vm4642 = vcmp.le.f32.partialorder %v4641, 0.7853982
  %vm4643 = vcmp.lt.s32.totalorder %v297, 0
  %v4644 = vand.u32 %v297, 2139095040
  %v4645 = vshrl.u32 %v4644, 23
  %v4646 = vsub.s32 %v4645, 127
  %v4647 = vand.u32 2147483647, %v297
  %v4648 = vand.u32 %v4647, 8388607
  %v4649 = vor.u32 %v4648, 8388608
  %v4650 = vsub.s32 0, %v4649
  %v4651 = vadd.s32 %v4646, 1
  %vm4652 = vcmp.gt.s32.totalorder %v4651, 0
  %v4653 = vsel %vm4652, %v4651, 0
  %v4654 = vshrl.u32 %v4653, 5
  %v4655 = vand.u32 %v4653, 31
  %v4656 = vsub.s32 32, %v4655
  %v4657 = vshrl.u32 683565275, %v4656
  %v4658 = vshll.u32 683565275, %v4655
  %v4659 = vshrl.u32 2475754826, %v4656
  %v4660 = vor.u32 %v4658, %v4659
  %v4661 = vshll.u32 2475754826, %v4655
  %v4662 = vshrl.u32 2131351028, %v4656
  %v4663 = vor.u32 %v4661, %v4662
  %v4664 = vshll.u32 2131351028, %v4655
  %v4665 = vshrl.u32 2102212464, %v4656
  %v4666 = vor.u32 %v4664, %v4665
  %v4667 = vshll.u32 2102212464, %v4655
  %v4668 = vshrl.u32 920167782, %v4656
  %v4669 = vor.u32 %v4667, %v4668
  %v4670 = vshll.u32 920167782, %v4655
  %v4671 = vshrl.u32 1326507024, %v4656
  %v4672 = vor.u32 %v4670, %v4671
  %vm4673 = vcmp.lt.s32.totalorder %v4654, 1
  %vm4674 = vcmp.lt.s32.totalorder %v4654, 2
  %vm4675 = vcmp.lt.s32.totalorder %v4654, 3
  %vm4676 = vcmp.lt.s32.totalorder %v4654, 4
  %v4677 = vsel %vm4673, %v4657, %v4660
  %v4678 = vsel %vm4676, %v4666, 2102212464
  %v4679 = vsel %vm4675, %v4663, %v4678
  %v4680 = vsel %vm4674, %v4677, %v4679
  %v4681 = vsel %vm4673, %v4660, %v4663
  %v4682 = vsel %vm4676, %v4669, 920167782
  %v4683 = vsel %vm4675, %v4666, %v4682
  %v4684 = vsel %vm4674, %v4681, %v4683
  %v4685 = vsel %vm4673, %v4663, %v4666
  %v4686 = vsel %vm4676, %v4672, 1326507024
  %v4687 = vsel %vm4675, %v4669, %v4686
  %v4688 = vsel %vm4674, %v4685, %v4687
  %v4689 = vshll.u32 %v4649, 8
  %v4690 = vand.u32 %v4689, 65535
  %v4691 = vshrl.u32 %v4689, 16
  %v4692 = vand.u32 %v4688, 65535
  %v4693 = vshrl.u32 %v4688, 16
  %v4694 = vmul.u32 %v4690, %v4692
  %v4695 = vmul.u32 %v4690, %v4693
  %v4696 = vmul.u32 %v4691, %v4692
  %v4697 = vmul.u32 %v4691, %v4693
  %v4698 = vshll.u32 %v4695, 16
  %v4699 = vshrl.u32 %v4695, 16
  %v4700 = vshll.u32 %v4696, 16
  %v4701 = vshrl.u32 %v4696, 16
  %vm4702 = vc.u32 %v4694, %v4698
  %v4703 = vsel %vm4702, 1, 0
  %v4704 = vadd.s32 %v4694, %v4698
  %v4705 = vadd.s32 %v4697, %v4703
  %vm4706 = vc.u32 %v4704, %v4700
  %v4707 = vsel %vm4706, 1, 0
  %v4708 = vadd.s32 %v4704, %v4700
  %v4709 = vadd.s32 %v4705, %v4707
  %v4710 = vadd.s32 %v4709, %v4699
  %v4711 = vadd.s32 %v4710, %v4701
  %v4712 = vand.u32 %v4689, 65535
  %v4713 = vshrl.u32 %v4689, 16
  %v4714 = vand.u32 %v4684, 65535
  %v4715 = vshrl.u32 %v4684, 16
  %v4716 = vmul.u32 %v4712, %v4714
  %v4717 = vmul.u32 %v4712, %v4715
  %v4718 = vmul.u32 %v4713, %v4714
  %v4719 = vmul.u32 %v4713, %v4715
  %v4720 = vshll.u32 %v4717, 16
  %v4721 = vshrl.u32 %v4717, 16
  %v4722 = vshll.u32 %v4718, 16
  %v4723 = vshrl.u32 %v4718, 16
  %vm4724 = vc.u32 %v4716, %v4720
  %v4725 = vsel %vm4724, 1, 0
  %v4726 = vadd.s32 %v4716, %v4720
  %v4727 = vadd.s32 %v4719, %v4725
  %vm4728 = vc.u32 %v4726, %v4722
  %v4729 = vsel %vm4728, 1, 0
  %v4730 = vadd.s32 %v4726, %v4722
  %v4731 = vadd.s32 %v4727, %v4729
  %v4732 = vadd.s32 %v4731, %v4721
  %v4733 = vadd.s32 %v4732, %v4723
  %v4734 = vmul.u32 %v4689, %v4680
  %v4735 = vadd.s32 %v4711, %v4730
  %vm4736 = vc.u32 %v4711, %v4730
  %v4737 = vadd.s32 %v4733, 1
  %v4738 = vsel %vm4736, %v4737, %v4733
  %v4739 = vadd.s32 %v4734, %v4738
  %v4740 = vadd.s32 %v4739, 536870912
  %v4741 = vshrl.u32 %v4740, 30
  %v4742 = vshll.u32 %v4741, 30
  %v4743 = vsub.s32 %v4739, %v4742
  %vm4744 = vcmp.lt.s32.totalorder %v4743, 0
  %v4745 = vsub.s32 0, %v4743
  %v4746 = vsel %vm4744, %v4745, %v4743
  %v4747 = vclz %v4746
  %v4748 = vsub.s32 %v4747, 2
  %vm4749 = vcmp.gt.s32.totalorder 0, %v4748
  %v4750 = vsel %vm4749, 0, %v4748
  %v4751 = vsub.s32 32, %v4750
  %v4752 = vshll.u32 %v4743, %v4750
  %v4753 = vshrl.u32 %v4735, %v4751
  %v4754 = vor.u32 %v4752, %v4753
  %v4755 = vsub.s32 4294967266, %v4750
  %v4756 = vadd.s32 %v4755, 127
  %v4757 = vshll.u32 %v4756, 23
  %v4758 = vor.u32 4788187, %v4757
  %v4759 = vand.u32 2147483647, %v4758
  %v4761 = vcvt.s32.f32 %v4754
  %v4762 = vmul.f32 %v4761, %v4759
  %v4763 = vxor.u32 %v4762, 2147483648
  %v4764 = vsel %vm4643, %v4763, %v4762
  %v4765 = vsub.s32 4, %v4741
  %v4766 = vsel %vm4643, %v4765, %v4741
  %v4767 = vsel %vm4642, %v297, %v4764
  %v4768 = vsel %vm4642, 0, %v4766
  %v4769 = vmul.f32 %v4767, %v4767
  %v4770 = vmul.f32 %v4769, -0.001358992
  %v4771 = vadd.f32 %v4770, 0.041655596
  %v4772 = vmul.f32 %v4769, %v4771
  %v4773 = vadd.f32 %v4772, -0.4999988
  %v4774 = vmul.f32 %v4769, %v4773
  %v4775 = vadd.f32 1.0, %v4774
  %v4776 = vmul.f32 %v4767, %v4767
  %v4777 = vmul.f32 %v4776, -0.00019511016
  %v4778 = vadd.f32 %v4777, 0.008332121
  %v4779 = vmul.f32 %v4776, %v4778
  %v4780 = vadd.f32 %v4779, -0.16666654
  %v4781 = vmul.f32 %v4776, %v4780
  %v4782 = vadd.f32 %v4781, 1.0
  %v4783 = vmul.f32 %v4782, %v4767
  %vm4784 = vweird.f32 %v297
  %v4785 = vadd.s32 %v4768, 3
  %v4786 = vand.u32 %v4785, 3
  %vm4787 = vcmp.lt.s32.totalorder %v4786, 2
  %vm4788 = vcmp.eq.s32.totalorder %v4786, 0
  %v4789 = vxor.u32 %v4783, 2147483648
  %v4790 = vsel %vm4788, %v4775, %v4789
  %vm4791 = vcmp.eq.s32.totalorder %v4786, 2
  %v4792 = vxor.u32 %v4775, 2147483648
  %v4793 = vsel %vm4791, %v4792, %v4783
  %v4794 = vsel %vm4787, %v4790, %v4793
  %v4795 = vsel %vm4784, nan, %v4794
  %v4796 = vand.u32 2147483647, %v298
  %vm4797 = vcmp.le.f32.partialorder %v4796, 0.7853982
  %vm4798 = vcmp.lt.s32.totalorder %v298, 0
  %v4799 = vand.u32 %v298, 2139095040
  %v4800 = vshrl.u32 %v4799, 23
  %v4801 = vsub.s32 %v4800, 127
  %v4802 = vand.u32 2147483647, %v298
  %v4803 = vand.u32 %v4802, 8388607
  %v4804 = vor.u32 %v4803, 8388608
  %v4805 = vsub.s32 0, %v4804
  %v4806 = vadd.s32 %v4801, 1
  %vm4807 = vcmp.gt.s32.totalorder %v4806, 0
  %v4808 = vsel %vm4807, %v4806, 0
  %v4809 = vshrl.u32 %v4808, 5
  %v4810 = vand.u32 %v4808, 31
  %v4811 = vsub.s32 32, %v4810
  %v4812 = vshrl.u32 683565275, %v4811
  %v4813 = vshll.u32 683565275, %v4810
  %v4814 = vshrl.u32 2475754826, %v4811
  %v4815 = vor.u32 %v4813, %v4814
  %v4816 = vshll.u32 2475754826, %v4810
  %v4817 = vshrl.u32 2131351028, %v4811
  %v4818 = vor.u32 %v4816, %v4817
  %v4819 = vshll.u32 2131351028, %v4810
  %v4820 = vshrl.u32 2102212464, %v4811
  %v4821 = vor.u32 %v4819, %v4820
  %v4822 = vshll.u32 2102212464, %v4810
  %v4823 = vshrl.u32 920167782, %v4811
  %v4824 = vor.u32 %v4822, %v4823
  %v4825 = vshll.u32 920167782, %v4810
  %v4826 = vshrl.u32 1326507024, %v4811
  %v4827 = vor.u32 %v4825, %v4826
  %vm4828 = vcmp.lt.s32.totalorder %v4809, 1
  %vm4829 = vcmp.lt.s32.totalorder %v4809, 2
  %vm4830 = vcmp.lt.s32.totalorder %v4809, 3
  %vm4831 = vcmp.lt.s32.totalorder %v4809, 4
  %v4832 = vsel %vm4828, %v4812, %v4815
  %v4833 = vsel %vm4831, %v4821, 2102212464
  %v4834 = vsel %vm4830, %v4818, %v4833
  %v4835 = vsel %vm4829, %v4832, %v4834
  %v4836 = vsel %vm4828, %v4815, %v4818
  %v4837 = vsel %vm4831, %v4824, 920167782
  %v4838 = vsel %vm4830, %v4821, %v4837
  %v4839 = vsel %vm4829, %v4836, %v4838
  %v4840 = vsel %vm4828, %v4818, %v4821
  %v4841 = vsel %vm4831, %v4827, 1326507024
  %v4842 = vsel %vm4830, %v4824, %v4841
  %v4843 = vsel %vm4829, %v4840, %v4842
  %v4844 = vshll.u32 %v4804, 8
  %v4845 = vand.u32 %v4844, 65535
  %v4846 = vshrl.u32 %v4844, 16
  %v4847 = vand.u32 %v4843, 65535
  %v4848 = vshrl.u32 %v4843, 16
  %v4849 = vmul.u32 %v4845, %v4847
  %v4850 = vmul.u32 %v4845, %v4848
  %v4851 = vmul.u32 %v4846, %v4847
  %v4852 = vmul.u32 %v4846, %v4848
  %v4853 = vshll.u32 %v4850, 16
  %v4854 = vshrl.u32 %v4850, 16
  %v4855 = vshll.u32 %v4851, 16
  %v4856 = vshrl.u32 %v4851, 16
  %vm4857 = vc.u32 %v4849, %v4853
  %v4858 = vsel %vm4857, 1, 0
  %v4859 = vadd.s32 %v4849, %v4853
  %v4860 = vadd.s32 %v4852, %v4858
  %vm4861 = vc.u32 %v4859, %v4855
  %v4862 = vsel %vm4861, 1, 0
  %v4863 = vadd.s32 %v4859, %v4855
  %v4864 = vadd.s32 %v4860, %v4862
  %v4865 = vadd.s32 %v4864, %v4854
  %v4866 = vadd.s32 %v4865, %v4856
  %v4867 = vand.u32 %v4844, 65535
  %v4868 = vshrl.u32 %v4844, 16
  %v4869 = vand.u32 %v4839, 65535
  %v4870 = vshrl.u32 %v4839, 16
  %v4871 = vmul.u32 %v4867, %v4869
  %v4872 = vmul.u32 %v4867, %v4870
  %v4873 = vmul.u32 %v4868, %v4869
  %v4874 = vmul.u32 %v4868, %v4870
  %v4875 = vshll.u32 %v4872, 16
  %v4876 = vshrl.u32 %v4872, 16
  %v4877 = vshll.u32 %v4873, 16
  %v4878 = vshrl.u32 %v4873, 16
  %vm4879 = vc.u32 %v4871, %v4875
  %v4880 = vsel %vm4879, 1, 0
  %v4881 = vadd.s32 %v4871, %v4875
  %v4882 = vadd.s32 %v4874, %v4880
  %vm4883 = vc.u32 %v4881, %v4877
  %v4884 = vsel %vm4883, 1, 0
  %v4885 = vadd.s32 %v4881, %v4877
  %v4886 = vadd.s32 %v4882, %v4884
  %v4887 = vadd.s32 %v4886, %v4876
  %v4888 = vadd.s32 %v4887, %v4878
  %v4889 = vmul.u32 %v4844, %v4835
  %v4890 = vadd.s32 %v4866, %v4885
  %vm4891 = vc.u32 %v4866, %v4885
  %v4892 = vadd.s32 %v4888, 1
  %v4893 = vsel %vm4891, %v4892, %v4888
  %v4894 = vadd.s32 %v4889, %v4893
  %v4895 = vadd.s32 %v4894, 536870912
  %v4896 = vshrl.u32 %v4895, 30
  %v4897 = vshll.u32 %v4896, 30
  %v4898 = vsub.s32 %v4894, %v4897
  %vm4899 = vcmp.lt.s32.totalorder %v4898, 0
  %v4900 = vsub.s32 0, %v4898
  %v4901 = vsel %vm4899, %v4900, %v4898
  %v4902 = vclz %v4901
  %v4903 = vsub.s32 %v4902, 2
  %vm4904 = vcmp.gt.s32.totalorder 0, %v4903
  %v4905 = vsel %vm4904, 0, %v4903
  %v4906 = vsub.s32 32, %v4905
  %v4907 = vshll.u32 %v4898, %v4905
  %v4908 = vshrl.u32 %v4890, %v4906
  %v4909 = vor.u32 %v4907, %v4908
  %v4910 = vsub.s32 4294967266, %v4905
  %v4911 = vadd.s32 %v4910, 127
  %v4912 = vshll.u32 %v4911, 23
  %v4913 = vor.u32 4788187, %v4912
  %v4914 = vand.u32 2147483647, %v4913
  %v4916 = vcvt.s32.f32 %v4909
  %v4917 = vmul.f32 %v4916, %v4914
  %v4918 = vxor.u32 %v4917, 2147483648
  %v4919 = vsel %vm4798, %v4918, %v4917
  %v4920 = vsub.s32 4, %v4896
  %v4921 = vsel %vm4798, %v4920, %v4896
  %v4922 = vsel %vm4797, %v298, %v4919
  %v4923 = vsel %vm4797, 0, %v4921
  %v4924 = vmul.f32 %v4922, %v4922
  %v4925 = vmul.f32 %v4924, -0.001358992
  %v4926 = vadd.f32 %v4925, 0.041655596
  %v4927 = vmul.f32 %v4924, %v4926
  %v4928 = vadd.f32 %v4927, -0.4999988
  %v4929 = vmul.f32 %v4924, %v4928
  %v4930 = vadd.f32 1.0, %v4929
  %v4931 = vmul.f32 %v4922, %v4922
  %v4932 = vmul.f32 %v4931, -0.00019511016
  %v4933 = vadd.f32 %v4932, 0.008332121
  %v4934 = vmul.f32 %v4931, %v4933
  %v4935 = vadd.f32 %v4934, -0.16666654
  %v4936 = vmul.f32 %v4931, %v4935
  %v4937 = vadd.f32 %v4936, 1.0
  %v4938 = vmul.f32 %v4937, %v4922
  %vm4939 = vweird.f32 %v298
  %v4940 = vadd.s32 %v4923, 3
  %v4941 = vand.u32 %v4940, 3
  %vm4942 = vcmp.lt.s32.totalorder %v4941, 2
  %vm4943 = vcmp.eq.s32.totalorder %v4941, 0
  %v4944 = vxor.u32 %v4938, 2147483648
  %v4945 = vsel %vm4943, %v4930, %v4944
  %vm4946 = vcmp.eq.s32.totalorder %v4941, 2
  %v4947 = vxor.u32 %v4930, 2147483648
  %v4948 = vsel %vm4946, %v4947, %v4938
  %v4949 = vsel %vm4942, %v4945, %v4948
  %v4950 = vsel %vm4939, nan, %v4949
  %v4951 = vand.u32 2147483647, %v299
  %vm4952 = vcmp.le.f32.partialorder %v4951, 0.7853982
  %vm4953 = vcmp.lt.s32.totalorder %v299, 0
  %v4954 = vand.u32 %v299, 2139095040
  %v4955 = vshrl.u32 %v4954, 23
  %v4956 = vsub.s32 %v4955, 127
  %v4957 = vand.u32 2147483647, %v299
  %v4958 = vand.u32 %v4957, 8388607
  %v4959 = vor.u32 %v4958, 8388608
  %v4960 = vsub.s32 0, %v4959
  %v4961 = vadd.s32 %v4956, 1
  %vm4962 = vcmp.gt.s32.totalorder %v4961, 0
  %v4963 = vsel %vm4962, %v4961, 0
  %v4964 = vshrl.u32 %v4963, 5
  %v4965 = vand.u32 %v4963, 31
  %v4966 = vsub.s32 32, %v4965
  %v4967 = vshrl.u32 683565275, %v4966
  %v4968 = vshll.u32 683565275, %v4965
  %v4969 = vshrl.u32 2475754826, %v4966
  %v4970 = vor.u32 %v4968, %v4969
  %v4971 = vshll.u32 2475754826, %v4965
  %v4972 = vshrl.u32 2131351028, %v4966
  %v4973 = vor.u32 %v4971, %v4972
  %v4974 = vshll.u32 2131351028, %v4965
  %v4975 = vshrl.u32 2102212464, %v4966
  %v4976 = vor.u32 %v4974, %v4975
  %v4977 = vshll.u32 2102212464, %v4965
  %v4978 = vshrl.u32 920167782, %v4966
  %v4979 = vor.u32 %v4977, %v4978
  %v4980 = vshll.u32 920167782, %v4965
  %v4981 = vshrl.u32 1326507024, %v4966
  %v4982 = vor.u32 %v4980, %v4981
  %vm4983 = vcmp.lt.s32.totalorder %v4964, 1
  %vm4984 = vcmp.lt.s32.totalorder %v4964, 2
  %vm4985 = vcmp.lt.s32.totalorder %v4964, 3
  %vm4986 = vcmp.lt.s32.totalorder %v4964, 4
  %v4987 = vsel %vm4983, %v4967, %v4970
  %v4988 = vsel %vm4986, %v4976, 2102212464
  %v4989 = vsel %vm4985, %v4973, %v4988
  %v4990 = vsel %vm4984, %v4987, %v4989
  %v4991 = vsel %vm4983, %v4970, %v4973
  %v4992 = vsel %vm4986, %v4979, 920167782
  %v4993 = vsel %vm4985, %v4976, %v4992
  %v4994 = vsel %vm4984, %v4991, %v4993
  %v4995 = vsel %vm4983, %v4973, %v4976
  %v4996 = vsel %vm4986, %v4982, 1326507024
  %v4997 = vsel %vm4985, %v4979, %v4996
  %v4998 = vsel %vm4984, %v4995, %v4997
  %v4999 = vshll.u32 %v4959, 8
  %v5000 = vand.u32 %v4999, 65535
  %v5001 = vshrl.u32 %v4999, 16
  %v5002 = vand.u32 %v4998, 65535
  %v5003 = vshrl.u32 %v4998, 16
  %v5004 = vmul.u32 %v5000, %v5002
  %v5005 = vmul.u32 %v5000, %v5003
  %v5006 = vmul.u32 %v5001, %v5002
  %v5007 = vmul.u32 %v5001, %v5003
  %v5008 = vshll.u32 %v5005, 16
  %v5009 = vshrl.u32 %v5005, 16
  %v5010 = vshll.u32 %v5006, 16
  %v5011 = vshrl.u32 %v5006, 16
  %vm5012 = vc.u32 %v5004, %v5008
  %v5013 = vsel %vm5012, 1, 0
  %v5014 = vadd.s32 %v5004, %v5008
  %v5015 = vadd.s32 %v5007, %v5013
  %vm5016 = vc.u32 %v5014, %v5010
  %v5017 = vsel %vm5016, 1, 0
  %v5018 = vadd.s32 %v5014, %v5010
  %v5019 = vadd.s32 %v5015, %v5017
  %v5020 = vadd.s32 %v5019, %v5009
  %v5021 = vadd.s32 %v5020, %v5011
  %v5022 = vand.u32 %v4999, 65535
  %v5023 = vshrl.u32 %v4999, 16
  %v5024 = vand.u32 %v4994, 65535
  %v5025 = vshrl.u32 %v4994, 16
  %v5026 = vmul.u32 %v5022, %v5024
  %v5027 = vmul.u32 %v5022, %v5025
  %v5028 = vmul.u32 %v5023, %v5024
  %v5029 = vmul.u32 %v5023, %v5025
  %v5030 = vshll.u32 %v5027, 16
  %v5031 = vshrl.u32 %v5027, 16
  %v5032 = vshll.u32 %v5028, 16
  %v5033 = vshrl.u32 %v5028, 16
  %vm5034 = vc.u32 %v5026, %v5030
  %v5035 = vsel %vm5034, 1, 0
  %v5036 = vadd.s32 %v5026, %v5030
  %v5037 = vadd.s32 %v5029, %v5035
  %vm5038 = vc.u32 %v5036, %v5032
  %v5039 = vsel %vm5038, 1, 0
  %v5040 = vadd.s32 %v5036, %v5032
  %v5041 = vadd.s32 %v5037, %v5039
  %v5042 = vadd.s32 %v5041, %v5031
  %v5043 = vadd.s32 %v5042, %v5033
  %v5044 = vmul.u32 %v4999, %v4990
  %v5045 = vadd.s32 %v5021, %v5040
  %vm5046 = vc.u32 %v5021, %v5040
  %v5047 = vadd.s32 %v5043, 1
  %v5048 = vsel %vm5046, %v5047, %v5043
  %v5049 = vadd.s32 %v5044, %v5048
  %v5050 = vadd.s32 %v5049, 536870912
  %v5051 = vshrl.u32 %v5050, 30
  %v5052 = vshll.u32 %v5051, 30
  %v5053 = vsub.s32 %v5049, %v5052
  %vm5054 = vcmp.lt.s32.totalorder %v5053, 0
  %v5055 = vsub.s32 0, %v5053
  %v5056 = vsel %vm5054, %v5055, %v5053
  %v5057 = vclz %v5056
  %v5058 = vsub.s32 %v5057, 2
  %vm5059 = vcmp.gt.s32.totalorder 0, %v5058
  %v5060 = vsel %vm5059, 0, %v5058
  %v5061 = vsub.s32 32, %v5060
  %v5062 = vshll.u32 %v5053, %v5060
  %v5063 = vshrl.u32 %v5045, %v5061
  %v5064 = vor.u32 %v5062, %v5063
  %v5065 = vsub.s32 4294967266, %v5060
  %v5066 = vadd.s32 %v5065, 127
  %v5067 = vshll.u32 %v5066, 23
  %v5068 = vor.u32 4788187, %v5067
  %v5069 = vand.u32 2147483647, %v5068
  %v5071 = vcvt.s32.f32 %v5064
  %v5072 = vmul.f32 %v5071, %v5069
  %v5073 = vxor.u32 %v5072, 2147483648
  %v5074 = vsel %vm4953, %v5073, %v5072
  %v5075 = vsub.s32 4, %v5051
  %v5076 = vsel %vm4953, %v5075, %v5051
  %v5077 = vsel %vm4952, %v299, %v5074
  %v5078 = vsel %vm4952, 0, %v5076
  %v5079 = vmul.f32 %v5077, %v5077
  %v5080 = vmul.f32 %v5079, -0.001358992
  %v5081 = vadd.f32 %v5080, 0.041655596
  %v5082 = vmul.f32 %v5079, %v5081
  %v5083 = vadd.f32 %v5082, -0.4999988
  %v5084 = vmul.f32 %v5079, %v5083
  %v5085 = vadd.f32 1.0, %v5084
  %v5086 = vmul.f32 %v5077, %v5077
  %v5087 = vmul.f32 %v5086, -0.00019511016
  %v5088 = vadd.f32 %v5087, 0.008332121
  %v5089 = vmul.f32 %v5086, %v5088
  %v5090 = vadd.f32 %v5089, -0.16666654
  %v5091 = vmul.f32 %v5086, %v5090
  %v5092 = vadd.f32 %v5091, 1.0
  %v5093 = vmul.f32 %v5092, %v5077
  %vm5094 = vweird.f32 %v299
  %v5095 = vadd.s32 %v5078, 3
  %v5096 = vand.u32 %v5095, 3
  %vm5097 = vcmp.lt.s32.totalorder %v5096, 2
  %vm5098 = vcmp.eq.s32.totalorder %v5096, 0
  %v5099 = vxor.u32 %v5093, 2147483648
  %v5100 = vsel %vm5098, %v5085, %v5099
  %vm5101 = vcmp.eq.s32.totalorder %v5096, 2
  %v5102 = vxor.u32 %v5085, 2147483648
  %v5103 = vsel %vm5101, %v5102, %v5093
  %v5104 = vsel %vm5097, %v5100, %v5103
  %v5105 = vsel %vm5094, nan, %v5104
  %v5106 = vand.u32 2147483647, %v300
  %vm5107 = vcmp.le.f32.partialorder %v5106, 0.7853982
  %vm5108 = vcmp.lt.s32.totalorder %v300, 0
  %v5109 = vand.u32 %v300, 2139095040
  %v5110 = vshrl.u32 %v5109, 23
  %v5111 = vsub.s32 %v5110, 127
  %v5112 = vand.u32 2147483647, %v300
  %v5113 = vand.u32 %v5112, 8388607
  %v5114 = vor.u32 %v5113, 8388608
  %v5115 = vsub.s32 0, %v5114
  %v5116 = vadd.s32 %v5111, 1
  %vm5117 = vcmp.gt.s32.totalorder %v5116, 0
  %v5118 = vsel %vm5117, %v5116, 0
  %v5119 = vshrl.u32 %v5118, 5
  %v5120 = vand.u32 %v5118, 31
  %v5121 = vsub.s32 32, %v5120
  %v5122 = vshrl.u32 683565275, %v5121
  %v5123 = vshll.u32 683565275, %v5120
  %v5124 = vshrl.u32 2475754826, %v5121
  %v5125 = vor.u32 %v5123, %v5124
  %v5126 = vshll.u32 2475754826, %v5120
  %v5127 = vshrl.u32 2131351028, %v5121
  %v5128 = vor.u32 %v5126, %v5127
  %v5129 = vshll.u32 2131351028, %v5120
  %v5130 = vshrl.u32 2102212464, %v5121
  %v5131 = vor.u32 %v5129, %v5130
  %v5132 = vshll.u32 2102212464, %v5120
  %v5133 = vshrl.u32 920167782, %v5121
  %v5134 = vor.u32 %v5132, %v5133
  %v5135 = vshll.u32 920167782, %v5120
  %v5136 = vshrl.u32 1326507024, %v5121
  %v5137 = vor.u32 %v5135, %v5136
  %vm5138 = vcmp.lt.s32.totalorder %v5119, 1
  %vm5139 = vcmp.lt.s32.totalorder %v5119, 2
  %vm5140 = vcmp.lt.s32.totalorder %v5119, 3
  %vm5141 = vcmp.lt.s32.totalorder %v5119, 4
  %v5142 = vsel %vm5138, %v5122, %v5125
  %v5143 = vsel %vm5141, %v5131, 2102212464
  %v5144 = vsel %vm5140, %v5128, %v5143
  %v5145 = vsel %vm5139, %v5142, %v5144
  %v5146 = vsel %vm5138, %v5125, %v5128
  %v5147 = vsel %vm5141, %v5134, 920167782
  %v5148 = vsel %vm5140, %v5131, %v5147
  %v5149 = vsel %vm5139, %v5146, %v5148
  %v5150 = vsel %vm5138, %v5128, %v5131
  %v5151 = vsel %vm5141, %v5137, 1326507024
  %v5152 = vsel %vm5140, %v5134, %v5151
  %v5153 = vsel %vm5139, %v5150, %v5152
  %v5154 = vshll.u32 %v5114, 8
  %v5155 = vand.u32 %v5154, 65535
  %v5156 = vshrl.u32 %v5154, 16
  %v5157 = vand.u32 %v5153, 65535
  %v5158 = vshrl.u32 %v5153, 16
  %v5159 = vmul.u32 %v5155, %v5157
  %v5160 = vmul.u32 %v5155, %v5158
  %v5161 = vmul.u32 %v5156, %v5157
  %v5162 = vmul.u32 %v5156, %v5158
  %v5163 = vshll.u32 %v5160, 16
  %v5164 = vshrl.u32 %v5160, 16
  %v5165 = vshll.u32 %v5161, 16
  %v5166 = vshrl.u32 %v5161, 16
  %vm5167 = vc.u32 %v5159, %v5163
  %v5168 = vsel %vm5167, 1, 0
  %v5169 = vadd.s32 %v5159, %v5163
  %v5170 = vadd.s32 %v5162, %v5168
  %vm5171 = vc.u32 %v5169, %v5165
  %v5172 = vsel %vm5171, 1, 0
  %v5173 = vadd.s32 %v5169, %v5165
  %v5174 = vadd.s32 %v5170, %v5172
  %v5175 = vadd.s32 %v5174, %v5164
  %v5176 = vadd.s32 %v5175, %v5166
  %v5177 = vand.u32 %v5154, 65535
  %v5178 = vshrl.u32 %v5154, 16
  %v5179 = vand.u32 %v5149, 65535
  %v5180 = vshrl.u32 %v5149, 16
  %v5181 = vmul.u32 %v5177, %v5179
  %v5182 = vmul.u32 %v5177, %v5180
  %v5183 = vmul.u32 %v5178, %v5179
  %v5184 = vmul.u32 %v5178, %v5180
  %v5185 = vshll.u32 %v5182, 16
  %v5186 = vshrl.u32 %v5182, 16
  %v5187 = vshll.u32 %v5183, 16
  %v5188 = vshrl.u32 %v5183, 16
  %vm5189 = vc.u32 %v5181, %v5185
  %v5190 = vsel %vm5189, 1, 0
  %v5191 = vadd.s32 %v5181, %v5185
  %v5192 = vadd.s32 %v5184, %v5190
  %vm5193 = vc.u32 %v5191, %v5187
  %v5194 = vsel %vm5193, 1, 0
  %v5195 = vadd.s32 %v5191, %v5187
  %v5196 = vadd.s32 %v5192, %v5194
  %v5197 = vadd.s32 %v5196, %v5186
  %v5198 = vadd.s32 %v5197, %v5188
  %v5199 = vmul.u32 %v5154, %v5145
  %v5200 = vadd.s32 %v5176, %v5195
  %vm5201 = vc.u32 %v5176, %v5195
  %v5202 = vadd.s32 %v5198, 1
  %v5203 = vsel %vm5201, %v5202, %v5198
  %v5204 = vadd.s32 %v5199, %v5203
  %v5205 = vadd.s32 %v5204, 536870912
  %v5206 = vshrl.u32 %v5205, 30
  %v5207 = vshll.u32 %v5206, 30
  %v5208 = vsub.s32 %v5204, %v5207
  %vm5209 = vcmp.lt.s32.totalorder %v5208, 0
  %v5210 = vsub.s32 0, %v5208
  %v5211 = vsel %vm5209, %v5210, %v5208
  %v5212 = vclz %v5211
  %v5213 = vsub.s32 %v5212, 2
  %vm5214 = vcmp.gt.s32.totalorder 0, %v5213
  %v5215 = vsel %vm5214, 0, %v5213
  %v5216 = vsub.s32 32, %v5215
  %v5217 = vshll.u32 %v5208, %v5215
  %v5218 = vshrl.u32 %v5200, %v5216
  %v5219 = vor.u32 %v5217, %v5218
  %v5220 = vsub.s32 4294967266, %v5215
  %v5221 = vadd.s32 %v5220, 127
  %v5222 = vshll.u32 %v5221, 23
  %v5223 = vor.u32 4788187, %v5222
  %v5224 = vand.u32 2147483647, %v5223
  %v5226 = vcvt.s32.f32 %v5219
  %v5227 = vmul.f32 %v5226, %v5224
  %v5228 = vxor.u32 %v5227, 2147483648
  %v5229 = vsel %vm5108, %v5228, %v5227
  %v5230 = vsub.s32 4, %v5206
  %v5231 = vsel %vm5108, %v5230, %v5206
  %v5232 = vsel %vm5107, %v300, %v5229
  %v5233 = vsel %vm5107, 0, %v5231
  %v5234 = vmul.f32 %v5232, %v5232
  %v5235 = vmul.f32 %v5234, -0.001358992
  %v5236 = vadd.f32 %v5235, 0.041655596
  %v5237 = vmul.f32 %v5234, %v5236
  %v5238 = vadd.f32 %v5237, -0.4999988
  %v5239 = vmul.f32 %v5234, %v5238
  %v5240 = vadd.f32 1.0, %v5239
  %v5241 = vmul.f32 %v5232, %v5232
  %v5242 = vmul.f32 %v5241, -0.00019511016
  %v5243 = vadd.f32 %v5242, 0.008332121
  %v5244 = vmul.f32 %v5241, %v5243
  %v5245 = vadd.f32 %v5244, -0.16666654
  %v5246 = vmul.f32 %v5241, %v5245
  %v5247 = vadd.f32 %v5246, 1.0
  %v5248 = vmul.f32 %v5247, %v5232
  %vm5249 = vweird.f32 %v300
  %v5250 = vadd.s32 %v5233, 3
  %v5251 = vand.u32 %v5250, 3
  %vm5252 = vcmp.lt.s32.totalorder %v5251, 2
  %vm5253 = vcmp.eq.s32.totalorder %v5251, 0
  %v5254 = vxor.u32 %v5248, 2147483648
  %v5255 = vsel %vm5253, %v5240, %v5254
  %vm5256 = vcmp.eq.s32.totalorder %v5251, 2
  %v5257 = vxor.u32 %v5240, 2147483648
  %v5258 = vsel %vm5256, %v5257, %v5248
  %v5259 = vsel %vm5252, %v5255, %v5258
  %v5260 = vsel %vm5249, nan, %v5259
  %v5261 = vld [vmem:[%s5] sm:$0xff]
  %v5262 = vld [vmem:[%s5 + $0x8] sm:$0xff]
  %v5263 = vld [vmem:[%s5 + $0x10] sm:$0xff]
  %v5264 = vld [vmem:[%s5 + $0x18] sm:$0xff]
  %v5265 = vld [vmem:[%s6] sm:$0x1]
  %v5267 = vperm.slane %v5265, 0
  %vm5269 = vcmask 261120
  %v5271 = vsel %vm5269, %v455, 0
  %v5274 = vsel %vm5269, %v610, 0
  %v5277 = vsel %vm5269, %v765, 0
  %v5280 = vsel %vm5269, %v920, 0
  %v5283 = vsel %vm5269, %v1075, 0
  %v5286 = vsel %vm5269, %v1230, 0
  %v5289 = vsel %vm5269, %v1385, 0
  %v5292 = vsel %vm5269, %v1540, 0
  %v5295 = vsel %vm5269, %v1695, 0
  %v5298 = vsel %vm5269, %v1850, 0
  %v5301 = vsel %vm5269, %v2005, 0
  %v5304 = vsel %vm5269, %v2160, 0
  %v5307 = vsel %vm5269, %v2315, 0
  %v5310 = vsel %vm5269, %v2470, 0
  %v5313 = vsel %vm5269, %v2625, 0
  %v5316 = vsel %vm5269, %v2780, 0
  %v5319 = vsel %vm5269, %v2935, 0
  %v5322 = vsel %vm5269, %v3090, 0
  %v5325 = vsel %vm5269, %v3245, 0
  %v5328 = vsel %vm5269, %v3400, 0
  %v5331 = vsel %vm5269, %v3555, 0
  %v5334 = vsel %vm5269, %v3710, 0
  %v5337 = vsel %vm5269, %v3865, 0
  %v5340 = vsel %vm5269, %v4020, 0
  %v5343 = vsel %vm5269, %v4175, 0
  %v5346 = vsel %vm5269, %v4330, 0
  %v5349 = vsel %vm5269, %v4485, 0
  %v5352 = vsel %vm5269, %v4640, 0
  %v5355 = vsel %vm5269, %v4795, 0
  %v5358 = vsel %vm5269, %v4950, 0
  %v5361 = vsel %vm5269, %v5105, 0
  %v5364 = vsel %vm5269, %v5260, 0
  %5366 = vmatpush.msra.mxu0 0.0
  %5367 = vmatpush.msra.mxu0 0.0
  %5368 = vmatpush.msra.mxu0 0.0
  %5369 = vmatpush.msra.mxu0 0.0
  %5370 = vmatpush.msra.mxu0 0.0
  %5371 = vmatpush.msra.mxu0 0.0
  %5372 = vmatpush.msra.mxu0 0.0
  %5373 = vmatpush.msra.mxu0 0.0
  %5374 = vmatpush.msra.mxu0 0.0
  %5375 = vmatpush.msra.mxu0 0.0
  %5376 = vmatpush.msra.mxu0 0.0
  %5377 = vmatpush.msra.mxu0 0.0
  %5378 = vmatpush.msra.mxu0 %v5264
  %5379 = vmatpush.msra.mxu0 %v5263
  %5380 = vmatpush.msra.mxu0 %v5262
  %5381 = vmatpush.msra.mxu0 %v5261
  %5382 = vmatmul.f32.gmra.mxu0 %v5271
  %v5383 = vpop.f32.mrf.mxu0
  %v5384 = vadd.f32 %v5267, %v5383
  %5385 = vmatmul.f32.gmra.mxu0 %v5274
  %v5386 = vpop.f32.mrf.mxu0
  %v5387 = vadd.f32 %v5267, %v5386
  %5388 = vmatmul.f32.gmra.mxu0 %v5277
  %v5389 = vpop.f32.mrf.mxu0
  %v5390 = vadd.f32 %v5267, %v5389
  %5391 = vmatmul.f32.gmra.mxu0 %v5280
  %v5392 = vpop.f32.mrf.mxu0
  %v5393 = vadd.f32 %v5267, %v5392
  %5394 = vmatmul.f32.gmra.mxu0 %v5283
  %v5395 = vpop.f32.mrf.mxu0
  %v5396 = vadd.f32 %v5267, %v5395
  %5397 = vmatmul.f32.gmra.mxu0 %v5286
  %v5398 = vpop.f32.mrf.mxu0
  %v5399 = vadd.f32 %v5267, %v5398
  %5400 = vmatmul.f32.gmra.mxu0 %v5289
  %v5401 = vpop.f32.mrf.mxu0
  %v5402 = vadd.f32 %v5267, %v5401
  %5403 = vmatmul.f32.gmra.mxu0 %v5292
  %v5404 = vpop.f32.mrf.mxu0
  %v5405 = vadd.f32 %v5267, %v5404
  %5406 = vmatmul.f32.gmra.mxu0 %v5295
  %v5407 = vpop.f32.mrf.mxu0
  %v5408 = vadd.f32 %v5267, %v5407
  %5409 = vmatmul.f32.gmra.mxu0 %v5298
  %v5410 = vpop.f32.mrf.mxu0
  %v5411 = vadd.f32 %v5267, %v5410
  %5412 = vmatmul.f32.gmra.mxu0 %v5301
  %v5413 = vpop.f32.mrf.mxu0
  %v5414 = vadd.f32 %v5267, %v5413
  %5415 = vmatmul.f32.gmra.mxu0 %v5304
  %v5416 = vpop.f32.mrf.mxu0
  %v5417 = vadd.f32 %v5267, %v5416
  %5418 = vmatmul.f32.gmra.mxu0 %v5307
  %v5419 = vpop.f32.mrf.mxu0
  %v5420 = vadd.f32 %v5267, %v5419
  %5421 = vmatmul.f32.gmra.mxu0 %v5310
  %v5422 = vpop.f32.mrf.mxu0
  %v5423 = vadd.f32 %v5267, %v5422
  %5424 = vmatmul.f32.gmra.mxu0 %v5313
  %v5425 = vpop.f32.mrf.mxu0
  %v5426 = vadd.f32 %v5267, %v5425
  %5427 = vmatmul.f32.gmra.mxu0 %v5316
  %v5428 = vpop.f32.mrf.mxu0
  %v5429 = vadd.f32 %v5267, %v5428
  %5430 = vmatmul.f32.gmra.mxu0 %v5319
  %v5431 = vpop.f32.mrf.mxu0
  %v5432 = vadd.f32 %v5267, %v5431
  %5433 = vmatmul.f32.gmra.mxu0 %v5322
  %v5434 = vpop.f32.mrf.mxu0
  %v5435 = vadd.f32 %v5267, %v5434
  %5436 = vmatmul.f32.gmra.mxu0 %v5325
  %v5437 = vpop.f32.mrf.mxu0
  %v5438 = vadd.f32 %v5267, %v5437
  %5439 = vmatmul.f32.gmra.mxu0 %v5328
  %v5440 = vpop.f32.mrf.mxu0
  %v5441 = vadd.f32 %v5267, %v5440
  %5442 = vmatmul.f32.gmra.mxu0 %v5331
  %v5443 = vpop.f32.mrf.mxu0
  %v5444 = vadd.f32 %v5267, %v5443
  %5445 = vmatmul.f32.gmra.mxu0 %v5334
  %v5446 = vpop.f32.mrf.mxu0
  %v5447 = vadd.f32 %v5267, %v5446
  %5448 = vmatmul.f32.gmra.mxu0 %v5337
  %v5449 = vpop.f32.mrf.mxu0
  %v5450 = vadd.f32 %v5267, %v5449
  %5451 = vmatmul.f32.gmra.mxu0 %v5340
  %v5452 = vpop.f32.mrf.mxu0
  %v5453 = vadd.f32 %v5267, %v5452
  %5454 = vmatmul.f32.gmra.mxu0 %v5343
  %v5455 = vpop.f32.mrf.mxu0
  %v5456 = vadd.f32 %v5267, %v5455
  %5457 = vmatmul.f32.gmra.mxu0 %v5346
  %v5458 = vpop.f32.mrf.mxu0
  %v5459 = vadd.f32 %v5267, %v5458
  %5460 = vmatmul.f32.gmra.mxu0 %v5349
  %v5461 = vpop.f32.mrf.mxu0
  %v5462 = vadd.f32 %v5267, %v5461
  %5463 = vmatmul.f32.gmra.mxu0 %v5352
  %v5464 = vpop.f32.mrf.mxu0
  %v5465 = vadd.f32 %v5267, %v5464
  %5466 = vmatmul.f32.gmra.mxu0 %v5355
  %v5467 = vpop.f32.mrf.mxu0
  %v5468 = vadd.f32 %v5267, %v5467
  %5469 = vmatmul.f32.gmra.mxu0 %v5358
  %v5470 = vpop.f32.mrf.mxu0
  %v5471 = vadd.f32 %v5267, %v5470
  %5472 = vmatmul.f32.gmra.mxu0 %v5361
  %v5473 = vpop.f32.mrf.mxu0
  %v5474 = vadd.f32 %v5267, %v5473
  %5475 = vmatmul.f32.gmra.mxu0 %v5364
  %v5476 = vpop.f32.mrf.mxu0
  %v5477 = vadd.f32 %v5267, %v5476
  %5478 = vdwg.mxu0
  %v5479 = vxor.u32 %v5384, 2147483648
  %v5480 = vxor.u32 %v5387, 2147483648
  %v5481 = vxor.u32 %v5390, 2147483648
  %v5482 = vxor.u32 %v5393, 2147483648
  %v5483 = vxor.u32 %v5396, 2147483648
  %v5484 = vxor.u32 %v5399, 2147483648
  %v5485 = vxor.u32 %v5402, 2147483648
  %v5486 = vxor.u32 %v5405, 2147483648
  %v5487 = vxor.u32 %v5408, 2147483648
  %v5488 = vxor.u32 %v5411, 2147483648
  %v5489 = vxor.u32 %v5414, 2147483648
  %v5490 = vxor.u32 %v5417, 2147483648
  %v5491 = vxor.u32 %v5420, 2147483648
  %v5492 = vxor.u32 %v5423, 2147483648
  %v5493 = vxor.u32 %v5426, 2147483648
  %v5494 = vxor.u32 %v5429, 2147483648
  %v5495 = vxor.u32 %v5432, 2147483648
  %v5496 = vxor.u32 %v5435, 2147483648
  %v5497 = vxor.u32 %v5438, 2147483648
  %v5498 = vxor.u32 %v5441, 2147483648
  %v5499 = vxor.u32 %v5444, 2147483648
  %v5500 = vxor.u32 %v5447, 2147483648
  %v5501 = vxor.u32 %v5450, 2147483648
  %v5502 = vxor.u32 %v5453, 2147483648
  %v5503 = vxor.u32 %v5456, 2147483648
  %v5504 = vxor.u32 %v5459, 2147483648
  %v5505 = vxor.u32 %v5462, 2147483648
  %v5506 = vxor.u32 %v5465, 2147483648
  %v5507 = vxor.u32 %v5468, 2147483648
  %v5508 = vxor.u32 %v5471, 2147483648
  %v5509 = vxor.u32 %v5474, 2147483648
  %v5510 = vxor.u32 %v5477, 2147483648
  %v5511 = vmul.f32 %v5479, 1.442695
  %v5512 = vpow.pop %v5511
  %v5513 = vmul.f32 %v5480, 1.442695
  %v5514 = vpow.pop %v5513
  %v5515 = vmul.f32 %v5481, 1.442695
  %v5516 = vpow.pop %v5515
  %v5517 = vmul.f32 %v5482, 1.442695
  %v5518 = vpow.pop %v5517
  %v5519 = vmul.f32 %v5483, 1.442695
  %v5520 = vpow.pop %v5519
  %v5521 = vmul.f32 %v5484, 1.442695
  %v5522 = vpow.pop %v5521
  %v5523 = vmul.f32 %v5485, 1.442695
  %v5524 = vpow.pop %v5523
  %v5525 = vmul.f32 %v5486, 1.442695
  %v5526 = vpow.pop %v5525
  %v5527 = vmul.f32 %v5487, 1.442695
  %v5528 = vpow.pop %v5527
  %v5529 = vmul.f32 %v5488, 1.442695
  %v5530 = vpow.pop %v5529
  %v5531 = vmul.f32 %v5489, 1.442695
  %v5532 = vpow.pop %v5531
  %v5533 = vmul.f32 %v5490, 1.442695
  %v5534 = vpow.pop %v5533
  %v5535 = vmul.f32 %v5491, 1.442695
  %v5536 = vpow.pop %v5535
  %v5537 = vmul.f32 %v5492, 1.442695
  %v5538 = vpow.pop %v5537
  %v5539 = vmul.f32 %v5493, 1.442695
  %v5540 = vpow.pop %v5539
  %v5541 = vmul.f32 %v5494, 1.442695
  %v5542 = vpow.pop %v5541
  %v5543 = vmul.f32 %v5495, 1.442695
  %v5544 = vpow.pop %v5543
  %v5545 = vmul.f32 %v5496, 1.442695
  %v5546 = vpow.pop %v5545
  %v5547 = vmul.f32 %v5497, 1.442695
  %v5548 = vpow.pop %v5547
  %v5549 = vmul.f32 %v5498, 1.442695
  %v5550 = vpow.pop %v5549
  %v5551 = vmul.f32 %v5499, 1.442695
  %v5552 = vpow.pop %v5551
  %v5553 = vmul.f32 %v5500, 1.442695
  %v5554 = vpow.pop %v5553
  %v5555 = vmul.f32 %v5501, 1.442695
  %v5556 = vpow.pop %v5555
  %v5557 = vmul.f32 %v5502, 1.442695
  %v5558 = vpow.pop %v5557
  %v5559 = vmul.f32 %v5503, 1.442695
  %v5560 = vpow.pop %v5559
  %v5561 = vmul.f32 %v5504, 1.442695
  %v5562 = vpow.pop %v5561
  %v5563 = vmul.f32 %v5505, 1.442695
  %v5564 = vpow.pop %v5563
  %v5565 = vmul.f32 %v5506, 1.442695
  %v5566 = vpow.pop %v5565
  %v5567 = vmul.f32 %v5507, 1.442695
  %v5568 = vpow.pop %v5567
  %v5569 = vmul.f32 %v5508, 1.442695
  %v5570 = vpow.pop %v5569
  %v5571 = vmul.f32 %v5509, 1.442695
  %v5572 = vpow.pop %v5571
  %v5573 = vmul.f32 %v5510, 1.442695
  %v5574 = vpow.pop %v5573
  %v5575 = vadd.f32 %v5512, 1.0
  %v5576 = vadd.f32 %v5514, 1.0
  %v5577 = vadd.f32 %v5516, 1.0
  %v5578 = vadd.f32 %v5518, 1.0
  %v5579 = vadd.f32 %v5520, 1.0
  %v5580 = vadd.f32 %v5522, 1.0
  %v5581 = vadd.f32 %v5524, 1.0
  %v5582 = vadd.f32 %v5526, 1.0
  %v5583 = vadd.f32 %v5528, 1.0
  %v5584 = vadd.f32 %v5530, 1.0
  %v5585 = vadd.f32 %v5532, 1.0
  %v5586 = vadd.f32 %v5534, 1.0
  %v5587 = vadd.f32 %v5536, 1.0
  %v5588 = vadd.f32 %v5538, 1.0
  %v5589 = vadd.f32 %v5540, 1.0
  %v5590 = vadd.f32 %v5542, 1.0
  %v5591 = vadd.f32 %v5544, 1.0
  %v5592 = vadd.f32 %v5546, 1.0
  %v5593 = vadd.f32 %v5548, 1.0
  %v5594 = vadd.f32 %v5550, 1.0
  %v5595 = vadd.f32 %v5552, 1.0
  %v5596 = vadd.f32 %v5554, 1.0
  %v5597 = vadd.f32 %v5556, 1.0
  %v5598 = vadd.f32 %v5558, 1.0
  %v5599 = vadd.f32 %v5560, 1.0
  %v5600 = vadd.f32 %v5562, 1.0
  %v5601 = vadd.f32 %v5564, 1.0
  %v5602 = vadd.f32 %v5566, 1.0
  %v5603 = vadd.f32 %v5568, 1.0
  %v5604 = vadd.f32 %v5570, 1.0
  %v5605 = vadd.f32 %v5572, 1.0
  %v5606 = vadd.f32 %v5574, 1.0
  %v5607 = vrcp.pop %v5575
  %v5608 = vmul.f32 %v5575, %v5607
  %v5609 = vsub.f32 1.0, %v5608
  %v5610 = vmul.f32 %v5607, %v5609
  %v5611 = vadd.f32 %v5607, %v5610
  %vm5612 = vweird.f32 %v5575
  %vm5613 = vweird.f32 %v5607
  %vm5614 = vmor %vm5612, %vm5613
  %v5615 = vsel %vm5614, %v5607, %v5611
  %v5616 = vand.u32 2147483647, %v5575
  %vm5617 = vcmp.eq.f32.partialorder %v5616, 8.507059e+37
  %v5618 = vand.u32 %v5575, 2147483648
  %v5619 = vor.u32 1.1754944e-38, %v5618
  %v5620 = vsel %vm5617, %v5619, %v5615
  %v5621 = vmul.f32 1.0, %v5620
  %v5622 = vrcp.pop %v5576
  %v5623 = vmul.f32 %v5576, %v5622
  %v5624 = vsub.f32 1.0, %v5623
  %v5625 = vmul.f32 %v5622, %v5624
  %v5626 = vadd.f32 %v5622, %v5625
  %vm5627 = vweird.f32 %v5576
  %vm5628 = vweird.f32 %v5622
  %vm5629 = vmor %vm5627, %vm5628
  %v5630 = vsel %vm5629, %v5622, %v5626
  %v5631 = vand.u32 2147483647, %v5576
  %vm5632 = vcmp.eq.f32.partialorder %v5631, 8.507059e+37
  %v5633 = vand.u32 %v5576, 2147483648
  %v5634 = vor.u32 1.1754944e-38, %v5633
  %v5635 = vsel %vm5632, %v5634, %v5630
  %v5636 = vmul.f32 1.0, %v5635
  %v5637 = vrcp.pop %v5577
  %v5638 = vmul.f32 %v5577, %v5637
  %v5639 = vsub.f32 1.0, %v5638
  %v5640 = vmul.f32 %v5637, %v5639
  %v5641 = vadd.f32 %v5637, %v5640
  %vm5642 = vweird.f32 %v5577
  %vm5643 = vweird.f32 %v5637
  %vm5644 = vmor %vm5642, %vm5643
  %v5645 = vsel %vm5644, %v5637, %v5641
  %v5646 = vand.u32 2147483647, %v5577
  %vm5647 = vcmp.eq.f32.partialorder %v5646, 8.507059e+37
  %v5648 = vand.u32 %v5577, 2147483648
  %v5649 = vor.u32 1.1754944e-38, %v5648
  %v5650 = vsel %vm5647, %v5649, %v5645
  %v5651 = vmul.f32 1.0, %v5650
  %v5652 = vrcp.pop %v5578
  %v5653 = vmul.f32 %v5578, %v5652
  %v5654 = vsub.f32 1.0, %v5653
  %v5655 = vmul.f32 %v5652, %v5654
  %v5656 = vadd.f32 %v5652, %v5655
  %vm5657 = vweird.f32 %v5578
  %vm5658 = vweird.f32 %v5652
  %vm5659 = vmor %vm5657, %vm5658
  %v5660 = vsel %vm5659, %v5652, %v5656
  %v5661 = vand.u32 2147483647, %v5578
  %vm5662 = vcmp.eq.f32.partialorder %v5661, 8.507059e+37
  %v5663 = vand.u32 %v5578, 2147483648
  %v5664 = vor.u32 1.1754944e-38, %v5663
  %v5665 = vsel %vm5662, %v5664, %v5660
  %v5666 = vmul.f32 1.0, %v5665
  %v5667 = vrcp.pop %v5579
  %v5668 = vmul.f32 %v5579, %v5667
  %v5669 = vsub.f32 1.0, %v5668
  %v5670 = vmul.f32 %v5667, %v5669
  %v5671 = vadd.f32 %v5667, %v5670
  %vm5672 = vweird.f32 %v5579
  %vm5673 = vweird.f32 %v5667
  %vm5674 = vmor %vm5672, %vm5673
  %v5675 = vsel %vm5674, %v5667, %v5671
  %v5676 = vand.u32 2147483647, %v5579
  %vm5677 = vcmp.eq.f32.partialorder %v5676, 8.507059e+37
  %v5678 = vand.u32 %v5579, 2147483648
  %v5679 = vor.u32 1.1754944e-38, %v5678
  %v5680 = vsel %vm5677, %v5679, %v5675
  %v5681 = vmul.f32 1.0, %v5680
  %v5682 = vrcp.pop %v5580
  %v5683 = vmul.f32 %v5580, %v5682
  %v5684 = vsub.f32 1.0, %v5683
  %v5685 = vmul.f32 %v5682, %v5684
  %v5686 = vadd.f32 %v5682, %v5685
  %vm5687 = vweird.f32 %v5580
  %vm5688 = vweird.f32 %v5682
  %vm5689 = vmor %vm5687, %vm5688
  %v5690 = vsel %vm5689, %v5682, %v5686
  %v5691 = vand.u32 2147483647, %v5580
  %vm5692 = vcmp.eq.f32.partialorder %v5691, 8.507059e+37
  %v5693 = vand.u32 %v5580, 2147483648
  %v5694 = vor.u32 1.1754944e-38, %v5693
  %v5695 = vsel %vm5692, %v5694, %v5690
  %v5696 = vmul.f32 1.0, %v5695
  %v5697 = vrcp.pop %v5581
  %v5698 = vmul.f32 %v5581, %v5697
  %v5699 = vsub.f32 1.0, %v5698
  %v5700 = vmul.f32 %v5697, %v5699
  %v5701 = vadd.f32 %v5697, %v5700
  %vm5702 = vweird.f32 %v5581
  %vm5703 = vweird.f32 %v5697
  %vm5704 = vmor %vm5702, %vm5703
  %v5705 = vsel %vm5704, %v5697, %v5701
  %v5706 = vand.u32 2147483647, %v5581
  %vm5707 = vcmp.eq.f32.partialorder %v5706, 8.507059e+37
  %v5708 = vand.u32 %v5581, 2147483648
  %v5709 = vor.u32 1.1754944e-38, %v5708
  %v5710 = vsel %vm5707, %v5709, %v5705
  %v5711 = vmul.f32 1.0, %v5710
  %v5712 = vrcp.pop %v5582
  %v5713 = vmul.f32 %v5582, %v5712
  %v5714 = vsub.f32 1.0, %v5713
  %v5715 = vmul.f32 %v5712, %v5714
  %v5716 = vadd.f32 %v5712, %v5715
  %vm5717 = vweird.f32 %v5582
  %vm5718 = vweird.f32 %v5712
  %vm5719 = vmor %vm5717, %vm5718
  %v5720 = vsel %vm5719, %v5712, %v5716
  %v5721 = vand.u32 2147483647, %v5582
  %vm5722 = vcmp.eq.f32.partialorder %v5721, 8.507059e+37
  %v5723 = vand.u32 %v5582, 2147483648
  %v5724 = vor.u32 1.1754944e-38, %v5723
  %v5725 = vsel %vm5722, %v5724, %v5720
  %v5726 = vmul.f32 1.0, %v5725
  %v5727 = vrcp.pop %v5583
  %v5728 = vmul.f32 %v5583, %v5727
  %v5729 = vsub.f32 1.0, %v5728
  %v5730 = vmul.f32 %v5727, %v5729
  %v5731 = vadd.f32 %v5727, %v5730
  %vm5732 = vweird.f32 %v5583
  %vm5733 = vweird.f32 %v5727
  %vm5734 = vmor %vm5732, %vm5733
  %v5735 = vsel %vm5734, %v5727, %v5731
  %v5736 = vand.u32 2147483647, %v5583
  %vm5737 = vcmp.eq.f32.partialorder %v5736, 8.507059e+37
  %v5738 = vand.u32 %v5583, 2147483648
  %v5739 = vor.u32 1.1754944e-38, %v5738
  %v5740 = vsel %vm5737, %v5739, %v5735
  %v5741 = vmul.f32 1.0, %v5740
  %v5742 = vrcp.pop %v5584
  %v5743 = vmul.f32 %v5584, %v5742
  %v5744 = vsub.f32 1.0, %v5743
  %v5745 = vmul.f32 %v5742, %v5744
  %v5746 = vadd.f32 %v5742, %v5745
  %vm5747 = vweird.f32 %v5584
  %vm5748 = vweird.f32 %v5742
  %vm5749 = vmor %vm5747, %vm5748
  %v5750 = vsel %vm5749, %v5742, %v5746
  %v5751 = vand.u32 2147483647, %v5584
  %vm5752 = vcmp.eq.f32.partialorder %v5751, 8.507059e+37
  %v5753 = vand.u32 %v5584, 2147483648
  %v5754 = vor.u32 1.1754944e-38, %v5753
  %v5755 = vsel %vm5752, %v5754, %v5750
  %v5756 = vmul.f32 1.0, %v5755
  %v5757 = vrcp.pop %v5585
  %v5758 = vmul.f32 %v5585, %v5757
  %v5759 = vsub.f32 1.0, %v5758
  %v5760 = vmul.f32 %v5757, %v5759
  %v5761 = vadd.f32 %v5757, %v5760
  %vm5762 = vweird.f32 %v5585
  %vm5763 = vweird.f32 %v5757
  %vm5764 = vmor %vm5762, %vm5763
  %v5765 = vsel %vm5764, %v5757, %v5761
  %v5766 = vand.u32 2147483647, %v5585
  %vm5767 = vcmp.eq.f32.partialorder %v5766, 8.507059e+37
  %v5768 = vand.u32 %v5585, 2147483648
  %v5769 = vor.u32 1.1754944e-38, %v5768
  %v5770 = vsel %vm5767, %v5769, %v5765
  %v5771 = vmul.f32 1.0, %v5770
  %v5772 = vrcp.pop %v5586
  %v5773 = vmul.f32 %v5586, %v5772
  %v5774 = vsub.f32 1.0, %v5773
  %v5775 = vmul.f32 %v5772, %v5774
  %v5776 = vadd.f32 %v5772, %v5775
  %vm5777 = vweird.f32 %v5586
  %vm5778 = vweird.f32 %v5772
  %vm5779 = vmor %vm5777, %vm5778
  %v5780 = vsel %vm5779, %v5772, %v5776
  %v5781 = vand.u32 2147483647, %v5586
  %vm5782 = vcmp.eq.f32.partialorder %v5781, 8.507059e+37
  %v5783 = vand.u32 %v5586, 2147483648
  %v5784 = vor.u32 1.1754944e-38, %v5783
  %v5785 = vsel %vm5782, %v5784, %v5780
  %v5786 = vmul.f32 1.0, %v5785
  %v5787 = vrcp.pop %v5587
  %v5788 = vmul.f32 %v5587, %v5787
  %v5789 = vsub.f32 1.0, %v5788
  %v5790 = vmul.f32 %v5787, %v5789
  %v5791 = vadd.f32 %v5787, %v5790
  %vm5792 = vweird.f32 %v5587
  %vm5793 = vweird.f32 %v5787
  %vm5794 = vmor %vm5792, %vm5793
  %v5795 = vsel %vm5794, %v5787, %v5791
  %v5796 = vand.u32 2147483647, %v5587
  %vm5797 = vcmp.eq.f32.partialorder %v5796, 8.507059e+37
  %v5798 = vand.u32 %v5587, 2147483648
  %v5799 = vor.u32 1.1754944e-38, %v5798
  %v5800 = vsel %vm5797, %v5799, %v5795
  %v5801 = vmul.f32 1.0, %v5800
  %v5802 = vrcp.pop %v5588
  %v5803 = vmul.f32 %v5588, %v5802
  %v5804 = vsub.f32 1.0, %v5803
  %v5805 = vmul.f32 %v5802, %v5804
  %v5806 = vadd.f32 %v5802, %v5805
  %vm5807 = vweird.f32 %v5588
  %vm5808 = vweird.f32 %v5802
  %vm5809 = vmor %vm5807, %vm5808
  %v5810 = vsel %vm5809, %v5802, %v5806
  %v5811 = vand.u32 2147483647, %v5588
  %vm5812 = vcmp.eq.f32.partialorder %v5811, 8.507059e+37
  %v5813 = vand.u32 %v5588, 2147483648
  %v5814 = vor.u32 1.1754944e-38, %v5813
  %v5815 = vsel %vm5812, %v5814, %v5810
  %v5816 = vmul.f32 1.0, %v5815
  %v5817 = vrcp.pop %v5589
  %v5818 = vmul.f32 %v5589, %v5817
  %v5819 = vsub.f32 1.0, %v5818
  %v5820 = vmul.f32 %v5817, %v5819
  %v5821 = vadd.f32 %v5817, %v5820
  %vm5822 = vweird.f32 %v5589
  %vm5823 = vweird.f32 %v5817
  %vm5824 = vmor %vm5822, %vm5823
  %v5825 = vsel %vm5824, %v5817, %v5821
  %v5826 = vand.u32 2147483647, %v5589
  %vm5827 = vcmp.eq.f32.partialorder %v5826, 8.507059e+37
  %v5828 = vand.u32 %v5589, 2147483648
  %v5829 = vor.u32 1.1754944e-38, %v5828
  %v5830 = vsel %vm5827, %v5829, %v5825
  %v5831 = vmul.f32 1.0, %v5830
  %v5832 = vrcp.pop %v5590
  %v5833 = vmul.f32 %v5590, %v5832
  %v5834 = vsub.f32 1.0, %v5833
  %v5835 = vmul.f32 %v5832, %v5834
  %v5836 = vadd.f32 %v5832, %v5835
  %vm5837 = vweird.f32 %v5590
  %vm5838 = vweird.f32 %v5832
  %vm5839 = vmor %vm5837, %vm5838
  %v5840 = vsel %vm5839, %v5832, %v5836
  %v5841 = vand.u32 2147483647, %v5590
  %vm5842 = vcmp.eq.f32.partialorder %v5841, 8.507059e+37
  %v5843 = vand.u32 %v5590, 2147483648
  %v5844 = vor.u32 1.1754944e-38, %v5843
  %v5845 = vsel %vm5842, %v5844, %v5840
  %v5846 = vmul.f32 1.0, %v5845
  %v5847 = vrcp.pop %v5591
  %v5848 = vmul.f32 %v5591, %v5847
  %v5849 = vsub.f32 1.0, %v5848
  %v5850 = vmul.f32 %v5847, %v5849
  %v5851 = vadd.f32 %v5847, %v5850
  %vm5852 = vweird.f32 %v5591
  %vm5853 = vweird.f32 %v5847
  %vm5854 = vmor %vm5852, %vm5853
  %v5855 = vsel %vm5854, %v5847, %v5851
  %v5856 = vand.u32 2147483647, %v5591
  %vm5857 = vcmp.eq.f32.partialorder %v5856, 8.507059e+37
  %v5858 = vand.u32 %v5591, 2147483648
  %v5859 = vor.u32 1.1754944e-38, %v5858
  %v5860 = vsel %vm5857, %v5859, %v5855
  %v5861 = vmul.f32 1.0, %v5860
  %v5862 = vrcp.pop %v5592
  %v5863 = vmul.f32 %v5592, %v5862
  %v5864 = vsub.f32 1.0, %v5863
  %v5865 = vmul.f32 %v5862, %v5864
  %v5866 = vadd.f32 %v5862, %v5865
  %vm5867 = vweird.f32 %v5592
  %vm5868 = vweird.f32 %v5862
  %vm5869 = vmor %vm5867, %vm5868
  %v5870 = vsel %vm5869, %v5862, %v5866
  %v5871 = vand.u32 2147483647, %v5592
  %vm5872 = vcmp.eq.f32.partialorder %v5871, 8.507059e+37
  %v5873 = vand.u32 %v5592, 2147483648
  %v5874 = vor.u32 1.1754944e-38, %v5873
  %v5875 = vsel %vm5872, %v5874, %v5870
  %v5876 = vmul.f32 1.0, %v5875
  %v5877 = vrcp.pop %v5593
  %v5878 = vmul.f32 %v5593, %v5877
  %v5879 = vsub.f32 1.0, %v5878
  %v5880 = vmul.f32 %v5877, %v5879
  %v5881 = vadd.f32 %v5877, %v5880
  %vm5882 = vweird.f32 %v5593
  %vm5883 = vweird.f32 %v5877
  %vm5884 = vmor %vm5882, %vm5883
  %v5885 = vsel %vm5884, %v5877, %v5881
  %v5886 = vand.u32 2147483647, %v5593
  %vm5887 = vcmp.eq.f32.partialorder %v5886, 8.507059e+37
  %v5888 = vand.u32 %v5593, 2147483648
  %v5889 = vor.u32 1.1754944e-38, %v5888
  %v5890 = vsel %vm5887, %v5889, %v5885
  %v5891 = vmul.f32 1.0, %v5890
  %v5892 = vrcp.pop %v5594
  %v5893 = vmul.f32 %v5594, %v5892
  %v5894 = vsub.f32 1.0, %v5893
  %v5895 = vmul.f32 %v5892, %v5894
  %v5896 = vadd.f32 %v5892, %v5895
  %vm5897 = vweird.f32 %v5594
  %vm5898 = vweird.f32 %v5892
  %vm5899 = vmor %vm5897, %vm5898
  %v5900 = vsel %vm5899, %v5892, %v5896
  %v5901 = vand.u32 2147483647, %v5594
  %vm5902 = vcmp.eq.f32.partialorder %v5901, 8.507059e+37
  %v5903 = vand.u32 %v5594, 2147483648
  %v5904 = vor.u32 1.1754944e-38, %v5903
  %v5905 = vsel %vm5902, %v5904, %v5900
  %v5906 = vmul.f32 1.0, %v5905
  %v5907 = vrcp.pop %v5595
  %v5908 = vmul.f32 %v5595, %v5907
  %v5909 = vsub.f32 1.0, %v5908
  %v5910 = vmul.f32 %v5907, %v5909
  %v5911 = vadd.f32 %v5907, %v5910
  %vm5912 = vweird.f32 %v5595
  %vm5913 = vweird.f32 %v5907
  %vm5914 = vmor %vm5912, %vm5913
  %v5915 = vsel %vm5914, %v5907, %v5911
  %v5916 = vand.u32 2147483647, %v5595
  %vm5917 = vcmp.eq.f32.partialorder %v5916, 8.507059e+37
  %v5918 = vand.u32 %v5595, 2147483648
  %v5919 = vor.u32 1.1754944e-38, %v5918
  %v5920 = vsel %vm5917, %v5919, %v5915
  %v5921 = vmul.f32 1.0, %v5920
  %v5922 = vrcp.pop %v5596
  %v5923 = vmul.f32 %v5596, %v5922
  %v5924 = vsub.f32 1.0, %v5923
  %v5925 = vmul.f32 %v5922, %v5924
  %v5926 = vadd.f32 %v5922, %v5925
  %vm5927 = vweird.f32 %v5596
  %vm5928 = vweird.f32 %v5922
  %vm5929 = vmor %vm5927, %vm5928
  %v5930 = vsel %vm5929, %v5922, %v5926
  %v5931 = vand.u32 2147483647, %v5596
  %vm5932 = vcmp.eq.f32.partialorder %v5931, 8.507059e+37
  %v5933 = vand.u32 %v5596, 2147483648
  %v5934 = vor.u32 1.1754944e-38, %v5933
  %v5935 = vsel %vm5932, %v5934, %v5930
  %v5936 = vmul.f32 1.0, %v5935
  %v5937 = vrcp.pop %v5597
  %v5938 = vmul.f32 %v5597, %v5937
  %v5939 = vsub.f32 1.0, %v5938
  %v5940 = vmul.f32 %v5937, %v5939
  %v5941 = vadd.f32 %v5937, %v5940
  %vm5942 = vweird.f32 %v5597
  %vm5943 = vweird.f32 %v5937
  %vm5944 = vmor %vm5942, %vm5943
  %v5945 = vsel %vm5944, %v5937, %v5941
  %v5946 = vand.u32 2147483647, %v5597
  %vm5947 = vcmp.eq.f32.partialorder %v5946, 8.507059e+37
  %v5948 = vand.u32 %v5597, 2147483648
  %v5949 = vor.u32 1.1754944e-38, %v5948
  %v5950 = vsel %vm5947, %v5949, %v5945
  %v5951 = vmul.f32 1.0, %v5950
  %v5952 = vrcp.pop %v5598
  %v5953 = vmul.f32 %v5598, %v5952
  %v5954 = vsub.f32 1.0, %v5953
  %v5955 = vmul.f32 %v5952, %v5954
  %v5956 = vadd.f32 %v5952, %v5955
  %vm5957 = vweird.f32 %v5598
  %vm5958 = vweird.f32 %v5952
  %vm5959 = vmor %vm5957, %vm5958
  %v5960 = vsel %vm5959, %v5952, %v5956
  %v5961 = vand.u32 2147483647, %v5598
  %vm5962 = vcmp.eq.f32.partialorder %v5961, 8.507059e+37
  %v5963 = vand.u32 %v5598, 2147483648
  %v5964 = vor.u32 1.1754944e-38, %v5963
  %v5965 = vsel %vm5962, %v5964, %v5960
  %v5966 = vmul.f32 1.0, %v5965
  %v5967 = vrcp.pop %v5599
  %v5968 = vmul.f32 %v5599, %v5967
  %v5969 = vsub.f32 1.0, %v5968
  %v5970 = vmul.f32 %v5967, %v5969
  %v5971 = vadd.f32 %v5967, %v5970
  %vm5972 = vweird.f32 %v5599
  %vm5973 = vweird.f32 %v5967
  %vm5974 = vmor %vm5972, %vm5973
  %v5975 = vsel %vm5974, %v5967, %v5971
  %v5976 = vand.u32 2147483647, %v5599
  %vm5977 = vcmp.eq.f32.partialorder %v5976, 8.507059e+37
  %v5978 = vand.u32 %v5599, 2147483648
  %v5979 = vor.u32 1.1754944e-38, %v5978
  %v5980 = vsel %vm5977, %v5979, %v5975
  %v5981 = vmul.f32 1.0, %v5980
  %v5982 = vrcp.pop %v5600
  %v5983 = vmul.f32 %v5600, %v5982
  %v5984 = vsub.f32 1.0, %v5983
  %v5985 = vmul.f32 %v5982, %v5984
  %v5986 = vadd.f32 %v5982, %v5985
  %vm5987 = vweird.f32 %v5600
  %vm5988 = vweird.f32 %v5982
  %vm5989 = vmor %vm5987, %vm5988
  %v5990 = vsel %vm5989, %v5982, %v5986
  %v5991 = vand.u32 2147483647, %v5600
  %vm5992 = vcmp.eq.f32.partialorder %v5991, 8.507059e+37
  %v5993 = vand.u32 %v5600, 2147483648
  %v5994 = vor.u32 1.1754944e-38, %v5993
  %v5995 = vsel %vm5992, %v5994, %v5990
  %v5996 = vmul.f32 1.0, %v5995
  %v5997 = vrcp.pop %v5601
  %v5998 = vmul.f32 %v5601, %v5997
  %v5999 = vsub.f32 1.0, %v5998
  %v6000 = vmul.f32 %v5997, %v5999
  %v6001 = vadd.f32 %v5997, %v6000
  %vm6002 = vweird.f32 %v5601
  %vm6003 = vweird.f32 %v5997
  %vm6004 = vmor %vm6002, %vm6003
  %v6005 = vsel %vm6004, %v5997, %v6001
  %v6006 = vand.u32 2147483647, %v5601
  %vm6007 = vcmp.eq.f32.partialorder %v6006, 8.507059e+37
  %v6008 = vand.u32 %v5601, 2147483648
  %v6009 = vor.u32 1.1754944e-38, %v6008
  %v6010 = vsel %vm6007, %v6009, %v6005
  %v6011 = vmul.f32 1.0, %v6010
  %v6012 = vrcp.pop %v5602
  %v6013 = vmul.f32 %v5602, %v6012
  %v6014 = vsub.f32 1.0, %v6013
  %v6015 = vmul.f32 %v6012, %v6014
  %v6016 = vadd.f32 %v6012, %v6015
  %vm6017 = vweird.f32 %v5602
  %vm6018 = vweird.f32 %v6012
  %vm6019 = vmor %vm6017, %vm6018
  %v6020 = vsel %vm6019, %v6012, %v6016
  %v6021 = vand.u32 2147483647, %v5602
  %vm6022 = vcmp.eq.f32.partialorder %v6021, 8.507059e+37
  %v6023 = vand.u32 %v5602, 2147483648
  %v6024 = vor.u32 1.1754944e-38, %v6023
  %v6025 = vsel %vm6022, %v6024, %v6020
  %v6026 = vmul.f32 1.0, %v6025
  %v6027 = vrcp.pop %v5603
  %v6028 = vmul.f32 %v5603, %v6027
  %v6029 = vsub.f32 1.0, %v6028
  %v6030 = vmul.f32 %v6027, %v6029
  %v6031 = vadd.f32 %v6027, %v6030
  %vm6032 = vweird.f32 %v5603
  %vm6033 = vweird.f32 %v6027
  %vm6034 = vmor %vm6032, %vm6033
  %v6035 = vsel %vm6034, %v6027, %v6031
  %v6036 = vand.u32 2147483647, %v5603
  %vm6037 = vcmp.eq.f32.partialorder %v6036, 8.507059e+37
  %v6038 = vand.u32 %v5603, 2147483648
  %v6039 = vor.u32 1.1754944e-38, %v6038
  %v6040 = vsel %vm6037, %v6039, %v6035
  %v6041 = vmul.f32 1.0, %v6040
  %v6042 = vrcp.pop %v5604
  %v6043 = vmul.f32 %v5604, %v6042
  %v6044 = vsub.f32 1.0, %v6043
  %v6045 = vmul.f32 %v6042, %v6044
  %v6046 = vadd.f32 %v6042, %v6045
  %vm6047 = vweird.f32 %v5604
  %vm6048 = vweird.f32 %v6042
  %vm6049 = vmor %vm6047, %vm6048
  %v6050 = vsel %vm6049, %v6042, %v6046
  %v6051 = vand.u32 2147483647, %v5604
  %vm6052 = vcmp.eq.f32.partialorder %v6051, 8.507059e+37
  %v6053 = vand.u32 %v5604, 2147483648
  %v6054 = vor.u32 1.1754944e-38, %v6053
  %v6055 = vsel %vm6052, %v6054, %v6050
  %v6056 = vmul.f32 1.0, %v6055
  %v6057 = vrcp.pop %v5605
  %v6058 = vmul.f32 %v5605, %v6057
  %v6059 = vsub.f32 1.0, %v6058
  %v6060 = vmul.f32 %v6057, %v6059
  %v6061 = vadd.f32 %v6057, %v6060
  %vm6062 = vweird.f32 %v5605
  %vm6063 = vweird.f32 %v6057
  %vm6064 = vmor %vm6062, %vm6063
  %v6065 = vsel %vm6064, %v6057, %v6061
  %v6066 = vand.u32 2147483647, %v5605
  %vm6067 = vcmp.eq.f32.partialorder %v6066, 8.507059e+37
  %v6068 = vand.u32 %v5605, 2147483648
  %v6069 = vor.u32 1.1754944e-38, %v6068
  %v6070 = vsel %vm6067, %v6069, %v6065
  %v6071 = vmul.f32 1.0, %v6070
  %v6072 = vrcp.pop %v5606
  %v6073 = vmul.f32 %v5606, %v6072
  %v6074 = vsub.f32 1.0, %v6073
  %v6075 = vmul.f32 %v6072, %v6074
  %v6076 = vadd.f32 %v6072, %v6075
  %vm6077 = vweird.f32 %v5606
  %vm6078 = vweird.f32 %v6072
  %vm6079 = vmor %vm6077, %vm6078
  %v6080 = vsel %vm6079, %v6072, %v6076
  %v6081 = vand.u32 2147483647, %v5606
  %vm6082 = vcmp.eq.f32.partialorder %v6081, 8.507059e+37
  %v6083 = vand.u32 %v5606, 2147483648
  %v6084 = vor.u32 1.1754944e-38, %v6083
  %v6085 = vsel %vm6082, %v6084, %v6080
  %v6086 = vmul.f32 1.0, %v6085
  %v6087 = vmul.f32 %v5384, %v5621
  %v6088 = vmul.f32 %v5387, %v5636
  %v6089 = vmul.f32 %v5390, %v5651
  %v6090 = vmul.f32 %v5393, %v5666
  %v6091 = vmul.f32 %v5396, %v5681
  %v6092 = vmul.f32 %v5399, %v5696
  %v6093 = vmul.f32 %v5402, %v5711
  %v6094 = vmul.f32 %v5405, %v5726
  %v6095 = vmul.f32 %v5408, %v5741
  %v6096 = vmul.f32 %v5411, %v5756
  %v6097 = vmul.f32 %v5414, %v5771
  %v6098 = vmul.f32 %v5417, %v5786
  %v6099 = vmul.f32 %v5420, %v5801
  %v6100 = vmul.f32 %v5423, %v5816
  %v6101 = vmul.f32 %v5426, %v5831
  %v6102 = vmul.f32 %v5429, %v5846
  %v6103 = vmul.f32 %v5432, %v5861
  %v6104 = vmul.f32 %v5435, %v5876
  %v6105 = vmul.f32 %v5438, %v5891
  %v6106 = vmul.f32 %v5441, %v5906
  %v6107 = vmul.f32 %v5444, %v5921
  %v6108 = vmul.f32 %v5447, %v5936
  %v6109 = vmul.f32 %v5450, %v5951
  %v6110 = vmul.f32 %v5453, %v5966
  %v6111 = vmul.f32 %v5456, %v5981
  %v6112 = vmul.f32 %v5459, %v5996
  %v6113 = vmul.f32 %v5462, %v6011
  %v6114 = vmul.f32 %v5465, %v6026
  %v6115 = vmul.f32 %v5468, %v6041
  %v6116 = vmul.f32 %v5471, %v6056
  %v6117 = vmul.f32 %v5474, %v6071
  %v6118 = vmul.f32 %v5477, %v6086
  %v6119 = vld [vmem:[%s7] sm:$0xff]
  %v6120 = vld [vmem:[%s7 + $0x8] sm:$0xff]
  %v6121 = vld [vmem:[%s7 + $0x10] sm:$0xff]
  %v6122 = vld [vmem:[%s7 + $0x18] sm:$0xff]
  %v6123 = vld [vmem:[%s7 + $0x20] sm:$0xff]
  %v6124 = vld [vmem:[%s7 + $0x28] sm:$0xff]
  %v6125 = vld [vmem:[%s7 + $0x30] sm:$0xff]
  %v6126 = vld [vmem:[%s7 + $0x38] sm:$0xff]
  %v6127 = vld [vmem:[%s7 + $0x40] sm:$0xff]
  %v6128 = vld [vmem:[%s7 + $0x48] sm:$0xff]
  %v6129 = vld [vmem:[%s7 + $0x50] sm:$0xff]
  %v6130 = vld [vmem:[%s7 + $0x58] sm:$0xff]
  %v6131 = vld [vmem:[%s7 + $0x60] sm:$0xff]
  %v6132 = vld [vmem:[%s7 + $0x68] sm:$0xff]
  %v6133 = vld [vmem:[%s7 + $0x70] sm:$0xff]
  %v6134 = vld [vmem:[%s7 + $0x78] sm:$0xff]
  %v6135 = vld [vmem:[%s8] sm:$0x1]
  %v6137 = vperm.slane %v6135, 0
  %6139 = vmatpush.msra.mxu0 %v6134
  %6140 = vmatpush.msra.mxu0 %v6133
  %6141 = vmatpush.msra.mxu0 %v6132
  %6142 = vmatpush.msra.mxu0 %v6131
  %6143 = vmatpush.msra.mxu0 %v6130
  %6144 = vmatpush.msra.mxu0 %v6129
  %6145 = vmatpush.msra.mxu0 %v6128
  %6146 = vmatpush.msra.mxu0 %v6127
  %6147 = vmatpush.msra.mxu0 %v6126
  %6148 = vmatpush.msra.mxu0 %v6125
  %6149 = vmatpush.msra.mxu0 %v6124
  %6150 = vmatpush.msra.mxu0 %v6123
  %6151 = vmatpush.msra.mxu0 %v6122
  %6152 = vmatpush.msra.mxu0 %v6121
  %6153 = vmatpush.msra.mxu0 %v6120
  %6154 = vmatpush.msra.mxu0 %v6119
  %6155 = vmatmul.f32.gmra.mxu0 %v6087
  %v6156 = vpop.f32.mrf.mxu0
  %v6157 = vadd.f32 %v6137, %v6156
  %6158 = vmatmul.f32.gmra.mxu0 %v6088
  %v6159 = vpop.f32.mrf.mxu0
  %v6160 = vadd.f32 %v6137, %v6159
  %6161 = vmatmul.f32.gmra.mxu0 %v6089
  %v6162 = vpop.f32.mrf.mxu0
  %v6163 = vadd.f32 %v6137, %v6162
  %6164 = vmatmul.f32.gmra.mxu0 %v6090
  %v6165 = vpop.f32.mrf.mxu0
  %v6166 = vadd.f32 %v6137, %v6165
  %6167 = vmatmul.f32.gmra.mxu0 %v6091
  %v6168 = vpop.f32.mrf.mxu0
  %v6169 = vadd.f32 %v6137, %v6168
  %6170 = vmatmul.f32.gmra.mxu0 %v6092
  %v6171 = vpop.f32.mrf.mxu0
  %v6172 = vadd.f32 %v6137, %v6171
  %6173 = vmatmul.f32.gmra.mxu0 %v6093
  %v6174 = vpop.f32.mrf.mxu0
  %v6175 = vadd.f32 %v6137, %v6174
  %6176 = vmatmul.f32.gmra.mxu0 %v6094
  %v6177 = vpop.f32.mrf.mxu0
  %v6178 = vadd.f32 %v6137, %v6177
  %6179 = vmatmul.f32.gmra.mxu0 %v6095
  %v6180 = vpop.f32.mrf.mxu0
  %v6181 = vadd.f32 %v6137, %v6180
  %6182 = vmatmul.f32.gmra.mxu0 %v6096
  %v6183 = vpop.f32.mrf.mxu0
  %v6184 = vadd.f32 %v6137, %v6183
  %6185 = vmatmul.f32.gmra.mxu0 %v6097
  %v6186 = vpop.f32.mrf.mxu0
  %v6187 = vadd.f32 %v6137, %v6186
  %6188 = vmatmul.f32.gmra.mxu0 %v6098
  %v6189 = vpop.f32.mrf.mxu0
  %v6190 = vadd.f32 %v6137, %v6189
  %6191 = vmatmul.f32.gmra.mxu0 %v6099
  %v6192 = vpop.f32.mrf.mxu0
  %v6193 = vadd.f32 %v6137, %v6192
  %6194 = vmatmul.f32.gmra.mxu0 %v6100
  %v6195 = vpop.f32.mrf.mxu0
  %v6196 = vadd.f32 %v6137, %v6195
  %6197 = vmatmul.f32.gmra.mxu0 %v6101
  %v6198 = vpop.f32.mrf.mxu0
  %v6199 = vadd.f32 %v6137, %v6198
  %6200 = vmatmul.f32.gmra.mxu0 %v6102
  %v6201 = vpop.f32.mrf.mxu0
  %v6202 = vadd.f32 %v6137, %v6201
  %6203 = vmatmul.f32.gmra.mxu0 %v6103
  %v6204 = vpop.f32.mrf.mxu0
  %v6205 = vadd.f32 %v6137, %v6204
  %6206 = vmatmul.f32.gmra.mxu0 %v6104
  %v6207 = vpop.f32.mrf.mxu0
  %v6208 = vadd.f32 %v6137, %v6207
  %6209 = vmatmul.f32.gmra.mxu0 %v6105
  %v6210 = vpop.f32.mrf.mxu0
  %v6211 = vadd.f32 %v6137, %v6210
  %6212 = vmatmul.f32.gmra.mxu0 %v6106
  %v6213 = vpop.f32.mrf.mxu0
  %v6214 = vadd.f32 %v6137, %v6213
  %6215 = vmatmul.f32.gmra.mxu0 %v6107
  %v6216 = vpop.f32.mrf.mxu0
  %v6217 = vadd.f32 %v6137, %v6216
  %6218 = vmatmul.f32.gmra.mxu0 %v6108
  %v6219 = vpop.f32.mrf.mxu0
  %v6220 = vadd.f32 %v6137, %v6219
  %6221 = vmatmul.f32.gmra.mxu0 %v6109
  %v6222 = vpop.f32.mrf.mxu0
  %v6223 = vadd.f32 %v6137, %v6222
  %6224 = vmatmul.f32.gmra.mxu0 %v6110
  %v6225 = vpop.f32.mrf.mxu0
  %v6226 = vadd.f32 %v6137, %v6225
  %6227 = vmatmul.f32.gmra.mxu0 %v6111
  %v6228 = vpop.f32.mrf.mxu0
  %v6229 = vadd.f32 %v6137, %v6228
  %6230 = vmatmul.f32.gmra.mxu0 %v6112
  %v6231 = vpop.f32.mrf.mxu0
  %v6232 = vadd.f32 %v6137, %v6231
  %6233 = vmatmul.f32.gmra.mxu0 %v6113
  %v6234 = vpop.f32.mrf.mxu0
  %v6235 = vadd.f32 %v6137, %v6234
  %6236 = vmatmul.f32.gmra.mxu0 %v6114
  %v6237 = vpop.f32.mrf.mxu0
  %v6238 = vadd.f32 %v6137, %v6237
  %6239 = vmatmul.f32.gmra.mxu0 %v6115
  %v6240 = vpop.f32.mrf.mxu0
  %v6241 = vadd.f32 %v6137, %v6240
  %6242 = vmatmul.f32.gmra.mxu0 %v6116
  %v6243 = vpop.f32.mrf.mxu0
  %v6244 = vadd.f32 %v6137, %v6243
  %6245 = vmatmul.f32.gmra.mxu0 %v6117
  %v6246 = vpop.f32.mrf.mxu0
  %v6247 = vadd.f32 %v6137, %v6246
  %6248 = vmatmul.f32.gmra.mxu0 %v6118
  %v6249 = vpop.f32.mrf.mxu0
  %v6250 = vadd.f32 %v6137, %v6249
  %6251 = vdwg.mxu0
  %6252 = vst [vmem:[%s10] sm:$0xff] %v6157
  %6253 = vst [vmem:[%s10 + $0x8] sm:$0xff] %v6160
  %6254 = vst [vmem:[%s10 + $0x10] sm:$0xff] %v6163
  %6255 = vst [vmem:[%s10 + $0x18] sm:$0xff] %v6166
  %6256 = vst [vmem:[%s10 + $0x20] sm:$0xff] %v6169
  %6257 = vst [vmem:[%s10 + $0x28] sm:$0xff] %v6172
  %6258 = vst [vmem:[%s10 + $0x30] sm:$0xff] %v6175
  %6259 = vst [vmem:[%s10 + $0x38] sm:$0xff] %v6178
  %6260 = vst [vmem:[%s10 + $0x40] sm:$0xff] %v6181
  %6261 = vst [vmem:[%s10 + $0x48] sm:$0xff] %v6184
  %6262 = vst [vmem:[%s10 + $0x50] sm:$0xff] %v6187
  %6263 = vst [vmem:[%s10 + $0x58] sm:$0xff] %v6190
  %6264 = vst [vmem:[%s10 + $0x60] sm:$0xff] %v6193
  %6265 = vst [vmem:[%s10 + $0x68] sm:$0xff] %v6196
  %6266 = vst [vmem:[%s10 + $0x70] sm:$0xff] %v6199
  %6267 = vst [vmem:[%s10 + $0x78] sm:$0xff] %v6202
  %6268 = vst [vmem:[%s10 + $0x80] sm:$0xff] %v6205
  %6269 = vst [vmem:[%s10 + $0x88] sm:$0xff] %v6208
  %6270 = vst [vmem:[%s10 + $0x90] sm:$0xff] %v6211
  %6271 = vst [vmem:[%s10 + $0x98] sm:$0xff] %v6214
  %6272 = vst [vmem:[%s10 + $0xa0] sm:$0xff] %v6217
  %6273 = vst [vmem:[%s10 + $0xa8] sm:$0xff] %v6220
  %6274 = vst [vmem:[%s10 + $0xb0] sm:$0xff] %v6223
  %6275 = vst [vmem:[%s10 + $0xb8] sm:$0xff] %v6226
  %6276 = vst [vmem:[%s10 + $0xc0] sm:$0xff] %v6229
  %6277 = vst [vmem:[%s10 + $0xc8] sm:$0xff] %v6232
  %6278 = vst [vmem:[%s10 + $0xd0] sm:$0xff] %v6235
  %6279 = vst [vmem:[%s10 + $0xd8] sm:$0xff] %v6238
  %6280 = vst [vmem:[%s10 + $0xe0] sm:$0xff] %v6241
  %6281 = vst [vmem:[%s10 + $0xe8] sm:$0xff] %v6244
  %6282 = vst [vmem:[%s10 + $0xf0] sm:$0xff] %v6247
  %6283 = vst [vmem:[%s10 + $0xf8] sm:$0xff] %v6250
  %v6284 = vlaneseq
  %v6285 = vand.u32 %v6284, 127
  %v6286 = vld [vmem:[%s1] sm:$0xff]
  %v6287 = vld [vmem:[%s1 + $0x8] sm:$0xff]
  %v6288 = vld [vmem:[%s1 + $0x10] sm:$0xff]
  %v6289 = vld [vmem:[%s1 + $0x18] sm:$0xff]
  %v6290 = vld [vmem:[%s1 + $0x20] sm:$0xff]
  %v6291 = vld [vmem:[%s1 + $0x28] sm:$0xff]
  %v6292 = vld [vmem:[%s1 + $0x30] sm:$0xff]
  %v6293 = vld [vmem:[%s1 + $0x38] sm:$0xff]
  %v6294 = vld [vmem:[%s1 + $0x40] sm:$0xff]
  %v6295 = vld [vmem:[%s1 + $0x48] sm:$0xff]
  %v6296 = vld [vmem:[%s1 + $0x50] sm:$0xff]
  %v6297 = vld [vmem:[%s1 + $0x58] sm:$0xff]
  %v6298 = vld [vmem:[%s1 + $0x60] sm:$0xff]
  %v6299 = vld [vmem:[%s1 + $0x68] sm:$0xff]
  %v6300 = vld [vmem:[%s1 + $0x70] sm:$0xff]
  %v6301 = vld [vmem:[%s1 + $0x78] sm:$0xff]
  %v6302 = vld [vmem:[%s1 + $0x80] sm:$0xff]
  %v6303 = vld [vmem:[%s1 + $0x88] sm:$0xff]
  %v6304 = vld [vmem:[%s1 + $0x90] sm:$0xff]
  %v6305 = vld [vmem:[%s1 + $0x98] sm:$0xff]
  %v6306 = vld [vmem:[%s1 + $0xa0] sm:$0xff]
  %v6307 = vld [vmem:[%s1 + $0xa8] sm:$0xff]
  %v6308 = vld [vmem:[%s1 + $0xb0] sm:$0xff]
  %v6309 = vld [vmem:[%s1 + $0xb8] sm:$0xff]
  %v6310 = vld [vmem:[%s1 + $0xc0] sm:$0xff]
  %v6311 = vld [vmem:[%s1 + $0xc8] sm:$0xff]
  %v6312 = vld [vmem:[%s1 + $0xd0] sm:$0xff]
  %v6313 = vld [vmem:[%s1 + $0xd8] sm:$0xff]
  %v6314 = vld [vmem:[%s1 + $0xe0] sm:$0xff]
  %v6315 = vld [vmem:[%s1 + $0xe8] sm:$0xff]
  %v6316 = vld [vmem:[%s1 + $0xf0] sm:$0xff]
  %v6317 = vld [vmem:[%s1 + $0xf8] sm:$0xff]
  %6318 = vset.pattern.permute.xlu0 0
  %6319 = vperm.xlu0 %6318, %v6286
  %v6320 = vpop.permute.xlu0 %6319
  %6321 = vset.pattern.permute.xlu0 0
  %6322 = vperm.xlu0 %6321, %v6287
  %v6323 = vpop.permute.xlu0 %6322
  %6324 = vset.pattern.permute.xlu0 0
  %6325 = vperm.xlu0 %6324, %v6288
  %v6326 = vpop.permute.xlu0 %6325
  %6327 = vset.pattern.permute.xlu0 0
  %6328 = vperm.xlu0 %6327, %v6289
  %v6329 = vpop.permute.xlu0 %6328
  %6330 = vset.pattern.permute.xlu0 0
  %6331 = vperm.xlu0 %6330, %v6290
  %v6332 = vpop.permute.xlu0 %6331
  %6333 = vset.pattern.permute.xlu0 0
  %6334 = vperm.xlu0 %6333, %v6291
  %v6335 = vpop.permute.xlu0 %6334
  %6336 = vset.pattern.permute.xlu0 0
  %6337 = vperm.xlu0 %6336, %v6292
  %v6338 = vpop.permute.xlu0 %6337
  %6339 = vset.pattern.permute.xlu0 0
  %6340 = vperm.xlu0 %6339, %v6293
  %v6341 = vpop.permute.xlu0 %6340
  %6342 = vset.pattern.permute.xlu0 0
  %6343 = vperm.xlu0 %6342, %v6294
  %v6344 = vpop.permute.xlu0 %6343
  %6345 = vset.pattern.permute.xlu0 0
  %6346 = vperm.xlu0 %6345, %v6295
  %v6347 = vpop.permute.xlu0 %6346
  %6348 = vset.pattern.permute.xlu0 0
  %6349 = vperm.xlu0 %6348, %v6296
  %v6350 = vpop.permute.xlu0 %6349
  %6351 = vset.pattern.permute.xlu0 0
  %6352 = vperm.xlu0 %6351, %v6297
  %v6353 = vpop.permute.xlu0 %6352
  %6354 = vset.pattern.permute.xlu0 0
  %6355 = vperm.xlu0 %6354, %v6298
  %v6356 = vpop.permute.xlu0 %6355
  %6357 = vset.pattern.permute.xlu0 0
  %6358 = vperm.xlu0 %6357, %v6299
  %v6359 = vpop.permute.xlu0 %6358
  %6360 = vset.pattern.permute.xlu0 0
  %6361 = vperm.xlu0 %6360, %v6300
  %v6362 = vpop.permute.xlu0 %6361
  %6363 = vset.pattern.permute.xlu0 0
  %6364 = vperm.xlu0 %6363, %v6301
  %v6365 = vpop.permute.xlu0 %6364
  %6366 = vset.pattern.permute.xlu0 0
  %6367 = vperm.xlu0 %6366, %v6302
  %v6368 = vpop.permute.xlu0 %6367
  %6369 = vset.pattern.permute.xlu0 0
  %6370 = vperm.xlu0 %6369, %v6303
  %v6371 = vpop.permute.xlu0 %6370
  %6372 = vset.pattern.permute.xlu0 0
  %6373 = vperm.xlu0 %6372, %v6304
  %v6374 = vpop.permute.xlu0 %6373
  %6375 = vset.pattern.permute.xlu0 0
  %6376 = vperm.xlu0 %6375, %v6305
  %v6377 = vpop.permute.xlu0 %6376
  %6378 = vset.pattern.permute.xlu0 0
  %6379 = vperm.xlu0 %6378, %v6306
  %v6380 = vpop.permute.xlu0 %6379
  %6381 = vset.pattern.permute.xlu0 0
  %6382 = vperm.xlu0 %6381, %v6307
  %v6383 = vpop.permute.xlu0 %6382
  %6384 = vset.pattern.permute.xlu0 0
  %6385 = vperm.xlu0 %6384, %v6308
  %v6386 = vpop.permute.xlu0 %6385
  %6387 = vset.pattern.permute.xlu0 0
  %6388 = vperm.xlu0 %6387, %v6309
  %v6389 = vpop.permute.xlu0 %6388
  %6390 = vset.pattern.permute.xlu0 0
  %6391 = vperm.xlu0 %6390, %v6310
  %v6392 = vpop.permute.xlu0 %6391
  %6393 = vset.pattern.permute.xlu0 0
  %6394 = vperm.xlu0 %6393, %v6311
  %v6395 = vpop.permute.xlu0 %6394
  %6396 = vset.pattern.permute.xlu0 0
  %6397 = vperm.xlu0 %6396, %v6312
  %v6398 = vpop.permute.xlu0 %6397
  %6399 = vset.pattern.permute.xlu0 0
  %6400 = vperm.xlu0 %6399, %v6313
  %v6401 = vpop.permute.xlu0 %6400
  %6402 = vset.pattern.permute.xlu0 0
  %6403 = vperm.xlu0 %6402, %v6314
  %v6404 = vpop.permute.xlu0 %6403
  %6405 = vset.pattern.permute.xlu0 0
  %6406 = vperm.xlu0 %6405, %v6315
  %v6407 = vpop.permute.xlu0 %6406
  %6408 = vset.pattern.permute.xlu0 0
  %6409 = vperm.xlu0 %6408, %v6316
  %v6410 = vpop.permute.xlu0 %6409
  %6411 = vset.pattern.permute.xlu0 0
  %6412 = vperm.xlu0 %6411, %v6317
  %v6413 = vpop.permute.xlu0 %6412
  %vm6414 = vcmp.eq.s32.totalorder %v6285, %v6320
  %vm6415 = vcmp.eq.s32.totalorder %v6285, %v6323
  %vm6416 = vcmp.eq.s32.totalorder %v6285, %v6326
  %vm6417 = vcmp.eq.s32.totalorder %v6285, %v6329
  %vm6418 = vcmp.eq.s32.totalorder %v6285, %v6332
  %vm6419 = vcmp.eq.s32.totalorder %v6285, %v6335
  %vm6420 = vcmp.eq.s32.totalorder %v6285, %v6338
  %vm6421 = vcmp.eq.s32.totalorder %v6285, %v6341
  %vm6422 = vcmp.eq.s32.totalorder %v6285, %v6344
  %vm6423 = vcmp.eq.s32.totalorder %v6285, %v6347
  %vm6424 = vcmp.eq.s32.totalorder %v6285, %v6350
  %vm6425 = vcmp.eq.s32.totalorder %v6285, %v6353
  %vm6426 = vcmp.eq.s32.totalorder %v6285, %v6356
  %vm6427 = vcmp.eq.s32.totalorder %v6285, %v6359
  %vm6428 = vcmp.eq.s32.totalorder %v6285, %v6362
  %vm6429 = vcmp.eq.s32.totalorder %v6285, %v6365
  %vm6430 = vcmp.eq.s32.totalorder %v6285, %v6368
  %vm6431 = vcmp.eq.s32.totalorder %v6285, %v6371
  %vm6432 = vcmp.eq.s32.totalorder %v6285, %v6374
  %vm6433 = vcmp.eq.s32.totalorder %v6285, %v6377
  %vm6434 = vcmp.eq.s32.totalorder %v6285, %v6380
  %vm6435 = vcmp.eq.s32.totalorder %v6285, %v6383
  %vm6436 = vcmp.eq.s32.totalorder %v6285, %v6386
  %vm6437 = vcmp.eq.s32.totalorder %v6285, %v6389
  %vm6438 = vcmp.eq.s32.totalorder %v6285, %v6392
  %vm6439 = vcmp.eq.s32.totalorder %v6285, %v6395
  %vm6440 = vcmp.eq.s32.totalorder %v6285, %v6398
  %vm6441 = vcmp.eq.s32.totalorder %v6285, %v6401
  %vm6442 = vcmp.eq.s32.totalorder %v6285, %v6404
  %vm6443 = vcmp.eq.s32.totalorder %v6285, %v6407
  %vm6444 = vcmp.eq.s32.totalorder %v6285, %v6410
  %vm6445 = vcmp.eq.s32.totalorder %v6285, %v6413
  %v6446 = vsel %vm6414, 1, 0
  %v6447 = vsel %vm6415, 1, 0
  %v6448 = vsel %vm6416, 1, 0
  %v6449 = vsel %vm6417, 1, 0
  %v6450 = vsel %vm6418, 1, 0
  %v6451 = vsel %vm6419, 1, 0
  %v6452 = vsel %vm6420, 1, 0
  %v6453 = vsel %vm6421, 1, 0
  %v6454 = vsel %vm6422, 1, 0
  %v6455 = vsel %vm6423, 1, 0
  %v6456 = vsel %vm6424, 1, 0
  %v6457 = vsel %vm6425, 1, 0
  %v6458 = vsel %vm6426, 1, 0
  %v6459 = vsel %vm6427, 1, 0
  %v6460 = vsel %vm6428, 1, 0
  %v6461 = vsel %vm6429, 1, 0
  %v6462 = vsel %vm6430, 1, 0
  %v6463 = vsel %vm6431, 1, 0
  %v6464 = vsel %vm6432, 1, 0
  %v6465 = vsel %vm6433, 1, 0
  %v6466 = vsel %vm6434, 1, 0
  %v6467 = vsel %vm6435, 1, 0
  %v6468 = vsel %vm6436, 1, 0
  %v6469 = vsel %vm6437, 1, 0
  %v6470 = vsel %vm6438, 1, 0
  %v6471 = vsel %vm6439, 1, 0
  %v6472 = vsel %vm6440, 1, 0
  %v6473 = vsel %vm6441, 1, 0
  %v6474 = vsel %vm6442, 1, 0
  %v6475 = vsel %vm6443, 1, 0
  %v6476 = vsel %vm6444, 1, 0
  %v6477 = vsel %vm6445, 1, 0
  %v6478 = vcvt.s32.f32 %v6446
  %v6479 = vcvt.s32.f32 %v6447
  %v6480 = vcvt.s32.f32 %v6448
  %v6481 = vcvt.s32.f32 %v6449
  %v6482 = vcvt.s32.f32 %v6450
  %v6483 = vcvt.s32.f32 %v6451
  %v6484 = vcvt.s32.f32 %v6452
  %v6485 = vcvt.s32.f32 %v6453
  %v6486 = vcvt.s32.f32 %v6454
  %v6487 = vcvt.s32.f32 %v6455
  %v6488 = vcvt.s32.f32 %v6456
  %v6489 = vcvt.s32.f32 %v6457
  %v6490 = vcvt.s32.f32 %v6458
  %v6491 = vcvt.s32.f32 %v6459
  %v6492 = vcvt.s32.f32 %v6460
  %v6493 = vcvt.s32.f32 %v6461
  %v6494 = vcvt.s32.f32 %v6462
  %v6495 = vcvt.s32.f32 %v6463
  %v6496 = vcvt.s32.f32 %v6464
  %v6497 = vcvt.s32.f32 %v6465
  %v6498 = vcvt.s32.f32 %v6466
  %v6499 = vcvt.s32.f32 %v6467
  %v6500 = vcvt.s32.f32 %v6468
  %v6501 = vcvt.s32.f32 %v6469
  %v6502 = vcvt.s32.f32 %v6470
  %v6503 = vcvt.s32.f32 %v6471
  %v6504 = vcvt.s32.f32 %v6472
  %v6505 = vcvt.s32.f32 %v6473
  %v6506 = vcvt.s32.f32 %v6474
  %v6507 = vcvt.s32.f32 %v6475
  %v6508 = vcvt.s32.f32 %v6476
  %v6509 = vcvt.s32.f32 %v6477
  %v6510 = vld [vmem:[%s2] sm:$0xff]
  %v6511 = vld [vmem:[%s2 + $0x8] sm:$0xff]
  %v6512 = vld [vmem:[%s2 + $0x10] sm:$0xff]
  %v6513 = vld [vmem:[%s2 + $0x18] sm:$0xff]
  %v6514 = vld [vmem:[%s2 + $0x20] sm:$0xff]
  %v6515 = vld [vmem:[%s2 + $0x28] sm:$0xff]
  %v6516 = vld [vmem:[%s2 + $0x30] sm:$0xff]
  %v6517 = vld [vmem:[%s2 + $0x38] sm:$0xff]
  %v6518 = vld [vmem:[%s2 + $0x40] sm:$0xff]
  %v6519 = vld [vmem:[%s2 + $0x48] sm:$0xff]
  %v6520 = vld [vmem:[%s2 + $0x50] sm:$0xff]
  %v6521 = vld [vmem:[%s2 + $0x58] sm:$0xff]
  %v6522 = vld [vmem:[%s2 + $0x60] sm:$0xff]
  %v6523 = vld [vmem:[%s2 + $0x68] sm:$0xff]
  %v6524 = vld [vmem:[%s2 + $0x70] sm:$0xff]
  %v6525 = vld [vmem:[%s2 + $0x78] sm:$0xff]
  %v6526 = vld [vmem:[%s2 + $0x80] sm:$0xff]
  %v6527 = vld [vmem:[%s2 + $0x88] sm:$0xff]
  %v6528 = vld [vmem:[%s2 + $0x90] sm:$0xff]
  %v6529 = vld [vmem:[%s2 + $0x98] sm:$0xff]
  %v6530 = vld [vmem:[%s2 + $0xa0] sm:$0xff]
  %v6531 = vld [vmem:[%s2 + $0xa8] sm:$0xff]
  %v6532 = vld [vmem:[%s2 + $0xb0] sm:$0xff]
  %v6533 = vld [vmem:[%s2 + $0xb8] sm:$0xff]
  %v6534 = vld [vmem:[%s2 + $0xc0] sm:$0xff]
  %v6535 = vld [vmem:[%s2 + $0xc8] sm:$0xff]
  %v6536 = vld [vmem:[%s2 + $0xd0] sm:$0xff]
  %v6537 = vld [vmem:[%s2 + $0xd8] sm:$0xff]
  %v6538 = vld [vmem:[%s2 + $0xe0] sm:$0xff]
  %v6539 = vld [vmem:[%s2 + $0xe8] sm:$0xff]
  %v6540 = vld [vmem:[%s2 + $0xf0] sm:$0xff]
  %v6541 = vld [vmem:[%s2 + $0xf8] sm:$0xff]
  %v6542 = vadd.s32 %v6510, 8
  %v6543 = vadd.s32 %v6511, 8
  %v6544 = vadd.s32 %v6512, 8
  %v6545 = vadd.s32 %v6513, 8
  %v6546 = vadd.s32 %v6514, 8
  %v6547 = vadd.s32 %v6515, 8
  %v6548 = vadd.s32 %v6516, 8
  %v6549 = vadd.s32 %v6517, 8
  %v6550 = vadd.s32 %v6518, 8
  %v6551 = vadd.s32 %v6519, 8
  %v6552 = vadd.s32 %v6520, 8
  %v6553 = vadd.s32 %v6521, 8
  %v6554 = vadd.s32 %v6522, 8
  %v6555 = vadd.s32 %v6523, 8
  %v6556 = vadd.s32 %v6524, 8
  %v6557 = vadd.s32 %v6525, 8
  %v6558 = vadd.s32 %v6526, 8
  %v6559 = vadd.s32 %v6527, 8
  %v6560 = vadd.s32 %v6528, 8
  %v6561 = vadd.s32 %v6529, 8
  %v6562 = vadd.s32 %v6530, 8
  %v6563 = vadd.s32 %v6531, 8
  %v6564 = vadd.s32 %v6532, 8
  %v6565 = vadd.s32 %v6533, 8
  %v6566 = vadd.s32 %v6534, 8
  %v6567 = vadd.s32 %v6535, 8
  %v6568 = vadd.s32 %v6536, 8
  %v6569 = vadd.s32 %v6537, 8
  %v6570 = vadd.s32 %v6538, 8
  %v6571 = vadd.s32 %v6539, 8
  %v6572 = vadd.s32 %v6540, 8
  %v6573 = vadd.s32 %v6541, 8
  %6574 = vset.pattern.permute.xlu0 0
  %6575 = vperm.xlu0 %6574, %v6542
  %v6576 = vpop.permute.xlu0 %6575
  %6577 = vset.pattern.permute.xlu0 0
  %6578 = vperm.xlu0 %6577, %v6543
  %v6579 = vpop.permute.xlu0 %6578
  %6580 = vset.pattern.permute.xlu0 0
  %6581 = vperm.xlu0 %6580, %v6544
  %v6582 = vpop.permute.xlu0 %6581
  %6583 = vset.pattern.permute.xlu0 0
  %6584 = vperm.xlu0 %6583, %v6545
  %v6585 = vpop.permute.xlu0 %6584
  %6586 = vset.pattern.permute.xlu0 0
  %6587 = vperm.xlu0 %6586, %v6546
  %v6588 = vpop.permute.xlu0 %6587
  %6589 = vset.pattern.permute.xlu0 0
  %6590 = vperm.xlu0 %6589, %v6547
  %v6591 = vpop.permute.xlu0 %6590
  %6592 = vset.pattern.permute.xlu0 0
  %6593 = vperm.xlu0 %6592, %v6548
  %v6594 = vpop.permute.xlu0 %6593
  %6595 = vset.pattern.permute.xlu0 0
  %6596 = vperm.xlu0 %6595, %v6549
  %v6597 = vpop.permute.xlu0 %6596
  %6598 = vset.pattern.permute.xlu0 0
  %6599 = vperm.xlu0 %6598, %v6550
  %v6600 = vpop.permute.xlu0 %6599
  %6601 = vset.pattern.permute.xlu0 0
  %6602 = vperm.xlu0 %6601, %v6551
  %v6603 = vpop.permute.xlu0 %6602
  %6604 = vset.pattern.permute.xlu0 0
  %6605 = vperm.xlu0 %6604, %v6552
  %v6606 = vpop.permute.xlu0 %6605
  %6607 = vset.pattern.permute.xlu0 0
  %6608 = vperm.xlu0 %6607, %v6553
  %v6609 = vpop.permute.xlu0 %6608
  %6610 = vset.pattern.permute.xlu0 0
  %6611 = vperm.xlu0 %6610, %v6554
  %v6612 = vpop.permute.xlu0 %6611
  %6613 = vset.pattern.permute.xlu0 0
  %6614 = vperm.xlu0 %6613, %v6555
  %v6615 = vpop.permute.xlu0 %6614
  %6616 = vset.pattern.permute.xlu0 0
  %6617 = vperm.xlu0 %6616, %v6556
  %v6618 = vpop.permute.xlu0 %6617
  %6619 = vset.pattern.permute.xlu0 0
  %6620 = vperm.xlu0 %6619, %v6557
  %v6621 = vpop.permute.xlu0 %6620
  %6622 = vset.pattern.permute.xlu0 0
  %6623 = vperm.xlu0 %6622, %v6558
  %v6624 = vpop.permute.xlu0 %6623
  %6625 = vset.pattern.permute.xlu0 0
  %6626 = vperm.xlu0 %6625, %v6559
  %v6627 = vpop.permute.xlu0 %6626
  %6628 = vset.pattern.permute.xlu0 0
  %6629 = vperm.xlu0 %6628, %v6560
  %v6630 = vpop.permute.xlu0 %6629
  %6631 = vset.pattern.permute.xlu0 0
  %6632 = vperm.xlu0 %6631, %v6561
  %v6633 = vpop.permute.xlu0 %6632
  %6634 = vset.pattern.permute.xlu0 0
  %6635 = vperm.xlu0 %6634, %v6562
  %v6636 = vpop.permute.xlu0 %6635
  %6637 = vset.pattern.permute.xlu0 0
  %6638 = vperm.xlu0 %6637, %v6563
  %v6639 = vpop.permute.xlu0 %6638
  %6640 = vset.pattern.permute.xlu0 0
  %6641 = vperm.xlu0 %6640, %v6564
  %v6642 = vpop.permute.xlu0 %6641
  %6643 = vset.pattern.permute.xlu0 0
  %6644 = vperm.xlu0 %6643, %v6565
  %v6645 = vpop.permute.xlu0 %6644
  %6646 = vset.pattern.permute.xlu0 0
  %6647 = vperm.xlu0 %6646, %v6566
  %v6648 = vpop.permute.xlu0 %6647
  %6649 = vset.pattern.permute.xlu0 0
  %6650 = vperm.xlu0 %6649, %v6567
  %v6651 = vpop.permute.xlu0 %6650
  %6652 = vset.pattern.permute.xlu0 0
  %6653 = vperm.xlu0 %6652, %v6568
  %v6654 = vpop.permute.xlu0 %6653
  %6655 = vset.pattern.permute.xlu0 0
  %6656 = vperm.xlu0 %6655, %v6569
  %v6657 = vpop.permute.xlu0 %6656
  %6658 = vset.pattern.permute.xlu0 0
  %6659 = vperm.xlu0 %6658, %v6570
  %v6660 = vpop.permute.xlu0 %6659
  %6661 = vset.pattern.permute.xlu0 0
  %6662 = vperm.xlu0 %6661, %v6571
  %v6663 = vpop.permute.xlu0 %6662
  %6664 = vset.pattern.permute.xlu0 0
  %6665 = vperm.xlu0 %6664, %v6572
  %v6666 = vpop.permute.xlu0 %6665
  %6667 = vset.pattern.permute.xlu0 0
  %6668 = vperm.xlu0 %6667, %v6573
  %v6669 = vpop.permute.xlu0 %6668
  %vm6670 = vcmp.eq.s32.totalorder %v6285, %v6576
  %vm6671 = vcmp.eq.s32.totalorder %v6285, %v6579
  %vm6672 = vcmp.eq.s32.totalorder %v6285, %v6582
  %vm6673 = vcmp.eq.s32.totalorder %v6285, %v6585
  %vm6674 = vcmp.eq.s32.totalorder %v6285, %v6588
  %vm6675 = vcmp.eq.s32.totalorder %v6285, %v6591
  %vm6676 = vcmp.eq.s32.totalorder %v6285, %v6594
  %vm6677 = vcmp.eq.s32.totalorder %v6285, %v6597
  %vm6678 = vcmp.eq.s32.totalorder %v6285, %v6600
  %vm6679 = vcmp.eq.s32.totalorder %v6285, %v6603
  %vm6680 = vcmp.eq.s32.totalorder %v6285, %v6606
  %vm6681 = vcmp.eq.s32.totalorder %v6285, %v6609
  %vm6682 = vcmp.eq.s32.totalorder %v6285, %v6612
  %vm6683 = vcmp.eq.s32.totalorder %v6285, %v6615
  %vm6684 = vcmp.eq.s32.totalorder %v6285, %v6618
  %vm6685 = vcmp.eq.s32.totalorder %v6285, %v6621
  %vm6686 = vcmp.eq.s32.totalorder %v6285, %v6624
  %vm6687 = vcmp.eq.s32.totalorder %v6285, %v6627
  %vm6688 = vcmp.eq.s32.totalorder %v6285, %v6630
  %vm6689 = vcmp.eq.s32.totalorder %v6285, %v6633
  %vm6690 = vcmp.eq.s32.totalorder %v6285, %v6636
  %vm6691 = vcmp.eq.s32.totalorder %v6285, %v6639
  %vm6692 = vcmp.eq.s32.totalorder %v6285, %v6642
  %vm6693 = vcmp.eq.s32.totalorder %v6285, %v6645
  %vm6694 = vcmp.eq.s32.totalorder %v6285, %v6648
  %vm6695 = vcmp.eq.s32.totalorder %v6285, %v6651
  %vm6696 = vcmp.eq.s32.totalorder %v6285, %v6654
  %vm6697 = vcmp.eq.s32.totalorder %v6285, %v6657
  %vm6698 = vcmp.eq.s32.totalorder %v6285, %v6660
  %vm6699 = vcmp.eq.s32.totalorder %v6285, %v6663
  %vm6700 = vcmp.eq.s32.totalorder %v6285, %v6666
  %vm6701 = vcmp.eq.s32.totalorder %v6285, %v6669
  %v6702 = vsel %vm6670, 1, 0
  %v6703 = vsel %vm6671, 1, 0
  %v6704 = vsel %vm6672, 1, 0
  %v6705 = vsel %vm6673, 1, 0
  %v6706 = vsel %vm6674, 1, 0
  %v6707 = vsel %vm6675, 1, 0
  %v6708 = vsel %vm6676, 1, 0
  %v6709 = vsel %vm6677, 1, 0
  %v6710 = vsel %vm6678, 1, 0
  %v6711 = vsel %vm6679, 1, 0
  %v6712 = vsel %vm6680, 1, 0
  %v6713 = vsel %vm6681, 1, 0
  %v6714 = vsel %vm6682, 1, 0
  %v6715 = vsel %vm6683, 1, 0
  %v6716 = vsel %vm6684, 1, 0
  %v6717 = vsel %vm6685, 1, 0
  %v6718 = vsel %vm6686, 1, 0
  %v6719 = vsel %vm6687, 1, 0
  %v6720 = vsel %vm6688, 1, 0
  %v6721 = vsel %vm6689, 1, 0
  %v6722 = vsel %vm6690, 1, 0
  %v6723 = vsel %vm6691, 1, 0
  %v6724 = vsel %vm6692, 1, 0
  %v6725 = vsel %vm6693, 1, 0
  %v6726 = vsel %vm6694, 1, 0
  %v6727 = vsel %vm6695, 1, 0
  %v6728 = vsel %vm6696, 1, 0
  %v6729 = vsel %vm6697, 1, 0
  %v6730 = vsel %vm6698, 1, 0
  %v6731 = vsel %vm6699, 1, 0
  %v6732 = vsel %vm6700, 1, 0
  %v6733 = vsel %vm6701, 1, 0
  %v6734 = vcvt.s32.f32 %v6702
  %v6735 = vcvt.s32.f32 %v6703
  %v6736 = vcvt.s32.f32 %v6704
  %v6737 = vcvt.s32.f32 %v6705
  %v6738 = vcvt.s32.f32 %v6706
  %v6739 = vcvt.s32.f32 %v6707
  %v6740 = vcvt.s32.f32 %v6708
  %v6741 = vcvt.s32.f32 %v6709
  %v6742 = vcvt.s32.f32 %v6710
  %v6743 = vcvt.s32.f32 %v6711
  %v6744 = vcvt.s32.f32 %v6712
  %v6745 = vcvt.s32.f32 %v6713
  %v6746 = vcvt.s32.f32 %v6714
  %v6747 = vcvt.s32.f32 %v6715
  %v6748 = vcvt.s32.f32 %v6716
  %v6749 = vcvt.s32.f32 %v6717
  %v6750 = vcvt.s32.f32 %v6718
  %v6751 = vcvt.s32.f32 %v6719
  %v6752 = vcvt.s32.f32 %v6720
  %v6753 = vcvt.s32.f32 %v6721
  %v6754 = vcvt.s32.f32 %v6722
  %v6755 = vcvt.s32.f32 %v6723
  %v6756 = vcvt.s32.f32 %v6724
  %v6757 = vcvt.s32.f32 %v6725
  %v6758 = vcvt.s32.f32 %v6726
  %v6759 = vcvt.s32.f32 %v6727
  %v6760 = vcvt.s32.f32 %v6728
  %v6761 = vcvt.s32.f32 %v6729
  %v6762 = vcvt.s32.f32 %v6730
  %v6763 = vcvt.s32.f32 %v6731
  %v6764 = vcvt.s32.f32 %v6732
  %v6765 = vcvt.s32.f32 %v6733
  %v6766 = vadd.f32 %v6478, %v6734
  %v6767 = vadd.f32 %v6479, %v6735
  %v6768 = vadd.f32 %v6480, %v6736
  %v6769 = vadd.f32 %v6481, %v6737
  %v6770 = vadd.f32 %v6482, %v6738
  %v6771 = vadd.f32 %v6483, %v6739
  %v6772 = vadd.f32 %v6484, %v6740
  %v6773 = vadd.f32 %v6485, %v6741
  %v6774 = vadd.f32 %v6486, %v6742
  %v6775 = vadd.f32 %v6487, %v6743
  %v6776 = vadd.f32 %v6488, %v6744
  %v6777 = vadd.f32 %v6489, %v6745
  %v6778 = vadd.f32 %v6490, %v6746
  %v6779 = vadd.f32 %v6491, %v6747
  %v6780 = vadd.f32 %v6492, %v6748
  %v6781 = vadd.f32 %v6493, %v6749
  %v6782 = vadd.f32 %v6494, %v6750
  %v6783 = vadd.f32 %v6495, %v6751
  %v6784 = vadd.f32 %v6496, %v6752
  %v6785 = vadd.f32 %v6497, %v6753
  %v6786 = vadd.f32 %v6498, %v6754
  %v6787 = vadd.f32 %v6499, %v6755
  %v6788 = vadd.f32 %v6500, %v6756
  %v6789 = vadd.f32 %v6501, %v6757
  %v6790 = vadd.f32 %v6502, %v6758
  %v6791 = vadd.f32 %v6503, %v6759
  %v6792 = vadd.f32 %v6504, %v6760
  %v6793 = vadd.f32 %v6505, %v6761
  %v6794 = vadd.f32 %v6506, %v6762
  %v6795 = vadd.f32 %v6507, %v6763
  %v6796 = vadd.f32 %v6508, %v6764
  %v6797 = vadd.f32 %v6509, %v6765
  %v6798 = vld [vmem:[%s9] sm:$0xff]
  %v6799 = vld [vmem:[%s9 + $0x8] sm:$0xff]
  %v6800 = vld [vmem:[%s9 + $0x10] sm:$0xff]
  %v6801 = vld [vmem:[%s9 + $0x18] sm:$0xff]
  %v6802 = vld [vmem:[%s9 + $0x20] sm:$0xff]
  %v6803 = vld [vmem:[%s9 + $0x28] sm:$0xff]
  %vm6804 = vcmask 195584
  %v6806 = vsel %vm6804, %v6766, 0
  %v6809 = vsel %vm6804, %v6767, 0
  %v6812 = vsel %vm6804, %v6768, 0
  %v6815 = vsel %vm6804, %v6769, 0
  %v6818 = vsel %vm6804, %v6770, 0
  %v6821 = vsel %vm6804, %v6771, 0
  %v6824 = vsel %vm6804, %v6772, 0
  %v6827 = vsel %vm6804, %v6773, 0
  %v6830 = vsel %vm6804, %v6774, 0
  %v6833 = vsel %vm6804, %v6775, 0
  %v6836 = vsel %vm6804, %v6776, 0
  %v6839 = vsel %vm6804, %v6777, 0
  %v6842 = vsel %vm6804, %v6778, 0
  %v6845 = vsel %vm6804, %v6779, 0
  %v6848 = vsel %vm6804, %v6780, 0
  %v6851 = vsel %vm6804, %v6781, 0
  %v6854 = vsel %vm6804, %v6782, 0
  %v6857 = vsel %vm6804, %v6783, 0
  %v6860 = vsel %vm6804, %v6784, 0
  %v6863 = vsel %vm6804, %v6785, 0
  %v6866 = vsel %vm6804, %v6786, 0
  %v6869 = vsel %vm6804, %v6787, 0
  %v6872 = vsel %vm6804, %v6788, 0
  %v6875 = vsel %vm6804, %v6789, 0
  %v6878 = vsel %vm6804, %v6790, 0
  %v6881 = vsel %vm6804, %v6791, 0
  %v6884 = vsel %vm6804, %v6792, 0
  %v6887 = vsel %vm6804, %v6793, 0
  %v6890 = vsel %vm6804, %v6794, 0
  %v6893 = vsel %vm6804, %v6795, 0
  %v6896 = vsel %vm6804, %v6796, 0
  %v6899 = vsel %vm6804, %v6797, 0
  %6901 = vmatpush.msra.mxu0 0.0
  %6902 = vmatpush.msra.mxu0 0.0
  %6903 = vmatpush.msra.mxu0 0.0
  %6904 = vmatpush.msra.mxu0 0.0
  %6905 = vmatpush.msra.mxu0 0.0
  %6906 = vmatpush.msra.mxu0 0.0
  %6907 = vmatpush.msra.mxu0 0.0
  %6908 = vmatpush.msra.mxu0 0.0
  %6909 = vmatpush.msra.mxu0 0.0
  %6910 = vmatpush.msra.mxu0 0.0
  %6911 = vmatpush.msra.mxu0 0.0
  %6912 = vmatpush.msra.mxu0 0.0
  %6913 = vmatpush.msra.mxu0 0.0
  %6914 = vmatpush.msra.mxu0 %v6802
  %6915 = vmatpush.msra.mxu0 %v6800
  %6916 = vmatpush.msra.mxu0 %v6798
  %6917 = vmatmul.f32.gmra.mxu0 %v6806
  %v6918 = vpop.f32.mrf.mxu0
  %v6919 = vadd.f32 0.0, %v6918
  %6920 = vmatmul.f32.gmra.mxu0 %v6809
  %v6921 = vpop.f32.mrf.mxu0
  %v6922 = vadd.f32 0.0, %v6921
  %6923 = vmatmul.f32.gmra.mxu0 %v6812
  %v6924 = vpop.f32.mrf.mxu0
  %v6925 = vadd.f32 0.0, %v6924
  %6926 = vmatmul.f32.gmra.mxu0 %v6815
  %v6927 = vpop.f32.mrf.mxu0
  %v6928 = vadd.f32 0.0, %v6927
  %6929 = vmatmul.f32.gmra.mxu0 %v6818
  %v6930 = vpop.f32.mrf.mxu0
  %v6931 = vadd.f32 0.0, %v6930
  %6932 = vmatmul.f32.gmra.mxu0 %v6821
  %v6933 = vpop.f32.mrf.mxu0
  %v6934 = vadd.f32 0.0, %v6933
  %6935 = vmatmul.f32.gmra.mxu0 %v6824
  %v6936 = vpop.f32.mrf.mxu0
  %v6937 = vadd.f32 0.0, %v6936
  %6938 = vmatmul.f32.gmra.mxu0 %v6827
  %v6939 = vpop.f32.mrf.mxu0
  %v6940 = vadd.f32 0.0, %v6939
  %6941 = vmatmul.f32.gmra.mxu0 %v6830
  %v6942 = vpop.f32.mrf.mxu0
  %v6943 = vadd.f32 0.0, %v6942
  %6944 = vmatmul.f32.gmra.mxu0 %v6833
  %v6945 = vpop.f32.mrf.mxu0
  %v6946 = vadd.f32 0.0, %v6945
  %6947 = vmatmul.f32.gmra.mxu0 %v6836
  %v6948 = vpop.f32.mrf.mxu0
  %v6949 = vadd.f32 0.0, %v6948
  %6950 = vmatmul.f32.gmra.mxu0 %v6839
  %v6951 = vpop.f32.mrf.mxu0
  %v6952 = vadd.f32 0.0, %v6951
  %6953 = vmatmul.f32.gmra.mxu0 %v6842
  %v6954 = vpop.f32.mrf.mxu0
  %v6955 = vadd.f32 0.0, %v6954
  %6956 = vmatmul.f32.gmra.mxu0 %v6845
  %v6957 = vpop.f32.mrf.mxu0
  %v6958 = vadd.f32 0.0, %v6957
  %6959 = vmatmul.f32.gmra.mxu0 %v6848
  %v6960 = vpop.f32.mrf.mxu0
  %v6961 = vadd.f32 0.0, %v6960
  %6962 = vmatmul.f32.gmra.mxu0 %v6851
  %v6963 = vpop.f32.mrf.mxu0
  %v6964 = vadd.f32 0.0, %v6963
  %6965 = vmatmul.f32.gmra.mxu0 %v6854
  %v6966 = vpop.f32.mrf.mxu0
  %v6967 = vadd.f32 0.0, %v6966
  %6968 = vmatmul.f32.gmra.mxu0 %v6857
  %v6969 = vpop.f32.mrf.mxu0
  %v6970 = vadd.f32 0.0, %v6969
  %6971 = vmatmul.f32.gmra.mxu0 %v6860
  %v6972 = vpop.f32.mrf.mxu0
  %v6973 = vadd.f32 0.0, %v6972
  %6974 = vmatmul.f32.gmra.mxu0 %v6863
  %v6975 = vpop.f32.mrf.mxu0
  %v6976 = vadd.f32 0.0, %v6975
  %6977 = vmatmul.f32.gmra.mxu0 %v6866
  %v6978 = vpop.f32.mrf.mxu0
  %v6979 = vadd.f32 0.0, %v6978
  %6980 = vmatmul.f32.gmra.mxu0 %v6869
  %v6981 = vpop.f32.mrf.mxu0
  %v6982 = vadd.f32 0.0, %v6981
  %6983 = vmatmul.f32.gmra.mxu0 %v6872
  %v6984 = vpop.f32.mrf.mxu0
  %v6985 = vadd.f32 0.0, %v6984
  %6986 = vmatmul.f32.gmra.mxu0 %v6875
  %v6987 = vpop.f32.mrf.mxu0
  %v6988 = vadd.f32 0.0, %v6987
  %6989 = vmatmul.f32.gmra.mxu0 %v6878
  %v6990 = vpop.f32.mrf.mxu0
  %v6991 = vadd.f32 0.0, %v6990
  %6992 = vmatmul.f32.gmra.mxu0 %v6881
  %v6993 = vpop.f32.mrf.mxu0
  %v6994 = vadd.f32 0.0, %v6993
  %6995 = vmatmul.f32.gmra.mxu0 %v6884
  %v6996 = vpop.f32.mrf.mxu0
  %v6997 = vadd.f32 0.0, %v6996
  %6998 = vmatmul.f32.gmra.mxu0 %v6887
  %v6999 = vpop.f32.mrf.mxu0
  %v7000 = vadd.f32 0.0, %v6999
  %7001 = vmatmul.f32.gmra.mxu0 %v6890
  %v7002 = vpop.f32.mrf.mxu0
  %v7003 = vadd.f32 0.0, %v7002
  %7004 = vmatmul.f32.gmra.mxu0 %v6893
  %v7005 = vpop.f32.mrf.mxu0
  %v7006 = vadd.f32 0.0, %v7005
  %7007 = vmatmul.f32.gmra.mxu0 %v6896
  %v7008 = vpop.f32.mrf.mxu0
  %v7009 = vadd.f32 0.0, %v7008
  %7010 = vmatmul.f32.gmra.mxu0 %v6899
  %v7011 = vpop.f32.mrf.mxu0
  %v7012 = vadd.f32 0.0, %v7011
  %7013 = vdwg.mxu0
  %7014 = vmatpush.msra.mxu0 0.0
  %7015 = vmatpush.msra.mxu0 0.0
  %7016 = vmatpush.msra.mxu0 0.0
  %7017 = vmatpush.msra.mxu0 0.0
  %7018 = vmatpush.msra.mxu0 0.0
  %7019 = vmatpush.msra.mxu0 0.0
  %7020 = vmatpush.msra.mxu0 0.0
  %7021 = vmatpush.msra.mxu0 0.0
  %7022 = vmatpush.msra.mxu0 0.0
  %7023 = vmatpush.msra.mxu0 0.0
  %7024 = vmatpush.msra.mxu0 0.0
  %7025 = vmatpush.msra.mxu0 0.0
  %7026 = vmatpush.msra.mxu0 0.0
  %7027 = vmatpush.msra.mxu0 %v6803
  %7028 = vmatpush.msra.mxu0 %v6801
  %7029 = vmatpush.msra.mxu0 %v6799
  %7030 = vmatmul.f32.gmra.mxu0 %v6806
  %v7031 = vpop.f32.mrf.mxu0
  %v7032 = vadd.f32 0.0, %v7031
  %7033 = vmatmul.f32.gmra.mxu0 %v6809
  %v7034 = vpop.f32.mrf.mxu0
  %v7035 = vadd.f32 0.0, %v7034
  %7036 = vmatmul.f32.gmra.mxu0 %v6812
  %v7037 = vpop.f32.mrf.mxu0
  %v7038 = vadd.f32 0.0, %v7037
  %7039 = vmatmul.f32.gmra.mxu0 %v6815
  %v7040 = vpop.f32.mrf.mxu0
  %v7041 = vadd.f32 0.0, %v7040
  %7042 = vmatmul.f32.gmra.mxu0 %v6818
  %v7043 = vpop.f32.mrf.mxu0
  %v7044 = vadd.f32 0.0, %v7043
  %7045 = vmatmul.f32.gmra.mxu0 %v6821
  %v7046 = vpop.f32.mrf.mxu0
  %v7047 = vadd.f32 0.0, %v7046
  %7048 = vmatmul.f32.gmra.mxu0 %v6824
  %v7049 = vpop.f32.mrf.mxu0
  %v7050 = vadd.f32 0.0, %v7049
  %7051 = vmatmul.f32.gmra.mxu0 %v6827
  %v7052 = vpop.f32.mrf.mxu0
  %v7053 = vadd.f32 0.0, %v7052
  %7054 = vmatmul.f32.gmra.mxu0 %v6830
  %v7055 = vpop.f32.mrf.mxu0
  %v7056 = vadd.f32 0.0, %v7055
  %7057 = vmatmul.f32.gmra.mxu0 %v6833
  %v7058 = vpop.f32.mrf.mxu0
  %v7059 = vadd.f32 0.0, %v7058
  %7060 = vmatmul.f32.gmra.mxu0 %v6836
  %v7061 = vpop.f32.mrf.mxu0
  %v7062 = vadd.f32 0.0, %v7061
  %7063 = vmatmul.f32.gmra.mxu0 %v6839
  %v7064 = vpop.f32.mrf.mxu0
  %v7065 = vadd.f32 0.0, %v7064
  %7066 = vmatmul.f32.gmra.mxu0 %v6842
  %v7067 = vpop.f32.mrf.mxu0
  %v7068 = vadd.f32 0.0, %v7067
  %7069 = vmatmul.f32.gmra.mxu0 %v6845
  %v7070 = vpop.f32.mrf.mxu0
  %v7071 = vadd.f32 0.0, %v7070
  %7072 = vmatmul.f32.gmra.mxu0 %v6848
  %v7073 = vpop.f32.mrf.mxu0
  %v7074 = vadd.f32 0.0, %v7073
  %7075 = vmatmul.f32.gmra.mxu0 %v6851
  %v7076 = vpop.f32.mrf.mxu0
  %v7077 = vadd.f32 0.0, %v7076
  %7078 = vmatmul.f32.gmra.mxu0 %v6854
  %v7079 = vpop.f32.mrf.mxu0
  %v7080 = vadd.f32 0.0, %v7079
  %7081 = vmatmul.f32.gmra.mxu0 %v6857
  %v7082 = vpop.f32.mrf.mxu0
  %v7083 = vadd.f32 0.0, %v7082
  %7084 = vmatmul.f32.gmra.mxu0 %v6860
  %v7085 = vpop.f32.mrf.mxu0
  %v7086 = vadd.f32 0.0, %v7085
  %7087 = vmatmul.f32.gmra.mxu0 %v6863
  %v7088 = vpop.f32.mrf.mxu0
  %v7089 = vadd.f32 0.0, %v7088
  %7090 = vmatmul.f32.gmra.mxu0 %v6866
  %v7091 = vpop.f32.mrf.mxu0
  %v7092 = vadd.f32 0.0, %v7091
  %7093 = vmatmul.f32.gmra.mxu0 %v6869
  %v7094 = vpop.f32.mrf.mxu0
  %v7095 = vadd.f32 0.0, %v7094
  %7096 = vmatmul.f32.gmra.mxu0 %v6872
  %v7097 = vpop.f32.mrf.mxu0
  %v7098 = vadd.f32 0.0, %v7097
  %7099 = vmatmul.f32.gmra.mxu0 %v6875
  %v7100 = vpop.f32.mrf.mxu0
  %v7101 = vadd.f32 0.0, %v7100
  %7102 = vmatmul.f32.gmra.mxu0 %v6878
  %v7103 = vpop.f32.mrf.mxu0
  %v7104 = vadd.f32 0.0, %v7103
  %7105 = vmatmul.f32.gmra.mxu0 %v6881
  %v7106 = vpop.f32.mrf.mxu0
  %v7107 = vadd.f32 0.0, %v7106
  %7108 = vmatmul.f32.gmra.mxu0 %v6884
  %v7109 = vpop.f32.mrf.mxu0
  %v7110 = vadd.f32 0.0, %v7109
  %7111 = vmatmul.f32.gmra.mxu0 %v6887
  %v7112 = vpop.f32.mrf.mxu0
  %v7113 = vadd.f32 0.0, %v7112
  %7114 = vmatmul.f32.gmra.mxu0 %v6890
  %v7115 = vpop.f32.mrf.mxu0
  %v7116 = vadd.f32 0.0, %v7115
  %7117 = vmatmul.f32.gmra.mxu0 %v6893
  %v7118 = vpop.f32.mrf.mxu0
  %v7119 = vadd.f32 0.0, %v7118
  %7120 = vmatmul.f32.gmra.mxu0 %v6896
  %v7121 = vpop.f32.mrf.mxu0
  %v7122 = vadd.f32 0.0, %v7121
  %7123 = vmatmul.f32.gmra.mxu0 %v6899
  %v7124 = vpop.f32.mrf.mxu0
  %v7125 = vadd.f32 0.0, %v7124
  %7126 = vdwg.mxu0
  %7127 = vst [vmem:[%s11] sm:$0xff] %v6919
  %7128 = vst [vmem:[%s11 + $0x8] sm:$0xff] %v7032
  %7129 = vst [vmem:[%s11 + $0x10] sm:$0xff] %v6922
  %7130 = vst [vmem:[%s11 + $0x18] sm:$0xff] %v7035
  %7131 = vst [vmem:[%s11 + $0x20] sm:$0xff] %v6925
  %7132 = vst [vmem:[%s11 + $0x28] sm:$0xff] %v7038
  %7133 = vst [vmem:[%s11 + $0x30] sm:$0xff] %v6928
  %7134 = vst [vmem:[%s11 + $0x38] sm:$0xff] %v7041
  %7135 = vst [vmem:[%s11 + $0x40] sm:$0xff] %v6931
  %7136 = vst [vmem:[%s11 + $0x48] sm:$0xff] %v7044
  %7137 = vst [vmem:[%s11 + $0x50] sm:$0xff] %v6934
  %7138 = vst [vmem:[%s11 + $0x58] sm:$0xff] %v7047
  %7139 = vst [vmem:[%s11 + $0x60] sm:$0xff] %v6937
  %7140 = vst [vmem:[%s11 + $0x68] sm:$0xff] %v7050
  %7141 = vst [vmem:[%s11 + $0x70] sm:$0xff] %v6940
  %7142 = vst [vmem:[%s11 + $0x78] sm:$0xff] %v7053
  %7143 = vst [vmem:[%s11 + $0x80] sm:$0xff] %v6943
  %7144 = vst [vmem:[%s11 + $0x88] sm:$0xff] %v7056
  %7145 = vst [vmem:[%s11 + $0x90] sm:$0xff] %v6946
  %7146 = vst [vmem:[%s11 + $0x98] sm:$0xff] %v7059
  %7147 = vst [vmem:[%s11 + $0xa0] sm:$0xff] %v6949
  %7148 = vst [vmem:[%s11 + $0xa8] sm:$0xff] %v7062
  %7149 = vst [vmem:[%s11 + $0xb0] sm:$0xff] %v6952
  %7150 = vst [vmem:[%s11 + $0xb8] sm:$0xff] %v7065
  %7151 = vst [vmem:[%s11 + $0xc0] sm:$0xff] %v6955
  %7152 = vst [vmem:[%s11 + $0xc8] sm:$0xff] %v7068
  %7153 = vst [vmem:[%s11 + $0xd0] sm:$0xff] %v6958
  %7154 = vst [vmem:[%s11 + $0xd8] sm:$0xff] %v7071
  %7155 = vst [vmem:[%s11 + $0xe0] sm:$0xff] %v6961
  %7156 = vst [vmem:[%s11 + $0xe8] sm:$0xff] %v7074
  %7157 = vst [vmem:[%s11 + $0xf0] sm:$0xff] %v6964
  %7158 = vst [vmem:[%s11 + $0xf8] sm:$0xff] %v7077
  %7159 = vst [vmem:[%s11 + $0x100] sm:$0xff] %v6967
  %7160 = vst [vmem:[%s11 + $0x108] sm:$0xff] %v7080
  %7161 = vst [vmem:[%s11 + $0x110] sm:$0xff] %v6970
  %7162 = vst [vmem:[%s11 + $0x118] sm:$0xff] %v7083
  %7163 = vst [vmem:[%s11 + $0x120] sm:$0xff] %v6973
  %7164 = vst [vmem:[%s11 + $0x128] sm:$0xff] %v7086
  %7165 = vst [vmem:[%s11 + $0x130] sm:$0xff] %v6976
  %7166 = vst [vmem:[%s11 + $0x138] sm:$0xff] %v7089
  %7167 = vst [vmem:[%s11 + $0x140] sm:$0xff] %v6979
  %7168 = vst [vmem:[%s11 + $0x148] sm:$0xff] %v7092
  %7169 = vst [vmem:[%s11 + $0x150] sm:$0xff] %v6982
  %7170 = vst [vmem:[%s11 + $0x158] sm:$0xff] %v7095
  %7171 = vst [vmem:[%s11 + $0x160] sm:$0xff] %v6985
  %7172 = vst [vmem:[%s11 + $0x168] sm:$0xff] %v7098
  %7173 = vst [vmem:[%s11 + $0x170] sm:$0xff] %v6988
  %7174 = vst [vmem:[%s11 + $0x178] sm:$0xff] %v7101
  %7175 = vst [vmem:[%s11 + $0x180] sm:$0xff] %v6991
  %7176 = vst [vmem:[%s11 + $0x188] sm:$0xff] %v7104
  %7177 = vst [vmem:[%s11 + $0x190] sm:$0xff] %v6994
  %7178 = vst [vmem:[%s11 + $0x198] sm:$0xff] %v7107
  %7179 = vst [vmem:[%s11 + $0x1a0] sm:$0xff] %v6997
  %7180 = vst [vmem:[%s11 + $0x1a8] sm:$0xff] %v7110
  %7181 = vst [vmem:[%s11 + $0x1b0] sm:$0xff] %v7000
  %7182 = vst [vmem:[%s11 + $0x1b8] sm:$0xff] %v7113
  %7183 = vst [vmem:[%s11 + $0x1c0] sm:$0xff] %v7003
  %7184 = vst [vmem:[%s11 + $0x1c8] sm:$0xff] %v7116
  %7185 = vst [vmem:[%s11 + $0x1d0] sm:$0xff] %v7006
  %7186 = vst [vmem:[%s11 + $0x1d8] sm:$0xff] %v7119
  %7187 = vst [vmem:[%s11 + $0x1e0] sm:$0xff] %v7009
  %7188 = vst [vmem:[%s11 + $0x1e8] sm:$0xff] %v7122
  %7189 = vst [vmem:[%s11 + $0x1f0] sm:$0xff] %v7012
  %7190 = vst [vmem:[%s11 + $0x1f8] sm:$0xff] %v7125
  // Predicated region
  $region42: #{base_backbone_embeddings.1} parent=0 // pred_check
    _
  $region43: #{base_backbone_embeddings.1} parent=0 // pred_check_branch
    %7192 = sbr.rel (0) target = $region45
  $region44: #{base_backbone_embeddings.1} parent=0 // pred_region
    _
  $region45: #{base_backbone_embeddings.1} parent=0 // pred_fallthru
    _
  // Predicated region
  $region46: #{base_backbone_embeddings.1} parent=0 // pred_check
    _
  $region47: #{base_backbone_embeddings.1} parent=0 // pred_check_branch
    %7194 = sbr.rel (0) target = $region49
  $region48: #{base_backbone_embeddings.1} parent=0 // pred_region
    _
  $region49: #{base_backbone_embeddings.1} parent=0 // pred_fallthru
    _
  // Predicated region
  $region50: #{base_backbone_embeddings.1} parent=0 // pred_check
    _
  $region51: #{base_backbone_embeddings.1} parent=0 // pred_check_branch
    %7196 = sbr.rel (0) target = $region53
  $region52: #{base_backbone_embeddings.1} parent=0 // pred_region
    _
  $region53: #{base_backbone_embeddings.1} parent=0 // pred_fallthru
    _
  // Predicated region
  $region54: #{base_backbone_embeddings.1} parent=0 // pred_check
    _
  $region55: #{base_backbone_embeddings.1} parent=0 // pred_check_branch
    %7198 = sbr.rel (0) target = $region57
  $region56: #{base_backbone_embeddings.1} parent=0 // pred_region
    _
  $region57: #{base_backbone_embeddings.1} parent=0 // pred_fallthru
    _

</llo_original>
